<compile_context>
chip_gen: v7x
topology: tpu7x:2x2x1
jax: 0.10.0
libtpu: 0.0.40
codegen_flags: <defaults>
</compile_context>

<pallas_src>
import jax
import jax.numpy as jnp
from jax.experimental import pallas as pl
from jax.experimental.pallas import tpu as pltpu

EPS = 1e-5
LANE = 128

_VMEM_LIMIT_CACHE = None


# ------------------------------ small helpers ------------------------------- #

def _vmem_limit_bytes():
    """Per-generation scoped-VMEM limit: 96 MiB on 128-MiB chips (v5e/v6e), 32 MiB otherwise."""
    global _VMEM_LIMIT_CACHE
    if _VMEM_LIMIT_CACHE is None:
        try:
            cap = int(getattr(pltpu.get_tpu_info(), "vmem_capacity_bytes", 64 << 20))
        except Exception:
            cap = 64 << 20
        _VMEM_LIMIT_CACHE = (96 << 20) if cap >= (100 << 20) else (32 << 20)
    return _VMEM_LIMIT_CACHE


def _rup(c):
    return max(LANE, ((c + LANE - 1) // LANE) * LANE)


def _padv(v, c):
    return jnp.pad(v, (0, c - v.shape[0]))


def _pad2(a, r, c):
    return jnp.pad(a, ((0, r - a.shape[0]), (0, c - a.shape[1])))


def _pad_rows(a, rows):
    if a.shape[0] == rows:
        return a
    return jnp.pad(a, ((0, rows - a.shape[0]), (0, 0)))


def _pick_tile(m, max_rows):
    """Return (row_tile, padded_rows). Prefer a divisor tile (multiple of 8) giving >=2 grid
    steps so the 'parallel' row axis can shard across cores; otherwise pad + mask the tail
    (never a single whole-array block)."""
    cands = [t for t in (1024, 512, 384, 256, 128, 64, 32, 16, 8) if t <= max_rows]
    fallback = None
    for t in cands:
        if m % t == 0:
            if m // t >= 2:
                return t, m
            if fallback is None:
                fallback = t
    if fallback is not None:
        return fallback, m
    t = min(max_rows, 256) if m >= 256 else max(8, ((m + 7) // 8) * 8)
    return t, ((m + t - 1) // t) * t


# ----------------------------- Pallas kernels ------------------------------- #

def _make_bn1_conv1_kernel(tm, m_valid, need_mask):
    """bn1 + ReLU + conv1(1x1). Emits y1 (bf16) and bn2 partial stats from the f32 accumulator."""

    def kernel(x_ref, s1_ref, b1_ref, w1_ref, y1_ref, sum_ref, sq_ref):
        a = jnp.maximum(x_ref[...].astype(jnp.float32) * s1_ref[...] + b1_ref[...], 0.0)
        y = jnp.dot(a.astype(jnp.bfloat16), w1_ref[...],
                    preferred_element_type=jnp.float32)
        y1_ref[...] = y.astype(jnp.bfloat16)
        ys = y
        if need_mask:
            # Padded tail rows (ragged m) must not contribute to bn2's batch statistics.
            rows = pl.program_id(0) * tm + jax.lax.broadcasted_iota(jnp.int32, (tm, 1), 0)
            ys = jnp.where(rows < m_valid, y, 0.0)
        # Per-tile channel sums for bn2, replicated across 8 sublanes for a lane+sublane-dense
        # store; the wrapper divides the grand total by 8.
        cs = jnp.sum(ys, axis=0, keepdims=True)
        cq = jnp.sum(ys * ys, axis=0, keepdims=True)
        sum_ref[...] = jnp.broadcast_to(cs, sum_ref.shape)
        sq_ref[...] = jnp.broadcast_to(cq, sq_ref.shape)

    return kernel


def _make_conv2_s1_kernel(h, w, cmid):
    """3x3 conv, stride 1, padding 1, fused with bn2+ReLU. One grid step per image; bn2/ReLU
    applied once per plane into a zero-ringed VMEM scratch, 9 taps statically unrolled."""
    ho, wo = h, w

    def kernel(y1_ref, s2_ref, b2_ref, w2_ref, y2_ref, sum_ref, sq_ref, pad_ref):
        # bn2 + ReLU hoisted out of the tap loop (computed exactly once per image).
        act = jnp.maximum(y1_ref[0].astype(jnp.float32) * s2_ref[...] + b2_ref[...], 0.0)
        # Zero-ringed padded copy in VMEM: re-zeroed every grid step so correctness holds when
        # the 'parallel' batch axis is sharded across TensorCores (each core owns its scratch).
        pad_ref[...] = jnp.zeros_like(pad_ref)
        pad_ref[pl.ds(1, h), pl.ds(1, w), :] = act.astype(jnp.bfloat16)

        acc = jnp.zeros((ho * wo, cmid), jnp.float32)
        for t in range(9):                      # statically unrolled taps: static slice offsets
            ky, kx = t // 3, t % 3
            win = pad_ref[pl.ds(ky, ho), pl.ds(kx, wo), :]
            # TODO(synk): when wo is not a multiple of 8 this reshape relayouts per tap; keep a
            # 3-D accumulator / pad wo for those shapes.
            acc = acc + jnp.dot(win.reshape(ho * wo, cmid), w2_ref[t],
                                preferred_element_type=jnp.float32)

        y2_ref[...] = acc.astype(jnp.bfloat16)
        # bn3 batch stats from the f32 accumulator (avoids bf16 cancellation on the stats path).
        cs = jnp.sum(acc, axis=0, keepdims=True)
        cq = jnp.sum(acc * acc, axis=0, keepdims=True)
        sum_ref[...] = jnp.broadcast_to(cs, sum_ref.shape)
        sq_ref[...] = jnp.broadcast_to(cq, sq_ref.shape)

    return kernel


def _make_conv2_sN_kernel(s, h, w, ho, wo, hs, ws, cmid):
    """3x3 conv, stride s>=2, padding 1, fused with bn2+ReLU. Input arrives as all s*s
    phase planes of one image in a single block; bn2/ReLU + pad-ring mask are applied once
    per phase plane, then the 9 statically-unrolled taps slice contiguously."""

    def kernel(yp_ref, s2_ref, b2_ref, w2_ref, y2_ref, sum_ref, sq_ref):
        s2 = s2_ref[...]
        b2 = b2_ref[...]
        ai = jax.lax.broadcasted_iota(jnp.int32, (hs, ws, 1), 0)
        bi = jax.lax.broadcasted_iota(jnp.int32, (hs, ws, 1), 1)
        acts = []
        for p in range(s * s):
            py, px = p // s, p % s
            a = jnp.maximum(yp_ref[0, p].astype(jnp.float32) * s2 + b2, 0.0)
            # Positions from conv2's zero-pad ring must contribute 0 (bn2 bias would leak);
            # the mask is static per phase and applied ONCE (not per tap).
            rr = ai * s + py
            cc = bi * s + px
            valid = (rr >= 1) & (rr <= h) & (cc >= 1) & (cc <= w)
            acts.append(jnp.where(valid, a, 0.0).astype(jnp.bfloat16))

        acc = jnp.zeros((ho * wo, cmid), jnp.float32)
        for t in range(9):                      # statically unrolled taps
            ky, kx = t // 3, t % 3
            p = (ky % s) * s + (kx % s)
            dy, dx = ky // s, kx // s
            win = acts[p][dy:dy + ho, dx:dx + wo, :]
            acc = acc + jnp.dot(win.reshape(ho * wo, cmid), w2_ref[t],
                                preferred_element_type=jnp.float32)

        y2_ref[...] = acc.astype(jnp.bfloat16)
        cs = jnp.sum(acc, axis=0, keepdims=True)
        cq = jnp.sum(acc * acc, axis=0, keepdims=True)
        sum_ref[...] = jnp.broadcast_to(cs, sum_ref.shape)
        sq_ref[...] = jnp.broadcast_to(cq, sq_ref.shape)

    return kernel


def _bn3_conv3_proj_kernel(y2_ref, s3_ref, b3_ref, w3_ref,
                           xs_ref, s1_ref, b1_ref, w4_ref, out_ref):
    a3 = jnp.maximum(y2_ref[...].astype(jnp.float32) * s3_ref[...] + b3_ref[...], 0.0)
    out = jnp.dot(a3.astype(jnp.bfloat16), w3_ref[...],
                  preferred_element_type=jnp.float32)
    # Projection residual: recompute relu(bn1(x)) on the (already strided, bf16) x tile and run
    # conv4 as a second MXU dot in the same kernel — out1 never hits HBM.
    a1 = jnp.maximum(xs_ref[...].astype(jnp.float32) * s1_ref[...] + b1_ref[...], 0.0)
    out = out + jnp.dot(a1.astype(jnp.bfloat16), w4_ref[...],
                        preferred_element_type=jnp.float32)
    out_ref[...] = out


def _bn3_conv3_id_kernel(y2_ref, s3_ref, b3_ref, w3_ref, res_ref, out_ref):
    a3 = jnp.maximum(y2_ref[...].astype(jnp.float32) * s3_ref[...] + b3_ref[...], 0.0)
    out_ref[...] = jnp.dot(a3.astype(jnp.bfloat16), w3_ref[...],
                           preferred_element_type=jnp.float32) + res_ref[...].astype(jnp.float32)


# ------------------------------ forward pass -------------------------------- #

def residual_block_forward(x_nchw, p, stride):
    n, cin, h, w = x_nchw.shape
    cout = p["w3"].shape[0]
    cm = p["w1"].shape[0]
    cinp, cmid, coutp = _rup(cin), _rup(cm), _rup(cout)
    s = int(stride)
    f32, bf16 = jnp.float32, jnp.bfloat16

    vmem_limit = _vmem_limit_bytes()
    max_rows = 1024 if vmem_limit >= (64 << 20) else 512
    params_rows = pltpu.CompilerParams(dimension_semantics=("parallel",),
                                       vmem_limit_bytes=vmem_limit)

    x = jnp.transpose(x_nchw, (0, 2, 3, 1)).astype(f32)              # NHWC, f32 (bn1 stats only)

    # bn1: training-mode batch statistics over the raw input, folded to scale/bias.
    mean1 = jnp.mean(x, axis=(0, 1, 2))
    var1 = jnp.var(x, axis=(0, 1, 2))
    sc1 = p["g1"] / jnp.sqrt(var1 + EPS)
    bi1 = p["be1"] - mean1 * sc1
    s1 = _padv(sc1, cinp).reshape(1, cinp)
    b1 = _padv(bi1, cinp).reshape(1, cinp)

    # Channel-pad + bf16-cast the input once: halves the HBM stream feeding kernels A and C.
    xp = jnp.pad(x, ((0, 0), (0, 0), (0, 0), (0, cinp - cin))).astype(bf16)
    m = n * h * w
    x2d = xp.reshape(m, cinp)

    # PyTorch OIHW conv weights -> bf16 matmul slabs (zero-padded channels).
    w1 = _pad2(p["w1"][:, :, 0, 0].T, cinp, cmid).astype(bf16)                 # (cinp, cmid)
    w2 = jnp.transpose(p["w2"], (2, 3, 1, 0)).reshape(9, cm, cm)
    w2 = jnp.pad(w2, ((0, 0), (0, cmid - cm), (0, cmid - cm))).astype(bf16)    # (9, cmid, cmid)
    w3 = _pad2(p["w3"][:, :, 0, 0].T, cmid, coutp).astype(bf16)                # (cmid, coutp)
    w4 = _pad2(p["w4"][:, :, 0, 0].T, cinp, coutp).astype(bf16)                # (cinp, coutp)

    # ---- kernel A: bn1 + relu + conv1 (1x1); emits y1 (bf16) and bn2 partial stats ----
    tm, m_pad = _pick_tile(m, max_rows)
    gm = m_pad // tm
    y1_2d, a_sum, a_sq = pl.pallas_call(
        _make_bn1_conv1_kernel(tm, m, m_pad != m),
        grid=(gm,),
        in_specs=[pl.BlockSpec((tm, cinp), lambda i: (i, 0)),
                  pl.BlockSpec((1, cinp), lambda i: (0, 0)),
                  pl.BlockSpec((1, cinp), lambda i: (0, 0)),
                  pl.BlockSpec((cinp, cmid), lambda i: (0, 0))],
        out_specs=[pl.BlockSpec((tm, cmid), lambda i: (i, 0)),
                   pl.BlockSpec((8, cmid), lambda i: (i, 0)),
                   pl.BlockSpec((8, cmid), lambda i: (i, 0))],
        out_shape=[jax.ShapeDtypeStruct((m_pad, cmid), bf16),
                   jax.ShapeDtypeStruct((gm * 8, cmid), f32),
                   jax.ShapeDtypeStruct((gm * 8, cmid), f32)],
        compiler_params=params_rows,
    )(_pad_rows(x2d, m_pad), s1, b1, w1)

    # Fold bn2 from the in-kernel partial sums (each tile's sum is replicated 8x).
    mean2 = jnp.sum(a_sum, axis=0) / (8.0 * m)
    ex2 = jnp.sum(a_sq, axis=0) / (8.0 * m)
    var2 = jnp.maximum(ex2 - mean2 * mean2, 0.0)
    sc2 = _padv(p["g2"], cmid) / jnp.sqrt(var2 + EPS)
    bi2 = _padv(p["be2"], cmid) - mean2 * sc2

    ho = (h + 2 - 3) // s + 1
    wo = (w + 2 - 3) // s + 1
    mo = n * ho * wo
    y1_4d = (y1_2d[:m] if m_pad != m else y1_2d).reshape(n, h, w, cmid)   # reshape only, no copy

    stat_b = [pl.BlockSpec((8, cmid), lambda b: (b, 0)),
              pl.BlockSpec((8, cmid), lambda b: (b, 0))]
    out_b = [jax.ShapeDtypeStruct((mo, cmid), bf16),
             jax.ShapeDtypeStruct((n * 8, cmid), f32),
             jax.ShapeDtypeStruct((n * 8, cmid), f32)]

    # ---- kernel B: conv2 (3x3, stride, pad=1) + bn2/ReLU, one grid step per image ----
    # TODO(synk): add an output-row spatial tile (halo'd via manual DMA) for very large planes
    # so v7x's 64 MiB VMEM and 2 TensorCores stay happy when batch is small.
    if s == 1:
        y2_2d, b_sum, b_sq = pl.pallas_call(
            _make_conv2_s1_kernel(h, w, cmid),
            grid=(n,),
            in_specs=[pl.BlockSpec((1, h, w, cmid), lambda b: (b, 0, 0, 0)),
                      pl.BlockSpec((1, 1, cmid), lambda b: (0, 0, 0)),
                      pl.BlockSpec((1, 1, cmid), lambda b: (0, 0, 0)),
                      pl.BlockSpec((9, cmid, cmid), lambda b: (0, 0, 0))],
            out_specs=[pl.BlockSpec((ho * wo, cmid), lambda b: (b, 0))] + stat_b,
            out_shape=out_b,
            scratch_shapes=[pltpu.VMEM((h + 2, w + 2, cmid), bf16)],
            compiler_params=params_rows,
        )(y1_4d, sc2.reshape(1, 1, cmid), bi2.reshape(1, 1, cmid), w2)
    else:
        # TODO(synk): the stride>1 phase split (pad + space-to-depth) is one fused XLA pass over
        # y1; BlockSpec index_maps cannot express strided element selection inside a dim.
        hp = ((h + 2 + s - 1) // s) * s
        wp = ((w + 2 + s - 1) // s) * s
        hs, ws = hp // s, wp // s
        y1p = jnp.pad(y1_4d, ((0, 0), (1, hp - h - 1), (1, wp - w - 1), (0, 0)))
        yp = y1p.reshape(n, hs, s, ws, s, cmid).transpose(0, 2, 4, 1, 3, 5)
        yp = yp.reshape(n, s * s, hs, ws, cmid)   # all phases of an image land in ONE block
        y2_2d, b_sum, b_sq = pl.pallas_call(
            _make_conv2_sN_kernel(s, h, w, ho, wo, hs, ws, cmid),
            grid=(n,),
            in_specs=[pl.BlockSpec((1, s * s, hs, ws, cmid), lambda b: (b, 0, 0, 0, 0)),
                      pl.BlockSpec((1, 1, cmid), lambda b: (0, 0, 0)),
                      pl.BlockSpec((1, 1, cmid), lambda b: (0, 0, 0)),
                      pl.BlockSpec((9, cmid, cmid), lambda b: (0, 0, 0))],
            out_specs=[pl.BlockSpec((ho * wo, cmid), lambda b: (b, 0))] + stat_b,
            out_shape=out_b,
            compiler_params=params_rows,
        )(yp, sc2.reshape(1, 1, cmid), bi2.reshape(1, 1, cmid), w2)

    # Fold bn3 from kernel B's partial sums (f32 accumulator based).
    mean3 = jnp.sum(b_sum, axis=0) / (8.0 * mo)
    ex3 = jnp.sum(b_sq, axis=0) / (8.0 * mo)
    var3 = jnp.maximum(ex3 - mean3 * mean3, 0.0)
    sc3v = _padv(p["g3"], cmid) / jnp.sqrt(var3 + EPS)
    bi3v = _padv(p["be3"], cmid) - mean3 * sc3v
    sc3 = sc3v.reshape(1, cmid)
    bi3 = bi3v.reshape(1, cmid)

    # ---- kernel C: bn3 + relu + conv3 (1x1) + residual (projection fused in-kernel) ----
    tmo, mo_pad = _pick_tile(mo, max_rows)
    gmo = mo_pad // tmo
    y2k = _pad_rows(y2_2d, mo_pad)
    proj = (cin != cout) or (s != 1)
    if proj:
        if s == 1:
            xs2d = x2d
        else:
            # TODO(synk): strided residual subsample stays XLA glue; index_map can't stride
            # inside the last two dims.
            xs2d = xp[:, ::s, ::s, :].reshape(mo, cinp)
        out2d = pl.pallas_call(
            _bn3_conv3_proj_kernel,
            grid=(gmo,),
            in_specs=[pl.BlockSpec((tmo, cmid), lambda i: (i, 0)),
                      pl.BlockSpec((1, cmid), lambda i: (0, 0)),
                      pl.BlockSpec((1, cmid), lambda i: (0, 0)),
                      pl.BlockSpec((cmid, coutp), lambda i: (0, 0)),
                      pl.BlockSpec((tmo, cinp), lambda i: (i, 0)),
                      pl.BlockSpec((1, cinp), lambda i: (0, 0)),
                      pl.BlockSpec((1, cinp), lambda i: (0, 0)),
                      pl.BlockSpec((cinp, coutp), lambda i: (0, 0))],
            out_specs=pl.BlockSpec((tmo, coutp), lambda i: (i, 0)),
            out_shape=jax.ShapeDtypeStruct((mo_pad, coutp), f32),
            compiler_params=params_rows,
        )(y2k, sc3, bi3, w3, _pad_rows(xs2d, mo_pad), s1, b1, w4)
    else:
        out2d = pl.pallas_call(
            _bn3_conv3_id_kernel,
            grid=(gmo,),
            in_specs=[pl.BlockSpec((tmo, cmid), lambda i: (i, 0)),
                      pl.BlockSpec((1, cmid), lambda i: (0, 0)),
                      pl.BlockSpec((1, cmid), lambda i: (0, 0)),
                      pl.BlockSpec((cmid, coutp), lambda i: (0, 0)),
                      pl.BlockSpec((tmo, coutp), lambda i: (i, 0))],
            out_specs=pl.BlockSpec((tmo, coutp), lambda i: (i, 0)),
            out_shape=jax.ShapeDtypeStruct((mo_pad, coutp), f32),
            compiler_params=params_rows,
        )(y2k, sc3, bi3, w3, _pad_rows(x2d, mo_pad))

    # TODO(synk): if the consumer accepts channels-last / padded channels / bf16, skip this
    # un-pad + NCHW transpose (pure XLA glue traffic).
    out = (out2d[:mo] if mo_pad != mo else out2d).reshape(n, ho, wo, coutp)[..., :cout]
    return jnp.transpose(out, (0, 3, 1, 2)).astype(x_nchw.dtype)     # back to NCHW


# ------------------------------- reference ---------------------------------- #

def reference_forward(x, p, stride):
    cin = x.shape[1]
    cout = p["w3"].shape[0]

    def bn(t, g, b):
        mn = jnp.mean(t, axis=(0, 2, 3), keepdims=True)
        v = jnp.var(t, axis=(0, 2, 3), keepdims=True)
        return (t - mn) / jnp.sqrt(v + EPS) * g.reshape(1, -1, 1, 1) + b.reshape(1, -1, 1, 1)

    def conv(t, wgt, s, pd):
        return jax.lax.conv_general_dilated(
            t, wgt, (s, s), [(pd, pd), (pd, pd)],
            dimension_numbers=("NCHW", "OIHW", "NCHW"),
            precision=jax.lax.Precision.HIGHEST)

    residual = x
    out1 = jnp.maximum(bn(x, p["g1"], p["be1"]), 0.0)
    out = conv(out1, p["w1"], 1, 0)
    out = jnp.maximum(bn(out, p["g2"], p["be2"]), 0.0)
    out = conv(out, p["w2"], stride, 1)
    out = jnp.maximum(bn(out, p["g3"], p["be3"]), 0.0)
    out = conv(out, p["w3"], 1, 0)
    if cin != cout or stride != 1:
        residual = conv(out1, p["w4"], stride, 0)
    return out + residual


# ------------------------------- params init -------------------------------- #

def init_params(key, cin, cout):
    cm = max(cout // 4, 1)
    ks = jax.random.split(key, 10)
    f32 = jnp.float32
    return {
        "g1": 1.0 + 0.1 * jax.random.normal(ks[0], (cin,), f32),
        "be1": 0.1 * jax.random.normal(ks[1], (cin,), f32),
        "w1": 0.3 * jax.random.normal(ks[2], (cm, cin, 1, 1), f32),
        "g2": 1.0 + 0.1 * jax.random.normal(ks[3], (cm,), f32),
        "be2": 0.1 * jax.random.normal(ks[4], (cm,), f32),
        "w2": 0.3 * jax.random.normal(ks[5], (cm, cm, 3, 3), f32),
        "g3": 1.0 + 0.1 * jax.random.normal(ks[6], (cm,), f32),
        "be3": 0.1 * jax.random.normal(ks[7], (cm,), f32),
        "w3": 0.3 * jax.random.normal(ks[8], (cout, cm, 1, 1), f32),
        "w4": 0.3 * jax.random.normal(ks[9], (cout, cin, 1, 1), f32),
    }


# ---------------------------------- main ------------------------------------ #

if __name__ == "__main__":
    key = jax.random.PRNGKey(0)
    kx, kp = jax.random.split(key)

    n, cin, h, w = 2, 4, 16, 16
    x = jax.random.normal(kx, (n, cin, h, w), jnp.float32)

    fwd = jax.jit(residual_block_forward, static_argnums=2)

    # MXU operands and the x/y1/y2 streams are deliberately bf16 (f32 accumulation), so compare
    # against the f32/HIGHEST reference with a tolerance covering bf16 rounding across the
    # bn1->conv1->bn2->conv2->bn3->conv3 chain.
    tol = dict(atol=8e-2, rtol=8e-2)

    # case 1 & 2: projection residual (cin != cout), stride 1 and 2
    cout = 8
    params = init_params(kp, cin, cout)
    for stride in (1, 2):
        out = jax.block_until_ready(fwd(x, params, stride))
        ref = reference_forward(x, params, stride)
        assert out.shape == ref.shape, (out.shape, ref.shape)
        err = float(jnp.max(jnp.abs(out - ref)))
        assert bool(jnp.allclose(out, ref, **tol)), f"mismatch (stride={stride}): {err}"

    # case 3: identity residual (cin == cout, stride 1)
    params_id = init_params(kp, cin, cin)
    out = jax.block_until_ready(fwd(x, params_id, 1))
    ref = reference_forward(x, params_id, 1)
    assert out.shape == ref.shape
    assert bool(jnp.allclose(out, ref, **tol)), float(jnp.max(jnp.abs(out - ref)))

    print("KERNEL_OK")
</pallas_src>

<mosaic_0001>
module attributes {stable_mosaic.version = 11 : i64} {
  func.func @kernel(%arg0: i32, %arg1: memref<256x128xbf16, #tpu.memory_space<vmem>>, %arg2: memref<1x128xf32, #tpu.memory_space<vmem>>, %arg3: memref<1x128xf32, #tpu.memory_space<vmem>>, %arg4: memref<128x128xbf16, #tpu.memory_space<vmem>>, %arg5: memref<256x128xbf16, #tpu.memory_space<vmem>>, %arg6: memref<8x128xf32, #tpu.memory_space<vmem>>, %arg7: memref<8x128xf32, #tpu.memory_space<vmem>>) attributes {dimension_semantics = [#tpu.dimension_semantics<parallel>], iteration_bounds = array<i64: 2>, scalar_prefetch = 0 : i64, scratch_operands = 0 : i64, tpu.core_type = #tpu.core_type<tc>, window_params = [{transform_indices = @transform_0, window_bounds = array<i64: 256, 128>}, {pipeline_mode = #tpu.pipeline_mode<synchronous>, transform_indices = @transform_1, window_bounds = array<i64: 1, 128>}, {pipeline_mode = #tpu.pipeline_mode<synchronous>, transform_indices = @transform_2, window_bounds = array<i64: 1, 128>}, {pipeline_mode = #tpu.pipeline_mode<synchronous>, transform_indices = @transform_3, window_bounds = array<i64: 128, 128>}, {transform_indices = @transform_4, window_bounds = array<i64: 256, 128>}, {transform_indices = @transform_5, window_bounds = array<i64: 8, 128>}, {transform_indices = @transform_6, window_bounds = array<i64: 8, 128>}]} {
    %c0 = arith.constant 0 : index
    %c0_0 = arith.constant 0 : index
    %0 = vector.load %arg1[%c0, %c0_0] : memref<256x128xbf16, #tpu.memory_space<vmem>>, vector<256x128xbf16>
    %1 = arith.extf %0 : vector<256x128xbf16> to vector<256x128xf32>
    %c0_1 = arith.constant 0 : index
    %c0_2 = arith.constant 0 : index
    %2 = vector.load %arg2[%c0_1, %c0_2] : memref<1x128xf32, #tpu.memory_space<vmem>>, vector<1x128xf32>
    %3 = vector.broadcast %2 : vector<1x128xf32> to vector<256x128xf32>
    %4 = arith.mulf %1, %3 : vector<256x128xf32>
    %c0_3 = arith.constant 0 : index
    %c0_4 = arith.constant 0 : index
    %5 = vector.load %arg3[%c0_3, %c0_4] : memref<1x128xf32, #tpu.memory_space<vmem>>, vector<1x128xf32>
    %6 = vector.broadcast %5 : vector<1x128xf32> to vector<256x128xf32>
    %7 = arith.addf %4, %6 : vector<256x128xf32>
    %cst = arith.constant 0.000000e+00 : f32
    %8 = vector.broadcast %cst : f32 to vector<256x128xf32>
    %9 = arith.maximumf %7, %8 : vector<256x128xf32>
    %10 = arith.truncf %9 : vector<256x128xf32> to vector<256x128xbf16>
    %c0_5 = arith.constant 0 : index
    %c0_6 = arith.constant 0 : index
    %11 = vector.load %arg4[%c0_5, %c0_6] : memref<128x128xbf16, #tpu.memory_space<vmem>>, vector<128x128xbf16>
    %cst_7 = arith.constant dense<0.000000e+00> : vector<256x128xf32>
    %12 = tpu.matmul %10, %11, %cst_7 {dimension_numbers = #tpu.dot_dimension_numbers<[1], [0], [0], [1], [0, 0, 1, 1], [], []>} : vector<256x128xbf16>, vector<128x128xbf16>, vector<256x128xf32> -> vector<256x128xf32>
    %13 = arith.truncf %12 : vector<256x128xf32> to vector<256x128xbf16>
    %c0_8 = arith.constant 0 : index
    %c0_9 = arith.constant 0 : index
    %14 = vector.load %arg5[%c0_8, %c0_9] : memref<256x128xbf16, #tpu.memory_space<vmem>>, vector<256x128xbf16>
    tpu.vector_store %arg5[%c0_8, %c0_9], %13 {strides = array<i32>} : memref<256x128xbf16, #tpu.memory_space<vmem>>, vector<256x128xbf16>,
    %cst_10 = arith.constant dense<0.000000e+00> : vector<128xf32>
    %15 = vector.multi_reduction <add>, %12, %cst_10 [0] : vector<256x128xf32> to vector<128xf32>
    %16 = vector.shape_cast %15 : vector<128xf32> to vector<1x128xf32>
    %17 = arith.mulf %12, %12 : vector<256x128xf32>
    %cst_11 = arith.constant dense<0.000000e+00> : vector<128xf32>
    %18 = vector.multi_reduction <add>, %17, %cst_11 [0] : vector<256x128xf32> to vector<128xf32>
    %19 = vector.shape_cast %18 : vector<128xf32> to vector<1x128xf32>
    %20 = vector.shape_cast %16 : vector<1x128xf32> to vector<1x128xf32>
    %21 = vector.broadcast %20 : vector<1x128xf32> to vector<8x128xf32>
    %c0_12 = arith.constant 0 : index
    %c0_13 = arith.constant 0 : index
    %22 = vector.load %arg6[%c0_12, %c0_13] : memref<8x128xf32, #tpu.memory_space<vmem>>, vector<8x128xf32>
    tpu.vector_store %arg6[%c0_12, %c0_13], %21 {strides = array<i32>} : memref<8x128xf32, #tpu.memory_space<vmem>>, vector<8x128xf32>,
    %23 = vector.shape_cast %19 : vector<1x128xf32> to vector<1x128xf32>
    %24 = vector.broadcast %23 : vector<1x128xf32> to vector<8x128xf32>
    %c0_14 = arith.constant 0 : index
    %c0_15 = arith.constant 0 : index
    %25 = vector.load %arg7[%c0_14, %c0_15] : memref<8x128xf32, #tpu.memory_space<vmem>>, vector<8x128xf32>
    tpu.vector_store %arg7[%c0_14, %c0_15], %24 {strides = array<i32>} : memref<8x128xf32, #tpu.memory_space<vmem>>, vector<8x128xf32>,
    return
  }
  func.func @transform_0(%arg0: i32) -> (i32, i32) {
    %c0_i32 = arith.constant 0 : i32
    %c0_i32_0 = arith.constant 0 : i32
    return %arg0, %c0_i32 : i32, i32
  }
  func.func @transform_1(%arg0: i32) -> (i32, i32) {
    %c0_i32 = arith.constant 0 : i32
    %c0_i32_0 = arith.constant 0 : i32
    %c0_i32_1 = arith.constant 0 : i32
    return %c0_i32, %c0_i32_0 : i32, i32
  }
  func.func @transform_2(%arg0: i32) -> (i32, i32) {
    %c0_i32 = arith.constant 0 : i32
    %c0_i32_0 = arith.constant 0 : i32
    %c0_i32_1 = arith.constant 0 : i32
    return %c0_i32, %c0_i32_0 : i32, i32
  }
  func.func @transform_3(%arg0: i32) -> (i32, i32) {
    %c0_i32 = arith.constant 0 : i32
    %c0_i32_0 = arith.constant 0 : i32
    %c0_i32_1 = arith.constant 0 : i32
    return %c0_i32, %c0_i32_0 : i32, i32
  }
  func.func @transform_4(%arg0: i32) -> (i32, i32) {
    %c0_i32 = arith.constant 0 : i32
    %c0_i32_0 = arith.constant 0 : i32
    return %arg0, %c0_i32 : i32, i32
  }
  func.func @transform_5(%arg0: i32) -> (i32, i32) {
    %c0_i32 = arith.constant 0 : i32
    %c0_i32_0 = arith.constant 0 : i32
    return %arg0, %c0_i32 : i32, i32
  }
  func.func @transform_6(%arg0: i32) -> (i32, i32) {
    %c0_i32 = arith.constant 0 : i32
    %c0_i32_0 = arith.constant 0 : i32
    return %arg0, %c0_i32 : i32, i32
  }
}

module attributes {stable_mosaic.version = 11 : i64} {
  func.func @kernel(%arg0: i32, %arg1: memref<1x16x16x128xbf16, #tpu.memory_space<vmem>>, %arg2: memref<1x1x128xf32, #tpu.memory_space<vmem>>, %arg3: memref<1x1x128xf32, #tpu.memory_space<vmem>>, %arg4: memref<9x128x128xbf16, #tpu.memory_space<vmem>>, %arg5: memref<256x128xbf16, #tpu.memory_space<vmem>>, %arg6: memref<8x128xf32, #tpu.memory_space<vmem>>, %arg7: memref<8x128xf32, #tpu.memory_space<vmem>>, %arg8: memref<18x18x128xbf16, #tpu.memory_space<vmem>>) attributes {dimension_semantics = [#tpu.dimension_semantics<parallel>], iteration_bounds = array<i64: 2>, scalar_prefetch = 0 : i64, scratch_operands = 1 : i64, tpu.core_type = #tpu.core_type<tc>, window_params = [{transform_indices = @transform_0, window_bounds = array<i64: 1, 16, 16, 128>}, {pipeline_mode = #tpu.pipeline_mode<synchronous>, transform_indices = @transform_1, window_bounds = array<i64: 1, 1, 128>}, {pipeline_mode = #tpu.pipeline_mode<synchronous>, transform_indices = @transform_2, window_bounds = array<i64: 1, 1, 128>}, {pipeline_mode = #tpu.pipeline_mode<synchronous>, transform_indices = @transform_3, window_bounds = array<i64: 9, 128, 128>}, {transform_indices = @transform_4, window_bounds = array<i64: 256, 128>}, {transform_indices = @transform_5, window_bounds = array<i64: 8, 128>}, {transform_indices = @transform_6, window_bounds = array<i64: 8, 128>}]} {
    %c0 = arith.constant 0 : index
    %c0_0 = arith.constant 0 : index
    %c0_1 = arith.constant 0 : index
    %c0_2 = arith.constant 0 : index
    %0 = vector.load %arg1[%c0, %c0_0, %c0_1, %c0_2] : memref<1x16x16x128xbf16, #tpu.memory_space<vmem>>, vector<1x16x16x128xbf16>
    %1 = vector.shape_cast %0 : vector<1x16x16x128xbf16> to vector<16x16x128xbf16>
    %2 = arith.extf %1 : vector<16x16x128xbf16> to vector<16x16x128xf32>
    %c0_3 = arith.constant 0 : index
    %c0_4 = arith.constant 0 : index
    %c0_5 = arith.constant 0 : index
    %3 = vector.load %arg2[%c0_3, %c0_4, %c0_5] : memref<1x1x128xf32, #tpu.memory_space<vmem>>, vector<1x1x128xf32>
    %4 = vector.broadcast %3 : vector<1x1x128xf32> to vector<16x16x128xf32>
    %5 = arith.mulf %2, %4 : vector<16x16x128xf32>
    %c0_6 = arith.constant 0 : index
    %c0_7 = arith.constant 0 : index
    %c0_8 = arith.constant 0 : index
    %6 = vector.load %arg3[%c0_6, %c0_7, %c0_8] : memref<1x1x128xf32, #tpu.memory_space<vmem>>, vector<1x1x128xf32>
    %7 = vector.broadcast %6 : vector<1x1x128xf32> to vector<16x16x128xf32>
    %8 = arith.addf %5, %7 : vector<16x16x128xf32>
    %cst = arith.constant 0.000000e+00 : f32
    %9 = vector.broadcast %cst : f32 to vector<16x16x128xf32>
    %10 = arith.maximumf %8, %9 : vector<16x16x128xf32>
    %cst_9 = arith.constant 0.000000e+00 : bf16
    %11 = vector.broadcast %cst_9 : bf16 to vector<18x18x128xbf16>
    %c0_10 = arith.constant 0 : index
    %c0_11 = arith.constant 0 : index
    %c0_12 = arith.constant 0 : index
    %12 = vector.load %arg8[%c0_10, %c0_11, %c0_12] : memref<18x18x128xbf16, #tpu.memory_space<vmem>>, vector<18x18x128xbf16>
    tpu.vector_store %arg8[%c0_10, %c0_11, %c0_12], %11 {strides = array<i32>} : memref<18x18x128xbf16, #tpu.memory_space<vmem>>, vector<18x18x128xbf16>,
    %13 = arith.truncf %10 : vector<16x16x128xf32> to vector<16x16x128xbf16>
    %c1 = arith.constant 1 : index
    %c1_13 = arith.constant 1 : index
    %c0_14 = arith.constant 0 : index
    %14 = vector.load %arg8[%c1, %c1_13, %c0_14] : memref<18x18x128xbf16, #tpu.memory_space<vmem>>, vector<16x16x128xbf16>
    tpu.vector_store %arg8[%c1, %c1_13, %c0_14], %13 {strides = array<i32>} : memref<18x18x128xbf16, #tpu.memory_space<vmem>>, vector<16x16x128xbf16>,
    %cst_15 = arith.constant 0.000000e+00 : f32
    %15 = vector.broadcast %cst_15 : f32 to vector<256x128xf32>
    %c0_16 = arith.constant 0 : index
    %c0_17 = arith.constant 0 : index
    %c0_18 = arith.constant 0 : index
    %16 = vector.load %arg8[%c0_16, %c0_17, %c0_18] : memref<18x18x128xbf16, #tpu.memory_space<vmem>>, vector<16x16x128xbf16>
    %17 = vector.shape_cast %16 : vector<16x16x128xbf16> to vector<256x128xbf16>
    %c0_19 = arith.constant 0 : index
    %c0_20 = arith.constant 0 : index
    %c0_21 = arith.constant 0 : index
    %18 = vector.load %arg4[%c0_19, %c0_20, %c0_21] : memref<9x128x128xbf16, #tpu.memory_space<vmem>>, vector<1x128x128xbf16>
    %19 = vector.shape_cast %18 : vector<1x128x128xbf16> to vector<128x128xbf16>
    %cst_22 = arith.constant dense<0.000000e+00> : vector<256x128xf32>
    %20 = tpu.matmul %17, %19, %cst_22 {dimension_numbers = #tpu.dot_dimension_numbers<[1], [0], [0], [1], [0, 0, 1, 1], [], []>} : vector<256x128xbf16>, vector<128x128xbf16>, vector<256x128xf32> -> vector<256x128xf32>
    %21 = arith.addf %15, %20 : vector<256x128xf32>
    %c0_23 = arith.constant 0 : index
    %c1_24 = arith.constant 1 : index
    %c0_25 = arith.constant 0 : index
    %22 = vector.load %arg8[%c0_23, %c1_24, %c0_25] : memref<18x18x128xbf16, #tpu.memory_space<vmem>>, vector<16x16x128xbf16>
    %23 = vector.shape_cast %22 : vector<16x16x128xbf16> to vector<256x128xbf16>
    %c1_26 = arith.constant 1 : index
    %c0_27 = arith.constant 0 : index
    %c0_28 = arith.constant 0 : index
    %24 = vector.load %arg4[%c1_26, %c0_27, %c0_28] : memref<9x128x128xbf16, #tpu.memory_space<vmem>>, vector<1x128x128xbf16>
    %25 = vector.shape_cast %24 : vector<1x128x128xbf16> to vector<128x128xbf16>
    %cst_29 = arith.constant dense<0.000000e+00> : vector<256x128xf32>
    %26 = tpu.matmul %23, %25, %cst_29 {dimension_numbers = #tpu.dot_dimension_numbers<[1], [0], [0], [1], [0, 0, 1, 1], [], []>} : vector<256x128xbf16>, vector<128x128xbf16>, vector<256x128xf32> -> vector<256x128xf32>
    %27 = arith.addf %21, %26 : vector<256x128xf32>
    %c0_30 = arith.constant 0 : index
    %c2 = arith.constant 2 : index
    %c0_31 = arith.constant 0 : index
    %28 = vector.load %arg8[%c0_30, %c2, %c0_31] : memref<18x18x128xbf16, #tpu.memory_space<vmem>>, vector<16x16x128xbf16>
    %29 = vector.shape_cast %28 : vector<16x16x128xbf16> to vector<256x128xbf16>
    %c2_32 = arith.constant 2 : index
    %c0_33 = arith.constant 0 : index
    %c0_34 = arith.constant 0 : index
    %30 = vector.load %arg4[%c2_32, %c0_33, %c0_34] : memref<9x128x128xbf16, #tpu.memory_space<vmem>>, vector<1x128x128xbf16>
    %31 = vector.shape_cast %30 : vector<1x128x128xbf16> to vector<128x128xbf16>
    %cst_35 = arith.constant dense<0.000000e+00> : vector<256x128xf32>
    %32 = tpu.matmul %29, %31, %cst_35 {dimension_numbers = #tpu.dot_dimension_numbers<[1], [0], [0], [1], [0, 0, 1, 1], [], []>} : vector<256x128xbf16>, vector<128x128xbf16>, vector<256x128xf32> -> vector<256x128xf32>
    %33 = arith.addf %27, %32 : vector<256x128xf32>
    %c1_36 = arith.constant 1 : index
    %c0_37 = arith.constant 0 : index
    %c0_38 = arith.constant 0 : index
    %34 = vector.load %arg8[%c1_36, %c0_37, %c0_38] : memref<18x18x128xbf16, #tpu.memory_space<vmem>>, vector<16x16x128xbf16>
    %35 = vector.shape_cast %34 : vector<16x16x128xbf16> to vector<256x128xbf16>
    %c3 = arith.constant 3 : index
    %c0_39 = arith.constant 0 : index
    %c0_40 = arith.constant 0 : index
    %36 = vector.load %arg4[%c3, %c0_39, %c0_40] : memref<9x128x128xbf16, #tpu.memory_space<vmem>>, vector<1x128x128xbf16>
    %37 = vector.shape_cast %36 : vector<1x128x128xbf16> to vector<128x128xbf16>
    %cst_41 = arith.constant dense<0.000000e+00> : vector<256x128xf32>
    %38 = tpu.matmul %35, %37, %cst_41 {dimension_numbers = #tpu.dot_dimension_numbers<[1], [0], [0], [1], [0, 0, 1, 1], [], []>} : vector<256x128xbf16>, vector<128x128xbf16>, vector<256x128xf32> -> vector<256x128xf32>
    %39 = arith.addf %33, %38 : vector<256x128xf32>
    %c1_42 = arith.constant 1 : index
    %c1_43 = arith.constant 1 : index
    %c0_44 = arith.constant 0 : index
    %40 = vector.load %arg8[%c1_42, %c1_43, %c0_44] : memref<18x18x128xbf16, #tpu.memory_space<vmem>>, vector<16x16x128xbf16>
    %41 = vector.shape_cast %40 : vector<16x16x128xbf16> to vector<256x128xbf16>
    %c4 = arith.constant 4 : index
    %c0_45 = arith.constant 0 : index
    %c0_46 = arith.constant 0 : index
    %42 = vector.load %arg4[%c4, %c0_45, %c0_46] : memref<9x128x128xbf16, #tpu.memory_space<vmem>>, vector<1x128x128xbf16>
    %43 = vector.shape_cast %42 : vector<1x128x128xbf16> to vector<128x128xbf16>
    %cst_47 = arith.constant dense<0.000000e+00> : vector<256x128xf32>
    %44 = tpu.matmul %41, %43, %cst_47 {dimension_numbers = #tpu.dot_dimension_numbers<[1], [0], [0], [1], [0, 0, 1, 1], [], []>} : vector<256x128xbf16>, vector<128x128xbf16>, vector<256x128xf32> -> vector<256x128xf32>
    %45 = arith.addf %39, %44 : vector<256x128xf32>
    %c1_48 = arith.constant 1 : index
    %c2_49 = arith.constant 2 : index
    %c0_50 = arith.constant 0 : index
    %46 = vector.load %arg8[%c1_48, %c2_49, %c0_50] : memref<18x18x128xbf16, #tpu.memory_space<vmem>>, vector<16x16x128xbf16>
    %47 = vector.shape_cast %46 : vector<16x16x128xbf16> to vector<256x128xbf16>
    %c5 = arith.constant 5 : index
    %c0_51 = arith.constant 0 : index
    %c0_52 = arith.constant 0 : index
    %48 = vector.load %arg4[%c5, %c0_51, %c0_52] : memref<9x128x128xbf16, #tpu.memory_space<vmem>>, vector<1x128x128xbf16>
    %49 = vector.shape_cast %48 : vector<1x128x128xbf16> to vector<128x128xbf16>
    %cst_53 = arith.constant dense<0.000000e+00> : vector<256x128xf32>
    %50 = tpu.matmul %47, %49, %cst_53 {dimension_numbers = #tpu.dot_dimension_numbers<[1], [0], [0], [1], [0, 0, 1, 1], [], []>} : vector<256x128xbf16>, vector<128x128xbf16>, vector<256x128xf32> -> vector<256x128xf32>
    %51 = arith.addf %45, %50 : vector<256x128xf32>
    %c2_54 = arith.constant 2 : index
    %c0_55 = arith.constant 0 : index
    %c0_56 = arith.constant 0 : index
    %52 = vector.load %arg8[%c2_54, %c0_55, %c0_56] : memref<18x18x128xbf16, #tpu.memory_space<vmem>>, vector<16x16x128xbf16>
    %53 = vector.shape_cast %52 : vector<16x16x128xbf16> to vector<256x128xbf16>
    %c6 = arith.constant 6 : index
    %c0_57 = arith.constant 0 : index
    %c0_58 = arith.constant 0 : index
    %54 = vector.load %arg4[%c6, %c0_57, %c0_58] : memref<9x128x128xbf16, #tpu.memory_space<vmem>>, vector<1x128x128xbf16>
    %55 = vector.shape_cast %54 : vector<1x128x128xbf16> to vector<128x128xbf16>
    %cst_59 = arith.constant dense<0.000000e+00> : vector<256x128xf32>
    %56 = tpu.matmul %53, %55, %cst_59 {dimension_numbers = #tpu.dot_dimension_numbers<[1], [0], [0], [1], [0, 0, 1, 1], [], []>} : vector<256x128xbf16>, vector<128x128xbf16>, vector<256x128xf32> -> vector<256x128xf32>
    %57 = arith.addf %51, %56 : vector<256x128xf32>
    %c2_60 = arith.constant 2 : index
    %c1_61 = arith.constant 1 : index
    %c0_62 = arith.constant 0 : index
    %58 = vector.load %arg8[%c2_60, %c1_61, %c0_62] : memref<18x18x128xbf16, #tpu.memory_space<vmem>>, vector<16x16x128xbf16>
    %59 = vector.shape_cast %58 : vector<16x16x128xbf16> to vector<256x128xbf16>
    %c7 = arith.constant 7 : index
    %c0_63 = arith.constant 0 : index
    %c0_64 = arith.constant 0 : index
    %60 = vector.load %arg4[%c7, %c0_63, %c0_64] : memref<9x128x128xbf16, #tpu.memory_space<vmem>>, vector<1x128x128xbf16>
    %61 = vector.shape_cast %60 : vector<1x128x128xbf16> to vector<128x128xbf16>
    %cst_65 = arith.constant dense<0.000000e+00> : vector<256x128xf32>
    %62 = tpu.matmul %59, %61, %cst_65 {dimension_numbers = #tpu.dot_dimension_numbers<[1], [0], [0], [1], [0, 0, 1, 1], [], []>} : vector<256x128xbf16>, vector<128x128xbf16>, vector<256x128xf32> -> vector<256x128xf32>
    %63 = arith.addf %57, %62 : vector<256x128xf32>
    %c2_66 = arith.constant 2 : index
    %c2_67 = arith.constant 2 : index
    %c0_68 = arith.constant 0 : index
    %64 = vector.load %arg8[%c2_66, %c2_67, %c0_68] : memref<18x18x128xbf16, #tpu.memory_space<vmem>>, vector<16x16x128xbf16>
    %65 = vector.shape_cast %64 : vector<16x16x128xbf16> to vector<256x128xbf16>
    %c8 = arith.constant 8 : index
    %c0_69 = arith.constant 0 : index
    %c0_70 = arith.constant 0 : index
    %66 = vector.load %arg4[%c8, %c0_69, %c0_70] : memref<9x128x128xbf16, #tpu.memory_space<vmem>>, vector<1x128x128xbf16>
    %67 = vector.shape_cast %66 : vector<1x128x128xbf16> to vector<128x128xbf16>
    %cst_71 = arith.constant dense<0.000000e+00> : vector<256x128xf32>
    %68 = tpu.matmul %65, %67, %cst_71 {dimension_numbers = #tpu.dot_dimension_numbers<[1], [0], [0], [1], [0, 0, 1, 1], [], []>} : vector<256x128xbf16>, vector<128x128xbf16>, vector<256x128xf32> -> vector<256x128xf32>
    %69 = arith.addf %63, %68 : vector<256x128xf32>
    %70 = arith.truncf %69 : vector<256x128xf32> to vector<256x128xbf16>
    %c0_72 = arith.constant 0 : index
    %c0_73 = arith.constant 0 : index
    %71 = vector.load %arg5[%c0_72, %c0_73] : memref<256x128xbf16, #tpu.memory_space<vmem>>, vector<256x128xbf16>
    tpu.vector_store %arg5[%c0_72, %c0_73], %70 {strides = array<i32>} : memref<256x128xbf16, #tpu.memory_space<vmem>>, vector<256x128xbf16>,
    %cst_74 = arith.constant dense<0.000000e+00> : vector<128xf32>
    %72 = vector.multi_reduction <add>, %69, %cst_74 [0] : vector<256x128xf32> to vector<128xf32>
    %73 = vector.shape_cast %72 : vector<128xf32> to vector<1x128xf32>
    %74 = arith.mulf %69, %69 : vector<256x128xf32>
    %cst_75 = arith.constant dense<0.000000e+00> : vector<128xf32>
    %75 = vector.multi_reduction <add>, %74, %cst_75 [0] : vector<256x128xf32> to vector<128xf32>
    %76 = vector.shape_cast %75 : vector<128xf32> to vector<1x128xf32>
    %77 = vector.shape_cast %73 : vector<1x128xf32> to vector<1x128xf32>
    %78 = vector.broadcast %77 : vector<1x128xf32> to vector<8x128xf32>
    %c0_76 = arith.constant 0 : index
    %c0_77 = arith.constant 0 : index
    %79 = vector.load %arg6[%c0_76, %c0_77] : memref<8x128xf32, #tpu.memory_space<vmem>>, vector<8x128xf32>
    tpu.vector_store %arg6[%c0_76, %c0_77], %78 {strides = array<i32>} : memref<8x128xf32, #tpu.memory_space<vmem>>, vector<8x128xf32>,
    %80 = vector.shape_cast %76 : vector<1x128xf32> to vector<1x128xf32>
    %81 = vector.broadcast %80 : vector<1x128xf32> to vector<8x128xf32>
    %c0_78 = arith.constant 0 : index
    %c0_79 = arith.constant 0 : index
    %82 = vector.load %arg7[%c0_78, %c0_79] : memref<8x128xf32, #tpu.memory_space<vmem>>, vector<8x128xf32>
    tpu.vector_store %arg7[%c0_78, %c0_79], %81 {strides = array<i32>} : memref<8x128xf32, #tpu.memory_space<vmem>>, vector<8x128xf32>,
    return
  }
  func.func @transform_0(%arg0: i32) -> (i32, i32, i32, i32) {
    %c0_i32 = arith.constant 0 : i32
    %c0_i32_0 = arith.constant 0 : i32
    %c0_i32_1 = arith.constant 0 : i32
    %c0_i32_2 = arith.constant 0 : i32
    return %arg0, %c0_i32, %c0_i32_0, %c0_i32_1 : i32, i32, i32, i32
  }
  func.func @transform_1(%arg0: i32) -> (i32, i32, i32) {
    %c0_i32 = arith.constant 0 : i32
    %c0_i32_0 = arith.constant 0 : i32
    %c0_i32_1 = arith.constant 0 : i32
    %c0_i32_2 = arith.constant 0 : i32
    return %c0_i32, %c0_i32_0, %c0_i32_1 : i32, i32, i32
  }
  func.func @transform_2(%arg0: i32) -> (i32, i32, i32) {
    %c0_i32 = arith.constant 0 : i32
    %c0_i32_0 = arith.constant 0 : i32
    %c0_i32_1 = arith.constant 0 : i32
    %c0_i32_2 = arith.constant 0 : i32
    return %c0_i32, %c0_i32_0, %c0_i32_1 : i32, i32, i32
  }
  func.func @transform_3(%arg0: i32) -> (i32, i32, i32) {
    %c0_i32 = arith.constant 0 : i32
    %c0_i32_0 = arith.constant 0 : i32
    %c0_i32_1 = arith.constant 0 : i32
    %c0_i32_2 = arith.constant 0 : i32
    return %c0_i32, %c0_i32_0, %c0_i32_1 : i32, i32, i32
  }
  func.func @transform_4(%arg0: i32) -> (i32, i32) {
    %c0_i32 = arith.constant 0 : i32
    %c0_i32_0 = arith.constant 0 : i32
    return %arg0, %c0_i32 : i32, i32
  }
  func.func @transform_5(%arg0: i32) -> (i32, i32) {
    %c0_i32 = arith.constant 0 : i32
    %c0_i32_0 = arith.constant 0 : i32
    return %arg0, %c0_i32 : i32, i32
  }
  func.func @transform_6(%arg0: i32) -> (i32, i32) {
    %c0_i32 = arith.constant 0 : i32
    %c0_i32_0 = arith.constant 0 : i32
    return %arg0, %c0_i32 : i32, i32
  }
}

module attributes {stable_mosaic.version = 11 : i64} {
  func.func @_bn3_conv3_proj_kernel(%arg0: i32, %arg1: memref<256x128xbf16, #tpu.memory_space<vmem>>, %arg2: memref<1x128xf32, #tpu.memory_space<vmem>>, %arg3: memref<1x128xf32, #tpu.memory_space<vmem>>, %arg4: memref<128x128xbf16, #tpu.memory_space<vmem>>, %arg5: memref<256x128xbf16, #tpu.memory_space<vmem>>, %arg6: memref<1x128xf32, #tpu.memory_space<vmem>>, %arg7: memref<1x128xf32, #tpu.memory_space<vmem>>, %arg8: memref<128x128xbf16, #tpu.memory_space<vmem>>, %arg9: memref<256x128xf32, #tpu.memory_space<vmem>>) attributes {dimension_semantics = [#tpu.dimension_semantics<parallel>], iteration_bounds = array<i64: 2>, scalar_prefetch = 0 : i64, scratch_operands = 0 : i64, tpu.core_type = #tpu.core_type<tc>, window_params = [{transform_indices = @transform_0, window_bounds = array<i64: 256, 128>}, {pipeline_mode = #tpu.pipeline_mode<synchronous>, transform_indices = @transform_1, window_bounds = array<i64: 1, 128>}, {pipeline_mode = #tpu.pipeline_mode<synchronous>, transform_indices = @transform_2, window_bounds = array<i64: 1, 128>}, {pipeline_mode = #tpu.pipeline_mode<synchronous>, transform_indices = @transform_3, window_bounds = array<i64: 128, 128>}, {transform_indices = @transform_4, window_bounds = array<i64: 256, 128>}, {pipeline_mode = #tpu.pipeline_mode<synchronous>, transform_indices = @transform_5, window_bounds = array<i64: 1, 128>}, {pipeline_mode = #tpu.pipeline_mode<synchronous>, transform_indices = @transform_6, window_bounds = array<i64: 1, 128>}, {pipeline_mode = #tpu.pipeline_mode<synchronous>, transform_indices = @transform_7, window_bounds = array<i64: 128, 128>}, {transform_indices = @transform_8, window_bounds = array<i64: 256, 128>}]} {
    %c0 = arith.constant 0 : index
    %c0_0 = arith.constant 0 : index
    %0 = vector.load %arg1[%c0, %c0_0] : memref<256x128xbf16, #tpu.memory_space<vmem>>, vector<256x128xbf16>
    %1 = arith.extf %0 : vector<256x128xbf16> to vector<256x128xf32>
    %c0_1 = arith.constant 0 : index
    %c0_2 = arith.constant 0 : index
    %2 = vector.load %arg2[%c0_1, %c0_2] : memref<1x128xf32, #tpu.memory_space<vmem>>, vector<1x128xf32>
    %3 = vector.broadcast %2 : vector<1x128xf32> to vector<256x128xf32>
    %4 = arith.mulf %1, %3 : vector<256x128xf32>
    %c0_3 = arith.constant 0 : index
    %c0_4 = arith.constant 0 : index
    %5 = vector.load %arg3[%c0_3, %c0_4] : memref<1x128xf32, #tpu.memory_space<vmem>>, vector<1x128xf32>
    %6 = vector.broadcast %5 : vector<1x128xf32> to vector<256x128xf32>
    %7 = arith.addf %4, %6 : vector<256x128xf32>
    %cst = arith.constant 0.000000e+00 : f32
    %8 = vector.broadcast %cst : f32 to vector<256x128xf32>
    %9 = arith.maximumf %7, %8 : vector<256x128xf32>
    %10 = arith.truncf %9 : vector<256x128xf32> to vector<256x128xbf16>
    %c0_5 = arith.constant 0 : index
    %c0_6 = arith.constant 0 : index
    %11 = vector.load %arg4[%c0_5, %c0_6] : memref<128x128xbf16, #tpu.memory_space<vmem>>, vector<128x128xbf16>
    %cst_7 = arith.constant dense<0.000000e+00> : vector<256x128xf32>
    %12 = tpu.matmul %10, %11, %cst_7 {dimension_numbers = #tpu.dot_dimension_numbers<[1], [0], [0], [1], [0, 0, 1, 1], [], []>} : vector<256x128xbf16>, vector<128x128xbf16>, vector<256x128xf32> -> vector<256x128xf32>
    %c0_8 = arith.constant 0 : index
    %c0_9 = arith.constant 0 : index
    %13 = vector.load %arg5[%c0_8, %c0_9] : memref<256x128xbf16, #tpu.memory_space<vmem>>, vector<256x128xbf16>
    %14 = arith.extf %13 : vector<256x128xbf16> to vector<256x128xf32>
    %c0_10 = arith.constant 0 : index
    %c0_11 = arith.constant 0 : index
    %15 = vector.load %arg6[%c0_10, %c0_11] : memref<1x128xf32, #tpu.memory_space<vmem>>, vector<1x128xf32>
    %16 = vector.broadcast %15 : vector<1x128xf32> to vector<256x128xf32>
    %17 = arith.mulf %14, %16 : vector<256x128xf32>
    %c0_12 = arith.constant 0 : index
    %c0_13 = arith.constant 0 : index
    %18 = vector.load %arg7[%c0_12, %c0_13] : memref<1x128xf32, #tpu.memory_space<vmem>>, vector<1x128xf32>
    %19 = vector.broadcast %18 : vector<1x128xf32> to vector<256x128xf32>
    %20 = arith.addf %17, %19 : vector<256x128xf32>
    %cst_14 = arith.constant 0.000000e+00 : f32
    %21 = vector.broadcast %cst_14 : f32 to vector<256x128xf32>
    %22 = arith.maximumf %20, %21 : vector<256x128xf32>
    %23 = arith.truncf %22 : vector<256x128xf32> to vector<256x128xbf16>
    %c0_15 = arith.constant 0 : index
    %c0_16 = arith.constant 0 : index
    %24 = vector.load %arg8[%c0_15, %c0_16] : memref<128x128xbf16, #tpu.memory_space<vmem>>, vector<128x128xbf16>
    %cst_17 = arith.constant dense<0.000000e+00> : vector<256x128xf32>
    %25 = tpu.matmul %23, %24, %cst_17 {dimension_numbers = #tpu.dot_dimension_numbers<[1], [0], [0], [1], [0, 0, 1, 1], [], []>} : vector<256x128xbf16>, vector<128x128xbf16>, vector<256x128xf32> -> vector<256x128xf32>
    %26 = arith.addf %12, %25 : vector<256x128xf32>
    %c0_18 = arith.constant 0 : index
    %c0_19 = arith.constant 0 : index
    %27 = vector.load %arg9[%c0_18, %c0_19] : memref<256x128xf32, #tpu.memory_space<vmem>>, vector<256x128xf32>
    tpu.vector_store %arg9[%c0_18, %c0_19], %26 {strides = array<i32>} : memref<256x128xf32, #tpu.memory_space<vmem>>, vector<256x128xf32>,
    return
  }
  func.func @transform_0(%arg0: i32) -> (i32, i32) {
    %c0_i32 = arith.constant 0 : i32
    %c0_i32_0 = arith.constant 0 : i32
    return %arg0, %c0_i32 : i32, i32
  }
  func.func @transform_1(%arg0: i32) -> (i32, i32) {
    %c0_i32 = arith.constant 0 : i32
    %c0_i32_0 = arith.constant 0 : i32
    %c0_i32_1 = arith.constant 0 : i32
    return %c0_i32, %c0_i32_0 : i32, i32
  }
  func.func @transform_2(%arg0: i32) -> (i32, i32) {
    %c0_i32 = arith.constant 0 : i32
    %c0_i32_0 = arith.constant 0 : i32
    %c0_i32_1 = arith.constant 0 : i32
    return %c0_i32, %c0_i32_0 : i32, i32
  }
  func.func @transform_3(%arg0: i32) -> (i32, i32) {
    %c0_i32 = arith.constant 0 : i32
    %c0_i32_0 = arith.constant 0 : i32
    %c0_i32_1 = arith.constant 0 : i32
    return %c0_i32, %c0_i32_0 : i32, i32
  }
  func.func @transform_4(%arg0: i32) -> (i32, i32) {
    %c0_i32 = arith.constant 0 : i32
    %c0_i32_0 = arith.constant 0 : i32
    return %arg0, %c0_i32 : i32, i32
  }
  func.func @transform_5(%arg0: i32) -> (i32, i32) {
    %c0_i32 = arith.constant 0 : i32
    %c0_i32_0 = arith.constant 0 : i32
    %c0_i32_1 = arith.constant 0 : i32
    return %c0_i32, %c0_i32_0 : i32, i32
  }
  func.func @transform_6(%arg0: i32) -> (i32, i32) {
    %c0_i32 = arith.constant 0 : i32
    %c0_i32_0 = arith.constant 0 : i32
    %c0_i32_1 = arith.constant 0 : i32
    return %c0_i32, %c0_i32_0 : i32, i32
  }
  func.func @transform_7(%arg0: i32) -> (i32, i32) {
    %c0_i32 = arith.constant 0 : i32
    %c0_i32_0 = arith.constant 0 : i32
    %c0_i32_1 = arith.constant 0 : i32
    return %c0_i32, %c0_i32_0 : i32, i32
  }
  func.func @transform_8(%arg0: i32) -> (i32, i32) {
    %c0_i32 = arith.constant 0 : i32
    %c0_i32_0 = arith.constant 0 : i32
    return %arg0, %c0_i32 : i32, i32
  }
}

</mosaic_0001>

<llo_original>
// kernel: residual_block_forward.3
$region0: #{residual_block_forward.3}
  #allocation0 [shape = 'u32[]', space=smem, size = 0x4, offset = 0x4, fixed_abs, tag = 'smem constant byte address 0x4 - core index']
  #allocation1 [shape = 'u32[144,128]{1,0:T(1,128)}', space=vmem, size = 0x12000, scoped, tag = 'internal scratch']
  %s0 = inlined_call_operand.vmem [shape: bf16[512,128], index: 0, kind: input, shape index: {}]
  %s1 = inlined_call_operand.vmem [shape: f32[1,128], index: 1, kind: input, shape index: {}]
  %s2 = inlined_call_operand.vmem [shape: f32[1,128], index: 2, kind: input, shape index: {}]
  %s3 = inlined_call_operand.vmem [shape: bf16[128,128], index: 3, kind: input, shape index: {}]
  %s4 = inlined_call_operand.vmem [shape: bf16[512,128], index: 4, kind: output, shape index: {0}]
  %s5 = inlined_call_operand.vmem [shape: f32[16,128], index: 5, kind: output, shape index: {1}]
  %s6 = inlined_call_operand.vmem [shape: f32[16,128], index: 6, kind: output, shape index: {2}]
  %7 = xla_tuple %s4, %s5, %s6
  %s8 = sld [smem:[#allocation0]]
  $region65: #{residual_block_forward.3} parent=0
    _
  %s10 = ssub.s32 1, %s8
  %s11 = scalar_select 0, %s10, %s8
  loop: start=0, step=1, limit=4
  $region2: #{residual_block_forward.3} parent=0 // loop_pre_header
    _
  $region3: #{residual_block_forward.3} parent=0 // loop_header
    %s13 = sphi 0, %s17
    %p14 = scmp.ge.s32.totalorder %s13, 4
    %s23 = sphi 0, %s25
    %s26 = sphi 0, %s23
    %s27 = sphi 0, %s26
    %s43 = sphi 0, %s27
    %s47 = sphi 0, %s47
    %s49 = sphi 0, %s47
    %s50 = sphi 0, %s49
    %s64 = sphi 0, %s50
    %s68 = sphi 0, %s68
    %s70 = sphi 0, %s68
    %s71 = sphi 0, %s70
    %s85 = sphi 0, %s71
    %s89 = sphi 0, %s89
    %s91 = sphi 0, %s89
    %s92 = sphi 0, %s91
    %s106 = sphi 0, %s92
    %s112 = sphi 0, %s114
    %s115 = sphi 0, %s112
    %s116 = sphi 0, %s115
    %s132 = sphi 0, %s116
    %s138 = sphi 0, %s140
    %s141 = sphi 0, %s138
    %s142 = sphi 0, %s141
    %s158 = sphi 0, %s142
    %s164 = sphi 0, %s166
    %s167 = sphi 0, %s164
    %s168 = sphi 0, %s167
    %s184 = sphi 0, %s168
  $region4: #{residual_block_forward.3} parent=0 // loop_header_branch
    %16 = sbr.rel (%p14) target = $region8
  $region5: #{residual_block_forward.3} parent=0 // loop_body
    %s18 = ssub.s32 %s13, 1
    %s19 = ssub.s32 %s13, 2
    %s20 = sadd.s32 %s13, 1
    %s21 = ssub.s32 %s13, %s20
    %p22 = scmp.eq.s32.totalorder %s21, 0
    %s24 = sadd.s32 %s23, 1
    %s25 = scalar_select %p22, %s23, %s24
    %p28 = pneg %p22
    %p29 = scmp.eq.s32.totalorder %s13, 1
    %p30 = por %p28, %p29
    %p31 = scmp.ne.s32.totalorder %s23, %s26
    %p32 = scmp.eq.s32.totalorder %s13, 0
    %p33 = por %p31, %p32
    %p34 = scmp.ne.s32.totalorder %s23, %s26
    %p35 = scmp.eq.s32.totalorder %s18, 1
    %p36 = por %p34, %p35
    %p37 = scmp.ne.s32.totalorder %s26, %s27
    %p38 = scmp.eq.s32.totalorder %s18, 0
    %p39 = por %p37, %p38
    %p40 = scmp.ne.s32.totalorder %s26, %s27
    %p41 = scmp.eq.s32.totalorder %s19, 1
    %p42 = por %p40, %p41
    %p44 = scmp.ne.s32.totalorder %s27, %s43
    %p45 = scmp.eq.s32.totalorder %s19, 0
    %p46 = por %p44, %p45
    %s48 = sadd.s32 %s47, 1
    %p51 = scmp.eq.s32.totalorder %s13, 1
    %p52 = scmp.ne.s32.totalorder %s47, %s49
    %p53 = scmp.eq.s32.totalorder %s13, 0
    %p54 = por %p52, %p53
    %p55 = scmp.ne.s32.totalorder %s47, %s49
    %p56 = scmp.eq.s32.totalorder %s18, 1
    %p57 = por %p55, %p56
    %p58 = scmp.ne.s32.totalorder %s49, %s50
    %p59 = scmp.eq.s32.totalorder %s18, 0
    %p60 = por %p58, %p59
    %p61 = scmp.ne.s32.totalorder %s49, %s50
    %p62 = scmp.eq.s32.totalorder %s19, 1
    %p63 = por %p61, %p62
    %p65 = scmp.ne.s32.totalorder %s50, %s64
    %p66 = scmp.eq.s32.totalorder %s19, 0
    %p67 = por %p65, %p66
    %s69 = sadd.s32 %s68, 1
    %p72 = scmp.eq.s32.totalorder %s13, 1
    %p73 = scmp.ne.s32.totalorder %s68, %s70
    %p74 = scmp.eq.s32.totalorder %s13, 0
    %p75 = por %p73, %p74
    %p76 = scmp.ne.s32.totalorder %s68, %s70
    %p77 = scmp.eq.s32.totalorder %s18, 1
    %p78 = por %p76, %p77
    %p79 = scmp.ne.s32.totalorder %s70, %s71
    %p80 = scmp.eq.s32.totalorder %s18, 0
    %p81 = por %p79, %p80
    %p82 = scmp.ne.s32.totalorder %s70, %s71
    %p83 = scmp.eq.s32.totalorder %s19, 1
    %p84 = por %p82, %p83
    %p86 = scmp.ne.s32.totalorder %s71, %s85
    %p87 = scmp.eq.s32.totalorder %s19, 0
    %p88 = por %p86, %p87
    %s90 = sadd.s32 %s89, 1
    %p93 = scmp.eq.s32.totalorder %s13, 1
    %p94 = scmp.ne.s32.totalorder %s89, %s91
    %p95 = scmp.eq.s32.totalorder %s13, 0
    %p96 = por %p94, %p95
    %p97 = scmp.ne.s32.totalorder %s89, %s91
    %p98 = scmp.eq.s32.totalorder %s18, 1
    %p99 = por %p97, %p98
    %p100 = scmp.ne.s32.totalorder %s91, %s92
    %p101 = scmp.eq.s32.totalorder %s18, 0
    %p102 = por %p100, %p101
    %p103 = scmp.ne.s32.totalorder %s91, %s92
    %p104 = scmp.eq.s32.totalorder %s19, 1
    %p105 = por %p103, %p104
    %p107 = scmp.ne.s32.totalorder %s92, %s106
    %p108 = scmp.eq.s32.totalorder %s19, 0
    %p109 = por %p107, %p108
    %s110 = ssub.s32 %s13, %s20
    %p111 = scmp.eq.s32.totalorder %s110, 0
    %s113 = sadd.s32 %s112, 1
    %s114 = scalar_select %p111, %s112, %s113
    %p117 = pneg %p111
    %p118 = scmp.eq.s32.totalorder %s13, 1
    %p119 = por %p117, %p118
    %p120 = scmp.ne.s32.totalorder %s112, %s115
    %p121 = scmp.eq.s32.totalorder %s13, 0
    %p122 = por %p120, %p121
    %p123 = scmp.ne.s32.totalorder %s112, %s115
    %p124 = scmp.eq.s32.totalorder %s18, 1
    %p125 = por %p123, %p124
    %p126 = scmp.ne.s32.totalorder %s115, %s116
    %p127 = scmp.eq.s32.totalorder %s18, 0
    %p128 = por %p126, %p127
    %p129 = scmp.ne.s32.totalorder %s115, %s116
    %p130 = scmp.eq.s32.totalorder %s19, 1
    %p131 = por %p129, %p130
    %p133 = scmp.ne.s32.totalorder %s116, %s132
    %p134 = scmp.eq.s32.totalorder %s19, 0
    %p135 = por %p133, %p134
    %s136 = ssub.s32 %s13, %s20
    %p137 = scmp.eq.s32.totalorder %s136, 0
    %s139 = sadd.s32 %s138, 1
    %s140 = scalar_select %p137, %s138, %s139
    %p143 = pneg %p137
    %p144 = scmp.eq.s32.totalorder %s13, 1
    %p145 = por %p143, %p144
    %p146 = scmp.ne.s32.totalorder %s138, %s141
    %p147 = scmp.eq.s32.totalorder %s13, 0
    %p148 = por %p146, %p147
    %p149 = scmp.ne.s32.totalorder %s138, %s141
    %p150 = scmp.eq.s32.totalorder %s18, 1
    %p151 = por %p149, %p150
    %p152 = scmp.ne.s32.totalorder %s141, %s142
    %p153 = scmp.eq.s32.totalorder %s18, 0
    %p154 = por %p152, %p153
    %p155 = scmp.ne.s32.totalorder %s141, %s142
    %p156 = scmp.eq.s32.totalorder %s19, 1
    %p157 = por %p155, %p156
    %p159 = scmp.ne.s32.totalorder %s142, %s158
    %p160 = scmp.eq.s32.totalorder %s19, 0
    %p161 = por %p159, %p160
    %s162 = ssub.s32 %s13, %s20
    %p163 = scmp.eq.s32.totalorder %s162, 0
    %s165 = sadd.s32 %s164, 1
    %s166 = scalar_select %p163, %s164, %s165
    %p169 = pneg %p163
    %p170 = scmp.eq.s32.totalorder %s13, 1
    %p171 = por %p169, %p170
    %p172 = scmp.ne.s32.totalorder %s164, %s167
    %p173 = scmp.eq.s32.totalorder %s13, 0
    %p174 = por %p172, %p173
    %p175 = scmp.ne.s32.totalorder %s164, %s167
    %p176 = scmp.eq.s32.totalorder %s18, 1
    %p177 = por %p175, %p176
    %p178 = scmp.ne.s32.totalorder %s167, %s168
    %p179 = scmp.eq.s32.totalorder %s18, 0
    %p180 = por %p178, %p179
    %p181 = scmp.ne.s32.totalorder %s167, %s168
    %p182 = scmp.eq.s32.totalorder %s19, 1
    %p183 = por %p181, %p182
    %p185 = scmp.ne.s32.totalorder %s168, %s184
    %p186 = scmp.eq.s32.totalorder %s19, 0
    %p187 = por %p185, %p186
    %p188 = scmp.le.s32.totalorder 1, %s13
    %p189 = scmp.lt.s32.totalorder %s13, 3
    %p190 = pnand %p188, %p189
    %p191 = pneg %p190
    // Predicated region
    $region9: #{residual_block_forward.3} parent=5 // pred_check
      _
    $region10: #{residual_block_forward.3} parent=5 // pred_check_branch
      %193 = sbr.rel (%p190) target = $region12
    $region11: #{residual_block_forward.3} parent=5 // pred_region
      %s194 = ssub.s32 %s13, 1
      // Predicated region
      $region13: #{residual_block_forward.3} parent=11 // pred_check
        %p195 = pneg %p60
      $region14: #{residual_block_forward.3} parent=11 // pred_check_branch
        %197 = sbr.rel (%p195) target = $region16
      $region15: #{residual_block_forward.3} parent=11 // pred_region
        _
      $region16: #{residual_block_forward.3} parent=11 // pred_fallthru
        _
      // Predicated region
      $region17: #{residual_block_forward.3} parent=11 // pred_check
        %p198 = pneg %p81
      $region18: #{residual_block_forward.3} parent=11 // pred_check_branch
        %200 = sbr.rel (%p198) target = $region20
      $region19: #{residual_block_forward.3} parent=11 // pred_region
        _
      $region20: #{residual_block_forward.3} parent=11 // pred_fallthru
        _
      // Predicated region
      $region21: #{residual_block_forward.3} parent=11 // pred_check
        %p201 = pneg %p102
      $region22: #{residual_block_forward.3} parent=11 // pred_check_branch
        %203 = sbr.rel (%p201) target = $region24
      $region23: #{residual_block_forward.3} parent=11 // pred_region
        _
      $region24: #{residual_block_forward.3} parent=11 // pred_fallthru
        _
    $region12: #{residual_block_forward.3} parent=5 // pred_fallthru
      _
    %p204 = scmp.lt.s32.totalorder %s13, 2
    // Predicated region
    $region25: #{residual_block_forward.3} parent=5 // pred_check
      %p205 = pneg %p204
    $region26: #{residual_block_forward.3} parent=5 // pred_check_branch
      %207 = sbr.rel (%p205) target = $region28
    $region27: #{residual_block_forward.3} parent=5 // pred_region
      // Predicated region
      $region29: #{residual_block_forward.3} parent=27 // pred_check
        %p208 = pneg %p33
      $region30: #{residual_block_forward.3} parent=27 // pred_check_branch
        %210 = sbr.rel (%p208) target = $region32
      $region31: #{residual_block_forward.3} parent=27 // pred_region
        %s211 = smul.u32 32, %s13
        %p212 = scmp.lt.s32.totalorder %s211, 63
        %s213 = scalar_select %p212, %s211, 63
        %s214 = smul.addr %s213, 4
        %s215 = scalar_lea.vmem %s0, %s214
        %s216 = smul.u32 32, %s13
      $region32: #{residual_block_forward.3} parent=27 // pred_fallthru
        _
    $region28: #{residual_block_forward.3} parent=5 // pred_fallthru
      _
    %p217 = scmp.le.s32.totalorder 1, %s13
    %p218 = scmp.lt.s32.totalorder %s13, 3
    %p219 = pnand %p217, %p218
    %p220 = pneg %p219
    // Predicated region
    $region33: #{residual_block_forward.3} parent=5 // pred_check
      _
    $region34: #{residual_block_forward.3} parent=5 // pred_check_branch
      %222 = sbr.rel (%p219) target = $region36
    $region35: #{residual_block_forward.3} parent=5 // pred_region
      %s223 = ssub.s32 %s13, 1
      %s224 = smul.u32 32, %s18
      %p225 = scmp.lt.s32.totalorder %s224, 63
      %s226 = scalar_select %p225, %s224, 63
      %s227 = smul.addr %s226, 4
      %s228 = scalar_lea.vmem %s0, %s227
      %p229 = pneg %p39
      %p230 = pneg %p36
      %p231 = pneg %p60
      %p232 = pneg %p57
      %p233 = pneg %p81
      %p234 = pneg %p78
      %p235 = pneg %p102
      %p236 = pneg %p99
      %p237 = pneg %p128
      %p238 = pneg %p125
      %s239 = smul.u32 32, %s18
      %p240 = scmp.lt.s32.totalorder %s239, 63
      %s241 = scalar_select %p240, %s239, 63
      %s242 = smul.addr %s241, 4
      %s243 = scalar_lea.vmem %s4, %s242
      %p244 = pneg %p154
      %p245 = pneg %p151
      %p246 = scmp.lt.s32.totalorder %s18, 1
      %s247 = scalar_select %p246, %s18, 1
      %s248 = smul.addr %s247, 8
      %s249 = scalar_lea.vmem %s5, %s248
      %p250 = pneg %p180
      %p251 = pneg %p177
      %p252 = scmp.lt.s32.totalorder %s18, 1
      %s253 = scalar_select %p252, %s18, 1
      %s254 = smul.addr %s253, 8
      %s255 = scalar_lea.vmem %s6, %s254
      %s256 = smul.u32 32, %s18
      %p257 = scmp.lt.s32.totalorder %s256, 63
      %s258 = scalar_select %p257, %s256, 63
      %s259 = smul.addr %s258, 4
      %s260 = scalar_lea.vmem %s0, %s259
      %s261 = smul.u32 32, %s18
      %s262 = smul.u32 32, %s18
      %p263 = scmp.lt.s32.totalorder %s262, 63
      %s264 = scalar_select %p263, %s262, 63
      %s265 = smul.addr %s264, 4
      %s266 = scalar_lea.vmem %s4, %s265
      %s267 = smul.u32 32, %s18
      %p268 = scmp.lt.s32.totalorder %s18, 1
      %s269 = scalar_select %p268, %s18, 1
      %s270 = smul.addr %s269, 8
      %s271 = scalar_lea.vmem %s5, %s270
      %p272 = scmp.lt.s32.totalorder %s18, 1
      %s273 = scalar_select %p272, %s18, 1
      %s274 = smul.addr %s273, 8
      %s275 = scalar_lea.vmem %s6, %s274
      %v277 = vld [vmem:[%s260] sm:$0xf]
      %v278 = vld [vmem:[%s260 + $0x4] sm:$0xf]
      %v279 = vld [vmem:[%s260 + $0x8] sm:$0xf]
      %v280 = vld [vmem:[%s260 + $0xc] sm:$0xf]
      %v281 = vld [vmem:[%s260 + $0x10] sm:$0xf]
      %v282 = vld [vmem:[%s260 + $0x14] sm:$0xf]
      %v283 = vld [vmem:[%s260 + $0x18] sm:$0xf]
      %v284 = vld [vmem:[%s260 + $0x1c] sm:$0xf]
      %v285 = vld [vmem:[%s260 + $0x20] sm:$0xf]
      %v286 = vld [vmem:[%s260 + $0x24] sm:$0xf]
      %v287 = vld [vmem:[%s260 + $0x28] sm:$0xf]
      %v288 = vld [vmem:[%s260 + $0x2c] sm:$0xf]
      %v289 = vld [vmem:[%s260 + $0x30] sm:$0xf]
      %v290 = vld [vmem:[%s260 + $0x34] sm:$0xf]
      %v291 = vld [vmem:[%s260 + $0x38] sm:$0xf]
      %v292 = vld [vmem:[%s260 + $0x3c] sm:$0xf]
      %v293 = vld [vmem:[%s260 + $0x40] sm:$0xf]
      %v294 = vld [vmem:[%s260 + $0x44] sm:$0xf]
      %v295 = vld [vmem:[%s260 + $0x48] sm:$0xf]
      %v296 = vld [vmem:[%s260 + $0x4c] sm:$0xf]
      %v297 = vld [vmem:[%s260 + $0x50] sm:$0xf]
      %v298 = vld [vmem:[%s260 + $0x54] sm:$0xf]
      %v299 = vld [vmem:[%s260 + $0x58] sm:$0xf]
      %v300 = vld [vmem:[%s260 + $0x5c] sm:$0xf]
      %v301 = vld [vmem:[%s260 + $0x60] sm:$0xf]
      %v302 = vld [vmem:[%s260 + $0x64] sm:$0xf]
      %v303 = vld [vmem:[%s260 + $0x68] sm:$0xf]
      %v304 = vld [vmem:[%s260 + $0x6c] sm:$0xf]
      %v305 = vld [vmem:[%s260 + $0x70] sm:$0xf]
      %v306 = vld [vmem:[%s260 + $0x74] sm:$0xf]
      %v307 = vld [vmem:[%s260 + $0x78] sm:$0xf]
      %v308 = vld [vmem:[%s260 + $0x7c] sm:$0xf]
      %v309 = vunpack.c.l.bf16 %v277
      %v310 = vunpack.c.l.bf16 %v278
      %v311 = vunpack.c.l.bf16 %v279
      %v312 = vunpack.c.l.bf16 %v280
      %v313 = vunpack.c.l.bf16 %v281
      %v314 = vunpack.c.l.bf16 %v282
      %v315 = vunpack.c.l.bf16 %v283
      %v316 = vunpack.c.l.bf16 %v284
      %v317 = vunpack.c.l.bf16 %v285
      %v318 = vunpack.c.l.bf16 %v286
      %v319 = vunpack.c.l.bf16 %v287
      %v320 = vunpack.c.l.bf16 %v288
      %v321 = vunpack.c.l.bf16 %v289
      %v322 = vunpack.c.l.bf16 %v290
      %v323 = vunpack.c.l.bf16 %v291
      %v324 = vunpack.c.l.bf16 %v292
      %v325 = vunpack.c.l.bf16 %v293
      %v326 = vunpack.c.l.bf16 %v294
      %v327 = vunpack.c.l.bf16 %v295
      %v328 = vunpack.c.l.bf16 %v296
      %v329 = vunpack.c.l.bf16 %v297
      %v330 = vunpack.c.l.bf16 %v298
      %v331 = vunpack.c.l.bf16 %v299
      %v332 = vunpack.c.l.bf16 %v300
      %v333 = vunpack.c.l.bf16 %v301
      %v334 = vunpack.c.l.bf16 %v302
      %v335 = vunpack.c.l.bf16 %v303
      %v336 = vunpack.c.l.bf16 %v304
      %v337 = vunpack.c.l.bf16 %v305
      %v338 = vunpack.c.l.bf16 %v306
      %v339 = vunpack.c.l.bf16 %v307
      %v340 = vunpack.c.l.bf16 %v308
      %v341 = vld [vmem:[%s1] sm:$0x1]
      %v343 = vlaneseq
      %v344 = vshrl.u32 %v343, 7
      %v345 = vsub.s32 0, %v344
      %v346 = vrot.slane %v341, %v345
      %v348 = vmul.f32 %v309, %v346
      %v349 = vmul.f32 %v310, %v346
      %v350 = vmul.f32 %v311, %v346
      %v351 = vmul.f32 %v312, %v346
      %v352 = vmul.f32 %v313, %v346
      %v353 = vmul.f32 %v314, %v346
      %v354 = vmul.f32 %v315, %v346
      %v355 = vmul.f32 %v316, %v346
      %v356 = vmul.f32 %v317, %v346
      %v357 = vmul.f32 %v318, %v346
      %v358 = vmul.f32 %v319, %v346
      %v359 = vmul.f32 %v320, %v346
      %v360 = vmul.f32 %v321, %v346
      %v361 = vmul.f32 %v322, %v346
      %v362 = vmul.f32 %v323, %v346
      %v363 = vmul.f32 %v324, %v346
      %v364 = vmul.f32 %v325, %v346
      %v365 = vmul.f32 %v326, %v346
      %v366 = vmul.f32 %v327, %v346
      %v367 = vmul.f32 %v328, %v346
      %v368 = vmul.f32 %v329, %v346
      %v369 = vmul.f32 %v330, %v346
      %v370 = vmul.f32 %v331, %v346
      %v371 = vmul.f32 %v332, %v346
      %v372 = vmul.f32 %v333, %v346
      %v373 = vmul.f32 %v334, %v346
      %v374 = vmul.f32 %v335, %v346
      %v375 = vmul.f32 %v336, %v346
      %v376 = vmul.f32 %v337, %v346
      %v377 = vmul.f32 %v338, %v346
      %v378 = vmul.f32 %v339, %v346
      %v379 = vmul.f32 %v340, %v346
      %v380 = vld [vmem:[%s2] sm:$0x1]
      %v382 = vlaneseq
      %v383 = vshrl.u32 %v382, 7
      %v384 = vsub.s32 0, %v383
      %v385 = vrot.slane %v380, %v384
      %v387 = vadd.f32 %v348, %v385
      %v388 = vadd.f32 %v349, %v385
      %v389 = vadd.f32 %v350, %v385
      %v390 = vadd.f32 %v351, %v385
      %v391 = vadd.f32 %v352, %v385
      %v392 = vadd.f32 %v353, %v385
      %v393 = vadd.f32 %v354, %v385
      %v394 = vadd.f32 %v355, %v385
      %v395 = vadd.f32 %v356, %v385
      %v396 = vadd.f32 %v357, %v385
      %v397 = vadd.f32 %v358, %v385
      %v398 = vadd.f32 %v359, %v385
      %v399 = vadd.f32 %v360, %v385
      %v400 = vadd.f32 %v361, %v385
      %v401 = vadd.f32 %v362, %v385
      %v402 = vadd.f32 %v363, %v385
      %v403 = vadd.f32 %v364, %v385
      %v404 = vadd.f32 %v365, %v385
      %v405 = vadd.f32 %v366, %v385
      %v406 = vadd.f32 %v367, %v385
      %v407 = vadd.f32 %v368, %v385
      %v408 = vadd.f32 %v369, %v385
      %v409 = vadd.f32 %v370, %v385
      %v410 = vadd.f32 %v371, %v385
      %v411 = vadd.f32 %v372, %v385
      %v412 = vadd.f32 %v373, %v385
      %v413 = vadd.f32 %v374, %v385
      %v414 = vadd.f32 %v375, %v385
      %v415 = vadd.f32 %v376, %v385
      %v416 = vadd.f32 %v377, %v385
      %v417 = vadd.f32 %v378, %v385
      %v418 = vadd.f32 %v379, %v385
      %v419 = vmax.f32 %v387, 0.0
      %v420 = vmax.f32 %v388, 0.0
      %v421 = vmax.f32 %v389, 0.0
      %v422 = vmax.f32 %v390, 0.0
      %v423 = vmax.f32 %v391, 0.0
      %v424 = vmax.f32 %v392, 0.0
      %v425 = vmax.f32 %v393, 0.0
      %v426 = vmax.f32 %v394, 0.0
      %v427 = vmax.f32 %v395, 0.0
      %v428 = vmax.f32 %v396, 0.0
      %v429 = vmax.f32 %v397, 0.0
      %v430 = vmax.f32 %v398, 0.0
      %v431 = vmax.f32 %v399, 0.0
      %v432 = vmax.f32 %v400, 0.0
      %v433 = vmax.f32 %v401, 0.0
      %v434 = vmax.f32 %v402, 0.0
      %v435 = vmax.f32 %v403, 0.0
      %v436 = vmax.f32 %v404, 0.0
      %v437 = vmax.f32 %v405, 0.0
      %v438 = vmax.f32 %v406, 0.0
      %v439 = vmax.f32 %v407, 0.0
      %v440 = vmax.f32 %v408, 0.0
      %v441 = vmax.f32 %v409, 0.0
      %v442 = vmax.f32 %v410, 0.0
      %v443 = vmax.f32 %v411, 0.0
      %v444 = vmax.f32 %v412, 0.0
      %v445 = vmax.f32 %v413, 0.0
      %v446 = vmax.f32 %v414, 0.0
      %v447 = vmax.f32 %v415, 0.0
      %v448 = vmax.f32 %v416, 0.0
      %v449 = vmax.f32 %v417, 0.0
      %v450 = vmax.f32 %v418, 0.0
      %v451 = vpack.c.bf16 %v420, %v419
      %v452 = vpack.c.bf16 %v422, %v421
      %v453 = vpack.c.bf16 %v424, %v423
      %v454 = vpack.c.bf16 %v426, %v425
      %v455 = vpack.c.bf16 %v428, %v427
      %v456 = vpack.c.bf16 %v430, %v429
      %v457 = vpack.c.bf16 %v432, %v431
      %v458 = vpack.c.bf16 %v434, %v433
      %v459 = vpack.c.bf16 %v436, %v435
      %v460 = vpack.c.bf16 %v438, %v437
      %v461 = vpack.c.bf16 %v440, %v439
      %v462 = vpack.c.bf16 %v442, %v441
      %v463 = vpack.c.bf16 %v444, %v443
      %v464 = vpack.c.bf16 %v446, %v445
      %v465 = vpack.c.bf16 %v448, %v447
      %v466 = vpack.c.bf16 %v450, %v449
      %v467 = vld [vmem:[%s3] sm:$0xf]
      %v468 = vld [vmem:[%s3 + $0x4] sm:$0xf]
      %v469 = vld [vmem:[%s3 + $0x8] sm:$0xf]
      %v470 = vld [vmem:[%s3 + $0xc] sm:$0xf]
      %v471 = vld [vmem:[%s3 + $0x10] sm:$0xf]
      %v472 = vld [vmem:[%s3 + $0x14] sm:$0xf]
      %v473 = vld [vmem:[%s3 + $0x18] sm:$0xf]
      %v474 = vld [vmem:[%s3 + $0x1c] sm:$0xf]
      %v475 = vld [vmem:[%s3 + $0x20] sm:$0xf]
      %v476 = vld [vmem:[%s3 + $0x24] sm:$0xf]
      %v477 = vld [vmem:[%s3 + $0x28] sm:$0xf]
      %v478 = vld [vmem:[%s3 + $0x2c] sm:$0xf]
      %v479 = vld [vmem:[%s3 + $0x30] sm:$0xf]
      %v480 = vld [vmem:[%s3 + $0x34] sm:$0xf]
      %v481 = vld [vmem:[%s3 + $0x38] sm:$0xf]
      %v482 = vld [vmem:[%s3 + $0x3c] sm:$0xf]
      %v499 = vunpack.c.l.b16 %v467
      %v500 = vunpack.c.l.b16 %v468
      %v501 = vunpack.c.l.b16 %v469
      %v502 = vunpack.c.l.b16 %v470
      %v503 = vunpack.c.l.b16 %v471
      %v504 = vunpack.c.l.b16 %v472
      %v505 = vunpack.c.l.b16 %v473
      %v506 = vunpack.c.l.b16 %v474
      %v507 = vunpack.c.l.b16 %v475
      %v508 = vunpack.c.l.b16 %v476
      %v509 = vunpack.c.l.b16 %v477
      %v510 = vunpack.c.l.b16 %v478
      %v511 = vunpack.c.l.b16 %v479
      %v512 = vunpack.c.l.b16 %v480
      %v513 = vunpack.c.l.b16 %v481
      %v514 = vunpack.c.l.b16 %v482
      %v515 = vpack.c.b16 %v500, %v499
      %v516 = vpack.c.b16 %v502, %v501
      %v517 = vpack.c.b16 %v504, %v503
      %v518 = vpack.c.b16 %v506, %v505
      %v519 = vpack.c.b16 %v508, %v507
      %v520 = vpack.c.b16 %v510, %v509
      %v521 = vpack.c.b16 %v512, %v511
      %v522 = vpack.c.b16 %v514, %v513
      %531 = vmatprep.subr.bf16.mxu0 0
      %532 = vmatpush1.bf16.msra.mxu0 %v515
      %533 = vmatprep.subr.bf16.mxu0 0
      %534 = vmatpush1.bf16.msra.mxu0 %v516
      %535 = vmatprep.subr.bf16.mxu0 0
      %536 = vmatpush1.bf16.msra.mxu0 %v517
      %537 = vmatprep.subr.bf16.mxu0 0
      %538 = vmatpush1.bf16.msra.mxu0 %v518
      %539 = vmatprep.subr.bf16.mxu0 0
      %540 = vmatpush1.bf16.msra.mxu0 %v519
      %541 = vmatprep.subr.bf16.mxu0 0
      %542 = vmatpush1.bf16.msra.mxu0 %v520
      %543 = vmatprep.subr.bf16.mxu0 0
      %544 = vmatpush1.bf16.msra.mxu0 %v521
      %545 = vmatprep.subr.bf16.mxu0 0
      %546 = vmatpush1.bf16.msra.mxu0 %v522
      %547 = vmatprep.subr.bf16.mxu0 0
      %548 = vmatpush1.bf16.msra.mxu0 0
      %549 = vmatprep.subr.bf16.mxu0 0
      %550 = vmatpush1.bf16.msra.mxu0 0
      %551 = vmatprep.subr.bf16.mxu0 0
      %552 = vmatpush1.bf16.msra.mxu0 0
      %553 = vmatprep.subr.bf16.mxu0 0
      %554 = vmatpush1.bf16.msra.mxu0 0
      %555 = vmatprep.subr.bf16.mxu0 0
      %556 = vmatpush1.bf16.msra.mxu0 0
      %557 = vmatprep.subr.bf16.mxu0 0
      %558 = vmatpush1.bf16.msra.mxu0 0
      %559 = vmatprep.subr.bf16.mxu0 0
      %560 = vmatpush1.bf16.msra.mxu0 0
      %561 = vmatprep.subr.bf16.mxu0 0
      %562 = vmatpush1.bf16.msra.mxu0 0
      %563 = vmatprep.mubr.bf16.mxu0 0
      %564 = vmatmul.mubr.bf16.gmra.mrb[0].mxu0 %v451
      %v565 = vpop.f32.mrb[0].mxu0
      %v566 = vadd.f32 0.0, %v565
      %v567 = vpop.f32.mrb[0].mxu0
      %v568 = vpop.f32.mrb[0].mxu0
      %v569 = vadd.f32 0.0, %v568
      %v570 = vpop.f32.mrb[0].mxu0
      %571 = vmatprep.mubr.bf16.mxu0 0
      %572 = vmatmul.mubr.bf16.gmra.mrb[0].mxu0 %v452
      %v573 = vpop.f32.mrb[0].mxu0
      %v574 = vadd.f32 0.0, %v573
      %v575 = vpop.f32.mrb[0].mxu0
      %v576 = vpop.f32.mrb[0].mxu0
      %v577 = vadd.f32 0.0, %v576
      %v578 = vpop.f32.mrb[0].mxu0
      %579 = vmatprep.mubr.bf16.mxu0 0
      %580 = vmatmul.mubr.bf16.gmra.mrb[0].mxu0 %v453
      %v581 = vpop.f32.mrb[0].mxu0
      %v582 = vadd.f32 0.0, %v581
      %v583 = vpop.f32.mrb[0].mxu0
      %v584 = vpop.f32.mrb[0].mxu0
      %v585 = vadd.f32 0.0, %v584
      %v586 = vpop.f32.mrb[0].mxu0
      %587 = vmatprep.mubr.bf16.mxu0 0
      %588 = vmatmul.mubr.bf16.gmra.mrb[0].mxu0 %v454
      %v589 = vpop.f32.mrb[0].mxu0
      %v590 = vadd.f32 0.0, %v589
      %v591 = vpop.f32.mrb[0].mxu0
      %v592 = vpop.f32.mrb[0].mxu0
      %v593 = vadd.f32 0.0, %v592
      %v594 = vpop.f32.mrb[0].mxu0
      %595 = vmatprep.mubr.bf16.mxu0 0
      %596 = vmatmul.mubr.bf16.gmra.mrb[0].mxu0 %v455
      %v597 = vpop.f32.mrb[0].mxu0
      %v598 = vadd.f32 0.0, %v597
      %v599 = vpop.f32.mrb[0].mxu0
      %v600 = vpop.f32.mrb[0].mxu0
      %v601 = vadd.f32 0.0, %v600
      %v602 = vpop.f32.mrb[0].mxu0
      %603 = vmatprep.mubr.bf16.mxu0 0
      %604 = vmatmul.mubr.bf16.gmra.mrb[0].mxu0 %v456
      %v605 = vpop.f32.mrb[0].mxu0
      %v606 = vadd.f32 0.0, %v605
      %v607 = vpop.f32.mrb[0].mxu0
      %v608 = vpop.f32.mrb[0].mxu0
      %v609 = vadd.f32 0.0, %v608
      %v610 = vpop.f32.mrb[0].mxu0
      %611 = vmatprep.mubr.bf16.mxu0 0
      %612 = vmatmul.mubr.bf16.gmra.mrb[0].mxu0 %v457
      %v613 = vpop.f32.mrb[0].mxu0
      %v614 = vadd.f32 0.0, %v613
      %v615 = vpop.f32.mrb[0].mxu0
      %v616 = vpop.f32.mrb[0].mxu0
      %v617 = vadd.f32 0.0, %v616
      %v618 = vpop.f32.mrb[0].mxu0
      %619 = vmatprep.mubr.bf16.mxu0 0
      %620 = vmatmul.mubr.bf16.gmra.mrb[0].mxu0 %v458
      %v621 = vpop.f32.mrb[0].mxu0
      %v622 = vadd.f32 0.0, %v621
      %v623 = vpop.f32.mrb[0].mxu0
      %v624 = vpop.f32.mrb[0].mxu0
      %v625 = vadd.f32 0.0, %v624
      %v626 = vpop.f32.mrb[0].mxu0
      %627 = vmatprep.mubr.bf16.mxu0 0
      %628 = vmatmul.mubr.bf16.gmra.mrb[0].mxu0 %v459
      %v629 = vpop.f32.mrb[0].mxu0
      %v630 = vadd.f32 0.0, %v629
      %v631 = vpop.f32.mrb[0].mxu0
      %v632 = vpop.f32.mrb[0].mxu0
      %v633 = vadd.f32 0.0, %v632
      %v634 = vpop.f32.mrb[0].mxu0
      %635 = vmatprep.mubr.bf16.mxu0 0
      %636 = vmatmul.mubr.bf16.gmra.mrb[0].mxu0 %v460
      %v637 = vpop.f32.mrb[0].mxu0
      %v638 = vadd.f32 0.0, %v637
      %v639 = vpop.f32.mrb[0].mxu0
      %v640 = vpop.f32.mrb[0].mxu0
      %v641 = vadd.f32 0.0, %v640
      %v642 = vpop.f32.mrb[0].mxu0
      %643 = vmatprep.mubr.bf16.mxu0 0
      %644 = vmatmul.mubr.bf16.gmra.mrb[0].mxu0 %v461
      %v645 = vpop.f32.mrb[0].mxu0
      %v646 = vadd.f32 0.0, %v645
      %v647 = vpop.f32.mrb[0].mxu0
      %v648 = vpop.f32.mrb[0].mxu0
      %v649 = vadd.f32 0.0, %v648
      %v650 = vpop.f32.mrb[0].mxu0
      %651 = vmatprep.mubr.bf16.mxu0 0
      %652 = vmatmul.mubr.bf16.gmra.mrb[0].mxu0 %v462
      %v653 = vpop.f32.mrb[0].mxu0
      %v654 = vadd.f32 0.0, %v653
      %v655 = vpop.f32.mrb[0].mxu0
      %v656 = vpop.f32.mrb[0].mxu0
      %v657 = vadd.f32 0.0, %v656
      %v658 = vpop.f32.mrb[0].mxu0
      %659 = vmatprep.mubr.bf16.mxu0 0
      %660 = vmatmul.mubr.bf16.gmra.mrb[0].mxu0 %v463
      %v661 = vpop.f32.mrb[0].mxu0
      %v662 = vadd.f32 0.0, %v661
      %v663 = vpop.f32.mrb[0].mxu0
      %v664 = vpop.f32.mrb[0].mxu0
      %v665 = vadd.f32 0.0, %v664
      %v666 = vpop.f32.mrb[0].mxu0
      %667 = vmatprep.mubr.bf16.mxu0 0
      %668 = vmatmul.mubr.bf16.gmra.mrb[0].mxu0 %v464
      %v669 = vpop.f32.mrb[0].mxu0
      %v670 = vadd.f32 0.0, %v669
      %v671 = vpop.f32.mrb[0].mxu0
      %v672 = vpop.f32.mrb[0].mxu0
      %v673 = vadd.f32 0.0, %v672
      %v674 = vpop.f32.mrb[0].mxu0
      %675 = vmatprep.mubr.bf16.mxu0 0
      %676 = vmatmul.mubr.bf16.gmra.mrb[0].mxu0 %v465
      %v677 = vpop.f32.mrb[0].mxu0
      %v678 = vadd.f32 0.0, %v677
      %v679 = vpop.f32.mrb[0].mxu0
      %v680 = vpop.f32.mrb[0].mxu0
      %v681 = vadd.f32 0.0, %v680
      %v682 = vpop.f32.mrb[0].mxu0
      %683 = vmatprep.mubr.bf16.mxu0 0
      %684 = vmatmul.mubr.bf16.gmra.mrb[0].mxu0 %v466
      %v685 = vpop.f32.mrb[0].mxu0
      %v686 = vadd.f32 0.0, %v685
      %v687 = vpop.f32.mrb[0].mxu0
      %v688 = vpop.f32.mrb[0].mxu0
      %v689 = vadd.f32 0.0, %v688
      %v690 = vpop.f32.mrb[0].mxu0
      %691 = vdwg.mxu0
      %v692 = vpack.c.bf16 %v569, %v566
      %v693 = vpack.c.bf16 %v577, %v574
      %v694 = vpack.c.bf16 %v585, %v582
      %v695 = vpack.c.bf16 %v593, %v590
      %v696 = vpack.c.bf16 %v601, %v598
      %v697 = vpack.c.bf16 %v609, %v606
      %v698 = vpack.c.bf16 %v617, %v614
      %v699 = vpack.c.bf16 %v625, %v622
      %v700 = vpack.c.bf16 %v633, %v630
      %v701 = vpack.c.bf16 %v641, %v638
      %v702 = vpack.c.bf16 %v649, %v646
      %v703 = vpack.c.bf16 %v657, %v654
      %v704 = vpack.c.bf16 %v665, %v662
      %v705 = vpack.c.bf16 %v673, %v670
      %v706 = vpack.c.bf16 %v681, %v678
      %v707 = vpack.c.bf16 %v689, %v686
      %v724 = vunpack.c.l.b16 %v692
      %v725 = vunpack.c.h.b16 %v692
      %v726 = vunpack.c.l.b16 %v693
      %v727 = vunpack.c.h.b16 %v693
      %v728 = vunpack.c.l.b16 %v694
      %v729 = vunpack.c.h.b16 %v694
      %v730 = vunpack.c.l.b16 %v695
      %v731 = vunpack.c.h.b16 %v695
      %v732 = vunpack.c.l.b16 %v696
      %v733 = vunpack.c.h.b16 %v696
      %v734 = vunpack.c.l.b16 %v697
      %v735 = vunpack.c.h.b16 %v697
      %v736 = vunpack.c.l.b16 %v698
      %v737 = vunpack.c.h.b16 %v698
      %v738 = vunpack.c.l.b16 %v699
      %v739 = vunpack.c.h.b16 %v699
      %v740 = vunpack.c.l.b16 %v700
      %v741 = vunpack.c.h.b16 %v700
      %v742 = vunpack.c.l.b16 %v701
      %v743 = vunpack.c.h.b16 %v701
      %v744 = vunpack.c.l.b16 %v702
      %v745 = vunpack.c.h.b16 %v702
      %v746 = vunpack.c.l.b16 %v703
      %v747 = vunpack.c.h.b16 %v703
      %v748 = vunpack.c.l.b16 %v704
      %v749 = vunpack.c.h.b16 %v704
      %v750 = vunpack.c.l.b16 %v705
      %v751 = vunpack.c.h.b16 %v705
      %v752 = vunpack.c.l.b16 %v706
      %v753 = vunpack.c.h.b16 %v706
      %v754 = vunpack.c.l.b16 %v707
      %v755 = vunpack.c.h.b16 %v707
      %v756 = vpack.c.b16 %v724, %v724
      %v757 = vpack.c.b16 %v725, %v725
      %v758 = vpack.c.b16 %v726, %v726
      %v759 = vpack.c.b16 %v727, %v727
      %v760 = vpack.c.b16 %v728, %v728
      %v761 = vpack.c.b16 %v729, %v729
      %v762 = vpack.c.b16 %v730, %v730
      %v763 = vpack.c.b16 %v731, %v731
      %v764 = vpack.c.b16 %v732, %v732
      %v765 = vpack.c.b16 %v733, %v733
      %v766 = vpack.c.b16 %v734, %v734
      %v767 = vpack.c.b16 %v735, %v735
      %v768 = vpack.c.b16 %v736, %v736
      %v769 = vpack.c.b16 %v737, %v737
      %v770 = vpack.c.b16 %v738, %v738
      %v771 = vpack.c.b16 %v739, %v739
      %v772 = vpack.c.b16 %v740, %v740
      %v773 = vpack.c.b16 %v741, %v741
      %v774 = vpack.c.b16 %v742, %v742
      %v775 = vpack.c.b16 %v743, %v743
      %v776 = vpack.c.b16 %v744, %v744
      %v777 = vpack.c.b16 %v745, %v745
      %v778 = vpack.c.b16 %v746, %v746
      %v779 = vpack.c.b16 %v747, %v747
      %v780 = vpack.c.b16 %v748, %v748
      %v781 = vpack.c.b16 %v749, %v749
      %v782 = vpack.c.b16 %v750, %v750
      %v783 = vpack.c.b16 %v751, %v751
      %v784 = vpack.c.b16 %v752, %v752
      %v785 = vpack.c.b16 %v753, %v753
      %v786 = vpack.c.b16 %v754, %v754
      %v787 = vpack.c.b16 %v755, %v755
      %820 = vst [vmem:[%s266] sm:$0xf] %v756
      %821 = vst [vmem:[%s266 + $0x4] sm:$0xf] %v757
      %822 = vst [vmem:[%s266 + $0x8] sm:$0xf] %v758
      %823 = vst [vmem:[%s266 + $0xc] sm:$0xf] %v759
      %824 = vst [vmem:[%s266 + $0x10] sm:$0xf] %v760
      %825 = vst [vmem:[%s266 + $0x14] sm:$0xf] %v761
      %826 = vst [vmem:[%s266 + $0x18] sm:$0xf] %v762
      %827 = vst [vmem:[%s266 + $0x1c] sm:$0xf] %v763
      %828 = vst [vmem:[%s266 + $0x20] sm:$0xf] %v764
      %829 = vst [vmem:[%s266 + $0x24] sm:$0xf] %v765
      %830 = vst [vmem:[%s266 + $0x28] sm:$0xf] %v766
      %831 = vst [vmem:[%s266 + $0x2c] sm:$0xf] %v767
      %832 = vst [vmem:[%s266 + $0x30] sm:$0xf] %v768
      %833 = vst [vmem:[%s266 + $0x34] sm:$0xf] %v769
      %834 = vst [vmem:[%s266 + $0x38] sm:$0xf] %v770
      %835 = vst [vmem:[%s266 + $0x3c] sm:$0xf] %v771
      %836 = vst [vmem:[%s266 + $0x40] sm:$0xf] %v772
      %837 = vst [vmem:[%s266 + $0x44] sm:$0xf] %v773
      %838 = vst [vmem:[%s266 + $0x48] sm:$0xf] %v774
      %839 = vst [vmem:[%s266 + $0x4c] sm:$0xf] %v775
      %840 = vst [vmem:[%s266 + $0x50] sm:$0xf] %v776
      %841 = vst [vmem:[%s266 + $0x54] sm:$0xf] %v777
      %842 = vst [vmem:[%s266 + $0x58] sm:$0xf] %v778
      %843 = vst [vmem:[%s266 + $0x5c] sm:$0xf] %v779
      %844 = vst [vmem:[%s266 + $0x60] sm:$0xf] %v780
      %845 = vst [vmem:[%s266 + $0x64] sm:$0xf] %v781
      %846 = vst [vmem:[%s266 + $0x68] sm:$0xf] %v782
      %847 = vst [vmem:[%s266 + $0x6c] sm:$0xf] %v783
      %848 = vst [vmem:[%s266 + $0x70] sm:$0xf] %v784
      %849 = vst [vmem:[%s266 + $0x74] sm:$0xf] %v785
      %850 = vst [vmem:[%s266 + $0x78] sm:$0xf] %v786
      %851 = vst [vmem:[%s266 + $0x7c] sm:$0xf] %v787
      %v852 = vadd.f32 %v566, %v569
      %v853 = vadd.f32 %v852, %v574
      %v854 = vadd.f32 %v853, %v577
      %v855 = vadd.f32 %v854, %v582
      %v856 = vadd.f32 %v855, %v585
      %v857 = vadd.f32 %v856, %v590
      %v858 = vadd.f32 %v857, %v593
      %v859 = vadd.f32 %v858, %v598
      %v860 = vadd.f32 %v859, %v601
      %v861 = vadd.f32 %v860, %v606
      %v862 = vadd.f32 %v861, %v609
      %v863 = vadd.f32 %v862, %v614
      %v864 = vadd.f32 %v863, %v617
      %v865 = vadd.f32 %v864, %v622
      %v866 = vadd.f32 %v865, %v625
      %v867 = vadd.f32 %v866, %v630
      %v868 = vadd.f32 %v867, %v633
      %v869 = vadd.f32 %v868, %v638
      %v870 = vadd.f32 %v869, %v641
      %v871 = vadd.f32 %v870, %v646
      %v872 = vadd.f32 %v871, %v649
      %v873 = vadd.f32 %v872, %v654
      %v874 = vadd.f32 %v873, %v657
      %v875 = vadd.f32 %v874, %v662
      %v876 = vadd.f32 %v875, %v665
      %v877 = vadd.f32 %v876, %v670
      %v878 = vadd.f32 %v877, %v673
      %v879 = vadd.f32 %v878, %v678
      %v880 = vadd.f32 %v879, %v681
      %v881 = vadd.f32 %v880, %v686
      %v882 = vadd.f32 %v881, %v689
      %v883 = vrot.slane %v882, 4
      %v884 = vadd.f32 %v882, %v883
      %v885 = vrot.slane %v884, 2
      %v886 = vadd.f32 %v884, %v885
      %v887 = vrot.slane %v886, 1
      %v888 = vadd.f32 %v886, %v887
      %v889 = vmul.f32 %v566, %v566
      %v890 = vmul.f32 %v569, %v569
      %v891 = vmul.f32 %v574, %v574
      %v892 = vmul.f32 %v577, %v577
      %v893 = vmul.f32 %v582, %v582
      %v894 = vmul.f32 %v585, %v585
      %v895 = vmul.f32 %v590, %v590
      %v896 = vmul.f32 %v593, %v593
      %v897 = vmul.f32 %v598, %v598
      %v898 = vmul.f32 %v601, %v601
      %v899 = vmul.f32 %v606, %v606
      %v900 = vmul.f32 %v609, %v609
      %v901 = vmul.f32 %v614, %v614
      %v902 = vmul.f32 %v617, %v617
      %v903 = vmul.f32 %v622, %v622
      %v904 = vmul.f32 %v625, %v625
      %v905 = vmul.f32 %v630, %v630
      %v906 = vmul.f32 %v633, %v633
      %v907 = vmul.f32 %v638, %v638
      %v908 = vmul.f32 %v641, %v641
      %v909 = vmul.f32 %v646, %v646
      %v910 = vmul.f32 %v649, %v649
      %v911 = vmul.f32 %v654, %v654
      %v912 = vmul.f32 %v657, %v657
      %v913 = vmul.f32 %v662, %v662
      %v914 = vmul.f32 %v665, %v665
      %v915 = vmul.f32 %v670, %v670
      %v916 = vmul.f32 %v673, %v673
      %v917 = vmul.f32 %v678, %v678
      %v918 = vmul.f32 %v681, %v681
      %v919 = vmul.f32 %v686, %v686
      %v920 = vmul.f32 %v689, %v689
      %v921 = vadd.f32 %v889, %v890
      %v922 = vadd.f32 %v921, %v891
      %v923 = vadd.f32 %v922, %v892
      %v924 = vadd.f32 %v923, %v893
      %v925 = vadd.f32 %v924, %v894
      %v926 = vadd.f32 %v925, %v895
      %v927 = vadd.f32 %v926, %v896
      %v928 = vadd.f32 %v927, %v897
      %v929 = vadd.f32 %v928, %v898
      %v930 = vadd.f32 %v929, %v899
      %v931 = vadd.f32 %v930, %v900
      %v932 = vadd.f32 %v931, %v901
      %v933 = vadd.f32 %v932, %v902
      %v934 = vadd.f32 %v933, %v903
      %v935 = vadd.f32 %v934, %v904
      %v936 = vadd.f32 %v935, %v905
      %v937 = vadd.f32 %v936, %v906
      %v938 = vadd.f32 %v937, %v907
      %v939 = vadd.f32 %v938, %v908
      %v940 = vadd.f32 %v939, %v909
      %v941 = vadd.f32 %v940, %v910
      %v942 = vadd.f32 %v941, %v911
      %v943 = vadd.f32 %v942, %v912
      %v944 = vadd.f32 %v943, %v913
      %v945 = vadd.f32 %v944, %v914
      %v946 = vadd.f32 %v945, %v915
      %v947 = vadd.f32 %v946, %v916
      %v948 = vadd.f32 %v947, %v917
      %v949 = vadd.f32 %v948, %v918
      %v950 = vadd.f32 %v949, %v919
      %v951 = vadd.f32 %v950, %v920
      %v952 = vrot.slane %v951, 4
      %v953 = vadd.f32 %v951, %v952
      %v954 = vrot.slane %v953, 2
      %v955 = vadd.f32 %v953, %v954
      %v956 = vrot.slane %v955, 1
      %v957 = vadd.f32 %v955, %v956
      %958 = vst [vmem:[%s271] sm:$0xff] %v888
      %959 = vst [vmem:[%s275] sm:$0xff] %v957
      %s960 = smul.u32 32, %s18
      %p961 = scmp.lt.s32.totalorder %s960, 63
      %s962 = scalar_select %p961, %s960, 63
      %s963 = smul.addr %s962, 4
      %s964 = scalar_lea.vmem %s4, %s963
      %p965 = scmp.lt.s32.totalorder %s18, 1
      %s966 = scalar_select %p965, %s18, 1
      %s967 = smul.addr %s966, 8
      %s968 = scalar_lea.vmem %s5, %s967
      %p969 = scmp.lt.s32.totalorder %s18, 1
      %s970 = scalar_select %p969, %s18, 1
      %s971 = smul.addr %s970, 8
      %s972 = scalar_lea.vmem %s6, %s971
      // Predicated region
      $region37: #{residual_block_forward.3} parent=35 // pred_check
        %p973 = pneg %p125
      $region38: #{residual_block_forward.3} parent=35 // pred_check_branch
        %975 = sbr.rel (%p973) target = $region40
      $region39: #{residual_block_forward.3} parent=35 // pred_region
        %s976 = smul.u32 32, %s18
      $region40: #{residual_block_forward.3} parent=35 // pred_fallthru
        _
      // Predicated region
      $region41: #{residual_block_forward.3} parent=35 // pred_check
        %p977 = pneg %p151
      $region42: #{residual_block_forward.3} parent=35 // pred_check_branch
        %979 = sbr.rel (%p977) target = $region44
      $region43: #{residual_block_forward.3} parent=35 // pred_region
        _
      $region44: #{residual_block_forward.3} parent=35 // pred_fallthru
        _
      // Predicated region
      $region45: #{residual_block_forward.3} parent=35 // pred_check
        %p980 = pneg %p177
      $region46: #{residual_block_forward.3} parent=35 // pred_check_branch
        %982 = sbr.rel (%p980) target = $region48
      $region47: #{residual_block_forward.3} parent=35 // pred_region
        _
      $region48: #{residual_block_forward.3} parent=35 // pred_fallthru
        _
    $region36: #{residual_block_forward.3} parent=5 // pred_fallthru
      _
    %p983 = scmp.le.s32.totalorder 2, %s13
    // Predicated region
    $region49: #{residual_block_forward.3} parent=5 // pred_check
      %p984 = pneg %p983
    $region50: #{residual_block_forward.3} parent=5 // pred_check_branch
      %986 = sbr.rel (%p984) target = $region52
    $region51: #{residual_block_forward.3} parent=5 // pred_region
      %s987 = ssub.s32 %s13, 2
      // Predicated region
      $region53: #{residual_block_forward.3} parent=51 // pred_check
        %p988 = pneg %p131
      $region54: #{residual_block_forward.3} parent=51 // pred_check_branch
        %990 = sbr.rel (%p988) target = $region56
      $region55: #{residual_block_forward.3} parent=51 // pred_region
        %s991 = smul.u32 32, %s19
        %p992 = scmp.lt.s32.totalorder %s991, 63
        %s993 = scalar_select %p992, %s991, 63
        %s994 = smul.addr %s993, 4
        %s995 = scalar_lea.vmem %s4, %s994
      $region56: #{residual_block_forward.3} parent=51 // pred_fallthru
        _
      // Predicated region
      $region57: #{residual_block_forward.3} parent=51 // pred_check
        %p996 = pneg %p157
      $region58: #{residual_block_forward.3} parent=51 // pred_check_branch
        %998 = sbr.rel (%p996) target = $region60
      $region59: #{residual_block_forward.3} parent=51 // pred_region
        %p999 = scmp.lt.s32.totalorder %s19, 1
        %s1000 = scalar_select %p999, %s19, 1
        %s1001 = smul.addr %s1000, 8
        %s1002 = scalar_lea.vmem %s5, %s1001
      $region60: #{residual_block_forward.3} parent=51 // pred_fallthru
        _
      // Predicated region
      $region61: #{residual_block_forward.3} parent=51 // pred_check
        %p1003 = pneg %p183
      $region62: #{residual_block_forward.3} parent=51 // pred_check_branch
        %1005 = sbr.rel (%p1003) target = $region64
      $region63: #{residual_block_forward.3} parent=51 // pred_region
        %p1006 = scmp.lt.s32.totalorder %s19, 1
        %s1007 = scalar_select %p1006, %s19, 1
        %s1008 = smul.addr %s1007, 8
        %s1009 = scalar_lea.vmem %s6, %s1008
      $region64: #{residual_block_forward.3} parent=51 // pred_fallthru
        _
    $region52: #{residual_block_forward.3} parent=5 // pred_fallthru
      _
  $region6: #{residual_block_forward.3} parent=0 // loop_footer
    %s17 = sadd.s32 1, %s13
  $region7: #{residual_block_forward.3} parent=0 // loop_footer_branch
    %12 = sbr.rel target = $region3
  $region8: #{residual_block_forward.3} parent=0 // loop_exit
    _

// kernel: residual_block_forward.5
$region0: #{residual_block_forward.5}
  #allocation0 [shape = 'u32[]', space=smem, size = 0x4, offset = 0x4, fixed_abs, tag = 'smem constant byte address 0x4 - core index']
  #allocation1 [shape = 'u32[144,128]{1,0:T(1,128)}', space=vmem, size = 0x12000, scoped, tag = 'internal scratch']
  %s0 = inlined_call_operand.vmem [shape: bf16[512,128], index: 0, kind: input, shape index: {}]
  %s1 = inlined_call_operand.vmem [shape: f32[1,128], index: 1, kind: input, shape index: {}]
  %s2 = inlined_call_operand.vmem [shape: f32[1,128], index: 2, kind: input, shape index: {}]
  %s3 = inlined_call_operand.vmem [shape: bf16[128,128], index: 3, kind: input, shape index: {}]
  %s4 = inlined_call_operand.vmem [shape: bf16[512,128], index: 4, kind: input, shape index: {}]
  %s5 = inlined_call_operand.vmem [shape: f32[1,128], index: 5, kind: input, shape index: {}]
  %s6 = inlined_call_operand.vmem [shape: f32[1,128], index: 6, kind: input, shape index: {}]
  %s7 = inlined_call_operand.vmem [shape: bf16[128,128], index: 7, kind: input, shape index: {}]
  %s8 = inlined_call_operand.vmem [shape: f32[512,128], index: 8, kind: output, shape index: {}]
  %s9 = sld [smem:[#allocation0]]
  $region65: #{residual_block_forward.5} parent=0
    _
  %s11 = ssub.s32 1, %s9
  %s12 = scalar_select 0, %s11, %s9
  loop: start=0, step=1, limit=4
  $region2: #{residual_block_forward.5} parent=0 // loop_pre_header
    _
  $region3: #{residual_block_forward.5} parent=0 // loop_header
    %s14 = sphi 0, %s18
    %p15 = scmp.ge.s32.totalorder %s14, 4
    %s24 = sphi 0, %s26
    %s27 = sphi 0, %s24
    %s28 = sphi 0, %s27
    %s44 = sphi 0, %s28
    %s48 = sphi 0, %s48
    %s50 = sphi 0, %s48
    %s51 = sphi 0, %s50
    %s65 = sphi 0, %s51
    %s69 = sphi 0, %s69
    %s71 = sphi 0, %s69
    %s72 = sphi 0, %s71
    %s86 = sphi 0, %s72
    %s90 = sphi 0, %s90
    %s92 = sphi 0, %s90
    %s93 = sphi 0, %s92
    %s107 = sphi 0, %s93
    %s113 = sphi 0, %s115
    %s116 = sphi 0, %s113
    %s117 = sphi 0, %s116
    %s133 = sphi 0, %s117
    %s137 = sphi 0, %s137
    %s139 = sphi 0, %s137
    %s140 = sphi 0, %s139
    %s154 = sphi 0, %s140
    %s158 = sphi 0, %s158
    %s160 = sphi 0, %s158
    %s161 = sphi 0, %s160
    %s175 = sphi 0, %s161
    %s179 = sphi 0, %s179
    %s181 = sphi 0, %s179
    %s182 = sphi 0, %s181
    %s196 = sphi 0, %s182
    %s202 = sphi 0, %s204
    %s205 = sphi 0, %s202
    %s206 = sphi 0, %s205
    %s222 = sphi 0, %s206
  $region4: #{residual_block_forward.5} parent=0 // loop_header_branch
    %17 = sbr.rel (%p15) target = $region8
  $region5: #{residual_block_forward.5} parent=0 // loop_body
    %s19 = ssub.s32 %s14, 1
    %s20 = ssub.s32 %s14, 2
    %s21 = sadd.s32 %s14, 1
    %s22 = ssub.s32 %s14, %s21
    %p23 = scmp.eq.s32.totalorder %s22, 0
    %s25 = sadd.s32 %s24, 1
    %s26 = scalar_select %p23, %s24, %s25
    %p29 = pneg %p23
    %p30 = scmp.eq.s32.totalorder %s14, 1
    %p31 = por %p29, %p30
    %p32 = scmp.ne.s32.totalorder %s24, %s27
    %p33 = scmp.eq.s32.totalorder %s14, 0
    %p34 = por %p32, %p33
    %p35 = scmp.ne.s32.totalorder %s24, %s27
    %p36 = scmp.eq.s32.totalorder %s19, 1
    %p37 = por %p35, %p36
    %p38 = scmp.ne.s32.totalorder %s27, %s28
    %p39 = scmp.eq.s32.totalorder %s19, 0
    %p40 = por %p38, %p39
    %p41 = scmp.ne.s32.totalorder %s27, %s28
    %p42 = scmp.eq.s32.totalorder %s20, 1
    %p43 = por %p41, %p42
    %p45 = scmp.ne.s32.totalorder %s28, %s44
    %p46 = scmp.eq.s32.totalorder %s20, 0
    %p47 = por %p45, %p46
    %s49 = sadd.s32 %s48, 1
    %p52 = scmp.eq.s32.totalorder %s14, 1
    %p53 = scmp.ne.s32.totalorder %s48, %s50
    %p54 = scmp.eq.s32.totalorder %s14, 0
    %p55 = por %p53, %p54
    %p56 = scmp.ne.s32.totalorder %s48, %s50
    %p57 = scmp.eq.s32.totalorder %s19, 1
    %p58 = por %p56, %p57
    %p59 = scmp.ne.s32.totalorder %s50, %s51
    %p60 = scmp.eq.s32.totalorder %s19, 0
    %p61 = por %p59, %p60
    %p62 = scmp.ne.s32.totalorder %s50, %s51
    %p63 = scmp.eq.s32.totalorder %s20, 1
    %p64 = por %p62, %p63
    %p66 = scmp.ne.s32.totalorder %s51, %s65
    %p67 = scmp.eq.s32.totalorder %s20, 0
    %p68 = por %p66, %p67
    %s70 = sadd.s32 %s69, 1
    %p73 = scmp.eq.s32.totalorder %s14, 1
    %p74 = scmp.ne.s32.totalorder %s69, %s71
    %p75 = scmp.eq.s32.totalorder %s14, 0
    %p76 = por %p74, %p75
    %p77 = scmp.ne.s32.totalorder %s69, %s71
    %p78 = scmp.eq.s32.totalorder %s19, 1
    %p79 = por %p77, %p78
    %p80 = scmp.ne.s32.totalorder %s71, %s72
    %p81 = scmp.eq.s32.totalorder %s19, 0
    %p82 = por %p80, %p81
    %p83 = scmp.ne.s32.totalorder %s71, %s72
    %p84 = scmp.eq.s32.totalorder %s20, 1
    %p85 = por %p83, %p84
    %p87 = scmp.ne.s32.totalorder %s72, %s86
    %p88 = scmp.eq.s32.totalorder %s20, 0
    %p89 = por %p87, %p88
    %s91 = sadd.s32 %s90, 1
    %p94 = scmp.eq.s32.totalorder %s14, 1
    %p95 = scmp.ne.s32.totalorder %s90, %s92
    %p96 = scmp.eq.s32.totalorder %s14, 0
    %p97 = por %p95, %p96
    %p98 = scmp.ne.s32.totalorder %s90, %s92
    %p99 = scmp.eq.s32.totalorder %s19, 1
    %p100 = por %p98, %p99
    %p101 = scmp.ne.s32.totalorder %s92, %s93
    %p102 = scmp.eq.s32.totalorder %s19, 0
    %p103 = por %p101, %p102
    %p104 = scmp.ne.s32.totalorder %s92, %s93
    %p105 = scmp.eq.s32.totalorder %s20, 1
    %p106 = por %p104, %p105
    %p108 = scmp.ne.s32.totalorder %s93, %s107
    %p109 = scmp.eq.s32.totalorder %s20, 0
    %p110 = por %p108, %p109
    %s111 = ssub.s32 %s14, %s21
    %p112 = scmp.eq.s32.totalorder %s111, 0
    %s114 = sadd.s32 %s113, 1
    %s115 = scalar_select %p112, %s113, %s114
    %p118 = pneg %p112
    %p119 = scmp.eq.s32.totalorder %s14, 1
    %p120 = por %p118, %p119
    %p121 = scmp.ne.s32.totalorder %s113, %s116
    %p122 = scmp.eq.s32.totalorder %s14, 0
    %p123 = por %p121, %p122
    %p124 = scmp.ne.s32.totalorder %s113, %s116
    %p125 = scmp.eq.s32.totalorder %s19, 1
    %p126 = por %p124, %p125
    %p127 = scmp.ne.s32.totalorder %s116, %s117
    %p128 = scmp.eq.s32.totalorder %s19, 0
    %p129 = por %p127, %p128
    %p130 = scmp.ne.s32.totalorder %s116, %s117
    %p131 = scmp.eq.s32.totalorder %s20, 1
    %p132 = por %p130, %p131
    %p134 = scmp.ne.s32.totalorder %s117, %s133
    %p135 = scmp.eq.s32.totalorder %s20, 0
    %p136 = por %p134, %p135
    %s138 = sadd.s32 %s137, 1
    %p141 = scmp.eq.s32.totalorder %s14, 1
    %p142 = scmp.ne.s32.totalorder %s137, %s139
    %p143 = scmp.eq.s32.totalorder %s14, 0
    %p144 = por %p142, %p143
    %p145 = scmp.ne.s32.totalorder %s137, %s139
    %p146 = scmp.eq.s32.totalorder %s19, 1
    %p147 = por %p145, %p146
    %p148 = scmp.ne.s32.totalorder %s139, %s140
    %p149 = scmp.eq.s32.totalorder %s19, 0
    %p150 = por %p148, %p149
    %p151 = scmp.ne.s32.totalorder %s139, %s140
    %p152 = scmp.eq.s32.totalorder %s20, 1
    %p153 = por %p151, %p152
    %p155 = scmp.ne.s32.totalorder %s140, %s154
    %p156 = scmp.eq.s32.totalorder %s20, 0
    %p157 = por %p155, %p156
    %s159 = sadd.s32 %s158, 1
    %p162 = scmp.eq.s32.totalorder %s14, 1
    %p163 = scmp.ne.s32.totalorder %s158, %s160
    %p164 = scmp.eq.s32.totalorder %s14, 0
    %p165 = por %p163, %p164
    %p166 = scmp.ne.s32.totalorder %s158, %s160
    %p167 = scmp.eq.s32.totalorder %s19, 1
    %p168 = por %p166, %p167
    %p169 = scmp.ne.s32.totalorder %s160, %s161
    %p170 = scmp.eq.s32.totalorder %s19, 0
    %p171 = por %p169, %p170
    %p172 = scmp.ne.s32.totalorder %s160, %s161
    %p173 = scmp.eq.s32.totalorder %s20, 1
    %p174 = por %p172, %p173
    %p176 = scmp.ne.s32.totalorder %s161, %s175
    %p177 = scmp.eq.s32.totalorder %s20, 0
    %p178 = por %p176, %p177
    %s180 = sadd.s32 %s179, 1
    %p183 = scmp.eq.s32.totalorder %s14, 1
    %p184 = scmp.ne.s32.totalorder %s179, %s181
    %p185 = scmp.eq.s32.totalorder %s14, 0
    %p186 = por %p184, %p185
    %p187 = scmp.ne.s32.totalorder %s179, %s181
    %p188 = scmp.eq.s32.totalorder %s19, 1
    %p189 = por %p187, %p188
    %p190 = scmp.ne.s32.totalorder %s181, %s182
    %p191 = scmp.eq.s32.totalorder %s19, 0
    %p192 = por %p190, %p191
    %p193 = scmp.ne.s32.totalorder %s181, %s182
    %p194 = scmp.eq.s32.totalorder %s20, 1
    %p195 = por %p193, %p194
    %p197 = scmp.ne.s32.totalorder %s182, %s196
    %p198 = scmp.eq.s32.totalorder %s20, 0
    %p199 = por %p197, %p198
    %s200 = ssub.s32 %s14, %s21
    %p201 = scmp.eq.s32.totalorder %s200, 0
    %s203 = sadd.s32 %s202, 1
    %s204 = scalar_select %p201, %s202, %s203
    %p207 = pneg %p201
    %p208 = scmp.eq.s32.totalorder %s14, 1
    %p209 = por %p207, %p208
    %p210 = scmp.ne.s32.totalorder %s202, %s205
    %p211 = scmp.eq.s32.totalorder %s14, 0
    %p212 = por %p210, %p211
    %p213 = scmp.ne.s32.totalorder %s202, %s205
    %p214 = scmp.eq.s32.totalorder %s19, 1
    %p215 = por %p213, %p214
    %p216 = scmp.ne.s32.totalorder %s205, %s206
    %p217 = scmp.eq.s32.totalorder %s19, 0
    %p218 = por %p216, %p217
    %p219 = scmp.ne.s32.totalorder %s205, %s206
    %p220 = scmp.eq.s32.totalorder %s20, 1
    %p221 = por %p219, %p220
    %p223 = scmp.ne.s32.totalorder %s206, %s222
    %p224 = scmp.eq.s32.totalorder %s20, 0
    %p225 = por %p223, %p224
    %p226 = scmp.le.s32.totalorder 1, %s14
    %p227 = scmp.lt.s32.totalorder %s14, 3
    %p228 = pnand %p226, %p227
    %p229 = pneg %p228
    // Predicated region
    $region9: #{residual_block_forward.5} parent=5 // pred_check
      _
    $region10: #{residual_block_forward.5} parent=5 // pred_check_branch
      %231 = sbr.rel (%p228) target = $region12
    $region11: #{residual_block_forward.5} parent=5 // pred_region
      %s232 = ssub.s32 %s14, 1
      // Predicated region
      $region13: #{residual_block_forward.5} parent=11 // pred_check
        %p233 = pneg %p61
      $region14: #{residual_block_forward.5} parent=11 // pred_check_branch
        %235 = sbr.rel (%p233) target = $region16
      $region15: #{residual_block_forward.5} parent=11 // pred_region
        _
      $region16: #{residual_block_forward.5} parent=11 // pred_fallthru
        _
      // Predicated region
      $region17: #{residual_block_forward.5} parent=11 // pred_check
        %p236 = pneg %p82
      $region18: #{residual_block_forward.5} parent=11 // pred_check_branch
        %238 = sbr.rel (%p236) target = $region20
      $region19: #{residual_block_forward.5} parent=11 // pred_region
        _
      $region20: #{residual_block_forward.5} parent=11 // pred_fallthru
        _
      // Predicated region
      $region21: #{residual_block_forward.5} parent=11 // pred_check
        %p239 = pneg %p103
      $region22: #{residual_block_forward.5} parent=11 // pred_check_branch
        %241 = sbr.rel (%p239) target = $region24
      $region23: #{residual_block_forward.5} parent=11 // pred_region
        _
      $region24: #{residual_block_forward.5} parent=11 // pred_fallthru
        _
      // Predicated region
      $region25: #{residual_block_forward.5} parent=11 // pred_check
        %p242 = pneg %p150
      $region26: #{residual_block_forward.5} parent=11 // pred_check_branch
        %244 = sbr.rel (%p242) target = $region28
      $region27: #{residual_block_forward.5} parent=11 // pred_region
        _
      $region28: #{residual_block_forward.5} parent=11 // pred_fallthru
        _
      // Predicated region
      $region29: #{residual_block_forward.5} parent=11 // pred_check
        %p245 = pneg %p171
      $region30: #{residual_block_forward.5} parent=11 // pred_check_branch
        %247 = sbr.rel (%p245) target = $region32
      $region31: #{residual_block_forward.5} parent=11 // pred_region
        _
      $region32: #{residual_block_forward.5} parent=11 // pred_fallthru
        _
      // Predicated region
      $region33: #{residual_block_forward.5} parent=11 // pred_check
        %p248 = pneg %p192
      $region34: #{residual_block_forward.5} parent=11 // pred_check_branch
        %250 = sbr.rel (%p248) target = $region36
      $region35: #{residual_block_forward.5} parent=11 // pred_region
        _
      $region36: #{residual_block_forward.5} parent=11 // pred_fallthru
        _
    $region12: #{residual_block_forward.5} parent=5 // pred_fallthru
      _
    %p251 = scmp.lt.s32.totalorder %s14, 2
    // Predicated region
    $region37: #{residual_block_forward.5} parent=5 // pred_check
      %p252 = pneg %p251
    $region38: #{residual_block_forward.5} parent=5 // pred_check_branch
      %254 = sbr.rel (%p252) target = $region40
    $region39: #{residual_block_forward.5} parent=5 // pred_region
      // Predicated region
      $region41: #{residual_block_forward.5} parent=39 // pred_check
        %p255 = pneg %p34
      $region42: #{residual_block_forward.5} parent=39 // pred_check_branch
        %257 = sbr.rel (%p255) target = $region44
      $region43: #{residual_block_forward.5} parent=39 // pred_region
        %s258 = smul.u32 32, %s14
        %p259 = scmp.lt.s32.totalorder %s258, 63
        %s260 = scalar_select %p259, %s258, 63
        %s261 = smul.addr %s260, 4
        %s262 = scalar_lea.vmem %s0, %s261
        %s263 = smul.u32 32, %s14
      $region44: #{residual_block_forward.5} parent=39 // pred_fallthru
        _
      // Predicated region
      $region45: #{residual_block_forward.5} parent=39 // pred_check
        %p264 = pneg %p123
      $region46: #{residual_block_forward.5} parent=39 // pred_check_branch
        %266 = sbr.rel (%p264) target = $region48
      $region47: #{residual_block_forward.5} parent=39 // pred_region
        %s267 = smul.u32 32, %s14
        %p268 = scmp.lt.s32.totalorder %s267, 63
        %s269 = scalar_select %p268, %s267, 63
        %s270 = smul.addr %s269, 4
        %s271 = scalar_lea.vmem %s4, %s270
        %s272 = smul.u32 32, %s14
      $region48: #{residual_block_forward.5} parent=39 // pred_fallthru
        _
    $region40: #{residual_block_forward.5} parent=5 // pred_fallthru
      _
    %p273 = scmp.le.s32.totalorder 1, %s14
    %p274 = scmp.lt.s32.totalorder %s14, 3
    %p275 = pnand %p273, %p274
    %p276 = pneg %p275
    // Predicated region
    $region49: #{residual_block_forward.5} parent=5 // pred_check
      _
    $region50: #{residual_block_forward.5} parent=5 // pred_check_branch
      %278 = sbr.rel (%p275) target = $region52
    $region51: #{residual_block_forward.5} parent=5 // pred_region
      %s279 = ssub.s32 %s14, 1
      %s280 = smul.u32 32, %s19
      %p281 = scmp.lt.s32.totalorder %s280, 63
      %s282 = scalar_select %p281, %s280, 63
      %s283 = smul.addr %s282, 4
      %s284 = scalar_lea.vmem %s0, %s283
      %p285 = pneg %p40
      %p286 = pneg %p37
      %p287 = pneg %p61
      %p288 = pneg %p58
      %p289 = pneg %p82
      %p290 = pneg %p79
      %p291 = pneg %p103
      %p292 = pneg %p100
      %s293 = smul.u32 32, %s19
      %p294 = scmp.lt.s32.totalorder %s293, 63
      %s295 = scalar_select %p294, %s293, 63
      %s296 = smul.addr %s295, 4
      %s297 = scalar_lea.vmem %s4, %s296
      %p298 = pneg %p129
      %p299 = pneg %p126
      %p300 = pneg %p150
      %p301 = pneg %p147
      %p302 = pneg %p171
      %p303 = pneg %p168
      %p304 = pneg %p192
      %p305 = pneg %p189
      %p306 = pneg %p218
      %p307 = pneg %p215
      %s308 = smul.u32 32, %s19
      %p309 = scmp.lt.s32.totalorder %s308, 63
      %s310 = scalar_select %p309, %s308, 63
      %s311 = smul.addr %s310, 8
      %s312 = scalar_lea.vmem %s8, %s311
      %s313 = smul.u32 32, %s19
      %p314 = scmp.lt.s32.totalorder %s313, 63
      %s315 = scalar_select %p314, %s313, 63
      %s316 = smul.addr %s315, 4
      %s317 = scalar_lea.vmem %s0, %s316
      %s318 = smul.u32 32, %s19
      %s319 = smul.u32 32, %s19
      %p320 = scmp.lt.s32.totalorder %s319, 63
      %s321 = scalar_select %p320, %s319, 63
      %s322 = smul.addr %s321, 4
      %s323 = scalar_lea.vmem %s4, %s322
      %s324 = smul.u32 32, %s19
      %s325 = smul.u32 32, %s19
      %p326 = scmp.lt.s32.totalorder %s325, 63
      %s327 = scalar_select %p326, %s325, 63
      %s328 = smul.addr %s327, 8
      %s329 = scalar_lea.vmem %s8, %s328
      %s330 = smul.u32 32, %s19
      %v332 = vld [vmem:[%s317] sm:$0xf]
      %v333 = vld [vmem:[%s317 + $0x4] sm:$0xf]
      %v334 = vld [vmem:[%s317 + $0x8] sm:$0xf]
      %v335 = vld [vmem:[%s317 + $0xc] sm:$0xf]
      %v336 = vld [vmem:[%s317 + $0x10] sm:$0xf]
      %v337 = vld [vmem:[%s317 + $0x14] sm:$0xf]
      %v338 = vld [vmem:[%s317 + $0x18] sm:$0xf]
      %v339 = vld [vmem:[%s317 + $0x1c] sm:$0xf]
      %v340 = vld [vmem:[%s317 + $0x20] sm:$0xf]
      %v341 = vld [vmem:[%s317 + $0x24] sm:$0xf]
      %v342 = vld [vmem:[%s317 + $0x28] sm:$0xf]
      %v343 = vld [vmem:[%s317 + $0x2c] sm:$0xf]
      %v344 = vld [vmem:[%s317 + $0x30] sm:$0xf]
      %v345 = vld [vmem:[%s317 + $0x34] sm:$0xf]
      %v346 = vld [vmem:[%s317 + $0x38] sm:$0xf]
      %v347 = vld [vmem:[%s317 + $0x3c] sm:$0xf]
      %v348 = vld [vmem:[%s317 + $0x40] sm:$0xf]
      %v349 = vld [vmem:[%s317 + $0x44] sm:$0xf]
      %v350 = vld [vmem:[%s317 + $0x48] sm:$0xf]
      %v351 = vld [vmem:[%s317 + $0x4c] sm:$0xf]
      %v352 = vld [vmem:[%s317 + $0x50] sm:$0xf]
      %v353 = vld [vmem:[%s317 + $0x54] sm:$0xf]
      %v354 = vld [vmem:[%s317 + $0x58] sm:$0xf]
      %v355 = vld [vmem:[%s317 + $0x5c] sm:$0xf]
      %v356 = vld [vmem:[%s317 + $0x60] sm:$0xf]
      %v357 = vld [vmem:[%s317 + $0x64] sm:$0xf]
      %v358 = vld [vmem:[%s317 + $0x68] sm:$0xf]
      %v359 = vld [vmem:[%s317 + $0x6c] sm:$0xf]
      %v360 = vld [vmem:[%s317 + $0x70] sm:$0xf]
      %v361 = vld [vmem:[%s317 + $0x74] sm:$0xf]
      %v362 = vld [vmem:[%s317 + $0x78] sm:$0xf]
      %v363 = vld [vmem:[%s317 + $0x7c] sm:$0xf]
      %v364 = vunpack.c.l.bf16 %v332
      %v365 = vunpack.c.l.bf16 %v333
      %v366 = vunpack.c.l.bf16 %v334
      %v367 = vunpack.c.l.bf16 %v335
      %v368 = vunpack.c.l.bf16 %v336
      %v369 = vunpack.c.l.bf16 %v337
      %v370 = vunpack.c.l.bf16 %v338
      %v371 = vunpack.c.l.bf16 %v339
      %v372 = vunpack.c.l.bf16 %v340
      %v373 = vunpack.c.l.bf16 %v341
      %v374 = vunpack.c.l.bf16 %v342
      %v375 = vunpack.c.l.bf16 %v343
      %v376 = vunpack.c.l.bf16 %v344
      %v377 = vunpack.c.l.bf16 %v345
      %v378 = vunpack.c.l.bf16 %v346
      %v379 = vunpack.c.l.bf16 %v347
      %v380 = vunpack.c.l.bf16 %v348
      %v381 = vunpack.c.l.bf16 %v349
      %v382 = vunpack.c.l.bf16 %v350
      %v383 = vunpack.c.l.bf16 %v351
      %v384 = vunpack.c.l.bf16 %v352
      %v385 = vunpack.c.l.bf16 %v353
      %v386 = vunpack.c.l.bf16 %v354
      %v387 = vunpack.c.l.bf16 %v355
      %v388 = vunpack.c.l.bf16 %v356
      %v389 = vunpack.c.l.bf16 %v357
      %v390 = vunpack.c.l.bf16 %v358
      %v391 = vunpack.c.l.bf16 %v359
      %v392 = vunpack.c.l.bf16 %v360
      %v393 = vunpack.c.l.bf16 %v361
      %v394 = vunpack.c.l.bf16 %v362
      %v395 = vunpack.c.l.bf16 %v363
      %v396 = vld [vmem:[%s1] sm:$0x1]
      %v398 = vlaneseq
      %v399 = vshrl.u32 %v398, 7
      %v400 = vsub.s32 0, %v399
      %v401 = vrot.slane %v396, %v400
      %v403 = vmul.f32 %v364, %v401
      %v404 = vmul.f32 %v365, %v401
      %v405 = vmul.f32 %v366, %v401
      %v406 = vmul.f32 %v367, %v401
      %v407 = vmul.f32 %v368, %v401
      %v408 = vmul.f32 %v369, %v401
      %v409 = vmul.f32 %v370, %v401
      %v410 = vmul.f32 %v371, %v401
      %v411 = vmul.f32 %v372, %v401
      %v412 = vmul.f32 %v373, %v401
      %v413 = vmul.f32 %v374, %v401
      %v414 = vmul.f32 %v375, %v401
      %v415 = vmul.f32 %v376, %v401
      %v416 = vmul.f32 %v377, %v401
      %v417 = vmul.f32 %v378, %v401
      %v418 = vmul.f32 %v379, %v401
      %v419 = vmul.f32 %v380, %v401
      %v420 = vmul.f32 %v381, %v401
      %v421 = vmul.f32 %v382, %v401
      %v422 = vmul.f32 %v383, %v401
      %v423 = vmul.f32 %v384, %v401
      %v424 = vmul.f32 %v385, %v401
      %v425 = vmul.f32 %v386, %v401
      %v426 = vmul.f32 %v387, %v401
      %v427 = vmul.f32 %v388, %v401
      %v428 = vmul.f32 %v389, %v401
      %v429 = vmul.f32 %v390, %v401
      %v430 = vmul.f32 %v391, %v401
      %v431 = vmul.f32 %v392, %v401
      %v432 = vmul.f32 %v393, %v401
      %v433 = vmul.f32 %v394, %v401
      %v434 = vmul.f32 %v395, %v401
      %v435 = vld [vmem:[%s2] sm:$0x1]
      %v437 = vlaneseq
      %v438 = vshrl.u32 %v437, 7
      %v439 = vsub.s32 0, %v438
      %v440 = vrot.slane %v435, %v439
      %v442 = vadd.f32 %v403, %v440
      %v443 = vadd.f32 %v404, %v440
      %v444 = vadd.f32 %v405, %v440
      %v445 = vadd.f32 %v406, %v440
      %v446 = vadd.f32 %v407, %v440
      %v447 = vadd.f32 %v408, %v440
      %v448 = vadd.f32 %v409, %v440
      %v449 = vadd.f32 %v410, %v440
      %v450 = vadd.f32 %v411, %v440
      %v451 = vadd.f32 %v412, %v440
      %v452 = vadd.f32 %v413, %v440
      %v453 = vadd.f32 %v414, %v440
      %v454 = vadd.f32 %v415, %v440
      %v455 = vadd.f32 %v416, %v440
      %v456 = vadd.f32 %v417, %v440
      %v457 = vadd.f32 %v418, %v440
      %v458 = vadd.f32 %v419, %v440
      %v459 = vadd.f32 %v420, %v440
      %v460 = vadd.f32 %v421, %v440
      %v461 = vadd.f32 %v422, %v440
      %v462 = vadd.f32 %v423, %v440
      %v463 = vadd.f32 %v424, %v440
      %v464 = vadd.f32 %v425, %v440
      %v465 = vadd.f32 %v426, %v440
      %v466 = vadd.f32 %v427, %v440
      %v467 = vadd.f32 %v428, %v440
      %v468 = vadd.f32 %v429, %v440
      %v469 = vadd.f32 %v430, %v440
      %v470 = vadd.f32 %v431, %v440
      %v471 = vadd.f32 %v432, %v440
      %v472 = vadd.f32 %v433, %v440
      %v473 = vadd.f32 %v434, %v440
      %v474 = vmax.f32 %v442, 0.0
      %v475 = vmax.f32 %v443, 0.0
      %v476 = vmax.f32 %v444, 0.0
      %v477 = vmax.f32 %v445, 0.0
      %v478 = vmax.f32 %v446, 0.0
      %v479 = vmax.f32 %v447, 0.0
      %v480 = vmax.f32 %v448, 0.0
      %v481 = vmax.f32 %v449, 0.0
      %v482 = vmax.f32 %v450, 0.0
      %v483 = vmax.f32 %v451, 0.0
      %v484 = vmax.f32 %v452, 0.0
      %v485 = vmax.f32 %v453, 0.0
      %v486 = vmax.f32 %v454, 0.0
      %v487 = vmax.f32 %v455, 0.0
      %v488 = vmax.f32 %v456, 0.0
      %v489 = vmax.f32 %v457, 0.0
      %v490 = vmax.f32 %v458, 0.0
      %v491 = vmax.f32 %v459, 0.0
      %v492 = vmax.f32 %v460, 0.0
      %v493 = vmax.f32 %v461, 0.0
      %v494 = vmax.f32 %v462, 0.0
      %v495 = vmax.f32 %v463, 0.0
      %v496 = vmax.f32 %v464, 0.0
      %v497 = vmax.f32 %v465, 0.0
      %v498 = vmax.f32 %v466, 0.0
      %v499 = vmax.f32 %v467, 0.0
      %v500 = vmax.f32 %v468, 0.0
      %v501 = vmax.f32 %v469, 0.0
      %v502 = vmax.f32 %v470, 0.0
      %v503 = vmax.f32 %v471, 0.0
      %v504 = vmax.f32 %v472, 0.0
      %v505 = vmax.f32 %v473, 0.0
      %v506 = vpack.c.bf16 %v475, %v474
      %v507 = vpack.c.bf16 %v477, %v476
      %v508 = vpack.c.bf16 %v479, %v478
      %v509 = vpack.c.bf16 %v481, %v480
      %v510 = vpack.c.bf16 %v483, %v482
      %v511 = vpack.c.bf16 %v485, %v484
      %v512 = vpack.c.bf16 %v487, %v486
      %v513 = vpack.c.bf16 %v489, %v488
      %v514 = vpack.c.bf16 %v491, %v490
      %v515 = vpack.c.bf16 %v493, %v492
      %v516 = vpack.c.bf16 %v495, %v494
      %v517 = vpack.c.bf16 %v497, %v496
      %v518 = vpack.c.bf16 %v499, %v498
      %v519 = vpack.c.bf16 %v501, %v500
      %v520 = vpack.c.bf16 %v503, %v502
      %v521 = vpack.c.bf16 %v505, %v504
      %v522 = vld [vmem:[%s3] sm:$0xf]
      %v523 = vld [vmem:[%s3 + $0x4] sm:$0xf]
      %v524 = vld [vmem:[%s3 + $0x8] sm:$0xf]
      %v525 = vld [vmem:[%s3 + $0xc] sm:$0xf]
      %v526 = vld [vmem:[%s3 + $0x10] sm:$0xf]
      %v527 = vld [vmem:[%s3 + $0x14] sm:$0xf]
      %v528 = vld [vmem:[%s3 + $0x18] sm:$0xf]
      %v529 = vld [vmem:[%s3 + $0x1c] sm:$0xf]
      %v530 = vld [vmem:[%s3 + $0x20] sm:$0xf]
      %v531 = vld [vmem:[%s3 + $0x24] sm:$0xf]
      %v532 = vld [vmem:[%s3 + $0x28] sm:$0xf]
      %v533 = vld [vmem:[%s3 + $0x2c] sm:$0xf]
      %v534 = vld [vmem:[%s3 + $0x30] sm:$0xf]
      %v535 = vld [vmem:[%s3 + $0x34] sm:$0xf]
      %v536 = vld [vmem:[%s3 + $0x38] sm:$0xf]
      %v537 = vld [vmem:[%s3 + $0x3c] sm:$0xf]
      %v538 = vld [vmem:[%s323] sm:$0xf]
      %v539 = vld [vmem:[%s323 + $0x4] sm:$0xf]
      %v540 = vld [vmem:[%s323 + $0x8] sm:$0xf]
      %v541 = vld [vmem:[%s323 + $0xc] sm:$0xf]
      %v542 = vld [vmem:[%s323 + $0x10] sm:$0xf]
      %v543 = vld [vmem:[%s323 + $0x14] sm:$0xf]
      %v544 = vld [vmem:[%s323 + $0x18] sm:$0xf]
      %v545 = vld [vmem:[%s323 + $0x1c] sm:$0xf]
      %v546 = vld [vmem:[%s323 + $0x20] sm:$0xf]
      %v547 = vld [vmem:[%s323 + $0x24] sm:$0xf]
      %v548 = vld [vmem:[%s323 + $0x28] sm:$0xf]
      %v549 = vld [vmem:[%s323 + $0x2c] sm:$0xf]
      %v550 = vld [vmem:[%s323 + $0x30] sm:$0xf]
      %v551 = vld [vmem:[%s323 + $0x34] sm:$0xf]
      %v552 = vld [vmem:[%s323 + $0x38] sm:$0xf]
      %v553 = vld [vmem:[%s323 + $0x3c] sm:$0xf]
      %v554 = vld [vmem:[%s323 + $0x40] sm:$0xf]
      %v555 = vld [vmem:[%s323 + $0x44] sm:$0xf]
      %v556 = vld [vmem:[%s323 + $0x48] sm:$0xf]
      %v557 = vld [vmem:[%s323 + $0x4c] sm:$0xf]
      %v558 = vld [vmem:[%s323 + $0x50] sm:$0xf]
      %v559 = vld [vmem:[%s323 + $0x54] sm:$0xf]
      %v560 = vld [vmem:[%s323 + $0x58] sm:$0xf]
      %v561 = vld [vmem:[%s323 + $0x5c] sm:$0xf]
      %v562 = vld [vmem:[%s323 + $0x60] sm:$0xf]
      %v563 = vld [vmem:[%s323 + $0x64] sm:$0xf]
      %v564 = vld [vmem:[%s323 + $0x68] sm:$0xf]
      %v565 = vld [vmem:[%s323 + $0x6c] sm:$0xf]
      %v566 = vld [vmem:[%s323 + $0x70] sm:$0xf]
      %v567 = vld [vmem:[%s323 + $0x74] sm:$0xf]
      %v568 = vld [vmem:[%s323 + $0x78] sm:$0xf]
      %v569 = vld [vmem:[%s323 + $0x7c] sm:$0xf]
      %v570 = vunpack.c.l.bf16 %v538
      %v571 = vunpack.c.l.bf16 %v539
      %v572 = vunpack.c.l.bf16 %v540
      %v573 = vunpack.c.l.bf16 %v541
      %v574 = vunpack.c.l.bf16 %v542
      %v575 = vunpack.c.l.bf16 %v543
      %v576 = vunpack.c.l.bf16 %v544
      %v577 = vunpack.c.l.bf16 %v545
      %v578 = vunpack.c.l.bf16 %v546
      %v579 = vunpack.c.l.bf16 %v547
      %v580 = vunpack.c.l.bf16 %v548
      %v581 = vunpack.c.l.bf16 %v549
      %v582 = vunpack.c.l.bf16 %v550
      %v583 = vunpack.c.l.bf16 %v551
      %v584 = vunpack.c.l.bf16 %v552
      %v585 = vunpack.c.l.bf16 %v553
      %v586 = vunpack.c.l.bf16 %v554
      %v587 = vunpack.c.l.bf16 %v555
      %v588 = vunpack.c.l.bf16 %v556
      %v589 = vunpack.c.l.bf16 %v557
      %v590 = vunpack.c.l.bf16 %v558
      %v591 = vunpack.c.l.bf16 %v559
      %v592 = vunpack.c.l.bf16 %v560
      %v593 = vunpack.c.l.bf16 %v561
      %v594 = vunpack.c.l.bf16 %v562
      %v595 = vunpack.c.l.bf16 %v563
      %v596 = vunpack.c.l.bf16 %v564
      %v597 = vunpack.c.l.bf16 %v565
      %v598 = vunpack.c.l.bf16 %v566
      %v599 = vunpack.c.l.bf16 %v567
      %v600 = vunpack.c.l.bf16 %v568
      %v601 = vunpack.c.l.bf16 %v569
      %v602 = vld [vmem:[%s5] sm:$0x1]
      %v604 = vlaneseq
      %v605 = vshrl.u32 %v604, 7
      %v606 = vsub.s32 0, %v605
      %v607 = vrot.slane %v602, %v606
      %v609 = vmul.f32 %v570, %v607
      %v610 = vmul.f32 %v571, %v607
      %v611 = vmul.f32 %v572, %v607
      %v612 = vmul.f32 %v573, %v607
      %v613 = vmul.f32 %v574, %v607
      %v614 = vmul.f32 %v575, %v607
      %v615 = vmul.f32 %v576, %v607
      %v616 = vmul.f32 %v577, %v607
      %v617 = vmul.f32 %v578, %v607
      %v618 = vmul.f32 %v579, %v607
      %v619 = vmul.f32 %v580, %v607
      %v620 = vmul.f32 %v581, %v607
      %v621 = vmul.f32 %v582, %v607
      %v622 = vmul.f32 %v583, %v607
      %v623 = vmul.f32 %v584, %v607
      %v624 = vmul.f32 %v585, %v607
      %v625 = vmul.f32 %v586, %v607
      %v626 = vmul.f32 %v587, %v607
      %v627 = vmul.f32 %v588, %v607
      %v628 = vmul.f32 %v589, %v607
      %v629 = vmul.f32 %v590, %v607
      %v630 = vmul.f32 %v591, %v607
      %v631 = vmul.f32 %v592, %v607
      %v632 = vmul.f32 %v593, %v607
      %v633 = vmul.f32 %v594, %v607
      %v634 = vmul.f32 %v595, %v607
      %v635 = vmul.f32 %v596, %v607
      %v636 = vmul.f32 %v597, %v607
      %v637 = vmul.f32 %v598, %v607
      %v638 = vmul.f32 %v599, %v607
      %v639 = vmul.f32 %v600, %v607
      %v640 = vmul.f32 %v601, %v607
      %v641 = vld [vmem:[%s6] sm:$0x1]
      %v643 = vlaneseq
      %v644 = vshrl.u32 %v643, 7
      %v645 = vsub.s32 0, %v644
      %v646 = vrot.slane %v641, %v645
      %v648 = vadd.f32 %v609, %v646
      %v649 = vadd.f32 %v610, %v646
      %v650 = vadd.f32 %v611, %v646
      %v651 = vadd.f32 %v612, %v646
      %v652 = vadd.f32 %v613, %v646
      %v653 = vadd.f32 %v614, %v646
      %v654 = vadd.f32 %v615, %v646
      %v655 = vadd.f32 %v616, %v646
      %v656 = vadd.f32 %v617, %v646
      %v657 = vadd.f32 %v618, %v646
      %v658 = vadd.f32 %v619, %v646
      %v659 = vadd.f32 %v620, %v646
      %v660 = vadd.f32 %v621, %v646
      %v661 = vadd.f32 %v622, %v646
      %v662 = vadd.f32 %v623, %v646
      %v663 = vadd.f32 %v624, %v646
      %v664 = vadd.f32 %v625, %v646
      %v665 = vadd.f32 %v626, %v646
      %v666 = vadd.f32 %v627, %v646
      %v667 = vadd.f32 %v628, %v646
      %v668 = vadd.f32 %v629, %v646
      %v669 = vadd.f32 %v630, %v646
      %v670 = vadd.f32 %v631, %v646
      %v671 = vadd.f32 %v632, %v646
      %v672 = vadd.f32 %v633, %v646
      %v673 = vadd.f32 %v634, %v646
      %v674 = vadd.f32 %v635, %v646
      %v675 = vadd.f32 %v636, %v646
      %v676 = vadd.f32 %v637, %v646
      %v677 = vadd.f32 %v638, %v646
      %v678 = vadd.f32 %v639, %v646
      %v679 = vadd.f32 %v640, %v646
      %v680 = vmax.f32 %v648, 0.0
      %v681 = vmax.f32 %v649, 0.0
      %v682 = vmax.f32 %v650, 0.0
      %v683 = vmax.f32 %v651, 0.0
      %v684 = vmax.f32 %v652, 0.0
      %v685 = vmax.f32 %v653, 0.0
      %v686 = vmax.f32 %v654, 0.0
      %v687 = vmax.f32 %v655, 0.0
      %v688 = vmax.f32 %v656, 0.0
      %v689 = vmax.f32 %v657, 0.0
      %v690 = vmax.f32 %v658, 0.0
      %v691 = vmax.f32 %v659, 0.0
      %v692 = vmax.f32 %v660, 0.0
      %v693 = vmax.f32 %v661, 0.0
      %v694 = vmax.f32 %v662, 0.0
      %v695 = vmax.f32 %v663, 0.0
      %v696 = vmax.f32 %v664, 0.0
      %v697 = vmax.f32 %v665, 0.0
      %v698 = vmax.f32 %v666, 0.0
      %v699 = vmax.f32 %v667, 0.0
      %v700 = vmax.f32 %v668, 0.0
      %v701 = vmax.f32 %v669, 0.0
      %v702 = vmax.f32 %v670, 0.0
      %v703 = vmax.f32 %v671, 0.0
      %v704 = vmax.f32 %v672, 0.0
      %v705 = vmax.f32 %v673, 0.0
      %v706 = vmax.f32 %v674, 0.0
      %v707 = vmax.f32 %v675, 0.0
      %v708 = vmax.f32 %v676, 0.0
      %v709 = vmax.f32 %v677, 0.0
      %v710 = vmax.f32 %v678, 0.0
      %v711 = vmax.f32 %v679, 0.0
      %v712 = vpack.c.bf16 %v681, %v680
      %v713 = vpack.c.bf16 %v683, %v682
      %v714 = vpack.c.bf16 %v685, %v684
      %v715 = vpack.c.bf16 %v687, %v686
      %v716 = vpack.c.bf16 %v689, %v688
      %v717 = vpack.c.bf16 %v691, %v690
      %v718 = vpack.c.bf16 %v693, %v692
      %v719 = vpack.c.bf16 %v695, %v694
      %v720 = vpack.c.bf16 %v697, %v696
      %v721 = vpack.c.bf16 %v699, %v698
      %v722 = vpack.c.bf16 %v701, %v700
      %v723 = vpack.c.bf16 %v703, %v702
      %v724 = vpack.c.bf16 %v705, %v704
      %v725 = vpack.c.bf16 %v707, %v706
      %v726 = vpack.c.bf16 %v709, %v708
      %v727 = vpack.c.bf16 %v711, %v710
      %v728 = vld [vmem:[%s7] sm:$0xf]
      %v729 = vld [vmem:[%s7 + $0x4] sm:$0xf]
      %v730 = vld [vmem:[%s7 + $0x8] sm:$0xf]
      %v731 = vld [vmem:[%s7 + $0xc] sm:$0xf]
      %v732 = vld [vmem:[%s7 + $0x10] sm:$0xf]
      %v733 = vld [vmem:[%s7 + $0x14] sm:$0xf]
      %v734 = vld [vmem:[%s7 + $0x18] sm:$0xf]
      %v735 = vld [vmem:[%s7 + $0x1c] sm:$0xf]
      %v736 = vld [vmem:[%s7 + $0x20] sm:$0xf]
      %v737 = vld [vmem:[%s7 + $0x24] sm:$0xf]
      %v738 = vld [vmem:[%s7 + $0x28] sm:$0xf]
      %v739 = vld [vmem:[%s7 + $0x2c] sm:$0xf]
      %v740 = vld [vmem:[%s7 + $0x30] sm:$0xf]
      %v741 = vld [vmem:[%s7 + $0x34] sm:$0xf]
      %v742 = vld [vmem:[%s7 + $0x38] sm:$0xf]
      %v743 = vld [vmem:[%s7 + $0x3c] sm:$0xf]
      %v760 = vunpack.c.l.b16 %v728
      %v761 = vunpack.c.l.b16 %v729
      %v762 = vunpack.c.l.b16 %v730
      %v763 = vunpack.c.l.b16 %v731
      %v764 = vunpack.c.l.b16 %v732
      %v765 = vunpack.c.l.b16 %v733
      %v766 = vunpack.c.l.b16 %v734
      %v767 = vunpack.c.l.b16 %v735
      %v768 = vunpack.c.l.b16 %v736
      %v769 = vunpack.c.l.b16 %v737
      %v770 = vunpack.c.l.b16 %v738
      %v771 = vunpack.c.l.b16 %v739
      %v772 = vunpack.c.l.b16 %v740
      %v773 = vunpack.c.l.b16 %v741
      %v774 = vunpack.c.l.b16 %v742
      %v775 = vunpack.c.l.b16 %v743
      %v776 = vpack.c.b16 %v761, %v760
      %v777 = vpack.c.b16 %v763, %v762
      %v778 = vpack.c.b16 %v765, %v764
      %v779 = vpack.c.b16 %v767, %v766
      %v780 = vpack.c.b16 %v769, %v768
      %v781 = vpack.c.b16 %v771, %v770
      %v782 = vpack.c.b16 %v773, %v772
      %v783 = vpack.c.b16 %v775, %v774
      %792 = vmatprep.subr.bf16.mxu0 0
      %793 = vmatpush1.bf16.msra.mxu0 %v776
      %794 = vmatprep.subr.bf16.mxu0 0
      %795 = vmatpush1.bf16.msra.mxu0 %v777
      %796 = vmatprep.subr.bf16.mxu0 0
      %797 = vmatpush1.bf16.msra.mxu0 %v778
      %798 = vmatprep.subr.bf16.mxu0 0
      %799 = vmatpush1.bf16.msra.mxu0 %v779
      %800 = vmatprep.subr.bf16.mxu0 0
      %801 = vmatpush1.bf16.msra.mxu0 %v780
      %802 = vmatprep.subr.bf16.mxu0 0
      %803 = vmatpush1.bf16.msra.mxu0 %v781
      %804 = vmatprep.subr.bf16.mxu0 0
      %805 = vmatpush1.bf16.msra.mxu0 %v782
      %806 = vmatprep.subr.bf16.mxu0 0
      %807 = vmatpush1.bf16.msra.mxu0 %v783
      %808 = vmatprep.subr.bf16.mxu0 0
      %809 = vmatpush1.bf16.msra.mxu0 0
      %810 = vmatprep.subr.bf16.mxu0 0
      %811 = vmatpush1.bf16.msra.mxu0 0
      %812 = vmatprep.subr.bf16.mxu0 0
      %813 = vmatpush1.bf16.msra.mxu0 0
      %814 = vmatprep.subr.bf16.mxu0 0
      %815 = vmatpush1.bf16.msra.mxu0 0
      %816 = vmatprep.subr.bf16.mxu0 0
      %817 = vmatpush1.bf16.msra.mxu0 0
      %818 = vmatprep.subr.bf16.mxu0 0
      %819 = vmatpush1.bf16.msra.mxu0 0
      %820 = vmatprep.subr.bf16.mxu0 0
      %821 = vmatpush1.bf16.msra.mxu0 0
      %822 = vmatprep.subr.bf16.mxu0 0
      %823 = vmatpush1.bf16.msra.mxu0 0
      %824 = vmatprep.mubr.bf16.mxu0 0
      %825 = vmatmul.mubr.bf16.gmra.mrb[0].mxu0 %v712
      %v826 = vpop.f32.mrb[0].mxu0
      %v827 = vadd.f32 0.0, %v826
      %v828 = vpop.f32.mrb[0].mxu0
      %v829 = vpop.f32.mrb[0].mxu0
      %v830 = vadd.f32 0.0, %v829
      %v831 = vpop.f32.mrb[0].mxu0
      %832 = vmatprep.mubr.bf16.mxu0 0
      %833 = vmatmul.mubr.bf16.gmra.mrb[0].mxu0 %v713
      %v834 = vpop.f32.mrb[0].mxu0
      %v835 = vadd.f32 0.0, %v834
      %v836 = vpop.f32.mrb[0].mxu0
      %v837 = vpop.f32.mrb[0].mxu0
      %v838 = vadd.f32 0.0, %v837
      %v839 = vpop.f32.mrb[0].mxu0
      %840 = vmatprep.mubr.bf16.mxu0 0
      %841 = vmatmul.mubr.bf16.gmra.mrb[0].mxu0 %v714
      %v842 = vpop.f32.mrb[0].mxu0
      %v843 = vadd.f32 0.0, %v842
      %v844 = vpop.f32.mrb[0].mxu0
      %v845 = vpop.f32.mrb[0].mxu0
      %v846 = vadd.f32 0.0, %v845
      %v847 = vpop.f32.mrb[0].mxu0
      %848 = vmatprep.mubr.bf16.mxu0 0
      %849 = vmatmul.mubr.bf16.gmra.mrb[0].mxu0 %v715
      %v850 = vpop.f32.mrb[0].mxu0
      %v851 = vadd.f32 0.0, %v850
      %v852 = vpop.f32.mrb[0].mxu0
      %v853 = vpop.f32.mrb[0].mxu0
      %v854 = vadd.f32 0.0, %v853
      %v855 = vpop.f32.mrb[0].mxu0
      %856 = vmatprep.mubr.bf16.mxu0 0
      %857 = vmatmul.mubr.bf16.gmra.mrb[0].mxu0 %v716
      %v858 = vpop.f32.mrb[0].mxu0
      %v859 = vadd.f32 0.0, %v858
      %v860 = vpop.f32.mrb[0].mxu0
      %v861 = vpop.f32.mrb[0].mxu0
      %v862 = vadd.f32 0.0, %v861
      %v863 = vpop.f32.mrb[0].mxu0
      %864 = vmatprep.mubr.bf16.mxu0 0
      %865 = vmatmul.mubr.bf16.gmra.mrb[0].mxu0 %v717
      %v866 = vpop.f32.mrb[0].mxu0
      %v867 = vadd.f32 0.0, %v866
      %v868 = vpop.f32.mrb[0].mxu0
      %v869 = vpop.f32.mrb[0].mxu0
      %v870 = vadd.f32 0.0, %v869
      %v871 = vpop.f32.mrb[0].mxu0
      %872 = vmatprep.mubr.bf16.mxu0 0
      %873 = vmatmul.mubr.bf16.gmra.mrb[0].mxu0 %v718
      %v874 = vpop.f32.mrb[0].mxu0
      %v875 = vadd.f32 0.0, %v874
      %v876 = vpop.f32.mrb[0].mxu0
      %v877 = vpop.f32.mrb[0].mxu0
      %v878 = vadd.f32 0.0, %v877
      %v879 = vpop.f32.mrb[0].mxu0
      %880 = vmatprep.mubr.bf16.mxu0 0
      %881 = vmatmul.mubr.bf16.gmra.mrb[0].mxu0 %v719
      %v882 = vpop.f32.mrb[0].mxu0
      %v883 = vadd.f32 0.0, %v882
      %v884 = vpop.f32.mrb[0].mxu0
      %v885 = vpop.f32.mrb[0].mxu0
      %v886 = vadd.f32 0.0, %v885
      %v887 = vpop.f32.mrb[0].mxu0
      %888 = vmatprep.mubr.bf16.mxu0 0
      %889 = vmatmul.mubr.bf16.gmra.mrb[0].mxu0 %v720
      %v890 = vpop.f32.mrb[0].mxu0
      %v891 = vadd.f32 0.0, %v890
      %v892 = vpop.f32.mrb[0].mxu0
      %v893 = vpop.f32.mrb[0].mxu0
      %v894 = vadd.f32 0.0, %v893
      %v895 = vpop.f32.mrb[0].mxu0
      %896 = vmatprep.mubr.bf16.mxu0 0
      %897 = vmatmul.mubr.bf16.gmra.mrb[0].mxu0 %v721
      %v898 = vpop.f32.mrb[0].mxu0
      %v899 = vadd.f32 0.0, %v898
      %v900 = vpop.f32.mrb[0].mxu0
      %v901 = vpop.f32.mrb[0].mxu0
      %v902 = vadd.f32 0.0, %v901
      %v903 = vpop.f32.mrb[0].mxu0
      %904 = vmatprep.mubr.bf16.mxu0 0
      %905 = vmatmul.mubr.bf16.gmra.mrb[0].mxu0 %v722
      %v906 = vpop.f32.mrb[0].mxu0
      %v907 = vadd.f32 0.0, %v906
      %v908 = vpop.f32.mrb[0].mxu0
      %v909 = vpop.f32.mrb[0].mxu0
      %v910 = vadd.f32 0.0, %v909
      %v911 = vpop.f32.mrb[0].mxu0
      %912 = vmatprep.mubr.bf16.mxu0 0
      %913 = vmatmul.mubr.bf16.gmra.mrb[0].mxu0 %v723
      %v914 = vpop.f32.mrb[0].mxu0
      %v915 = vadd.f32 0.0, %v914
      %v916 = vpop.f32.mrb[0].mxu0
      %v917 = vpop.f32.mrb[0].mxu0
      %v918 = vadd.f32 0.0, %v917
      %v919 = vpop.f32.mrb[0].mxu0
      %920 = vmatprep.mubr.bf16.mxu0 0
      %921 = vmatmul.mubr.bf16.gmra.mrb[0].mxu0 %v724
      %v922 = vpop.f32.mrb[0].mxu0
      %v923 = vadd.f32 0.0, %v922
      %v924 = vpop.f32.mrb[0].mxu0
      %v925 = vpop.f32.mrb[0].mxu0
      %v926 = vadd.f32 0.0, %v925
      %v927 = vpop.f32.mrb[0].mxu0
      %928 = vmatprep.mubr.bf16.mxu0 0
      %929 = vmatmul.mubr.bf16.gmra.mrb[0].mxu0 %v725
      %v930 = vpop.f32.mrb[0].mxu0
      %v931 = vadd.f32 0.0, %v930
      %v932 = vpop.f32.mrb[0].mxu0
      %v933 = vpop.f32.mrb[0].mxu0
      %v934 = vadd.f32 0.0, %v933
      %v935 = vpop.f32.mrb[0].mxu0
      %936 = vmatprep.mubr.bf16.mxu0 0
      %937 = vmatmul.mubr.bf16.gmra.mrb[0].mxu0 %v726
      %v938 = vpop.f32.mrb[0].mxu0
      %v939 = vadd.f32 0.0, %v938
      %v940 = vpop.f32.mrb[0].mxu0
      %v941 = vpop.f32.mrb[0].mxu0
      %v942 = vadd.f32 0.0, %v941
      %v943 = vpop.f32.mrb[0].mxu0
      %944 = vmatprep.mubr.bf16.mxu0 0
      %945 = vmatmul.mubr.bf16.gmra.mrb[0].mxu0 %v727
      %v946 = vpop.f32.mrb[0].mxu0
      %v947 = vadd.f32 0.0, %v946
      %v948 = vpop.f32.mrb[0].mxu0
      %v949 = vpop.f32.mrb[0].mxu0
      %v950 = vadd.f32 0.0, %v949
      %v951 = vpop.f32.mrb[0].mxu0
      %952 = vdwg.mxu0
      %v969 = vunpack.c.l.b16 %v522
      %v970 = vunpack.c.l.b16 %v523
      %v971 = vunpack.c.l.b16 %v524
      %v972 = vunpack.c.l.b16 %v525
      %v973 = vunpack.c.l.b16 %v526
      %v974 = vunpack.c.l.b16 %v527
      %v975 = vunpack.c.l.b16 %v528
      %v976 = vunpack.c.l.b16 %v529
      %v977 = vunpack.c.l.b16 %v530
      %v978 = vunpack.c.l.b16 %v531
      %v979 = vunpack.c.l.b16 %v532
      %v980 = vunpack.c.l.b16 %v533
      %v981 = vunpack.c.l.b16 %v534
      %v982 = vunpack.c.l.b16 %v535
      %v983 = vunpack.c.l.b16 %v536
      %v984 = vunpack.c.l.b16 %v537
      %v985 = vpack.c.b16 %v970, %v969
      %v986 = vpack.c.b16 %v972, %v971
      %v987 = vpack.c.b16 %v974, %v973
      %v988 = vpack.c.b16 %v976, %v975
      %v989 = vpack.c.b16 %v978, %v977
      %v990 = vpack.c.b16 %v980, %v979
      %v991 = vpack.c.b16 %v982, %v981
      %v992 = vpack.c.b16 %v984, %v983
      %1001 = vmatprep.subr.bf16.mxu0 0
      %1002 = vmatpush1.bf16.msra.mxu0 %v985
      %1003 = vmatprep.subr.bf16.mxu0 0
      %1004 = vmatpush1.bf16.msra.mxu0 %v986
      %1005 = vmatprep.subr.bf16.mxu0 0
      %1006 = vmatpush1.bf16.msra.mxu0 %v987
      %1007 = vmatprep.subr.bf16.mxu0 0
      %1008 = vmatpush1.bf16.msra.mxu0 %v988
      %1009 = vmatprep.subr.bf16.mxu0 0
      %1010 = vmatpush1.bf16.msra.mxu0 %v989
      %1011 = vmatprep.subr.bf16.mxu0 0
      %1012 = vmatpush1.bf16.msra.mxu0 %v990
      %1013 = vmatprep.subr.bf16.mxu0 0
      %1014 = vmatpush1.bf16.msra.mxu0 %v991
      %1015 = vmatprep.subr.bf16.mxu0 0
      %1016 = vmatpush1.bf16.msra.mxu0 %v992
      %1017 = vmatprep.subr.bf16.mxu0 0
      %1018 = vmatpush1.bf16.msra.mxu0 0
      %1019 = vmatprep.subr.bf16.mxu0 0
      %1020 = vmatpush1.bf16.msra.mxu0 0
      %1021 = vmatprep.subr.bf16.mxu0 0
      %1022 = vmatpush1.bf16.msra.mxu0 0
      %1023 = vmatprep.subr.bf16.mxu0 0
      %1024 = vmatpush1.bf16.msra.mxu0 0
      %1025 = vmatprep.subr.bf16.mxu0 0
      %1026 = vmatpush1.bf16.msra.mxu0 0
      %1027 = vmatprep.subr.bf16.mxu0 0
      %1028 = vmatpush1.bf16.msra.mxu0 0
      %1029 = vmatprep.subr.bf16.mxu0 0
      %1030 = vmatpush1.bf16.msra.mxu0 0
      %1031 = vmatprep.subr.bf16.mxu0 0
      %1032 = vmatpush1.bf16.msra.mxu0 0
      %1033 = vmatprep.mubr.bf16.mxu0 0
      %1034 = vmatmul.mubr.bf16.gmra.mrb[0].mxu0 %v506
      %v1035 = vpop.f32.mrb[0].mxu0
      %v1036 = vadd.f32 %v827, %v1035
      %v1037 = vpop.f32.mrb[0].mxu0
      %v1038 = vpop.f32.mrb[0].mxu0
      %v1039 = vadd.f32 %v830, %v1038
      %v1040 = vpop.f32.mrb[0].mxu0
      %1041 = vmatprep.mubr.bf16.mxu0 0
      %1042 = vmatmul.mubr.bf16.gmra.mrb[0].mxu0 %v507
      %v1043 = vpop.f32.mrb[0].mxu0
      %v1044 = vadd.f32 %v835, %v1043
      %v1045 = vpop.f32.mrb[0].mxu0
      %v1046 = vpop.f32.mrb[0].mxu0
      %v1047 = vadd.f32 %v838, %v1046
      %v1048 = vpop.f32.mrb[0].mxu0
      %1049 = vmatprep.mubr.bf16.mxu0 0
      %1050 = vmatmul.mubr.bf16.gmra.mrb[0].mxu0 %v508
      %v1051 = vpop.f32.mrb[0].mxu0
      %v1052 = vadd.f32 %v843, %v1051
      %v1053 = vpop.f32.mrb[0].mxu0
      %v1054 = vpop.f32.mrb[0].mxu0
      %v1055 = vadd.f32 %v846, %v1054
      %v1056 = vpop.f32.mrb[0].mxu0
      %1057 = vmatprep.mubr.bf16.mxu0 0
      %1058 = vmatmul.mubr.bf16.gmra.mrb[0].mxu0 %v509
      %v1059 = vpop.f32.mrb[0].mxu0
      %v1060 = vadd.f32 %v851, %v1059
      %v1061 = vpop.f32.mrb[0].mxu0
      %v1062 = vpop.f32.mrb[0].mxu0
      %v1063 = vadd.f32 %v854, %v1062
      %v1064 = vpop.f32.mrb[0].mxu0
      %1065 = vmatprep.mubr.bf16.mxu0 0
      %1066 = vmatmul.mubr.bf16.gmra.mrb[0].mxu0 %v510
      %v1067 = vpop.f32.mrb[0].mxu0
      %v1068 = vadd.f32 %v859, %v1067
      %v1069 = vpop.f32.mrb[0].mxu0
      %v1070 = vpop.f32.mrb[0].mxu0
      %v1071 = vadd.f32 %v862, %v1070
      %v1072 = vpop.f32.mrb[0].mxu0
      %1073 = vmatprep.mubr.bf16.mxu0 0
      %1074 = vmatmul.mubr.bf16.gmra.mrb[0].mxu0 %v511
      %v1075 = vpop.f32.mrb[0].mxu0
      %v1076 = vadd.f32 %v867, %v1075
      %v1077 = vpop.f32.mrb[0].mxu0
      %v1078 = vpop.f32.mrb[0].mxu0
      %v1079 = vadd.f32 %v870, %v1078
      %v1080 = vpop.f32.mrb[0].mxu0
      %1081 = vmatprep.mubr.bf16.mxu0 0
      %1082 = vmatmul.mubr.bf16.gmra.mrb[0].mxu0 %v512
      %v1083 = vpop.f32.mrb[0].mxu0
      %v1084 = vadd.f32 %v875, %v1083
      %v1085 = vpop.f32.mrb[0].mxu0
      %v1086 = vpop.f32.mrb[0].mxu0
      %v1087 = vadd.f32 %v878, %v1086
      %v1088 = vpop.f32.mrb[0].mxu0
      %1089 = vmatprep.mubr.bf16.mxu0 0
      %1090 = vmatmul.mubr.bf16.gmra.mrb[0].mxu0 %v513
      %v1091 = vpop.f32.mrb[0].mxu0
      %v1092 = vadd.f32 %v883, %v1091
      %v1093 = vpop.f32.mrb[0].mxu0
      %v1094 = vpop.f32.mrb[0].mxu0
      %v1095 = vadd.f32 %v886, %v1094
      %v1096 = vpop.f32.mrb[0].mxu0
      %1097 = vmatprep.mubr.bf16.mxu0 0
      %1098 = vmatmul.mubr.bf16.gmra.mrb[0].mxu0 %v514
      %v1099 = vpop.f32.mrb[0].mxu0
      %v1100 = vadd.f32 %v891, %v1099
      %v1101 = vpop.f32.mrb[0].mxu0
      %v1102 = vpop.f32.mrb[0].mxu0
      %v1103 = vadd.f32 %v894, %v1102
      %v1104 = vpop.f32.mrb[0].mxu0
      %1105 = vmatprep.mubr.bf16.mxu0 0
      %1106 = vmatmul.mubr.bf16.gmra.mrb[0].mxu0 %v515
      %v1107 = vpop.f32.mrb[0].mxu0
      %v1108 = vadd.f32 %v899, %v1107
      %v1109 = vpop.f32.mrb[0].mxu0
      %v1110 = vpop.f32.mrb[0].mxu0
      %v1111 = vadd.f32 %v902, %v1110
      %v1112 = vpop.f32.mrb[0].mxu0
      %1113 = vmatprep.mubr.bf16.mxu0 0
      %1114 = vmatmul.mubr.bf16.gmra.mrb[0].mxu0 %v516
      %v1115 = vpop.f32.mrb[0].mxu0
      %v1116 = vadd.f32 %v907, %v1115
      %v1117 = vpop.f32.mrb[0].mxu0
      %v1118 = vpop.f32.mrb[0].mxu0
      %v1119 = vadd.f32 %v910, %v1118
      %v1120 = vpop.f32.mrb[0].mxu0
      %1121 = vmatprep.mubr.bf16.mxu0 0
      %1122 = vmatmul.mubr.bf16.gmra.mrb[0].mxu0 %v517
      %v1123 = vpop.f32.mrb[0].mxu0
      %v1124 = vadd.f32 %v915, %v1123
      %v1125 = vpop.f32.mrb[0].mxu0
      %v1126 = vpop.f32.mrb[0].mxu0
      %v1127 = vadd.f32 %v918, %v1126
      %v1128 = vpop.f32.mrb[0].mxu0
      %1129 = vmatprep.mubr.bf16.mxu0 0
      %1130 = vmatmul.mubr.bf16.gmra.mrb[0].mxu0 %v518
      %v1131 = vpop.f32.mrb[0].mxu0
      %v1132 = vadd.f32 %v923, %v1131
      %v1133 = vpop.f32.mrb[0].mxu0
      %v1134 = vpop.f32.mrb[0].mxu0
      %v1135 = vadd.f32 %v926, %v1134
      %v1136 = vpop.f32.mrb[0].mxu0
      %1137 = vmatprep.mubr.bf16.mxu0 0
      %1138 = vmatmul.mubr.bf16.gmra.mrb[0].mxu0 %v519
      %v1139 = vpop.f32.mrb[0].mxu0
      %v1140 = vadd.f32 %v931, %v1139
      %v1141 = vpop.f32.mrb[0].mxu0
      %v1142 = vpop.f32.mrb[0].mxu0
      %v1143 = vadd.f32 %v934, %v1142
      %v1144 = vpop.f32.mrb[0].mxu0
      %1145 = vmatprep.mubr.bf16.mxu0 0
      %1146 = vmatmul.mubr.bf16.gmra.mrb[0].mxu0 %v520
      %v1147 = vpop.f32.mrb[0].mxu0
      %v1148 = vadd.f32 %v939, %v1147
      %v1149 = vpop.f32.mrb[0].mxu0
      %v1150 = vpop.f32.mrb[0].mxu0
      %v1151 = vadd.f32 %v942, %v1150
      %v1152 = vpop.f32.mrb[0].mxu0
      %1153 = vmatprep.mubr.bf16.mxu0 0
      %1154 = vmatmul.mubr.bf16.gmra.mrb[0].mxu0 %v521
      %v1155 = vpop.f32.mrb[0].mxu0
      %v1156 = vadd.f32 %v947, %v1155
      %v1157 = vpop.f32.mrb[0].mxu0
      %v1158 = vpop.f32.mrb[0].mxu0
      %v1159 = vadd.f32 %v950, %v1158
      %v1160 = vpop.f32.mrb[0].mxu0
      %1161 = vdwg.mxu0
      %1162 = vst [vmem:[%s329] sm:$0xff] %v1036
      %1163 = vst [vmem:[%s329 + $0x8] sm:$0xff] %v1039
      %1164 = vst [vmem:[%s329 + $0x10] sm:$0xff] %v1044
      %1165 = vst [vmem:[%s329 + $0x18] sm:$0xff] %v1047
      %1166 = vst [vmem:[%s329 + $0x20] sm:$0xff] %v1052
      %1167 = vst [vmem:[%s329 + $0x28] sm:$0xff] %v1055
      %1168 = vst [vmem:[%s329 + $0x30] sm:$0xff] %v1060
      %1169 = vst [vmem:[%s329 + $0x38] sm:$0xff] %v1063
      %1170 = vst [vmem:[%s329 + $0x40] sm:$0xff] %v1068
      %1171 = vst [vmem:[%s329 + $0x48] sm:$0xff] %v1071
      %1172 = vst [vmem:[%s329 + $0x50] sm:$0xff] %v1076
      %1173 = vst [vmem:[%s329 + $0x58] sm:$0xff] %v1079
      %1174 = vst [vmem:[%s329 + $0x60] sm:$0xff] %v1084
      %1175 = vst [vmem:[%s329 + $0x68] sm:$0xff] %v1087
      %1176 = vst [vmem:[%s329 + $0x70] sm:$0xff] %v1092
      %1177 = vst [vmem:[%s329 + $0x78] sm:$0xff] %v1095
      %1178 = vst [vmem:[%s329 + $0x80] sm:$0xff] %v1100
      %1179 = vst [vmem:[%s329 + $0x88] sm:$0xff] %v1103
      %1180 = vst [vmem:[%s329 + $0x90] sm:$0xff] %v1108
      %1181 = vst [vmem:[%s329 + $0x98] sm:$0xff] %v1111
      %1182 = vst [vmem:[%s329 + $0xa0] sm:$0xff] %v1116
      %1183 = vst [vmem:[%s329 + $0xa8] sm:$0xff] %v1119
      %1184 = vst [vmem:[%s329 + $0xb0] sm:$0xff] %v1124
      %1185 = vst [vmem:[%s329 + $0xb8] sm:$0xff] %v1127
      %1186 = vst [vmem:[%s329 + $0xc0] sm:$0xff] %v1132
      %1187 = vst [vmem:[%s329 + $0xc8] sm:$0xff] %v1135
      %1188 = vst [vmem:[%s329 + $0xd0] sm:$0xff] %v1140
      %1189 = vst [vmem:[%s329 + $0xd8] sm:$0xff] %v1143
      %1190 = vst [vmem:[%s329 + $0xe0] sm:$0xff] %v1148
      %1191 = vst [vmem:[%s329 + $0xe8] sm:$0xff] %v1151
      %1192 = vst [vmem:[%s329 + $0xf0] sm:$0xff] %v1156
      %1193 = vst [vmem:[%s329 + $0xf8] sm:$0xff] %v1159
      %s1194 = smul.u32 32, %s19
      %p1195 = scmp.lt.s32.totalorder %s1194, 63
      %s1196 = scalar_select %p1195, %s1194, 63
      %s1197 = smul.addr %s1196, 8
      %s1198 = scalar_lea.vmem %s8, %s1197
      // Predicated region
      $region53: #{residual_block_forward.5} parent=51 // pred_check
        %p1199 = pneg %p215
      $region54: #{residual_block_forward.5} parent=51 // pred_check_branch
        %1201 = sbr.rel (%p1199) target = $region56
      $region55: #{residual_block_forward.5} parent=51 // pred_region
        %s1202 = smul.u32 32, %s19
      $region56: #{residual_block_forward.5} parent=51 // pred_fallthru
        _
    $region52: #{residual_block_forward.5} parent=5 // pred_fallthru
      _
    %p1203 = scmp.le.s32.totalorder 2, %s14
    // Predicated region
    $region57: #{residual_block_forward.5} parent=5 // pred_check
      %p1204 = pneg %p1203
    $region58: #{residual_block_forward.5} parent=5 // pred_check_branch
      %1206 = sbr.rel (%p1204) target = $region60
    $region59: #{residual_block_forward.5} parent=5 // pred_region
      %s1207 = ssub.s32 %s14, 2
      // Predicated region
      $region61: #{residual_block_forward.5} parent=59 // pred_check
        %p1208 = pneg %p221
      $region62: #{residual_block_forward.5} parent=59 // pred_check_branch
        %1210 = sbr.rel (%p1208) target = $region64
      $region63: #{residual_block_forward.5} parent=59 // pred_region
        %s1211 = smul.u32 32, %s20
        %p1212 = scmp.lt.s32.totalorder %s1211, 63
        %s1213 = scalar_select %p1212, %s1211, 63
        %s1214 = smul.addr %s1213, 8
        %s1215 = scalar_lea.vmem %s8, %s1214
      $region64: #{residual_block_forward.5} parent=59 // pred_fallthru
        _
    $region60: #{residual_block_forward.5} parent=5 // pred_fallthru
      _
  $region6: #{residual_block_forward.5} parent=0 // loop_footer
    %s18 = sadd.s32 1, %s14
  $region7: #{residual_block_forward.5} parent=0 // loop_footer_branch
    %13 = sbr.rel target = $region3
  $region8: #{residual_block_forward.5} parent=0 // loop_exit
    _

// kernel: residual_block_forward.4
$region0: #{residual_block_forward.4}
  #allocation0 [shape = 'u32[]', space=smem, size = 0x4, offset = 0x4, fixed_abs, tag = 'smem constant byte address 0x4 - core index']
  #allocation1 [shape = 'u32[144,128]{1,0:T(1,128)}', space=vmem, size = 0x12000, scoped, tag = 'internal scratch']
  #allocation2 [shape = 'bf16[18,18,128]{2,1,0:T(8,128)(2,1)}', space=vmem, size = 0x1b000, scoped, tag = 'scratch operand']
  %s0 = inlined_call_operand.vmem [shape: bf16[2,16,16,128], index: 0, kind: input, shape index: {}]
  %s1 = inlined_call_operand.vmem [shape: f32[1,1,128], index: 1, kind: input, shape index: {}]
  %s2 = inlined_call_operand.vmem [shape: f32[1,1,128], index: 2, kind: input, shape index: {}]
  %s3 = inlined_call_operand.vmem [shape: bf16[9,128,128], index: 3, kind: input, shape index: {}]
  %s4 = inlined_call_operand.vmem [shape: bf16[512,128], index: 4, kind: output, shape index: {0}]
  %s5 = inlined_call_operand.vmem [shape: f32[16,128], index: 5, kind: output, shape index: {1}]
  %s6 = inlined_call_operand.vmem [shape: f32[16,128], index: 6, kind: output, shape index: {2}]
  %7 = xla_tuple %s4, %s5, %s6
  %s8 = sld [smem:[#allocation0]]
  $region65: #{residual_block_forward.4} parent=0
    _
  %s10 = ssub.s32 1, %s8
  %s11 = scalar_select 0, %s10, %s8
  loop: start=0, step=1, limit=4
  $region2: #{residual_block_forward.4} parent=0 // loop_pre_header
    _
  $region3: #{residual_block_forward.4} parent=0 // loop_header
    %s13 = sphi 0, %s17
    %p14 = scmp.ge.s32.totalorder %s13, 4
    %s23 = sphi 0, %s25
    %s26 = sphi 0, %s23
    %s27 = sphi 0, %s26
    %s43 = sphi 0, %s27
    %s47 = sphi 0, %s47
    %s49 = sphi 0, %s47
    %s50 = sphi 0, %s49
    %s64 = sphi 0, %s50
    %s68 = sphi 0, %s68
    %s70 = sphi 0, %s68
    %s71 = sphi 0, %s70
    %s85 = sphi 0, %s71
    %s89 = sphi 0, %s89
    %s91 = sphi 0, %s89
    %s92 = sphi 0, %s91
    %s106 = sphi 0, %s92
    %s112 = sphi 0, %s114
    %s115 = sphi 0, %s112
    %s116 = sphi 0, %s115
    %s132 = sphi 0, %s116
    %s138 = sphi 0, %s140
    %s141 = sphi 0, %s138
    %s142 = sphi 0, %s141
    %s158 = sphi 0, %s142
    %s164 = sphi 0, %s166
    %s167 = sphi 0, %s164
    %s168 = sphi 0, %s167
    %s184 = sphi 0, %s168
  $region4: #{residual_block_forward.4} parent=0 // loop_header_branch
    %16 = sbr.rel (%p14) target = $region8
  $region5: #{residual_block_forward.4} parent=0 // loop_body
    %s18 = ssub.s32 %s13, 1
    %s19 = ssub.s32 %s13, 2
    %s20 = sadd.s32 %s13, 1
    %s21 = ssub.s32 %s13, %s20
    %p22 = scmp.eq.s32.totalorder %s21, 0
    %s24 = sadd.s32 %s23, 1
    %s25 = scalar_select %p22, %s23, %s24
    %p28 = pneg %p22
    %p29 = scmp.eq.s32.totalorder %s13, 1
    %p30 = por %p28, %p29
    %p31 = scmp.ne.s32.totalorder %s23, %s26
    %p32 = scmp.eq.s32.totalorder %s13, 0
    %p33 = por %p31, %p32
    %p34 = scmp.ne.s32.totalorder %s23, %s26
    %p35 = scmp.eq.s32.totalorder %s18, 1
    %p36 = por %p34, %p35
    %p37 = scmp.ne.s32.totalorder %s26, %s27
    %p38 = scmp.eq.s32.totalorder %s18, 0
    %p39 = por %p37, %p38
    %p40 = scmp.ne.s32.totalorder %s26, %s27
    %p41 = scmp.eq.s32.totalorder %s19, 1
    %p42 = por %p40, %p41
    %p44 = scmp.ne.s32.totalorder %s27, %s43
    %p45 = scmp.eq.s32.totalorder %s19, 0
    %p46 = por %p44, %p45
    %s48 = sadd.s32 %s47, 1
    %p51 = scmp.eq.s32.totalorder %s13, 1
    %p52 = scmp.ne.s32.totalorder %s47, %s49
    %p53 = scmp.eq.s32.totalorder %s13, 0
    %p54 = por %p52, %p53
    %p55 = scmp.ne.s32.totalorder %s47, %s49
    %p56 = scmp.eq.s32.totalorder %s18, 1
    %p57 = por %p55, %p56
    %p58 = scmp.ne.s32.totalorder %s49, %s50
    %p59 = scmp.eq.s32.totalorder %s18, 0
    %p60 = por %p58, %p59
    %p61 = scmp.ne.s32.totalorder %s49, %s50
    %p62 = scmp.eq.s32.totalorder %s19, 1
    %p63 = por %p61, %p62
    %p65 = scmp.ne.s32.totalorder %s50, %s64
    %p66 = scmp.eq.s32.totalorder %s19, 0
    %p67 = por %p65, %p66
    %s69 = sadd.s32 %s68, 1
    %p72 = scmp.eq.s32.totalorder %s13, 1
    %p73 = scmp.ne.s32.totalorder %s68, %s70
    %p74 = scmp.eq.s32.totalorder %s13, 0
    %p75 = por %p73, %p74
    %p76 = scmp.ne.s32.totalorder %s68, %s70
    %p77 = scmp.eq.s32.totalorder %s18, 1
    %p78 = por %p76, %p77
    %p79 = scmp.ne.s32.totalorder %s70, %s71
    %p80 = scmp.eq.s32.totalorder %s18, 0
    %p81 = por %p79, %p80
    %p82 = scmp.ne.s32.totalorder %s70, %s71
    %p83 = scmp.eq.s32.totalorder %s19, 1
    %p84 = por %p82, %p83
    %p86 = scmp.ne.s32.totalorder %s71, %s85
    %p87 = scmp.eq.s32.totalorder %s19, 0
    %p88 = por %p86, %p87
    %s90 = sadd.s32 %s89, 1
    %p93 = scmp.eq.s32.totalorder %s13, 1
    %p94 = scmp.ne.s32.totalorder %s89, %s91
    %p95 = scmp.eq.s32.totalorder %s13, 0
    %p96 = por %p94, %p95
    %p97 = scmp.ne.s32.totalorder %s89, %s91
    %p98 = scmp.eq.s32.totalorder %s18, 1
    %p99 = por %p97, %p98
    %p100 = scmp.ne.s32.totalorder %s91, %s92
    %p101 = scmp.eq.s32.totalorder %s18, 0
    %p102 = por %p100, %p101
    %p103 = scmp.ne.s32.totalorder %s91, %s92
    %p104 = scmp.eq.s32.totalorder %s19, 1
    %p105 = por %p103, %p104
    %p107 = scmp.ne.s32.totalorder %s92, %s106
    %p108 = scmp.eq.s32.totalorder %s19, 0
    %p109 = por %p107, %p108
    %s110 = ssub.s32 %s13, %s20
    %p111 = scmp.eq.s32.totalorder %s110, 0
    %s113 = sadd.s32 %s112, 1
    %s114 = scalar_select %p111, %s112, %s113
    %p117 = pneg %p111
    %p118 = scmp.eq.s32.totalorder %s13, 1
    %p119 = por %p117, %p118
    %p120 = scmp.ne.s32.totalorder %s112, %s115
    %p121 = scmp.eq.s32.totalorder %s13, 0
    %p122 = por %p120, %p121
    %p123 = scmp.ne.s32.totalorder %s112, %s115
    %p124 = scmp.eq.s32.totalorder %s18, 1
    %p125 = por %p123, %p124
    %p126 = scmp.ne.s32.totalorder %s115, %s116
    %p127 = scmp.eq.s32.totalorder %s18, 0
    %p128 = por %p126, %p127
    %p129 = scmp.ne.s32.totalorder %s115, %s116
    %p130 = scmp.eq.s32.totalorder %s19, 1
    %p131 = por %p129, %p130
    %p133 = scmp.ne.s32.totalorder %s116, %s132
    %p134 = scmp.eq.s32.totalorder %s19, 0
    %p135 = por %p133, %p134
    %s136 = ssub.s32 %s13, %s20
    %p137 = scmp.eq.s32.totalorder %s136, 0
    %s139 = sadd.s32 %s138, 1
    %s140 = scalar_select %p137, %s138, %s139
    %p143 = pneg %p137
    %p144 = scmp.eq.s32.totalorder %s13, 1
    %p145 = por %p143, %p144
    %p146 = scmp.ne.s32.totalorder %s138, %s141
    %p147 = scmp.eq.s32.totalorder %s13, 0
    %p148 = por %p146, %p147
    %p149 = scmp.ne.s32.totalorder %s138, %s141
    %p150 = scmp.eq.s32.totalorder %s18, 1
    %p151 = por %p149, %p150
    %p152 = scmp.ne.s32.totalorder %s141, %s142
    %p153 = scmp.eq.s32.totalorder %s18, 0
    %p154 = por %p152, %p153
    %p155 = scmp.ne.s32.totalorder %s141, %s142
    %p156 = scmp.eq.s32.totalorder %s19, 1
    %p157 = por %p155, %p156
    %p159 = scmp.ne.s32.totalorder %s142, %s158
    %p160 = scmp.eq.s32.totalorder %s19, 0
    %p161 = por %p159, %p160
    %s162 = ssub.s32 %s13, %s20
    %p163 = scmp.eq.s32.totalorder %s162, 0
    %s165 = sadd.s32 %s164, 1
    %s166 = scalar_select %p163, %s164, %s165
    %p169 = pneg %p163
    %p170 = scmp.eq.s32.totalorder %s13, 1
    %p171 = por %p169, %p170
    %p172 = scmp.ne.s32.totalorder %s164, %s167
    %p173 = scmp.eq.s32.totalorder %s13, 0
    %p174 = por %p172, %p173
    %p175 = scmp.ne.s32.totalorder %s164, %s167
    %p176 = scmp.eq.s32.totalorder %s18, 1
    %p177 = por %p175, %p176
    %p178 = scmp.ne.s32.totalorder %s167, %s168
    %p179 = scmp.eq.s32.totalorder %s18, 0
    %p180 = por %p178, %p179
    %p181 = scmp.ne.s32.totalorder %s167, %s168
    %p182 = scmp.eq.s32.totalorder %s19, 1
    %p183 = por %p181, %p182
    %p185 = scmp.ne.s32.totalorder %s168, %s184
    %p186 = scmp.eq.s32.totalorder %s19, 0
    %p187 = por %p185, %p186
    %p188 = scmp.le.s32.totalorder 1, %s13
    %p189 = scmp.lt.s32.totalorder %s13, 3
    %p190 = pnand %p188, %p189
    %p191 = pneg %p190
    // Predicated region
    $region9: #{residual_block_forward.4} parent=5 // pred_check
      _
    $region10: #{residual_block_forward.4} parent=5 // pred_check_branch
      %193 = sbr.rel (%p190) target = $region12
    $region11: #{residual_block_forward.4} parent=5 // pred_region
      %s194 = ssub.s32 %s13, 1
      // Predicated region
      $region13: #{residual_block_forward.4} parent=11 // pred_check
        %p195 = pneg %p60
      $region14: #{residual_block_forward.4} parent=11 // pred_check_branch
        %197 = sbr.rel (%p195) target = $region16
      $region15: #{residual_block_forward.4} parent=11 // pred_region
        _
      $region16: #{residual_block_forward.4} parent=11 // pred_fallthru
        _
      // Predicated region
      $region17: #{residual_block_forward.4} parent=11 // pred_check
        %p198 = pneg %p81
      $region18: #{residual_block_forward.4} parent=11 // pred_check_branch
        %200 = sbr.rel (%p198) target = $region20
      $region19: #{residual_block_forward.4} parent=11 // pred_region
        _
      $region20: #{residual_block_forward.4} parent=11 // pred_fallthru
        _
      // Predicated region
      $region21: #{residual_block_forward.4} parent=11 // pred_check
        %p201 = pneg %p102
      $region22: #{residual_block_forward.4} parent=11 // pred_check_branch
        %203 = sbr.rel (%p201) target = $region24
      $region23: #{residual_block_forward.4} parent=11 // pred_region
        _
      $region24: #{residual_block_forward.4} parent=11 // pred_fallthru
        _
    $region12: #{residual_block_forward.4} parent=5 // pred_fallthru
      _
    %p204 = scmp.lt.s32.totalorder %s13, 2
    // Predicated region
    $region25: #{residual_block_forward.4} parent=5 // pred_check
      %p205 = pneg %p204
    $region26: #{residual_block_forward.4} parent=5 // pred_check_branch
      %207 = sbr.rel (%p205) target = $region28
    $region27: #{residual_block_forward.4} parent=5 // pred_region
      // Predicated region
      $region29: #{residual_block_forward.4} parent=27 // pred_check
        %p208 = pneg %p33
      $region30: #{residual_block_forward.4} parent=27 // pred_check_branch
        %210 = sbr.rel (%p208) target = $region32
      $region31: #{residual_block_forward.4} parent=27 // pred_region
        %p211 = scmp.lt.s32.totalorder %s13, 1
        %s212 = scalar_select %p211, %s13, 1
        %s213 = smul.addr %s212, 32
        %s214 = smul.addr %s213, 4
        %s215 = scalar_lea.vmem %s0, %s214
      $region32: #{residual_block_forward.4} parent=27 // pred_fallthru
        _
    $region28: #{residual_block_forward.4} parent=5 // pred_fallthru
      _
    %p216 = scmp.le.s32.totalorder 1, %s13
    %p217 = scmp.lt.s32.totalorder %s13, 3
    %p218 = pnand %p216, %p217
    %p219 = pneg %p218
    // Predicated region
    $region33: #{residual_block_forward.4} parent=5 // pred_check
      _
    $region34: #{residual_block_forward.4} parent=5 // pred_check_branch
      %221 = sbr.rel (%p218) target = $region36
    $region35: #{residual_block_forward.4} parent=5 // pred_region
      %s222 = ssub.s32 %s13, 1
      %p223 = scmp.lt.s32.totalorder %s18, 1
      %s224 = scalar_select %p223, %s18, 1
      %s225 = smul.addr %s224, 32
      %s226 = smul.addr %s225, 4
      %s227 = scalar_lea.vmem %s0, %s226
      %p228 = pneg %p39
      %p229 = pneg %p36
      %p230 = pneg %p60
      %p231 = pneg %p57
      %p232 = pneg %p81
      %p233 = pneg %p78
      %p234 = pneg %p102
      %p235 = pneg %p99
      %p236 = pneg %p128
      %p237 = pneg %p125
      %s238 = smul.u32 32, %s18
      %p239 = scmp.lt.s32.totalorder %s238, 63
      %s240 = scalar_select %p239, %s238, 63
      %s241 = smul.addr %s240, 4
      %s242 = scalar_lea.vmem %s4, %s241
      %p243 = pneg %p154
      %p244 = pneg %p151
      %p245 = scmp.lt.s32.totalorder %s18, 1
      %s246 = scalar_select %p245, %s18, 1
      %s247 = smul.addr %s246, 8
      %s248 = scalar_lea.vmem %s5, %s247
      %p249 = pneg %p180
      %p250 = pneg %p177
      %p251 = scmp.lt.s32.totalorder %s18, 1
      %s252 = scalar_select %p251, %s18, 1
      %s253 = smul.addr %s252, 8
      %s254 = scalar_lea.vmem %s6, %s253
      %p255 = scmp.lt.s32.totalorder %s18, 1
      %s256 = scalar_select %p255, %s18, 1
      %s257 = smul.addr %s256, 32
      %s258 = smul.addr %s257, 4
      %s259 = scalar_lea.vmem %s0, %s258
      %s260 = smul.u32 32, %s18
      %p261 = scmp.lt.s32.totalorder %s260, 63
      %s262 = scalar_select %p261, %s260, 63
      %s263 = smul.addr %s262, 4
      %s264 = scalar_lea.vmem %s4, %s263
      %s265 = smul.u32 32, %s18
      %p266 = scmp.lt.s32.totalorder %s18, 1
      %s267 = scalar_select %p266, %s18, 1
      %s268 = smul.addr %s267, 8
      %s269 = scalar_lea.vmem %s5, %s268
      %p270 = scmp.lt.s32.totalorder %s18, 1
      %s271 = scalar_select %p270, %s18, 1
      %s272 = smul.addr %s271, 8
      %s273 = scalar_lea.vmem %s6, %s272
      %v275 = vld [vmem:[%s259] sm:$0xf]
      %v276 = vld [vmem:[%s259 + $0x4] sm:$0xf]
      %v277 = vld [vmem:[%s259 + $0x8] sm:$0xf]
      %v278 = vld [vmem:[%s259 + $0xc] sm:$0xf]
      %v279 = vld [vmem:[%s259 + $0x10] sm:$0xf]
      %v280 = vld [vmem:[%s259 + $0x14] sm:$0xf]
      %v281 = vld [vmem:[%s259 + $0x18] sm:$0xf]
      %v282 = vld [vmem:[%s259 + $0x1c] sm:$0xf]
      %v283 = vld [vmem:[%s259 + $0x20] sm:$0xf]
      %v284 = vld [vmem:[%s259 + $0x24] sm:$0xf]
      %v285 = vld [vmem:[%s259 + $0x28] sm:$0xf]
      %v286 = vld [vmem:[%s259 + $0x2c] sm:$0xf]
      %v287 = vld [vmem:[%s259 + $0x30] sm:$0xf]
      %v288 = vld [vmem:[%s259 + $0x34] sm:$0xf]
      %v289 = vld [vmem:[%s259 + $0x38] sm:$0xf]
      %v290 = vld [vmem:[%s259 + $0x3c] sm:$0xf]
      %v291 = vld [vmem:[%s259 + $0x40] sm:$0xf]
      %v292 = vld [vmem:[%s259 + $0x44] sm:$0xf]
      %v293 = vld [vmem:[%s259 + $0x48] sm:$0xf]
      %v294 = vld [vmem:[%s259 + $0x4c] sm:$0xf]
      %v295 = vld [vmem:[%s259 + $0x50] sm:$0xf]
      %v296 = vld [vmem:[%s259 + $0x54] sm:$0xf]
      %v297 = vld [vmem:[%s259 + $0x58] sm:$0xf]
      %v298 = vld [vmem:[%s259 + $0x5c] sm:$0xf]
      %v299 = vld [vmem:[%s259 + $0x60] sm:$0xf]
      %v300 = vld [vmem:[%s259 + $0x64] sm:$0xf]
      %v301 = vld [vmem:[%s259 + $0x68] sm:$0xf]
      %v302 = vld [vmem:[%s259 + $0x6c] sm:$0xf]
      %v303 = vld [vmem:[%s259 + $0x70] sm:$0xf]
      %v304 = vld [vmem:[%s259 + $0x74] sm:$0xf]
      %v305 = vld [vmem:[%s259 + $0x78] sm:$0xf]
      %v306 = vld [vmem:[%s259 + $0x7c] sm:$0xf]
      %v307 = vunpack.c.l.bf16 %v275
      %v308 = vunpack.c.l.bf16 %v276
      %v309 = vunpack.c.l.bf16 %v277
      %v310 = vunpack.c.l.bf16 %v278
      %v311 = vunpack.c.l.bf16 %v279
      %v312 = vunpack.c.l.bf16 %v280
      %v313 = vunpack.c.l.bf16 %v281
      %v314 = vunpack.c.l.bf16 %v282
      %v315 = vunpack.c.l.bf16 %v283
      %v316 = vunpack.c.l.bf16 %v284
      %v317 = vunpack.c.l.bf16 %v285
      %v318 = vunpack.c.l.bf16 %v286
      %v319 = vunpack.c.l.bf16 %v287
      %v320 = vunpack.c.l.bf16 %v288
      %v321 = vunpack.c.l.bf16 %v289
      %v322 = vunpack.c.l.bf16 %v290
      %v323 = vunpack.c.l.bf16 %v291
      %v324 = vunpack.c.l.bf16 %v292
      %v325 = vunpack.c.l.bf16 %v293
      %v326 = vunpack.c.l.bf16 %v294
      %v327 = vunpack.c.l.bf16 %v295
      %v328 = vunpack.c.l.bf16 %v296
      %v329 = vunpack.c.l.bf16 %v297
      %v330 = vunpack.c.l.bf16 %v298
      %v331 = vunpack.c.l.bf16 %v299
      %v332 = vunpack.c.l.bf16 %v300
      %v333 = vunpack.c.l.bf16 %v301
      %v334 = vunpack.c.l.bf16 %v302
      %v335 = vunpack.c.l.bf16 %v303
      %v336 = vunpack.c.l.bf16 %v304
      %v337 = vunpack.c.l.bf16 %v305
      %v338 = vunpack.c.l.bf16 %v306
      %v339 = vld [vmem:[%s1] sm:$0x1]
      %v341 = vlaneseq
      %v342 = vshrl.u32 %v341, 7
      %v343 = vsub.s32 0, %v342
      %v344 = vrot.slane %v339, %v343
      %v346 = vmul.f32 %v307, %v344
      %v347 = vmul.f32 %v308, %v344
      %v348 = vmul.f32 %v309, %v344
      %v349 = vmul.f32 %v310, %v344
      %v350 = vmul.f32 %v311, %v344
      %v351 = vmul.f32 %v312, %v344
      %v352 = vmul.f32 %v313, %v344
      %v353 = vmul.f32 %v314, %v344
      %v354 = vmul.f32 %v315, %v344
      %v355 = vmul.f32 %v316, %v344
      %v356 = vmul.f32 %v317, %v344
      %v357 = vmul.f32 %v318, %v344
      %v358 = vmul.f32 %v319, %v344
      %v359 = vmul.f32 %v320, %v344
      %v360 = vmul.f32 %v321, %v344
      %v361 = vmul.f32 %v322, %v344
      %v362 = vmul.f32 %v323, %v344
      %v363 = vmul.f32 %v324, %v344
      %v364 = vmul.f32 %v325, %v344
      %v365 = vmul.f32 %v326, %v344
      %v366 = vmul.f32 %v327, %v344
      %v367 = vmul.f32 %v328, %v344
      %v368 = vmul.f32 %v329, %v344
      %v369 = vmul.f32 %v330, %v344
      %v370 = vmul.f32 %v331, %v344
      %v371 = vmul.f32 %v332, %v344
      %v372 = vmul.f32 %v333, %v344
      %v373 = vmul.f32 %v334, %v344
      %v374 = vmul.f32 %v335, %v344
      %v375 = vmul.f32 %v336, %v344
      %v376 = vmul.f32 %v337, %v344
      %v377 = vmul.f32 %v338, %v344
      %v378 = vld [vmem:[%s2] sm:$0x1]
      %v380 = vlaneseq
      %v381 = vshrl.u32 %v380, 7
      %v382 = vsub.s32 0, %v381
      %v383 = vrot.slane %v378, %v382
      %v385 = vadd.f32 %v346, %v383
      %v386 = vadd.f32 %v347, %v383
      %v387 = vadd.f32 %v348, %v383
      %v388 = vadd.f32 %v349, %v383
      %v389 = vadd.f32 %v350, %v383
      %v390 = vadd.f32 %v351, %v383
      %v391 = vadd.f32 %v352, %v383
      %v392 = vadd.f32 %v353, %v383
      %v393 = vadd.f32 %v354, %v383
      %v394 = vadd.f32 %v355, %v383
      %v395 = vadd.f32 %v356, %v383
      %v396 = vadd.f32 %v357, %v383
      %v397 = vadd.f32 %v358, %v383
      %v398 = vadd.f32 %v359, %v383
      %v399 = vadd.f32 %v360, %v383
      %v400 = vadd.f32 %v361, %v383
      %v401 = vadd.f32 %v362, %v383
      %v402 = vadd.f32 %v363, %v383
      %v403 = vadd.f32 %v364, %v383
      %v404 = vadd.f32 %v365, %v383
      %v405 = vadd.f32 %v366, %v383
      %v406 = vadd.f32 %v367, %v383
      %v407 = vadd.f32 %v368, %v383
      %v408 = vadd.f32 %v369, %v383
      %v409 = vadd.f32 %v370, %v383
      %v410 = vadd.f32 %v371, %v383
      %v411 = vadd.f32 %v372, %v383
      %v412 = vadd.f32 %v373, %v383
      %v413 = vadd.f32 %v374, %v383
      %v414 = vadd.f32 %v375, %v383
      %v415 = vadd.f32 %v376, %v383
      %v416 = vadd.f32 %v377, %v383
      %v417 = vmax.f32 %v385, 0.0
      %v418 = vmax.f32 %v386, 0.0
      %v419 = vmax.f32 %v387, 0.0
      %v420 = vmax.f32 %v388, 0.0
      %v421 = vmax.f32 %v389, 0.0
      %v422 = vmax.f32 %v390, 0.0
      %v423 = vmax.f32 %v391, 0.0
      %v424 = vmax.f32 %v392, 0.0
      %v425 = vmax.f32 %v393, 0.0
      %v426 = vmax.f32 %v394, 0.0
      %v427 = vmax.f32 %v395, 0.0
      %v428 = vmax.f32 %v396, 0.0
      %v429 = vmax.f32 %v397, 0.0
      %v430 = vmax.f32 %v398, 0.0
      %v431 = vmax.f32 %v399, 0.0
      %v432 = vmax.f32 %v400, 0.0
      %v433 = vmax.f32 %v401, 0.0
      %v434 = vmax.f32 %v402, 0.0
      %v435 = vmax.f32 %v403, 0.0
      %v436 = vmax.f32 %v404, 0.0
      %v437 = vmax.f32 %v405, 0.0
      %v438 = vmax.f32 %v406, 0.0
      %v439 = vmax.f32 %v407, 0.0
      %v440 = vmax.f32 %v408, 0.0
      %v441 = vmax.f32 %v409, 0.0
      %v442 = vmax.f32 %v410, 0.0
      %v443 = vmax.f32 %v411, 0.0
      %v444 = vmax.f32 %v412, 0.0
      %v445 = vmax.f32 %v413, 0.0
      %v446 = vmax.f32 %v414, 0.0
      %v447 = vmax.f32 %v415, 0.0
      %v448 = vmax.f32 %v416, 0.0
      %449 = vst [vmem:[#allocation2] sm:$0xf] 0
      %450 = vst [vmem:[#allocation2 + $0x4] sm:$0xf] 0
      %451 = vst [vmem:[#allocation2 + $0x8] sm:$0x1] 0
      %452 = vst [vmem:[#allocation2 + $0xc] sm:$0xf] 0
      %453 = vst [vmem:[#allocation2 + $0x10] sm:$0xf] 0
      %454 = vst [vmem:[#allocation2 + $0x14] sm:$0x1] 0
      %455 = vst [vmem:[#allocation2 + $0x18] sm:$0xf] 0
      %456 = vst [vmem:[#allocation2 + $0x1c] sm:$0xf] 0
      %457 = vst [vmem:[#allocation2 + $0x20] sm:$0x1] 0
      %458 = vst [vmem:[#allocation2 + $0x24] sm:$0xf] 0
      %459 = vst [vmem:[#allocation2 + $0x28] sm:$0xf] 0
      %460 = vst [vmem:[#allocation2 + $0x2c] sm:$0x1] 0
      %461 = vst [vmem:[#allocation2 + $0x30] sm:$0xf] 0
      %462 = vst [vmem:[#allocation2 + $0x34] sm:$0xf] 0
      %463 = vst [vmem:[#allocation2 + $0x38] sm:$0x1] 0
      %464 = vst [vmem:[#allocation2 + $0x3c] sm:$0xf] 0
      %465 = vst [vmem:[#allocation2 + $0x40] sm:$0xf] 0
      %466 = vst [vmem:[#allocation2 + $0x44] sm:$0x1] 0
      %467 = vst [vmem:[#allocation2 + $0x48] sm:$0xf] 0
      %468 = vst [vmem:[#allocation2 + $0x4c] sm:$0xf] 0
      %469 = vst [vmem:[#allocation2 + $0x50] sm:$0x1] 0
      %470 = vst [vmem:[#allocation2 + $0x54] sm:$0xf] 0
      %471 = vst [vmem:[#allocation2 + $0x58] sm:$0xf] 0
      %472 = vst [vmem:[#allocation2 + $0x5c] sm:$0x1] 0
      %473 = vst [vmem:[#allocation2 + $0x60] sm:$0xf] 0
      %474 = vst [vmem:[#allocation2 + $0x64] sm:$0xf] 0
      %475 = vst [vmem:[#allocation2 + $0x68] sm:$0x1] 0
      %476 = vst [vmem:[#allocation2 + $0x6c] sm:$0xf] 0
      %477 = vst [vmem:[#allocation2 + $0x70] sm:$0xf] 0
      %478 = vst [vmem:[#allocation2 + $0x74] sm:$0x1] 0
      %479 = vst [vmem:[#allocation2 + $0x78] sm:$0xf] 0
      %480 = vst [vmem:[#allocation2 + $0x7c] sm:$0xf] 0
      %481 = vst [vmem:[#allocation2 + $0x80] sm:$0x1] 0
      %482 = vst [vmem:[#allocation2 + $0x84] sm:$0xf] 0
      %483 = vst [vmem:[#allocation2 + $0x88] sm:$0xf] 0
      %484 = vst [vmem:[#allocation2 + $0x8c] sm:$0x1] 0
      %485 = vst [vmem:[#allocation2 + $0x90] sm:$0xf] 0
      %486 = vst [vmem:[#allocation2 + $0x94] sm:$0xf] 0
      %487 = vst [vmem:[#allocation2 + $0x98] sm:$0x1] 0
      %488 = vst [vmem:[#allocation2 + $0x9c] sm:$0xf] 0
      %489 = vst [vmem:[#allocation2 + $0xa0] sm:$0xf] 0
      %490 = vst [vmem:[#allocation2 + $0xa4] sm:$0x1] 0
      %491 = vst [vmem:[#allocation2 + $0xa8] sm:$0xf] 0
      %492 = vst [vmem:[#allocation2 + $0xac] sm:$0xf] 0
      %493 = vst [vmem:[#allocation2 + $0xb0] sm:$0x1] 0
      %494 = vst [vmem:[#allocation2 + $0xb4] sm:$0xf] 0
      %495 = vst [vmem:[#allocation2 + $0xb8] sm:$0xf] 0
      %496 = vst [vmem:[#allocation2 + $0xbc] sm:$0x1] 0
      %497 = vst [vmem:[#allocation2 + $0xc0] sm:$0xf] 0
      %498 = vst [vmem:[#allocation2 + $0xc4] sm:$0xf] 0
      %499 = vst [vmem:[#allocation2 + $0xc8] sm:$0x1] 0
      %500 = vst [vmem:[#allocation2 + $0xcc] sm:$0xf] 0
      %501 = vst [vmem:[#allocation2 + $0xd0] sm:$0xf] 0
      %502 = vst [vmem:[#allocation2 + $0xd4] sm:$0x1] 0
      %v503 = vpack.c.bf16 %v418, %v417
      %v504 = vpack.c.bf16 %v420, %v419
      %v505 = vpack.c.bf16 %v422, %v421
      %v506 = vpack.c.bf16 %v424, %v423
      %v507 = vpack.c.bf16 %v426, %v425
      %v508 = vpack.c.bf16 %v428, %v427
      %v509 = vpack.c.bf16 %v430, %v429
      %v510 = vpack.c.bf16 %v432, %v431
      %v511 = vpack.c.bf16 %v434, %v433
      %v512 = vpack.c.bf16 %v436, %v435
      %v513 = vpack.c.bf16 %v438, %v437
      %v514 = vpack.c.bf16 %v440, %v439
      %v515 = vpack.c.bf16 %v442, %v441
      %v516 = vpack.c.bf16 %v444, %v443
      %v517 = vpack.c.bf16 %v446, %v445
      %v518 = vpack.c.bf16 %v448, %v447
      %v535 = vunpack.c.l.b16 %v503
      %v536 = vunpack.c.h.b16 %v503
      %v537 = vunpack.c.l.b16 %v504
      %v538 = vunpack.c.h.b16 %v504
      %v539 = vunpack.c.l.b16 %v505
      %v540 = vunpack.c.h.b16 %v505
      %v541 = vunpack.c.l.b16 %v506
      %v542 = vunpack.c.h.b16 %v506
      %v543 = vunpack.c.l.b16 %v507
      %v544 = vunpack.c.h.b16 %v507
      %v545 = vunpack.c.l.b16 %v508
      %v546 = vunpack.c.h.b16 %v508
      %v547 = vunpack.c.l.b16 %v509
      %v548 = vunpack.c.h.b16 %v509
      %v549 = vunpack.c.l.b16 %v510
      %v550 = vunpack.c.h.b16 %v510
      %v551 = vunpack.c.l.b16 %v511
      %v552 = vunpack.c.h.b16 %v511
      %v553 = vunpack.c.l.b16 %v512
      %v554 = vunpack.c.h.b16 %v512
      %v555 = vunpack.c.l.b16 %v513
      %v556 = vunpack.c.h.b16 %v513
      %v557 = vunpack.c.l.b16 %v514
      %v558 = vunpack.c.h.b16 %v514
      %v559 = vunpack.c.l.b16 %v515
      %v560 = vunpack.c.h.b16 %v515
      %v561 = vunpack.c.l.b16 %v516
      %v562 = vunpack.c.h.b16 %v516
      %v563 = vunpack.c.l.b16 %v517
      %v564 = vunpack.c.h.b16 %v517
      %v565 = vunpack.c.l.b16 %v518
      %v566 = vunpack.c.h.b16 %v518
      %v567 = vpack.c.b16 %v535, %v535
      %v568 = vpack.c.b16 %v536, %v536
      %v569 = vpack.c.b16 %v537, %v537
      %v570 = vpack.c.b16 %v538, %v538
      %v571 = vpack.c.b16 %v539, %v539
      %v572 = vpack.c.b16 %v540, %v540
      %v573 = vpack.c.b16 %v541, %v541
      %v574 = vpack.c.b16 %v542, %v542
      %v575 = vpack.c.b16 %v543, %v543
      %v576 = vpack.c.b16 %v544, %v544
      %v577 = vpack.c.b16 %v545, %v545
      %v578 = vpack.c.b16 %v546, %v546
      %v579 = vpack.c.b16 %v547, %v547
      %v580 = vpack.c.b16 %v548, %v548
      %v581 = vpack.c.b16 %v549, %v549
      %v582 = vpack.c.b16 %v550, %v550
      %v583 = vpack.c.b16 %v551, %v551
      %v584 = vpack.c.b16 %v552, %v552
      %v585 = vpack.c.b16 %v553, %v553
      %v586 = vpack.c.b16 %v554, %v554
      %v587 = vpack.c.b16 %v555, %v555
      %v588 = vpack.c.b16 %v556, %v556
      %v589 = vpack.c.b16 %v557, %v557
      %v590 = vpack.c.b16 %v558, %v558
      %v591 = vpack.c.b16 %v559, %v559
      %v592 = vpack.c.b16 %v560, %v560
      %v593 = vpack.c.b16 %v561, %v561
      %v594 = vpack.c.b16 %v562, %v562
      %v595 = vpack.c.b16 %v563, %v563
      %v596 = vpack.c.b16 %v564, %v564
      %v597 = vpack.c.b16 %v565, %v565
      %v598 = vpack.c.b16 %v566, %v566
      %vm599 = vsmask.f32 256
      %vm600 = vsmask.f32 4368
      %vm601 = vmor %vm599, %vm600
      %v603 = vshrl.u32 %v567, 16
      %v605 = vrot.slane %v603, 7
      %v606 = vshll.u32 %v567, 16
      %v608 = vor.u32 %v605, %v606
      %v609 = vrot.slane %v605, 4
      %v611 = vshrl.u32 %v568, 16
      %v613 = vrot.slane %v611, 7
      %v614 = vshll.u32 %v568, 16
      %v616 = vor.u32 %v613, %v614
      %v617 = vsel %vm601, %v609, %v616
      %v618 = vrot.slane %v613, 4
      %v620 = vshrl.u32 %v569, 16
      %v622 = vrot.slane %v620, 7
      %v623 = vshll.u32 %v569, 16
      %v625 = vor.u32 %v622, %v623
      %v626 = vrot.slane %v622, 4
      %v628 = vshrl.u32 %v570, 16
      %v630 = vrot.slane %v628, 7
      %v631 = vshll.u32 %v570, 16
      %v633 = vor.u32 %v630, %v631
      %v634 = vsel %vm601, %v626, %v633
      %v635 = vrot.slane %v630, 4
      %v637 = vshrl.u32 %v571, 16
      %v639 = vrot.slane %v637, 7
      %v640 = vshll.u32 %v571, 16
      %v642 = vor.u32 %v639, %v640
      %v643 = vrot.slane %v639, 4
      %v645 = vshrl.u32 %v572, 16
      %v647 = vrot.slane %v645, 7
      %v648 = vshll.u32 %v572, 16
      %v650 = vor.u32 %v647, %v648
      %v651 = vsel %vm601, %v643, %v650
      %v652 = vrot.slane %v647, 4
      %v654 = vshrl.u32 %v573, 16
      %v656 = vrot.slane %v654, 7
      %v657 = vshll.u32 %v573, 16
      %v659 = vor.u32 %v656, %v657
      %v660 = vrot.slane %v656, 4
      %v662 = vshrl.u32 %v574, 16
      %v664 = vrot.slane %v662, 7
      %v665 = vshll.u32 %v574, 16
      %v667 = vor.u32 %v664, %v665
      %v668 = vsel %vm601, %v660, %v667
      %v669 = vrot.slane %v664, 4
      %v671 = vshrl.u32 %v575, 16
      %v673 = vrot.slane %v671, 7
      %v674 = vshll.u32 %v575, 16
      %v676 = vor.u32 %v673, %v674
      %v677 = vrot.slane %v673, 4
      %v679 = vshrl.u32 %v576, 16
      %v681 = vrot.slane %v679, 7
      %v682 = vshll.u32 %v576, 16
      %v684 = vor.u32 %v681, %v682
      %v685 = vsel %vm601, %v677, %v684
      %v686 = vrot.slane %v681, 4
      %v688 = vshrl.u32 %v577, 16
      %v690 = vrot.slane %v688, 7
      %v691 = vshll.u32 %v577, 16
      %v693 = vor.u32 %v690, %v691
      %v694 = vrot.slane %v690, 4
      %v696 = vshrl.u32 %v578, 16
      %v698 = vrot.slane %v696, 7
      %v699 = vshll.u32 %v578, 16
      %v701 = vor.u32 %v698, %v699
      %v702 = vsel %vm601, %v694, %v701
      %v703 = vrot.slane %v698, 4
      %v705 = vshrl.u32 %v579, 16
      %v707 = vrot.slane %v705, 7
      %v708 = vshll.u32 %v579, 16
      %v710 = vor.u32 %v707, %v708
      %v711 = vrot.slane %v707, 4
      %v713 = vshrl.u32 %v580, 16
      %v715 = vrot.slane %v713, 7
      %v716 = vshll.u32 %v580, 16
      %v718 = vor.u32 %v715, %v716
      %v719 = vsel %vm601, %v711, %v718
      %v720 = vrot.slane %v715, 4
      %v722 = vshrl.u32 %v581, 16
      %v724 = vrot.slane %v722, 7
      %v725 = vshll.u32 %v581, 16
      %v727 = vor.u32 %v724, %v725
      %v728 = vrot.slane %v724, 4
      %v730 = vshrl.u32 %v582, 16
      %v732 = vrot.slane %v730, 7
      %v733 = vshll.u32 %v582, 16
      %v735 = vor.u32 %v732, %v733
      %v736 = vsel %vm601, %v728, %v735
      %v737 = vrot.slane %v732, 4
      %v739 = vshrl.u32 %v583, 16
      %v741 = vrot.slane %v739, 7
      %v742 = vshll.u32 %v583, 16
      %v744 = vor.u32 %v741, %v742
      %v745 = vrot.slane %v741, 4
      %v747 = vshrl.u32 %v584, 16
      %v749 = vrot.slane %v747, 7
      %v750 = vshll.u32 %v584, 16
      %v752 = vor.u32 %v749, %v750
      %v753 = vsel %vm601, %v745, %v752
      %v754 = vrot.slane %v749, 4
      %v756 = vshrl.u32 %v585, 16
      %v758 = vrot.slane %v756, 7
      %v759 = vshll.u32 %v585, 16
      %v761 = vor.u32 %v758, %v759
      %v762 = vrot.slane %v758, 4
      %v764 = vshrl.u32 %v586, 16
      %v766 = vrot.slane %v764, 7
      %v767 = vshll.u32 %v586, 16
      %v769 = vor.u32 %v766, %v767
      %v770 = vsel %vm601, %v762, %v769
      %v771 = vrot.slane %v766, 4
      %v773 = vshrl.u32 %v587, 16
      %v775 = vrot.slane %v773, 7
      %v776 = vshll.u32 %v587, 16
      %v778 = vor.u32 %v775, %v776
      %v779 = vrot.slane %v775, 4
      %v781 = vshrl.u32 %v588, 16
      %v783 = vrot.slane %v781, 7
      %v784 = vshll.u32 %v588, 16
      %v786 = vor.u32 %v783, %v784
      %v787 = vsel %vm601, %v779, %v786
      %v788 = vrot.slane %v783, 4
      %v790 = vshrl.u32 %v589, 16
      %v792 = vrot.slane %v790, 7
      %v793 = vshll.u32 %v589, 16
      %v795 = vor.u32 %v792, %v793
      %v796 = vrot.slane %v792, 4
      %v798 = vshrl.u32 %v590, 16
      %v800 = vrot.slane %v798, 7
      %v801 = vshll.u32 %v590, 16
      %v803 = vor.u32 %v800, %v801
      %v804 = vsel %vm601, %v796, %v803
      %v805 = vrot.slane %v800, 4
      %v807 = vshrl.u32 %v591, 16
      %v809 = vrot.slane %v807, 7
      %v810 = vshll.u32 %v591, 16
      %v812 = vor.u32 %v809, %v810
      %v813 = vrot.slane %v809, 4
      %v815 = vshrl.u32 %v592, 16
      %v817 = vrot.slane %v815, 7
      %v818 = vshll.u32 %v592, 16
      %v820 = vor.u32 %v817, %v818
      %v821 = vsel %vm601, %v813, %v820
      %v822 = vrot.slane %v817, 4
      %v824 = vshrl.u32 %v593, 16
      %v826 = vrot.slane %v824, 7
      %v827 = vshll.u32 %v593, 16
      %v829 = vor.u32 %v826, %v827
      %v830 = vrot.slane %v826, 4
      %v832 = vshrl.u32 %v594, 16
      %v834 = vrot.slane %v832, 7
      %v835 = vshll.u32 %v594, 16
      %v837 = vor.u32 %v834, %v835
      %v838 = vsel %vm601, %v830, %v837
      %v839 = vrot.slane %v834, 4
      %v841 = vshrl.u32 %v595, 16
      %v843 = vrot.slane %v841, 7
      %v844 = vshll.u32 %v595, 16
      %v846 = vor.u32 %v843, %v844
      %v847 = vrot.slane %v843, 4
      %v849 = vshrl.u32 %v596, 16
      %v851 = vrot.slane %v849, 7
      %v852 = vshll.u32 %v596, 16
      %v854 = vor.u32 %v851, %v852
      %v855 = vsel %vm601, %v847, %v854
      %v856 = vrot.slane %v851, 4
      %v858 = vshrl.u32 %v597, 16
      %v860 = vrot.slane %v858, 7
      %v861 = vshll.u32 %v597, 16
      %v863 = vor.u32 %v860, %v861
      %v864 = vrot.slane %v860, 4
      %v866 = vshrl.u32 %v598, 16
      %v868 = vrot.slane %v866, 7
      %v869 = vshll.u32 %v598, 16
      %v871 = vor.u32 %v868, %v869
      %v872 = vsel %vm601, %v864, %v871
      %v873 = vrot.slane %v868, 4
      %s922 = scalar_lea.vmem [#allocation2], 12
      %vm923 = vcmask 1043456
      %vm924 = vsmask.f32 7938
      %vm925 = vmand %vm923, %vm924
      %v926 = vld [vmem:[%s922] sm:$0xf]
      %v927 = vsel %vm925, %v608, %v926
      %928 = vst [vmem:[%s922] sm:$0xf] %v927
      %929 = vst [vmem:[%s922 + $0x4] sm:$0xf] %v617
      %vm930 = vcmask 1040384
      %vm931 = vmand %vm930, %vm599
      %v932 = vld [vmem:[%s922 + $0x8] sm:$0x1]
      %v933 = vsel %vm931, %v618, %v932
      %934 = vst [vmem:[%s922 + $0x8] sm:$0x1] %v933
      %v935 = vld [vmem:[%s922 + $0xc] sm:$0xf]
      %v936 = vsel %vm925, %v625, %v935
      %937 = vst [vmem:[%s922 + $0xc] sm:$0xf] %v936
      %938 = vst [vmem:[%s922 + $0x10] sm:$0xf] %v634
      %v939 = vld [vmem:[%s922 + $0x14] sm:$0x1]
      %v940 = vsel %vm931, %v635, %v939
      %941 = vst [vmem:[%s922 + $0x14] sm:$0x1] %v940
      %v942 = vld [vmem:[%s922 + $0x18] sm:$0xf]
      %v943 = vsel %vm925, %v642, %v942
      %944 = vst [vmem:[%s922 + $0x18] sm:$0xf] %v943
      %945 = vst [vmem:[%s922 + $0x1c] sm:$0xf] %v651
      %v946 = vld [vmem:[%s922 + $0x20] sm:$0x1]
      %v947 = vsel %vm931, %v652, %v946
      %948 = vst [vmem:[%s922 + $0x20] sm:$0x1] %v947
      %v949 = vld [vmem:[%s922 + $0x24] sm:$0xf]
      %v950 = vsel %vm925, %v659, %v949
      %951 = vst [vmem:[%s922 + $0x24] sm:$0xf] %v950
      %952 = vst [vmem:[%s922 + $0x28] sm:$0xf] %v668
      %v953 = vld [vmem:[%s922 + $0x2c] sm:$0x1]
      %v954 = vsel %vm931, %v669, %v953
      %955 = vst [vmem:[%s922 + $0x2c] sm:$0x1] %v954
      %v956 = vld [vmem:[%s922 + $0x30] sm:$0xf]
      %v957 = vsel %vm925, %v676, %v956
      %958 = vst [vmem:[%s922 + $0x30] sm:$0xf] %v957
      %959 = vst [vmem:[%s922 + $0x34] sm:$0xf] %v685
      %v960 = vld [vmem:[%s922 + $0x38] sm:$0x1]
      %v961 = vsel %vm931, %v686, %v960
      %962 = vst [vmem:[%s922 + $0x38] sm:$0x1] %v961
      %v963 = vld [vmem:[%s922 + $0x3c] sm:$0xf]
      %v964 = vsel %vm925, %v693, %v963
      %965 = vst [vmem:[%s922 + $0x3c] sm:$0xf] %v964
      %966 = vst [vmem:[%s922 + $0x40] sm:$0xf] %v702
      %v967 = vld [vmem:[%s922 + $0x44] sm:$0x1]
      %v968 = vsel %vm931, %v703, %v967
      %969 = vst [vmem:[%s922 + $0x44] sm:$0x1] %v968
      %v970 = vld [vmem:[%s922 + $0x48] sm:$0xf]
      %v971 = vsel %vm925, %v710, %v970
      %972 = vst [vmem:[%s922 + $0x48] sm:$0xf] %v971
      %973 = vst [vmem:[%s922 + $0x4c] sm:$0xf] %v719
      %v974 = vld [vmem:[%s922 + $0x50] sm:$0x1]
      %v975 = vsel %vm931, %v720, %v974
      %976 = vst [vmem:[%s922 + $0x50] sm:$0x1] %v975
      %v977 = vld [vmem:[%s922 + $0x54] sm:$0xf]
      %v978 = vsel %vm925, %v727, %v977
      %979 = vst [vmem:[%s922 + $0x54] sm:$0xf] %v978
      %980 = vst [vmem:[%s922 + $0x58] sm:$0xf] %v736
      %v981 = vld [vmem:[%s922 + $0x5c] sm:$0x1]
      %v982 = vsel %vm931, %v737, %v981
      %983 = vst [vmem:[%s922 + $0x5c] sm:$0x1] %v982
      %v984 = vld [vmem:[%s922 + $0x60] sm:$0xf]
      %v985 = vsel %vm925, %v744, %v984
      %986 = vst [vmem:[%s922 + $0x60] sm:$0xf] %v985
      %987 = vst [vmem:[%s922 + $0x64] sm:$0xf] %v753
      %v988 = vld [vmem:[%s922 + $0x68] sm:$0x1]
      %v989 = vsel %vm931, %v754, %v988
      %990 = vst [vmem:[%s922 + $0x68] sm:$0x1] %v989
      %v991 = vld [vmem:[%s922 + $0x6c] sm:$0xf]
      %v992 = vsel %vm925, %v761, %v991
      %993 = vst [vmem:[%s922 + $0x6c] sm:$0xf] %v992
      %994 = vst [vmem:[%s922 + $0x70] sm:$0xf] %v770
      %v995 = vld [vmem:[%s922 + $0x74] sm:$0x1]
      %v996 = vsel %vm931, %v771, %v995
      %997 = vst [vmem:[%s922 + $0x74] sm:$0x1] %v996
      %v998 = vld [vmem:[%s922 + $0x78] sm:$0xf]
      %v999 = vsel %vm925, %v778, %v998
      %1000 = vst [vmem:[%s922 + $0x78] sm:$0xf] %v999
      %1001 = vst [vmem:[%s922 + $0x7c] sm:$0xf] %v787
      %v1002 = vld [vmem:[%s922 + $0x80] sm:$0x1]
      %v1003 = vsel %vm931, %v788, %v1002
      %1004 = vst [vmem:[%s922 + $0x80] sm:$0x1] %v1003
      %v1005 = vld [vmem:[%s922 + $0x84] sm:$0xf]
      %v1006 = vsel %vm925, %v795, %v1005
      %1007 = vst [vmem:[%s922 + $0x84] sm:$0xf] %v1006
      %1008 = vst [vmem:[%s922 + $0x88] sm:$0xf] %v804
      %v1009 = vld [vmem:[%s922 + $0x8c] sm:$0x1]
      %v1010 = vsel %vm931, %v805, %v1009
      %1011 = vst [vmem:[%s922 + $0x8c] sm:$0x1] %v1010
      %v1012 = vld [vmem:[%s922 + $0x90] sm:$0xf]
      %v1013 = vsel %vm925, %v812, %v1012
      %1014 = vst [vmem:[%s922 + $0x90] sm:$0xf] %v1013
      %1015 = vst [vmem:[%s922 + $0x94] sm:$0xf] %v821
      %v1016 = vld [vmem:[%s922 + $0x98] sm:$0x1]
      %v1017 = vsel %vm931, %v822, %v1016
      %1018 = vst [vmem:[%s922 + $0x98] sm:$0x1] %v1017
      %v1019 = vld [vmem:[%s922 + $0x9c] sm:$0xf]
      %v1020 = vsel %vm925, %v829, %v1019
      %1021 = vst [vmem:[%s922 + $0x9c] sm:$0xf] %v1020
      %1022 = vst [vmem:[%s922 + $0xa0] sm:$0xf] %v838
      %v1023 = vld [vmem:[%s922 + $0xa4] sm:$0x1]
      %v1024 = vsel %vm931, %v839, %v1023
      %1025 = vst [vmem:[%s922 + $0xa4] sm:$0x1] %v1024
      %v1026 = vld [vmem:[%s922 + $0xa8] sm:$0xf]
      %v1027 = vsel %vm925, %v846, %v1026
      %1028 = vst [vmem:[%s922 + $0xa8] sm:$0xf] %v1027
      %1029 = vst [vmem:[%s922 + $0xac] sm:$0xf] %v855
      %v1030 = vld [vmem:[%s922 + $0xb0] sm:$0x1]
      %v1031 = vsel %vm931, %v856, %v1030
      %1032 = vst [vmem:[%s922 + $0xb0] sm:$0x1] %v1031
      %v1033 = vld [vmem:[%s922 + $0xb4] sm:$0xf]
      %v1034 = vsel %vm925, %v863, %v1033
      %1035 = vst [vmem:[%s922 + $0xb4] sm:$0xf] %v1034
      %1036 = vst [vmem:[%s922 + $0xb8] sm:$0xf] %v872
      %v1037 = vld [vmem:[%s922 + $0xbc] sm:$0x1]
      %v1038 = vsel %vm931, %v873, %v1037
      %1039 = vst [vmem:[%s922 + $0xbc] sm:$0x1] %v1038
      %v1040 = vld [vmem:[#allocation2] sm:$0xf]
      %v1041 = vld [vmem:[#allocation2 + $0x4] sm:$0xf]
      %v1042 = vld [vmem:[#allocation2 + $0xc] sm:$0xf]
      %v1043 = vld [vmem:[#allocation2 + $0x10] sm:$0xf]
      %v1044 = vld [vmem:[#allocation2 + $0x18] sm:$0xf]
      %v1045 = vld [vmem:[#allocation2 + $0x1c] sm:$0xf]
      %v1046 = vld [vmem:[#allocation2 + $0x24] sm:$0xf]
      %v1047 = vld [vmem:[#allocation2 + $0x28] sm:$0xf]
      %v1048 = vld [vmem:[#allocation2 + $0x30] sm:$0xf]
      %v1049 = vld [vmem:[#allocation2 + $0x34] sm:$0xf]
      %v1050 = vld [vmem:[#allocation2 + $0x3c] sm:$0xf]
      %v1051 = vld [vmem:[#allocation2 + $0x40] sm:$0xf]
      %v1052 = vld [vmem:[#allocation2 + $0x48] sm:$0xf]
      %v1053 = vld [vmem:[#allocation2 + $0x4c] sm:$0xf]
      %v1054 = vld [vmem:[#allocation2 + $0x54] sm:$0xf]
      %v1055 = vld [vmem:[#allocation2 + $0x58] sm:$0xf]
      %v1056 = vld [vmem:[#allocation2 + $0x60] sm:$0xf]
      %v1057 = vld [vmem:[#allocation2 + $0x64] sm:$0xf]
      %v1058 = vld [vmem:[#allocation2 + $0x6c] sm:$0xf]
      %v1059 = vld [vmem:[#allocation2 + $0x70] sm:$0xf]
      %v1060 = vld [vmem:[#allocation2 + $0x78] sm:$0xf]
      %v1061 = vld [vmem:[#allocation2 + $0x7c] sm:$0xf]
      %v1062 = vld [vmem:[#allocation2 + $0x84] sm:$0xf]
      %v1063 = vld [vmem:[#allocation2 + $0x88] sm:$0xf]
      %v1064 = vld [vmem:[#allocation2 + $0x90] sm:$0xf]
      %v1065 = vld [vmem:[#allocation2 + $0x94] sm:$0xf]
      %v1066 = vld [vmem:[#allocation2 + $0x9c] sm:$0xf]
      %v1067 = vld [vmem:[#allocation2 + $0xa0] sm:$0xf]
      %v1068 = vld [vmem:[#allocation2 + $0xa8] sm:$0xf]
      %v1069 = vld [vmem:[#allocation2 + $0xac] sm:$0xf]
      %v1070 = vld [vmem:[#allocation2 + $0xb4] sm:$0xf]
      %v1071 = vld [vmem:[#allocation2 + $0xb8] sm:$0xf]
      %v1072 = vld [vmem:[%s3] sm:$0xf]
      %v1073 = vld [vmem:[%s3 + $0x4] sm:$0xf]
      %v1074 = vld [vmem:[%s3 + $0x8] sm:$0xf]
      %v1075 = vld [vmem:[%s3 + $0xc] sm:$0xf]
      %v1076 = vld [vmem:[%s3 + $0x10] sm:$0xf]
      %v1077 = vld [vmem:[%s3 + $0x14] sm:$0xf]
      %v1078 = vld [vmem:[%s3 + $0x18] sm:$0xf]
      %v1079 = vld [vmem:[%s3 + $0x1c] sm:$0xf]
      %v1080 = vld [vmem:[%s3 + $0x20] sm:$0xf]
      %v1081 = vld [vmem:[%s3 + $0x24] sm:$0xf]
      %v1082 = vld [vmem:[%s3 + $0x28] sm:$0xf]
      %v1083 = vld [vmem:[%s3 + $0x2c] sm:$0xf]
      %v1084 = vld [vmem:[%s3 + $0x30] sm:$0xf]
      %v1085 = vld [vmem:[%s3 + $0x34] sm:$0xf]
      %v1086 = vld [vmem:[%s3 + $0x38] sm:$0xf]
      %v1087 = vld [vmem:[%s3 + $0x3c] sm:$0xf]
      %v1088 = vld [vmem:[#allocation2 + $0x8] sm:$0x1]
      %v1089 = vld [vmem:[#allocation2 + $0x14] sm:$0x1]
      %v1090 = vld [vmem:[#allocation2 + $0x20] sm:$0x1]
      %v1091 = vld [vmem:[#allocation2 + $0x2c] sm:$0x1]
      %v1092 = vld [vmem:[#allocation2 + $0x38] sm:$0x1]
      %v1093 = vld [vmem:[#allocation2 + $0x44] sm:$0x1]
      %v1094 = vld [vmem:[#allocation2 + $0x50] sm:$0x1]
      %v1095 = vld [vmem:[#allocation2 + $0x5c] sm:$0x1]
      %v1096 = vld [vmem:[#allocation2 + $0x68] sm:$0x1]
      %v1097 = vld [vmem:[#allocation2 + $0x74] sm:$0x1]
      %v1098 = vld [vmem:[#allocation2 + $0x80] sm:$0x1]
      %v1099 = vld [vmem:[#allocation2 + $0x8c] sm:$0x1]
      %v1100 = vld [vmem:[#allocation2 + $0x98] sm:$0x1]
      %v1101 = vld [vmem:[#allocation2 + $0xa4] sm:$0x1]
      %v1102 = vld [vmem:[#allocation2 + $0xb0] sm:$0x1]
      %v1103 = vld [vmem:[#allocation2 + $0xbc] sm:$0x1]
      %vm1104 = vsmask.f32 3328
      %vm1105 = vsmask.f32 7440
      %vm1106 = vmor %vm1104, %vm1105
      %v1108 = vshrl.u32 %v1040, 16
      %v1110 = vrot.slane %v1108, 4
      %v1111 = vshll.u32 %v1040, 16
      %v1113 = vrot.slane %v1111, 5
      %v1114 = vor.u32 %v1110, %v1113
      %v1115 = vrot.slane %v1114, 4
      %v1117 = vshll.u32 %v1041, 16
      %v1119 = vrot.slane %v1117, 5
      %v1120 = vsel %vm1106, %v1115, %v1119
      %v1121 = vshrl.u32 %v1041, 16
      %v1123 = vrot.slane %v1121, 4
      %v1124 = vor.u32 %v1123, %v1119
      %v1125 = vrot.slane %v1124, 4
      %v1127 = vshll.u32 %v1088, 16
      %v1129 = vrot.slane %v1127, 5
      %v1130 = vsel %vm1106, %v1125, %v1129
      %v1132 = vshrl.u32 %v1042, 16
      %v1134 = vrot.slane %v1132, 4
      %v1135 = vshll.u32 %v1042, 16
      %v1137 = vrot.slane %v1135, 5
      %v1138 = vor.u32 %v1134, %v1137
      %v1139 = vrot.slane %v1138, 4
      %v1141 = vshll.u32 %v1043, 16
      %v1143 = vrot.slane %v1141, 5
      %v1144 = vsel %vm1106, %v1139, %v1143
      %v1145 = vshrl.u32 %v1043, 16
      %v1147 = vrot.slane %v1145, 4
      %v1148 = vor.u32 %v1147, %v1143
      %v1149 = vrot.slane %v1148, 4
      %v1151 = vshll.u32 %v1089, 16
      %v1153 = vrot.slane %v1151, 5
      %v1154 = vsel %vm1106, %v1149, %v1153
      %v1156 = vshrl.u32 %v1044, 16
      %v1158 = vrot.slane %v1156, 4
      %v1159 = vshll.u32 %v1044, 16
      %v1161 = vrot.slane %v1159, 5
      %v1162 = vor.u32 %v1158, %v1161
      %v1163 = vrot.slane %v1162, 4
      %v1165 = vshll.u32 %v1045, 16
      %v1167 = vrot.slane %v1165, 5
      %v1168 = vsel %vm1106, %v1163, %v1167
      %v1169 = vshrl.u32 %v1045, 16
      %v1171 = vrot.slane %v1169, 4
      %v1172 = vor.u32 %v1171, %v1167
      %v1173 = vrot.slane %v1172, 4
      %v1175 = vshll.u32 %v1090, 16
      %v1177 = vrot.slane %v1175, 5
      %v1178 = vsel %vm1106, %v1173, %v1177
      %v1180 = vshrl.u32 %v1046, 16
      %v1182 = vrot.slane %v1180, 4
      %v1183 = vshll.u32 %v1046, 16
      %v1185 = vrot.slane %v1183, 5
      %v1186 = vor.u32 %v1182, %v1185
      %v1187 = vrot.slane %v1186, 4
      %v1189 = vshll.u32 %v1047, 16
      %v1191 = vrot.slane %v1189, 5
      %v1192 = vsel %vm1106, %v1187, %v1191
      %v1193 = vshrl.u32 %v1047, 16
      %v1195 = vrot.slane %v1193, 4
      %v1196 = vor.u32 %v1195, %v1191
      %v1197 = vrot.slane %v1196, 4
      %v1199 = vshll.u32 %v1091, 16
      %v1201 = vrot.slane %v1199, 5
      %v1202 = vsel %vm1106, %v1197, %v1201
      %v1204 = vshrl.u32 %v1048, 16
      %v1206 = vrot.slane %v1204, 4
      %v1207 = vshll.u32 %v1048, 16
      %v1209 = vrot.slane %v1207, 5
      %v1210 = vor.u32 %v1206, %v1209
      %v1211 = vrot.slane %v1210, 4
      %v1213 = vshll.u32 %v1049, 16
      %v1215 = vrot.slane %v1213, 5
      %v1216 = vsel %vm1106, %v1211, %v1215
      %v1217 = vshrl.u32 %v1049, 16
      %v1219 = vrot.slane %v1217, 4
      %v1220 = vor.u32 %v1219, %v1215
      %v1221 = vrot.slane %v1220, 4
      %v1223 = vshll.u32 %v1092, 16
      %v1225 = vrot.slane %v1223, 5
      %v1226 = vsel %vm1106, %v1221, %v1225
      %v1228 = vshrl.u32 %v1050, 16
      %v1230 = vrot.slane %v1228, 4
      %v1231 = vshll.u32 %v1050, 16
      %v1233 = vrot.slane %v1231, 5
      %v1234 = vor.u32 %v1230, %v1233
      %v1235 = vrot.slane %v1234, 4
      %v1237 = vshll.u32 %v1051, 16
      %v1239 = vrot.slane %v1237, 5
      %v1240 = vsel %vm1106, %v1235, %v1239
      %v1241 = vshrl.u32 %v1051, 16
      %v1243 = vrot.slane %v1241, 4
      %v1244 = vor.u32 %v1243, %v1239
      %v1245 = vrot.slane %v1244, 4
      %v1247 = vshll.u32 %v1093, 16
      %v1249 = vrot.slane %v1247, 5
      %v1250 = vsel %vm1106, %v1245, %v1249
      %v1252 = vshrl.u32 %v1052, 16
      %v1254 = vrot.slane %v1252, 4
      %v1255 = vshll.u32 %v1052, 16
      %v1257 = vrot.slane %v1255, 5
      %v1258 = vor.u32 %v1254, %v1257
      %v1259 = vrot.slane %v1258, 4
      %v1261 = vshll.u32 %v1053, 16
      %v1263 = vrot.slane %v1261, 5
      %v1264 = vsel %vm1106, %v1259, %v1263
      %v1265 = vshrl.u32 %v1053, 16
      %v1267 = vrot.slane %v1265, 4
      %v1268 = vor.u32 %v1267, %v1263
      %v1269 = vrot.slane %v1268, 4
      %v1271 = vshll.u32 %v1094, 16
      %v1273 = vrot.slane %v1271, 5
      %v1274 = vsel %vm1106, %v1269, %v1273
      %v1276 = vshrl.u32 %v1054, 16
      %v1278 = vrot.slane %v1276, 4
      %v1279 = vshll.u32 %v1054, 16
      %v1281 = vrot.slane %v1279, 5
      %v1282 = vor.u32 %v1278, %v1281
      %v1283 = vrot.slane %v1282, 4
      %v1285 = vshll.u32 %v1055, 16
      %v1287 = vrot.slane %v1285, 5
      %v1288 = vsel %vm1106, %v1283, %v1287
      %v1289 = vshrl.u32 %v1055, 16
      %v1291 = vrot.slane %v1289, 4
      %v1292 = vor.u32 %v1291, %v1287
      %v1293 = vrot.slane %v1292, 4
      %v1295 = vshll.u32 %v1095, 16
      %v1297 = vrot.slane %v1295, 5
      %v1298 = vsel %vm1106, %v1293, %v1297
      %v1300 = vshrl.u32 %v1056, 16
      %v1302 = vrot.slane %v1300, 4
      %v1303 = vshll.u32 %v1056, 16
      %v1305 = vrot.slane %v1303, 5
      %v1306 = vor.u32 %v1302, %v1305
      %v1307 = vrot.slane %v1306, 4
      %v1309 = vshll.u32 %v1057, 16
      %v1311 = vrot.slane %v1309, 5
      %v1312 = vsel %vm1106, %v1307, %v1311
      %v1313 = vshrl.u32 %v1057, 16
      %v1315 = vrot.slane %v1313, 4
      %v1316 = vor.u32 %v1315, %v1311
      %v1317 = vrot.slane %v1316, 4
      %v1319 = vshll.u32 %v1096, 16
      %v1321 = vrot.slane %v1319, 5
      %v1322 = vsel %vm1106, %v1317, %v1321
      %v1324 = vshrl.u32 %v1058, 16
      %v1326 = vrot.slane %v1324, 4
      %v1327 = vshll.u32 %v1058, 16
      %v1329 = vrot.slane %v1327, 5
      %v1330 = vor.u32 %v1326, %v1329
      %v1331 = vrot.slane %v1330, 4
      %v1333 = vshll.u32 %v1059, 16
      %v1335 = vrot.slane %v1333, 5
      %v1336 = vsel %vm1106, %v1331, %v1335
      %v1337 = vshrl.u32 %v1059, 16
      %v1339 = vrot.slane %v1337, 4
      %v1340 = vor.u32 %v1339, %v1335
      %v1341 = vrot.slane %v1340, 4
      %v1343 = vshll.u32 %v1097, 16
      %v1345 = vrot.slane %v1343, 5
      %v1346 = vsel %vm1106, %v1341, %v1345
      %v1348 = vshrl.u32 %v1060, 16
      %v1350 = vrot.slane %v1348, 4
      %v1351 = vshll.u32 %v1060, 16
      %v1353 = vrot.slane %v1351, 5
      %v1354 = vor.u32 %v1350, %v1353
      %v1355 = vrot.slane %v1354, 4
      %v1357 = vshll.u32 %v1061, 16
      %v1359 = vrot.slane %v1357, 5
      %v1360 = vsel %vm1106, %v1355, %v1359
      %v1361 = vshrl.u32 %v1061, 16
      %v1363 = vrot.slane %v1361, 4
      %v1364 = vor.u32 %v1363, %v1359
      %v1365 = vrot.slane %v1364, 4
      %v1367 = vshll.u32 %v1098, 16
      %v1369 = vrot.slane %v1367, 5
      %v1370 = vsel %vm1106, %v1365, %v1369
      %v1372 = vshrl.u32 %v1062, 16
      %v1374 = vrot.slane %v1372, 4
      %v1375 = vshll.u32 %v1062, 16
      %v1377 = vrot.slane %v1375, 5
      %v1378 = vor.u32 %v1374, %v1377
      %v1379 = vrot.slane %v1378, 4
      %v1381 = vshll.u32 %v1063, 16
      %v1383 = vrot.slane %v1381, 5
      %v1384 = vsel %vm1106, %v1379, %v1383
      %v1385 = vshrl.u32 %v1063, 16
      %v1387 = vrot.slane %v1385, 4
      %v1388 = vor.u32 %v1387, %v1383
      %v1389 = vrot.slane %v1388, 4
      %v1391 = vshll.u32 %v1099, 16
      %v1393 = vrot.slane %v1391, 5
      %v1394 = vsel %vm1106, %v1389, %v1393
      %v1396 = vshrl.u32 %v1064, 16
      %v1398 = vrot.slane %v1396, 4
      %v1399 = vshll.u32 %v1064, 16
      %v1401 = vrot.slane %v1399, 5
      %v1402 = vor.u32 %v1398, %v1401
      %v1403 = vrot.slane %v1402, 4
      %v1405 = vshll.u32 %v1065, 16
      %v1407 = vrot.slane %v1405, 5
      %v1408 = vsel %vm1106, %v1403, %v1407
      %v1409 = vshrl.u32 %v1065, 16
      %v1411 = vrot.slane %v1409, 4
      %v1412 = vor.u32 %v1411, %v1407
      %v1413 = vrot.slane %v1412, 4
      %v1415 = vshll.u32 %v1100, 16
      %v1417 = vrot.slane %v1415, 5
      %v1418 = vsel %vm1106, %v1413, %v1417
      %v1420 = vshrl.u32 %v1066, 16
      %v1422 = vrot.slane %v1420, 4
      %v1423 = vshll.u32 %v1066, 16
      %v1425 = vrot.slane %v1423, 5
      %v1426 = vor.u32 %v1422, %v1425
      %v1427 = vrot.slane %v1426, 4
      %v1429 = vshll.u32 %v1067, 16
      %v1431 = vrot.slane %v1429, 5
      %v1432 = vsel %vm1106, %v1427, %v1431
      %v1433 = vshrl.u32 %v1067, 16
      %v1435 = vrot.slane %v1433, 4
      %v1436 = vor.u32 %v1435, %v1431
      %v1437 = vrot.slane %v1436, 4
      %v1439 = vshll.u32 %v1101, 16
      %v1441 = vrot.slane %v1439, 5
      %v1442 = vsel %vm1106, %v1437, %v1441
      %v1444 = vshrl.u32 %v1068, 16
      %v1446 = vrot.slane %v1444, 4
      %v1447 = vshll.u32 %v1068, 16
      %v1449 = vrot.slane %v1447, 5
      %v1450 = vor.u32 %v1446, %v1449
      %v1451 = vrot.slane %v1450, 4
      %v1453 = vshll.u32 %v1069, 16
      %v1455 = vrot.slane %v1453, 5
      %v1456 = vsel %vm1106, %v1451, %v1455
      %v1457 = vshrl.u32 %v1069, 16
      %v1459 = vrot.slane %v1457, 4
      %v1460 = vor.u32 %v1459, %v1455
      %v1461 = vrot.slane %v1460, 4
      %v1463 = vshll.u32 %v1102, 16
      %v1465 = vrot.slane %v1463, 5
      %v1466 = vsel %vm1106, %v1461, %v1465
      %v1468 = vshrl.u32 %v1070, 16
      %v1470 = vrot.slane %v1468, 4
      %v1471 = vshll.u32 %v1070, 16
      %v1473 = vrot.slane %v1471, 5
      %v1474 = vor.u32 %v1470, %v1473
      %v1475 = vrot.slane %v1474, 4
      %v1477 = vshll.u32 %v1071, 16
      %v1479 = vrot.slane %v1477, 5
      %v1480 = vsel %vm1106, %v1475, %v1479
      %v1481 = vshrl.u32 %v1071, 16
      %v1483 = vrot.slane %v1481, 4
      %v1484 = vor.u32 %v1483, %v1479
      %v1485 = vrot.slane %v1484, 4
      %v1487 = vshll.u32 %v1103, 16
      %v1489 = vrot.slane %v1487, 5
      %v1490 = vsel %vm1106, %v1485, %v1489
      %s1491 = scalar_lea.vmem %s3, 64
      %v1492 = vld [vmem:[%s1491] sm:$0xf]
      %v1493 = vld [vmem:[%s1491 + $0x4] sm:$0xf]
      %v1494 = vld [vmem:[%s1491 + $0x8] sm:$0xf]
      %v1495 = vld [vmem:[%s1491 + $0xc] sm:$0xf]
      %v1496 = vld [vmem:[%s1491 + $0x10] sm:$0xf]
      %v1497 = vld [vmem:[%s1491 + $0x14] sm:$0xf]
      %v1498 = vld [vmem:[%s1491 + $0x18] sm:$0xf]
      %v1499 = vld [vmem:[%s1491 + $0x1c] sm:$0xf]
      %v1500 = vld [vmem:[%s1491 + $0x20] sm:$0xf]
      %v1501 = vld [vmem:[%s1491 + $0x24] sm:$0xf]
      %v1502 = vld [vmem:[%s1491 + $0x28] sm:$0xf]
      %v1503 = vld [vmem:[%s1491 + $0x2c] sm:$0xf]
      %v1504 = vld [vmem:[%s1491 + $0x30] sm:$0xf]
      %v1505 = vld [vmem:[%s1491 + $0x34] sm:$0xf]
      %v1506 = vld [vmem:[%s1491 + $0x38] sm:$0xf]
      %v1507 = vld [vmem:[%s1491 + $0x3c] sm:$0xf]
      %v1508 = vunpack.c.l.b16 %v1120
      %v1509 = vunpack.c.l.b16 %v1130
      %v1510 = vunpack.c.l.b16 %v1144
      %v1511 = vunpack.c.l.b16 %v1154
      %v1512 = vunpack.c.l.b16 %v1168
      %v1513 = vunpack.c.l.b16 %v1178
      %v1514 = vunpack.c.l.b16 %v1192
      %v1515 = vunpack.c.l.b16 %v1202
      %v1516 = vunpack.c.l.b16 %v1216
      %v1517 = vunpack.c.l.b16 %v1226
      %v1518 = vunpack.c.l.b16 %v1240
      %v1519 = vunpack.c.l.b16 %v1250
      %v1520 = vunpack.c.l.b16 %v1264
      %v1521 = vunpack.c.l.b16 %v1274
      %v1522 = vunpack.c.l.b16 %v1288
      %v1523 = vunpack.c.l.b16 %v1298
      %v1524 = vunpack.c.l.b16 %v1312
      %v1525 = vunpack.c.l.b16 %v1322
      %v1526 = vunpack.c.l.b16 %v1336
      %v1527 = vunpack.c.l.b16 %v1346
      %v1528 = vunpack.c.l.b16 %v1360
      %v1529 = vunpack.c.l.b16 %v1370
      %v1530 = vunpack.c.l.b16 %v1384
      %v1531 = vunpack.c.l.b16 %v1394
      %v1532 = vunpack.c.l.b16 %v1408
      %v1533 = vunpack.c.l.b16 %v1418
      %v1534 = vunpack.c.l.b16 %v1432
      %v1535 = vunpack.c.l.b16 %v1442
      %v1536 = vunpack.c.l.b16 %v1456
      %v1537 = vunpack.c.l.b16 %v1466
      %v1538 = vunpack.c.l.b16 %v1480
      %v1539 = vunpack.c.l.b16 %v1490
      %v1540 = vpack.c.b16 %v1509, %v1508
      %v1541 = vpack.c.b16 %v1511, %v1510
      %v1542 = vpack.c.b16 %v1513, %v1512
      %v1543 = vpack.c.b16 %v1515, %v1514
      %v1544 = vpack.c.b16 %v1517, %v1516
      %v1545 = vpack.c.b16 %v1519, %v1518
      %v1546 = vpack.c.b16 %v1521, %v1520
      %v1547 = vpack.c.b16 %v1523, %v1522
      %v1548 = vpack.c.b16 %v1525, %v1524
      %v1549 = vpack.c.b16 %v1527, %v1526
      %v1550 = vpack.c.b16 %v1529, %v1528
      %v1551 = vpack.c.b16 %v1531, %v1530
      %v1552 = vpack.c.b16 %v1533, %v1532
      %v1553 = vpack.c.b16 %v1535, %v1534
      %v1554 = vpack.c.b16 %v1537, %v1536
      %v1555 = vpack.c.b16 %v1539, %v1538
      %v1588 = vunpack.c.l.b16 %v1492
      %v1589 = vunpack.c.l.b16 %v1493
      %v1590 = vunpack.c.l.b16 %v1494
      %v1591 = vunpack.c.l.b16 %v1495
      %v1592 = vunpack.c.l.b16 %v1496
      %v1593 = vunpack.c.l.b16 %v1497
      %v1594 = vunpack.c.l.b16 %v1498
      %v1595 = vunpack.c.l.b16 %v1499
      %v1596 = vunpack.c.l.b16 %v1500
      %v1597 = vunpack.c.l.b16 %v1501
      %v1598 = vunpack.c.l.b16 %v1502
      %v1599 = vunpack.c.l.b16 %v1503
      %v1600 = vunpack.c.l.b16 %v1504
      %v1601 = vunpack.c.l.b16 %v1505
      %v1602 = vunpack.c.l.b16 %v1506
      %v1603 = vunpack.c.l.b16 %v1507
      %v1604 = vpack.c.b16 %v1589, %v1588
      %v1605 = vpack.c.b16 %v1591, %v1590
      %v1606 = vpack.c.b16 %v1593, %v1592
      %v1607 = vpack.c.b16 %v1595, %v1594
      %v1608 = vpack.c.b16 %v1597, %v1596
      %v1609 = vpack.c.b16 %v1599, %v1598
      %v1610 = vpack.c.b16 %v1601, %v1600
      %v1611 = vpack.c.b16 %v1603, %v1602
      %1620 = vmatprep.subr.bf16.mxu0 0
      %1621 = vmatpush1.bf16.msra.mxu0 %v1604
      %1622 = vmatprep.subr.bf16.mxu0 0
      %1623 = vmatpush1.bf16.msra.mxu0 %v1605
      %1624 = vmatprep.subr.bf16.mxu0 0
      %1625 = vmatpush1.bf16.msra.mxu0 %v1606
      %1626 = vmatprep.subr.bf16.mxu0 0
      %1627 = vmatpush1.bf16.msra.mxu0 %v1607
      %1628 = vmatprep.subr.bf16.mxu0 0
      %1629 = vmatpush1.bf16.msra.mxu0 %v1608
      %1630 = vmatprep.subr.bf16.mxu0 0
      %1631 = vmatpush1.bf16.msra.mxu0 %v1609
      %1632 = vmatprep.subr.bf16.mxu0 0
      %1633 = vmatpush1.bf16.msra.mxu0 %v1610
      %1634 = vmatprep.subr.bf16.mxu0 0
      %1635 = vmatpush1.bf16.msra.mxu0 %v1611
      %1636 = vmatprep.subr.bf16.mxu0 0
      %1637 = vmatpush1.bf16.msra.mxu0 0
      %1638 = vmatprep.subr.bf16.mxu0 0
      %1639 = vmatpush1.bf16.msra.mxu0 0
      %1640 = vmatprep.subr.bf16.mxu0 0
      %1641 = vmatpush1.bf16.msra.mxu0 0
      %1642 = vmatprep.subr.bf16.mxu0 0
      %1643 = vmatpush1.bf16.msra.mxu0 0
      %1644 = vmatprep.subr.bf16.mxu0 0
      %1645 = vmatpush1.bf16.msra.mxu0 0
      %1646 = vmatprep.subr.bf16.mxu0 0
      %1647 = vmatpush1.bf16.msra.mxu0 0
      %1648 = vmatprep.subr.bf16.mxu0 0
      %1649 = vmatpush1.bf16.msra.mxu0 0
      %1650 = vmatprep.subr.bf16.mxu0 0
      %1651 = vmatpush1.bf16.msra.mxu0 0
      %1652 = vmatprep.mubr.bf16.mxu0 0
      %1653 = vmatmul.mubr.bf16.gmra.mrb[0].mxu0 %v1540
      %v1654 = vpop.f32.mrb[0].mxu0
      %v1655 = vadd.f32 0.0, %v1654
      %v1656 = vpop.f32.mrb[0].mxu0
      %v1657 = vpop.f32.mrb[0].mxu0
      %v1658 = vadd.f32 0.0, %v1657
      %v1659 = vpop.f32.mrb[0].mxu0
      %1660 = vmatprep.mubr.bf16.mxu0 0
      %1661 = vmatmul.mubr.bf16.gmra.mrb[0].mxu0 %v1541
      %v1662 = vpop.f32.mrb[0].mxu0
      %v1663 = vadd.f32 0.0, %v1662
      %v1664 = vpop.f32.mrb[0].mxu0
      %v1665 = vpop.f32.mrb[0].mxu0
      %v1666 = vadd.f32 0.0, %v1665
      %v1667 = vpop.f32.mrb[0].mxu0
      %1668 = vmatprep.mubr.bf16.mxu0 0
      %1669 = vmatmul.mubr.bf16.gmra.mrb[0].mxu0 %v1542
      %v1670 = vpop.f32.mrb[0].mxu0
      %v1671 = vadd.f32 0.0, %v1670
      %v1672 = vpop.f32.mrb[0].mxu0
      %v1673 = vpop.f32.mrb[0].mxu0
      %v1674 = vadd.f32 0.0, %v1673
      %v1675 = vpop.f32.mrb[0].mxu0
      %1676 = vmatprep.mubr.bf16.mxu0 0
      %1677 = vmatmul.mubr.bf16.gmra.mrb[0].mxu0 %v1543
      %v1678 = vpop.f32.mrb[0].mxu0
      %v1679 = vadd.f32 0.0, %v1678
      %v1680 = vpop.f32.mrb[0].mxu0
      %v1681 = vpop.f32.mrb[0].mxu0
      %v1682 = vadd.f32 0.0, %v1681
      %v1683 = vpop.f32.mrb[0].mxu0
      %1684 = vmatprep.mubr.bf16.mxu0 0
      %1685 = vmatmul.mubr.bf16.gmra.mrb[0].mxu0 %v1544
      %v1686 = vpop.f32.mrb[0].mxu0
      %v1687 = vadd.f32 0.0, %v1686
      %v1688 = vpop.f32.mrb[0].mxu0
      %v1689 = vpop.f32.mrb[0].mxu0
      %v1690 = vadd.f32 0.0, %v1689
      %v1691 = vpop.f32.mrb[0].mxu0
      %1692 = vmatprep.mubr.bf16.mxu0 0
      %1693 = vmatmul.mubr.bf16.gmra.mrb[0].mxu0 %v1545
      %v1694 = vpop.f32.mrb[0].mxu0
      %v1695 = vadd.f32 0.0, %v1694
      %v1696 = vpop.f32.mrb[0].mxu0
      %v1697 = vpop.f32.mrb[0].mxu0
      %v1698 = vadd.f32 0.0, %v1697
      %v1699 = vpop.f32.mrb[0].mxu0
      %1700 = vmatprep.mubr.bf16.mxu0 0
      %1701 = vmatmul.mubr.bf16.gmra.mrb[0].mxu0 %v1546
      %v1702 = vpop.f32.mrb[0].mxu0
      %v1703 = vadd.f32 0.0, %v1702
      %v1704 = vpop.f32.mrb[0].mxu0
      %v1705 = vpop.f32.mrb[0].mxu0
      %v1706 = vadd.f32 0.0, %v1705
      %v1707 = vpop.f32.mrb[0].mxu0
      %1708 = vmatprep.mubr.bf16.mxu0 0
      %1709 = vmatmul.mubr.bf16.gmra.mrb[0].mxu0 %v1547
      %v1710 = vpop.f32.mrb[0].mxu0
      %v1711 = vadd.f32 0.0, %v1710
      %v1712 = vpop.f32.mrb[0].mxu0
      %v1713 = vpop.f32.mrb[0].mxu0
      %v1714 = vadd.f32 0.0, %v1713
      %v1715 = vpop.f32.mrb[0].mxu0
      %1716 = vmatprep.mubr.bf16.mxu0 0
      %1717 = vmatmul.mubr.bf16.gmra.mrb[0].mxu0 %v1548
      %v1718 = vpop.f32.mrb[0].mxu0
      %v1719 = vadd.f32 0.0, %v1718
      %v1720 = vpop.f32.mrb[0].mxu0
      %v1721 = vpop.f32.mrb[0].mxu0
      %v1722 = vadd.f32 0.0, %v1721
      %v1723 = vpop.f32.mrb[0].mxu0
      %1724 = vmatprep.mubr.bf16.mxu0 0
      %1725 = vmatmul.mubr.bf16.gmra.mrb[0].mxu0 %v1549
      %v1726 = vpop.f32.mrb[0].mxu0
      %v1727 = vadd.f32 0.0, %v1726
      %v1728 = vpop.f32.mrb[0].mxu0
      %v1729 = vpop.f32.mrb[0].mxu0
      %v1730 = vadd.f32 0.0, %v1729
      %v1731 = vpop.f32.mrb[0].mxu0
      %1732 = vmatprep.mubr.bf16.mxu0 0
      %1733 = vmatmul.mubr.bf16.gmra.mrb[0].mxu0 %v1550
      %v1734 = vpop.f32.mrb[0].mxu0
      %v1735 = vadd.f32 0.0, %v1734
      %v1736 = vpop.f32.mrb[0].mxu0
      %v1737 = vpop.f32.mrb[0].mxu0
      %v1738 = vadd.f32 0.0, %v1737
      %v1739 = vpop.f32.mrb[0].mxu0
      %1740 = vmatprep.mubr.bf16.mxu0 0
      %1741 = vmatmul.mubr.bf16.gmra.mrb[0].mxu0 %v1551
      %v1742 = vpop.f32.mrb[0].mxu0
      %v1743 = vadd.f32 0.0, %v1742
      %v1744 = vpop.f32.mrb[0].mxu0
      %v1745 = vpop.f32.mrb[0].mxu0
      %v1746 = vadd.f32 0.0, %v1745
      %v1747 = vpop.f32.mrb[0].mxu0
      %1748 = vmatprep.mubr.bf16.mxu0 0
      %1749 = vmatmul.mubr.bf16.gmra.mrb[0].mxu0 %v1552
      %v1750 = vpop.f32.mrb[0].mxu0
      %v1751 = vadd.f32 0.0, %v1750
      %v1752 = vpop.f32.mrb[0].mxu0
      %v1753 = vpop.f32.mrb[0].mxu0
      %v1754 = vadd.f32 0.0, %v1753
      %v1755 = vpop.f32.mrb[0].mxu0
      %1756 = vmatprep.mubr.bf16.mxu0 0
      %1757 = vmatmul.mubr.bf16.gmra.mrb[0].mxu0 %v1553
      %v1758 = vpop.f32.mrb[0].mxu0
      %v1759 = vadd.f32 0.0, %v1758
      %v1760 = vpop.f32.mrb[0].mxu0
      %v1761 = vpop.f32.mrb[0].mxu0
      %v1762 = vadd.f32 0.0, %v1761
      %v1763 = vpop.f32.mrb[0].mxu0
      %1764 = vmatprep.mubr.bf16.mxu0 0
      %1765 = vmatmul.mubr.bf16.gmra.mrb[0].mxu0 %v1554
      %v1766 = vpop.f32.mrb[0].mxu0
      %v1767 = vadd.f32 0.0, %v1766
      %v1768 = vpop.f32.mrb[0].mxu0
      %v1769 = vpop.f32.mrb[0].mxu0
      %v1770 = vadd.f32 0.0, %v1769
      %v1771 = vpop.f32.mrb[0].mxu0
      %1772 = vmatprep.mubr.bf16.mxu0 0
      %1773 = vmatmul.mubr.bf16.gmra.mrb[0].mxu0 %v1555
      %v1774 = vpop.f32.mrb[0].mxu0
      %v1775 = vadd.f32 0.0, %v1774
      %v1776 = vpop.f32.mrb[0].mxu0
      %v1777 = vpop.f32.mrb[0].mxu0
      %v1778 = vadd.f32 0.0, %v1777
      %v1779 = vpop.f32.mrb[0].mxu0
      %1780 = vdwg.mxu0
      %v1813 = vunpack.c.l.b16 %v1040
      %v1814 = vunpack.c.l.b16 %v1041
      %v1815 = vunpack.c.l.b16 %v1042
      %v1816 = vunpack.c.l.b16 %v1043
      %v1817 = vunpack.c.l.b16 %v1044
      %v1818 = vunpack.c.l.b16 %v1045
      %v1819 = vunpack.c.l.b16 %v1046
      %v1820 = vunpack.c.l.b16 %v1047
      %v1821 = vunpack.c.l.b16 %v1048
      %v1822 = vunpack.c.l.b16 %v1049
      %v1823 = vunpack.c.l.b16 %v1050
      %v1824 = vunpack.c.l.b16 %v1051
      %v1825 = vunpack.c.l.b16 %v1052
      %v1826 = vunpack.c.l.b16 %v1053
      %v1827 = vunpack.c.l.b16 %v1054
      %v1828 = vunpack.c.l.b16 %v1055
      %v1829 = vunpack.c.l.b16 %v1056
      %v1830 = vunpack.c.l.b16 %v1057
      %v1831 = vunpack.c.l.b16 %v1058
      %v1832 = vunpack.c.l.b16 %v1059
      %v1833 = vunpack.c.l.b16 %v1060
      %v1834 = vunpack.c.l.b16 %v1061
      %v1835 = vunpack.c.l.b16 %v1062
      %v1836 = vunpack.c.l.b16 %v1063
      %v1837 = vunpack.c.l.b16 %v1064
      %v1838 = vunpack.c.l.b16 %v1065
      %v1839 = vunpack.c.l.b16 %v1066
      %v1840 = vunpack.c.l.b16 %v1067
      %v1841 = vunpack.c.l.b16 %v1068
      %v1842 = vunpack.c.l.b16 %v1069
      %v1843 = vunpack.c.l.b16 %v1070
      %v1844 = vunpack.c.l.b16 %v1071
      %v1845 = vpack.c.b16 %v1814, %v1813
      %v1846 = vpack.c.b16 %v1816, %v1815
      %v1847 = vpack.c.b16 %v1818, %v1817
      %v1848 = vpack.c.b16 %v1820, %v1819
      %v1849 = vpack.c.b16 %v1822, %v1821
      %v1850 = vpack.c.b16 %v1824, %v1823
      %v1851 = vpack.c.b16 %v1826, %v1825
      %v1852 = vpack.c.b16 %v1828, %v1827
      %v1853 = vpack.c.b16 %v1830, %v1829
      %v1854 = vpack.c.b16 %v1832, %v1831
      %v1855 = vpack.c.b16 %v1834, %v1833
      %v1856 = vpack.c.b16 %v1836, %v1835
      %v1857 = vpack.c.b16 %v1838, %v1837
      %v1858 = vpack.c.b16 %v1840, %v1839
      %v1859 = vpack.c.b16 %v1842, %v1841
      %v1860 = vpack.c.b16 %v1844, %v1843
      %v1893 = vunpack.c.l.b16 %v1072
      %v1894 = vunpack.c.l.b16 %v1073
      %v1895 = vunpack.c.l.b16 %v1074
      %v1896 = vunpack.c.l.b16 %v1075
      %v1897 = vunpack.c.l.b16 %v1076
      %v1898 = vunpack.c.l.b16 %v1077
      %v1899 = vunpack.c.l.b16 %v1078
      %v1900 = vunpack.c.l.b16 %v1079
      %v1901 = vunpack.c.l.b16 %v1080
      %v1902 = vunpack.c.l.b16 %v1081
      %v1903 = vunpack.c.l.b16 %v1082
      %v1904 = vunpack.c.l.b16 %v1083
      %v1905 = vunpack.c.l.b16 %v1084
      %v1906 = vunpack.c.l.b16 %v1085
      %v1907 = vunpack.c.l.b16 %v1086
      %v1908 = vunpack.c.l.b16 %v1087
      %v1909 = vpack.c.b16 %v1894, %v1893
      %v1910 = vpack.c.b16 %v1896, %v1895
      %v1911 = vpack.c.b16 %v1898, %v1897
      %v1912 = vpack.c.b16 %v1900, %v1899
      %v1913 = vpack.c.b16 %v1902, %v1901
      %v1914 = vpack.c.b16 %v1904, %v1903
      %v1915 = vpack.c.b16 %v1906, %v1905
      %v1916 = vpack.c.b16 %v1908, %v1907
      %1925 = vmatprep.subr.bf16.mxu0 0
      %1926 = vmatpush1.bf16.msra.mxu0 %v1909
      %1927 = vmatprep.subr.bf16.mxu0 0
      %1928 = vmatpush1.bf16.msra.mxu0 %v1910
      %1929 = vmatprep.subr.bf16.mxu0 0
      %1930 = vmatpush1.bf16.msra.mxu0 %v1911
      %1931 = vmatprep.subr.bf16.mxu0 0
      %1932 = vmatpush1.bf16.msra.mxu0 %v1912
      %1933 = vmatprep.subr.bf16.mxu0 0
      %1934 = vmatpush1.bf16.msra.mxu0 %v1913
      %1935 = vmatprep.subr.bf16.mxu0 0
      %1936 = vmatpush1.bf16.msra.mxu0 %v1914
      %1937 = vmatprep.subr.bf16.mxu0 0
      %1938 = vmatpush1.bf16.msra.mxu0 %v1915
      %1939 = vmatprep.subr.bf16.mxu0 0
      %1940 = vmatpush1.bf16.msra.mxu0 %v1916
      %1941 = vmatprep.subr.bf16.mxu0 0
      %1942 = vmatpush1.bf16.msra.mxu0 0
      %1943 = vmatprep.subr.bf16.mxu0 0
      %1944 = vmatpush1.bf16.msra.mxu0 0
      %1945 = vmatprep.subr.bf16.mxu0 0
      %1946 = vmatpush1.bf16.msra.mxu0 0
      %1947 = vmatprep.subr.bf16.mxu0 0
      %1948 = vmatpush1.bf16.msra.mxu0 0
      %1949 = vmatprep.subr.bf16.mxu0 0
      %1950 = vmatpush1.bf16.msra.mxu0 0
      %1951 = vmatprep.subr.bf16.mxu0 0
      %1952 = vmatpush1.bf16.msra.mxu0 0
      %1953 = vmatprep.subr.bf16.mxu0 0
      %1954 = vmatpush1.bf16.msra.mxu0 0
      %1955 = vmatprep.subr.bf16.mxu0 0
      %1956 = vmatpush1.bf16.msra.mxu0 0
      %1957 = vmatprep.mubr.bf16.mxu0 0
      %1958 = vmatmul.mubr.bf16.gmra.mrb[0].mxu0 %v1845
      %v1959 = vpop.f32.mrb[0].mxu0
      %v1960 = vadd.f32 %v1655, %v1959
      %v1961 = vpop.f32.mrb[0].mxu0
      %v1962 = vpop.f32.mrb[0].mxu0
      %v1963 = vadd.f32 %v1658, %v1962
      %v1964 = vpop.f32.mrb[0].mxu0
      %1965 = vmatprep.mubr.bf16.mxu0 0
      %1966 = vmatmul.mubr.bf16.gmra.mrb[0].mxu0 %v1846
      %v1967 = vpop.f32.mrb[0].mxu0
      %v1968 = vadd.f32 %v1663, %v1967
      %v1969 = vpop.f32.mrb[0].mxu0
      %v1970 = vpop.f32.mrb[0].mxu0
      %v1971 = vadd.f32 %v1666, %v1970
      %v1972 = vpop.f32.mrb[0].mxu0
      %1973 = vmatprep.mubr.bf16.mxu0 0
      %1974 = vmatmul.mubr.bf16.gmra.mrb[0].mxu0 %v1847
      %v1975 = vpop.f32.mrb[0].mxu0
      %v1976 = vadd.f32 %v1671, %v1975
      %v1977 = vpop.f32.mrb[0].mxu0
      %v1978 = vpop.f32.mrb[0].mxu0
      %v1979 = vadd.f32 %v1674, %v1978
      %v1980 = vpop.f32.mrb[0].mxu0
      %1981 = vmatprep.mubr.bf16.mxu0 0
      %1982 = vmatmul.mubr.bf16.gmra.mrb[0].mxu0 %v1848
      %v1983 = vpop.f32.mrb[0].mxu0
      %v1984 = vadd.f32 %v1679, %v1983
      %v1985 = vpop.f32.mrb[0].mxu0
      %v1986 = vpop.f32.mrb[0].mxu0
      %v1987 = vadd.f32 %v1682, %v1986
      %v1988 = vpop.f32.mrb[0].mxu0
      %1989 = vmatprep.mubr.bf16.mxu0 0
      %1990 = vmatmul.mubr.bf16.gmra.mrb[0].mxu0 %v1849
      %v1991 = vpop.f32.mrb[0].mxu0
      %v1992 = vadd.f32 %v1687, %v1991
      %v1993 = vpop.f32.mrb[0].mxu0
      %v1994 = vpop.f32.mrb[0].mxu0
      %v1995 = vadd.f32 %v1690, %v1994
      %v1996 = vpop.f32.mrb[0].mxu0
      %1997 = vmatprep.mubr.bf16.mxu0 0
      %1998 = vmatmul.mubr.bf16.gmra.mrb[0].mxu0 %v1850
      %v1999 = vpop.f32.mrb[0].mxu0
      %v2000 = vadd.f32 %v1695, %v1999
      %v2001 = vpop.f32.mrb[0].mxu0
      %v2002 = vpop.f32.mrb[0].mxu0
      %v2003 = vadd.f32 %v1698, %v2002
      %v2004 = vpop.f32.mrb[0].mxu0
      %2005 = vmatprep.mubr.bf16.mxu0 0
      %2006 = vmatmul.mubr.bf16.gmra.mrb[0].mxu0 %v1851
      %v2007 = vpop.f32.mrb[0].mxu0
      %v2008 = vadd.f32 %v1703, %v2007
      %v2009 = vpop.f32.mrb[0].mxu0
      %v2010 = vpop.f32.mrb[0].mxu0
      %v2011 = vadd.f32 %v1706, %v2010
      %v2012 = vpop.f32.mrb[0].mxu0
      %2013 = vmatprep.mubr.bf16.mxu0 0
      %2014 = vmatmul.mubr.bf16.gmra.mrb[0].mxu0 %v1852
      %v2015 = vpop.f32.mrb[0].mxu0
      %v2016 = vadd.f32 %v1711, %v2015
      %v2017 = vpop.f32.mrb[0].mxu0
      %v2018 = vpop.f32.mrb[0].mxu0
      %v2019 = vadd.f32 %v1714, %v2018
      %v2020 = vpop.f32.mrb[0].mxu0
      %2021 = vmatprep.mubr.bf16.mxu0 0
      %2022 = vmatmul.mubr.bf16.gmra.mrb[0].mxu0 %v1853
      %v2023 = vpop.f32.mrb[0].mxu0
      %v2024 = vadd.f32 %v1719, %v2023
      %v2025 = vpop.f32.mrb[0].mxu0
      %v2026 = vpop.f32.mrb[0].mxu0
      %v2027 = vadd.f32 %v1722, %v2026
      %v2028 = vpop.f32.mrb[0].mxu0
      %2029 = vmatprep.mubr.bf16.mxu0 0
      %2030 = vmatmul.mubr.bf16.gmra.mrb[0].mxu0 %v1854
      %v2031 = vpop.f32.mrb[0].mxu0
      %v2032 = vadd.f32 %v1727, %v2031
      %v2033 = vpop.f32.mrb[0].mxu0
      %v2034 = vpop.f32.mrb[0].mxu0
      %v2035 = vadd.f32 %v1730, %v2034
      %v2036 = vpop.f32.mrb[0].mxu0
      %2037 = vmatprep.mubr.bf16.mxu0 0
      %2038 = vmatmul.mubr.bf16.gmra.mrb[0].mxu0 %v1855
      %v2039 = vpop.f32.mrb[0].mxu0
      %v2040 = vadd.f32 %v1735, %v2039
      %v2041 = vpop.f32.mrb[0].mxu0
      %v2042 = vpop.f32.mrb[0].mxu0
      %v2043 = vadd.f32 %v1738, %v2042
      %v2044 = vpop.f32.mrb[0].mxu0
      %2045 = vmatprep.mubr.bf16.mxu0 0
      %2046 = vmatmul.mubr.bf16.gmra.mrb[0].mxu0 %v1856
      %v2047 = vpop.f32.mrb[0].mxu0
      %v2048 = vadd.f32 %v1743, %v2047
      %v2049 = vpop.f32.mrb[0].mxu0
      %v2050 = vpop.f32.mrb[0].mxu0
      %v2051 = vadd.f32 %v1746, %v2050
      %v2052 = vpop.f32.mrb[0].mxu0
      %2053 = vmatprep.mubr.bf16.mxu0 0
      %2054 = vmatmul.mubr.bf16.gmra.mrb[0].mxu0 %v1857
      %v2055 = vpop.f32.mrb[0].mxu0
      %v2056 = vadd.f32 %v1751, %v2055
      %v2057 = vpop.f32.mrb[0].mxu0
      %v2058 = vpop.f32.mrb[0].mxu0
      %v2059 = vadd.f32 %v1754, %v2058
      %v2060 = vpop.f32.mrb[0].mxu0
      %2061 = vmatprep.mubr.bf16.mxu0 0
      %2062 = vmatmul.mubr.bf16.gmra.mrb[0].mxu0 %v1858
      %v2063 = vpop.f32.mrb[0].mxu0
      %v2064 = vadd.f32 %v1759, %v2063
      %v2065 = vpop.f32.mrb[0].mxu0
      %v2066 = vpop.f32.mrb[0].mxu0
      %v2067 = vadd.f32 %v1762, %v2066
      %v2068 = vpop.f32.mrb[0].mxu0
      %2069 = vmatprep.mubr.bf16.mxu0 0
      %2070 = vmatmul.mubr.bf16.gmra.mrb[0].mxu0 %v1859
      %v2071 = vpop.f32.mrb[0].mxu0
      %v2072 = vadd.f32 %v1767, %v2071
      %v2073 = vpop.f32.mrb[0].mxu0
      %v2074 = vpop.f32.mrb[0].mxu0
      %v2075 = vadd.f32 %v1770, %v2074
      %v2076 = vpop.f32.mrb[0].mxu0
      %2077 = vmatprep.mubr.bf16.mxu0 0
      %2078 = vmatmul.mubr.bf16.gmra.mrb[0].mxu0 %v1860
      %v2079 = vpop.f32.mrb[0].mxu0
      %v2080 = vadd.f32 %v1775, %v2079
      %v2081 = vpop.f32.mrb[0].mxu0
      %v2082 = vpop.f32.mrb[0].mxu0
      %v2083 = vadd.f32 %v1778, %v2082
      %v2084 = vpop.f32.mrb[0].mxu0
      %2085 = vdwg.mxu0
      %v2086 = vld [vmem:[#allocation2] sm:$0xe]
      %v2087 = vld [vmem:[#allocation2 + $0xc] sm:$0xe]
      %v2088 = vld [vmem:[#allocation2 + $0x18] sm:$0xe]
      %v2089 = vld [vmem:[#allocation2 + $0x24] sm:$0xe]
      %v2090 = vld [vmem:[#allocation2 + $0x30] sm:$0xe]
      %v2091 = vld [vmem:[#allocation2 + $0x3c] sm:$0xe]
      %v2092 = vld [vmem:[#allocation2 + $0x48] sm:$0xe]
      %v2093 = vld [vmem:[#allocation2 + $0x54] sm:$0xe]
      %v2094 = vld [vmem:[#allocation2 + $0x60] sm:$0xe]
      %v2095 = vld [vmem:[#allocation2 + $0x6c] sm:$0xe]
      %v2096 = vld [vmem:[#allocation2 + $0x78] sm:$0xe]
      %v2097 = vld [vmem:[#allocation2 + $0x84] sm:$0xe]
      %v2098 = vld [vmem:[#allocation2 + $0x90] sm:$0xe]
      %v2099 = vld [vmem:[#allocation2 + $0x9c] sm:$0xe]
      %v2100 = vld [vmem:[#allocation2 + $0xa8] sm:$0xe]
      %v2101 = vld [vmem:[#allocation2 + $0xb4] sm:$0xe]
      %vm2134 = vcmask 1042432
      %vm2135 = vcmask 1046532
      %vm2136 = vmor %vm2134, %vm2135
      %v2137 = vrot.slane %v2086, 5
      %v2138 = vrot.slane %v2137, 4
      %v2139 = vrot.slane %v1041, 5
      %v2140 = vsel %vm2136, %v2138, %v2139
      %v2141 = vrot.slane %v2139, 4
      %v2142 = vrot.slane %v1088, 5
      %v2143 = vsel %vm2136, %v2141, %v2142
      %v2144 = vrot.slane %v2087, 5
      %v2145 = vrot.slane %v2144, 4
      %v2146 = vrot.slane %v1043, 5
      %v2147 = vsel %vm2136, %v2145, %v2146
      %v2148 = vrot.slane %v2146, 4
      %v2149 = vrot.slane %v1089, 5
      %v2150 = vsel %vm2136, %v2148, %v2149
      %v2151 = vrot.slane %v2088, 5
      %v2152 = vrot.slane %v2151, 4
      %v2153 = vrot.slane %v1045, 5
      %v2154 = vsel %vm2136, %v2152, %v2153
      %v2155 = vrot.slane %v2153, 4
      %v2156 = vrot.slane %v1090, 5
      %v2157 = vsel %vm2136, %v2155, %v2156
      %v2158 = vrot.slane %v2089, 5
      %v2159 = vrot.slane %v2158, 4
      %v2160 = vrot.slane %v1047, 5
      %v2161 = vsel %vm2136, %v2159, %v2160
      %v2162 = vrot.slane %v2160, 4
      %v2163 = vrot.slane %v1091, 5
      %v2164 = vsel %vm2136, %v2162, %v2163
      %v2165 = vrot.slane %v2090, 5
      %v2166 = vrot.slane %v2165, 4
      %v2167 = vrot.slane %v1049, 5
      %v2168 = vsel %vm2136, %v2166, %v2167
      %v2169 = vrot.slane %v2167, 4
      %v2170 = vrot.slane %v1092, 5
      %v2171 = vsel %vm2136, %v2169, %v2170
      %v2172 = vrot.slane %v2091, 5
      %v2173 = vrot.slane %v2172, 4
      %v2174 = vrot.slane %v1051, 5
      %v2175 = vsel %vm2136, %v2173, %v2174
      %v2176 = vrot.slane %v2174, 4
      %v2177 = vrot.slane %v1093, 5
      %v2178 = vsel %vm2136, %v2176, %v2177
      %v2179 = vrot.slane %v2092, 5
      %v2180 = vrot.slane %v2179, 4
      %v2181 = vrot.slane %v1053, 5
      %v2182 = vsel %vm2136, %v2180, %v2181
      %v2183 = vrot.slane %v2181, 4
      %v2184 = vrot.slane %v1094, 5
      %v2185 = vsel %vm2136, %v2183, %v2184
      %v2186 = vrot.slane %v2093, 5
      %v2187 = vrot.slane %v2186, 4
      %v2188 = vrot.slane %v1055, 5
      %v2189 = vsel %vm2136, %v2187, %v2188
      %v2190 = vrot.slane %v2188, 4
      %v2191 = vrot.slane %v1095, 5
      %v2192 = vsel %vm2136, %v2190, %v2191
      %v2193 = vrot.slane %v2094, 5
      %v2194 = vrot.slane %v2193, 4
      %v2195 = vrot.slane %v1057, 5
      %v2196 = vsel %vm2136, %v2194, %v2195
      %v2197 = vrot.slane %v2195, 4
      %v2198 = vrot.slane %v1096, 5
      %v2199 = vsel %vm2136, %v2197, %v2198
      %v2200 = vrot.slane %v2095, 5
      %v2201 = vrot.slane %v2200, 4
      %v2202 = vrot.slane %v1059, 5
      %v2203 = vsel %vm2136, %v2201, %v2202
      %v2204 = vrot.slane %v2202, 4
      %v2205 = vrot.slane %v1097, 5
      %v2206 = vsel %vm2136, %v2204, %v2205
      %v2207 = vrot.slane %v2096, 5
      %v2208 = vrot.slane %v2207, 4
      %v2209 = vrot.slane %v1061, 5
      %v2210 = vsel %vm2136, %v2208, %v2209
      %v2211 = vrot.slane %v2209, 4
      %v2212 = vrot.slane %v1098, 5
      %v2213 = vsel %vm2136, %v2211, %v2212
      %v2214 = vrot.slane %v2097, 5
      %v2215 = vrot.slane %v2214, 4
      %v2216 = vrot.slane %v1063, 5
      %v2217 = vsel %vm2136, %v2215, %v2216
      %v2218 = vrot.slane %v2216, 4
      %v2219 = vrot.slane %v1099, 5
      %v2220 = vsel %vm2136, %v2218, %v2219
      %v2221 = vrot.slane %v2098, 5
      %v2222 = vrot.slane %v2221, 4
      %v2223 = vrot.slane %v1065, 5
      %v2224 = vsel %vm2136, %v2222, %v2223
      %v2225 = vrot.slane %v2223, 4
      %v2226 = vrot.slane %v1100, 5
      %v2227 = vsel %vm2136, %v2225, %v2226
      %v2228 = vrot.slane %v2099, 5
      %v2229 = vrot.slane %v2228, 4
      %v2230 = vrot.slane %v1067, 5
      %v2231 = vsel %vm2136, %v2229, %v2230
      %v2232 = vrot.slane %v2230, 4
      %v2233 = vrot.slane %v1101, 5
      %v2234 = vsel %vm2136, %v2232, %v2233
      %v2235 = vrot.slane %v2100, 5
      %v2236 = vrot.slane %v2235, 4
      %v2237 = vrot.slane %v1069, 5
      %v2238 = vsel %vm2136, %v2236, %v2237
      %v2239 = vrot.slane %v2237, 4
      %v2240 = vrot.slane %v1102, 5
      %v2241 = vsel %vm2136, %v2239, %v2240
      %v2242 = vrot.slane %v2101, 5
      %v2243 = vrot.slane %v2242, 4
      %v2244 = vrot.slane %v1071, 5
      %v2245 = vsel %vm2136, %v2243, %v2244
      %v2246 = vrot.slane %v2244, 4
      %v2247 = vrot.slane %v1103, 5
      %v2248 = vsel %vm2136, %v2246, %v2247
      %s2249 = scalar_lea.vmem %s3, 128
      %v2250 = vld [vmem:[%s2249] sm:$0xf]
      %v2251 = vld [vmem:[%s2249 + $0x4] sm:$0xf]
      %v2252 = vld [vmem:[%s2249 + $0x8] sm:$0xf]
      %v2253 = vld [vmem:[%s2249 + $0xc] sm:$0xf]
      %v2254 = vld [vmem:[%s2249 + $0x10] sm:$0xf]
      %v2255 = vld [vmem:[%s2249 + $0x14] sm:$0xf]
      %v2256 = vld [vmem:[%s2249 + $0x18] sm:$0xf]
      %v2257 = vld [vmem:[%s2249 + $0x1c] sm:$0xf]
      %v2258 = vld [vmem:[%s2249 + $0x20] sm:$0xf]
      %v2259 = vld [vmem:[%s2249 + $0x24] sm:$0xf]
      %v2260 = vld [vmem:[%s2249 + $0x28] sm:$0xf]
      %v2261 = vld [vmem:[%s2249 + $0x2c] sm:$0xf]
      %v2262 = vld [vmem:[%s2249 + $0x30] sm:$0xf]
      %v2263 = vld [vmem:[%s2249 + $0x34] sm:$0xf]
      %v2264 = vld [vmem:[%s2249 + $0x38] sm:$0xf]
      %v2265 = vld [vmem:[%s2249 + $0x3c] sm:$0xf]
      %v2266 = vunpack.c.l.b16 %v2140
      %v2267 = vunpack.c.l.b16 %v2143
      %v2268 = vunpack.c.l.b16 %v2147
      %v2269 = vunpack.c.l.b16 %v2150
      %v2270 = vunpack.c.l.b16 %v2154
      %v2271 = vunpack.c.l.b16 %v2157
      %v2272 = vunpack.c.l.b16 %v2161
      %v2273 = vunpack.c.l.b16 %v2164
      %v2274 = vunpack.c.l.b16 %v2168
      %v2275 = vunpack.c.l.b16 %v2171
      %v2276 = vunpack.c.l.b16 %v2175
      %v2277 = vunpack.c.l.b16 %v2178
      %v2278 = vunpack.c.l.b16 %v2182
      %v2279 = vunpack.c.l.b16 %v2185
      %v2280 = vunpack.c.l.b16 %v2189
      %v2281 = vunpack.c.l.b16 %v2192
      %v2282 = vunpack.c.l.b16 %v2196
      %v2283 = vunpack.c.l.b16 %v2199
      %v2284 = vunpack.c.l.b16 %v2203
      %v2285 = vunpack.c.l.b16 %v2206
      %v2286 = vunpack.c.l.b16 %v2210
      %v2287 = vunpack.c.l.b16 %v2213
      %v2288 = vunpack.c.l.b16 %v2217
      %v2289 = vunpack.c.l.b16 %v2220
      %v2290 = vunpack.c.l.b16 %v2224
      %v2291 = vunpack.c.l.b16 %v2227
      %v2292 = vunpack.c.l.b16 %v2231
      %v2293 = vunpack.c.l.b16 %v2234
      %v2294 = vunpack.c.l.b16 %v2238
      %v2295 = vunpack.c.l.b16 %v2241
      %v2296 = vunpack.c.l.b16 %v2245
      %v2297 = vunpack.c.l.b16 %v2248
      %v2298 = vpack.c.b16 %v2267, %v2266
      %v2299 = vpack.c.b16 %v2269, %v2268
      %v2300 = vpack.c.b16 %v2271, %v2270
      %v2301 = vpack.c.b16 %v2273, %v2272
      %v2302 = vpack.c.b16 %v2275, %v2274
      %v2303 = vpack.c.b16 %v2277, %v2276
      %v2304 = vpack.c.b16 %v2279, %v2278
      %v2305 = vpack.c.b16 %v2281, %v2280
      %v2306 = vpack.c.b16 %v2283, %v2282
      %v2307 = vpack.c.b16 %v2285, %v2284
      %v2308 = vpack.c.b16 %v2287, %v2286
      %v2309 = vpack.c.b16 %v2289, %v2288
      %v2310 = vpack.c.b16 %v2291, %v2290
      %v2311 = vpack.c.b16 %v2293, %v2292
      %v2312 = vpack.c.b16 %v2295, %v2294
      %v2313 = vpack.c.b16 %v2297, %v2296
      %v2346 = vunpack.c.l.b16 %v2250
      %v2347 = vunpack.c.l.b16 %v2251
      %v2348 = vunpack.c.l.b16 %v2252
      %v2349 = vunpack.c.l.b16 %v2253
      %v2350 = vunpack.c.l.b16 %v2254
      %v2351 = vunpack.c.l.b16 %v2255
      %v2352 = vunpack.c.l.b16 %v2256
      %v2353 = vunpack.c.l.b16 %v2257
      %v2354 = vunpack.c.l.b16 %v2258
      %v2355 = vunpack.c.l.b16 %v2259
      %v2356 = vunpack.c.l.b16 %v2260
      %v2357 = vunpack.c.l.b16 %v2261
      %v2358 = vunpack.c.l.b16 %v2262
      %v2359 = vunpack.c.l.b16 %v2263
      %v2360 = vunpack.c.l.b16 %v2264
      %v2361 = vunpack.c.l.b16 %v2265
      %v2362 = vpack.c.b16 %v2347, %v2346
      %v2363 = vpack.c.b16 %v2349, %v2348
      %v2364 = vpack.c.b16 %v2351, %v2350
      %v2365 = vpack.c.b16 %v2353, %v2352
      %v2366 = vpack.c.b16 %v2355, %v2354
      %v2367 = vpack.c.b16 %v2357, %v2356
      %v2368 = vpack.c.b16 %v2359, %v2358
      %v2369 = vpack.c.b16 %v2361, %v2360
      %2378 = vmatprep.subr.bf16.mxu0 0
      %2379 = vmatpush1.bf16.msra.mxu0 %v2362
      %2380 = vmatprep.subr.bf16.mxu0 0
      %2381 = vmatpush1.bf16.msra.mxu0 %v2363
      %2382 = vmatprep.subr.bf16.mxu0 0
      %2383 = vmatpush1.bf16.msra.mxu0 %v2364
      %2384 = vmatprep.subr.bf16.mxu0 0
      %2385 = vmatpush1.bf16.msra.mxu0 %v2365
      %2386 = vmatprep.subr.bf16.mxu0 0
      %2387 = vmatpush1.bf16.msra.mxu0 %v2366
      %2388 = vmatprep.subr.bf16.mxu0 0
      %2389 = vmatpush1.bf16.msra.mxu0 %v2367
      %2390 = vmatprep.subr.bf16.mxu0 0
      %2391 = vmatpush1.bf16.msra.mxu0 %v2368
      %2392 = vmatprep.subr.bf16.mxu0 0
      %2393 = vmatpush1.bf16.msra.mxu0 %v2369
      %2394 = vmatprep.subr.bf16.mxu0 0
      %2395 = vmatpush1.bf16.msra.mxu0 0
      %2396 = vmatprep.subr.bf16.mxu0 0
      %2397 = vmatpush1.bf16.msra.mxu0 0
      %2398 = vmatprep.subr.bf16.mxu0 0
      %2399 = vmatpush1.bf16.msra.mxu0 0
      %2400 = vmatprep.subr.bf16.mxu0 0
      %2401 = vmatpush1.bf16.msra.mxu0 0
      %2402 = vmatprep.subr.bf16.mxu0 0
      %2403 = vmatpush1.bf16.msra.mxu0 0
      %2404 = vmatprep.subr.bf16.mxu0 0
      %2405 = vmatpush1.bf16.msra.mxu0 0
      %2406 = vmatprep.subr.bf16.mxu0 0
      %2407 = vmatpush1.bf16.msra.mxu0 0
      %2408 = vmatprep.subr.bf16.mxu0 0
      %2409 = vmatpush1.bf16.msra.mxu0 0
      %2410 = vmatprep.mubr.bf16.mxu0 0
      %2411 = vmatmul.mubr.bf16.gmra.mrb[0].mxu0 %v2298
      %v2412 = vpop.f32.mrb[0].mxu0
      %v2413 = vadd.f32 0.0, %v2412
      %v2414 = vpop.f32.mrb[0].mxu0
      %v2415 = vpop.f32.mrb[0].mxu0
      %v2416 = vadd.f32 0.0, %v2415
      %v2417 = vpop.f32.mrb[0].mxu0
      %2418 = vmatprep.mubr.bf16.mxu0 0
      %2419 = vmatmul.mubr.bf16.gmra.mrb[0].mxu0 %v2299
      %v2420 = vpop.f32.mrb[0].mxu0
      %v2421 = vadd.f32 0.0, %v2420
      %v2422 = vpop.f32.mrb[0].mxu0
      %v2423 = vpop.f32.mrb[0].mxu0
      %v2424 = vadd.f32 0.0, %v2423
      %v2425 = vpop.f32.mrb[0].mxu0
      %2426 = vmatprep.mubr.bf16.mxu0 0
      %2427 = vmatmul.mubr.bf16.gmra.mrb[0].mxu0 %v2300
      %v2428 = vpop.f32.mrb[0].mxu0
      %v2429 = vadd.f32 0.0, %v2428
      %v2430 = vpop.f32.mrb[0].mxu0
      %v2431 = vpop.f32.mrb[0].mxu0
      %v2432 = vadd.f32 0.0, %v2431
      %v2433 = vpop.f32.mrb[0].mxu0
      %2434 = vmatprep.mubr.bf16.mxu0 0
      %2435 = vmatmul.mubr.bf16.gmra.mrb[0].mxu0 %v2301
      %v2436 = vpop.f32.mrb[0].mxu0
      %v2437 = vadd.f32 0.0, %v2436
      %v2438 = vpop.f32.mrb[0].mxu0
      %v2439 = vpop.f32.mrb[0].mxu0
      %v2440 = vadd.f32 0.0, %v2439
      %v2441 = vpop.f32.mrb[0].mxu0
      %2442 = vmatprep.mubr.bf16.mxu0 0
      %2443 = vmatmul.mubr.bf16.gmra.mrb[0].mxu0 %v2302
      %v2444 = vpop.f32.mrb[0].mxu0
      %v2445 = vadd.f32 0.0, %v2444
      %v2446 = vpop.f32.mrb[0].mxu0
      %v2447 = vpop.f32.mrb[0].mxu0
      %v2448 = vadd.f32 0.0, %v2447
      %v2449 = vpop.f32.mrb[0].mxu0
      %2450 = vmatprep.mubr.bf16.mxu0 0
      %2451 = vmatmul.mubr.bf16.gmra.mrb[0].mxu0 %v2303
      %v2452 = vpop.f32.mrb[0].mxu0
      %v2453 = vadd.f32 0.0, %v2452
      %v2454 = vpop.f32.mrb[0].mxu0
      %v2455 = vpop.f32.mrb[0].mxu0
      %v2456 = vadd.f32 0.0, %v2455
      %v2457 = vpop.f32.mrb[0].mxu0
      %2458 = vmatprep.mubr.bf16.mxu0 0
      %2459 = vmatmul.mubr.bf16.gmra.mrb[0].mxu0 %v2304
      %v2460 = vpop.f32.mrb[0].mxu0
      %v2461 = vadd.f32 0.0, %v2460
      %v2462 = vpop.f32.mrb[0].mxu0
      %v2463 = vpop.f32.mrb[0].mxu0
      %v2464 = vadd.f32 0.0, %v2463
      %v2465 = vpop.f32.mrb[0].mxu0
      %2466 = vmatprep.mubr.bf16.mxu0 0
      %2467 = vmatmul.mubr.bf16.gmra.mrb[0].mxu0 %v2305
      %v2468 = vpop.f32.mrb[0].mxu0
      %v2469 = vadd.f32 0.0, %v2468
      %v2470 = vpop.f32.mrb[0].mxu0
      %v2471 = vpop.f32.mrb[0].mxu0
      %v2472 = vadd.f32 0.0, %v2471
      %v2473 = vpop.f32.mrb[0].mxu0
      %2474 = vmatprep.mubr.bf16.mxu0 0
      %2475 = vmatmul.mubr.bf16.gmra.mrb[0].mxu0 %v2306
      %v2476 = vpop.f32.mrb[0].mxu0
      %v2477 = vadd.f32 0.0, %v2476
      %v2478 = vpop.f32.mrb[0].mxu0
      %v2479 = vpop.f32.mrb[0].mxu0
      %v2480 = vadd.f32 0.0, %v2479
      %v2481 = vpop.f32.mrb[0].mxu0
      %2482 = vmatprep.mubr.bf16.mxu0 0
      %2483 = vmatmul.mubr.bf16.gmra.mrb[0].mxu0 %v2307
      %v2484 = vpop.f32.mrb[0].mxu0
      %v2485 = vadd.f32 0.0, %v2484
      %v2486 = vpop.f32.mrb[0].mxu0
      %v2487 = vpop.f32.mrb[0].mxu0
      %v2488 = vadd.f32 0.0, %v2487
      %v2489 = vpop.f32.mrb[0].mxu0
      %2490 = vmatprep.mubr.bf16.mxu0 0
      %2491 = vmatmul.mubr.bf16.gmra.mrb[0].mxu0 %v2308
      %v2492 = vpop.f32.mrb[0].mxu0
      %v2493 = vadd.f32 0.0, %v2492
      %v2494 = vpop.f32.mrb[0].mxu0
      %v2495 = vpop.f32.mrb[0].mxu0
      %v2496 = vadd.f32 0.0, %v2495
      %v2497 = vpop.f32.mrb[0].mxu0
      %2498 = vmatprep.mubr.bf16.mxu0 0
      %2499 = vmatmul.mubr.bf16.gmra.mrb[0].mxu0 %v2309
      %v2500 = vpop.f32.mrb[0].mxu0
      %v2501 = vadd.f32 0.0, %v2500
      %v2502 = vpop.f32.mrb[0].mxu0
      %v2503 = vpop.f32.mrb[0].mxu0
      %v2504 = vadd.f32 0.0, %v2503
      %v2505 = vpop.f32.mrb[0].mxu0
      %2506 = vmatprep.mubr.bf16.mxu0 0
      %2507 = vmatmul.mubr.bf16.gmra.mrb[0].mxu0 %v2310
      %v2508 = vpop.f32.mrb[0].mxu0
      %v2509 = vadd.f32 0.0, %v2508
      %v2510 = vpop.f32.mrb[0].mxu0
      %v2511 = vpop.f32.mrb[0].mxu0
      %v2512 = vadd.f32 0.0, %v2511
      %v2513 = vpop.f32.mrb[0].mxu0
      %2514 = vmatprep.mubr.bf16.mxu0 0
      %2515 = vmatmul.mubr.bf16.gmra.mrb[0].mxu0 %v2311
      %v2516 = vpop.f32.mrb[0].mxu0
      %v2517 = vadd.f32 0.0, %v2516
      %v2518 = vpop.f32.mrb[0].mxu0
      %v2519 = vpop.f32.mrb[0].mxu0
      %v2520 = vadd.f32 0.0, %v2519
      %v2521 = vpop.f32.mrb[0].mxu0
      %2522 = vmatprep.mubr.bf16.mxu0 0
      %2523 = vmatmul.mubr.bf16.gmra.mrb[0].mxu0 %v2312
      %v2524 = vpop.f32.mrb[0].mxu0
      %v2525 = vadd.f32 0.0, %v2524
      %v2526 = vpop.f32.mrb[0].mxu0
      %v2527 = vpop.f32.mrb[0].mxu0
      %v2528 = vadd.f32 0.0, %v2527
      %v2529 = vpop.f32.mrb[0].mxu0
      %2530 = vmatprep.mubr.bf16.mxu0 0
      %2531 = vmatmul.mubr.bf16.gmra.mrb[0].mxu0 %v2313
      %v2532 = vpop.f32.mrb[0].mxu0
      %v2533 = vadd.f32 0.0, %v2532
      %v2534 = vpop.f32.mrb[0].mxu0
      %v2535 = vpop.f32.mrb[0].mxu0
      %v2536 = vadd.f32 0.0, %v2535
      %v2537 = vpop.f32.mrb[0].mxu0
      %2538 = vdwg.mxu0
      %v2539 = vadd.f32 %v1960, %v2413
      %v2540 = vadd.f32 %v1963, %v2416
      %v2541 = vadd.f32 %v1968, %v2421
      %v2542 = vadd.f32 %v1971, %v2424
      %v2543 = vadd.f32 %v1976, %v2429
      %v2544 = vadd.f32 %v1979, %v2432
      %v2545 = vadd.f32 %v1984, %v2437
      %v2546 = vadd.f32 %v1987, %v2440
      %v2547 = vadd.f32 %v1992, %v2445
      %v2548 = vadd.f32 %v1995, %v2448
      %v2549 = vadd.f32 %v2000, %v2453
      %v2550 = vadd.f32 %v2003, %v2456
      %v2551 = vadd.f32 %v2008, %v2461
      %v2552 = vadd.f32 %v2011, %v2464
      %v2553 = vadd.f32 %v2016, %v2469
      %v2554 = vadd.f32 %v2019, %v2472
      %v2555 = vadd.f32 %v2024, %v2477
      %v2556 = vadd.f32 %v2027, %v2480
      %v2557 = vadd.f32 %v2032, %v2485
      %v2558 = vadd.f32 %v2035, %v2488
      %v2559 = vadd.f32 %v2040, %v2493
      %v2560 = vadd.f32 %v2043, %v2496
      %v2561 = vadd.f32 %v2048, %v2501
      %v2562 = vadd.f32 %v2051, %v2504
      %v2563 = vadd.f32 %v2056, %v2509
      %v2564 = vadd.f32 %v2059, %v2512
      %v2565 = vadd.f32 %v2064, %v2517
      %v2566 = vadd.f32 %v2067, %v2520
      %v2567 = vadd.f32 %v2072, %v2525
      %v2568 = vadd.f32 %v2075, %v2528
      %v2569 = vadd.f32 %v2080, %v2533
      %v2570 = vadd.f32 %v2083, %v2536
      %v2571 = vld [vmem:[%s922] sm:$0xf]
      %v2572 = vld [vmem:[%s922 + $0x4] sm:$0xf]
      %v2573 = vld [vmem:[%s922 + $0xc] sm:$0xf]
      %v2574 = vld [vmem:[%s922 + $0x10] sm:$0xf]
      %v2575 = vld [vmem:[%s922 + $0x18] sm:$0xf]
      %v2576 = vld [vmem:[%s922 + $0x1c] sm:$0xf]
      %v2577 = vld [vmem:[%s922 + $0x24] sm:$0xf]
      %v2578 = vld [vmem:[%s922 + $0x28] sm:$0xf]
      %v2579 = vld [vmem:[%s922 + $0x30] sm:$0xf]
      %v2580 = vld [vmem:[%s922 + $0x34] sm:$0xf]
      %v2581 = vld [vmem:[%s922 + $0x3c] sm:$0xf]
      %v2582 = vld [vmem:[%s922 + $0x40] sm:$0xf]
      %v2583 = vld [vmem:[%s922 + $0x48] sm:$0xf]
      %v2584 = vld [vmem:[%s922 + $0x4c] sm:$0xf]
      %v2585 = vld [vmem:[%s922 + $0x54] sm:$0xf]
      %v2586 = vld [vmem:[%s922 + $0x58] sm:$0xf]
      %v2587 = vld [vmem:[%s922 + $0x60] sm:$0xf]
      %v2588 = vld [vmem:[%s922 + $0x64] sm:$0xf]
      %v2589 = vld [vmem:[%s922 + $0x6c] sm:$0xf]
      %v2590 = vld [vmem:[%s922 + $0x70] sm:$0xf]
      %v2591 = vld [vmem:[%s922 + $0x78] sm:$0xf]
      %v2592 = vld [vmem:[%s922 + $0x7c] sm:$0xf]
      %v2593 = vld [vmem:[%s922 + $0x84] sm:$0xf]
      %v2594 = vld [vmem:[%s922 + $0x88] sm:$0xf]
      %v2595 = vld [vmem:[%s922 + $0x90] sm:$0xf]
      %v2596 = vld [vmem:[%s922 + $0x94] sm:$0xf]
      %v2597 = vld [vmem:[%s922 + $0x9c] sm:$0xf]
      %v2598 = vld [vmem:[%s922 + $0xa0] sm:$0xf]
      %v2599 = vld [vmem:[%s922 + $0xa8] sm:$0xf]
      %v2600 = vld [vmem:[%s922 + $0xac] sm:$0xf]
      %v2601 = vld [vmem:[%s922 + $0xb4] sm:$0xf]
      %v2602 = vld [vmem:[%s922 + $0xb8] sm:$0xf]
      %s2603 = scalar_lea.vmem %s3, 192
      %v2604 = vld [vmem:[%s2603] sm:$0xf]
      %v2605 = vld [vmem:[%s2603 + $0x4] sm:$0xf]
      %v2606 = vld [vmem:[%s2603 + $0x8] sm:$0xf]
      %v2607 = vld [vmem:[%s2603 + $0xc] sm:$0xf]
      %v2608 = vld [vmem:[%s2603 + $0x10] sm:$0xf]
      %v2609 = vld [vmem:[%s2603 + $0x14] sm:$0xf]
      %v2610 = vld [vmem:[%s2603 + $0x18] sm:$0xf]
      %v2611 = vld [vmem:[%s2603 + $0x1c] sm:$0xf]
      %v2612 = vld [vmem:[%s2603 + $0x20] sm:$0xf]
      %v2613 = vld [vmem:[%s2603 + $0x24] sm:$0xf]
      %v2614 = vld [vmem:[%s2603 + $0x28] sm:$0xf]
      %v2615 = vld [vmem:[%s2603 + $0x2c] sm:$0xf]
      %v2616 = vld [vmem:[%s2603 + $0x30] sm:$0xf]
      %v2617 = vld [vmem:[%s2603 + $0x34] sm:$0xf]
      %v2618 = vld [vmem:[%s2603 + $0x38] sm:$0xf]
      %v2619 = vld [vmem:[%s2603 + $0x3c] sm:$0xf]
      %v2652 = vunpack.c.l.b16 %v2571
      %v2653 = vunpack.c.l.b16 %v2572
      %v2654 = vunpack.c.l.b16 %v2573
      %v2655 = vunpack.c.l.b16 %v2574
      %v2656 = vunpack.c.l.b16 %v2575
      %v2657 = vunpack.c.l.b16 %v2576
      %v2658 = vunpack.c.l.b16 %v2577
      %v2659 = vunpack.c.l.b16 %v2578
      %v2660 = vunpack.c.l.b16 %v2579
      %v2661 = vunpack.c.l.b16 %v2580
      %v2662 = vunpack.c.l.b16 %v2581
      %v2663 = vunpack.c.l.b16 %v2582
      %v2664 = vunpack.c.l.b16 %v2583
      %v2665 = vunpack.c.l.b16 %v2584
      %v2666 = vunpack.c.l.b16 %v2585
      %v2667 = vunpack.c.l.b16 %v2586
      %v2668 = vunpack.c.l.b16 %v2587
      %v2669 = vunpack.c.l.b16 %v2588
      %v2670 = vunpack.c.l.b16 %v2589
      %v2671 = vunpack.c.l.b16 %v2590
      %v2672 = vunpack.c.l.b16 %v2591
      %v2673 = vunpack.c.l.b16 %v2592
      %v2674 = vunpack.c.l.b16 %v2593
      %v2675 = vunpack.c.l.b16 %v2594
      %v2676 = vunpack.c.l.b16 %v2595
      %v2677 = vunpack.c.l.b16 %v2596
      %v2678 = vunpack.c.l.b16 %v2597
      %v2679 = vunpack.c.l.b16 %v2598
      %v2680 = vunpack.c.l.b16 %v2599
      %v2681 = vunpack.c.l.b16 %v2600
      %v2682 = vunpack.c.l.b16 %v2601
      %v2683 = vunpack.c.l.b16 %v2602
      %v2684 = vpack.c.b16 %v2653, %v2652
      %v2685 = vpack.c.b16 %v2655, %v2654
      %v2686 = vpack.c.b16 %v2657, %v2656
      %v2687 = vpack.c.b16 %v2659, %v2658
      %v2688 = vpack.c.b16 %v2661, %v2660
      %v2689 = vpack.c.b16 %v2663, %v2662
      %v2690 = vpack.c.b16 %v2665, %v2664
      %v2691 = vpack.c.b16 %v2667, %v2666
      %v2692 = vpack.c.b16 %v2669, %v2668
      %v2693 = vpack.c.b16 %v2671, %v2670
      %v2694 = vpack.c.b16 %v2673, %v2672
      %v2695 = vpack.c.b16 %v2675, %v2674
      %v2696 = vpack.c.b16 %v2677, %v2676
      %v2697 = vpack.c.b16 %v2679, %v2678
      %v2698 = vpack.c.b16 %v2681, %v2680
      %v2699 = vpack.c.b16 %v2683, %v2682
      %v2732 = vunpack.c.l.b16 %v2604
      %v2733 = vunpack.c.l.b16 %v2605
      %v2734 = vunpack.c.l.b16 %v2606
      %v2735 = vunpack.c.l.b16 %v2607
      %v2736 = vunpack.c.l.b16 %v2608
      %v2737 = vunpack.c.l.b16 %v2609
      %v2738 = vunpack.c.l.b16 %v2610
      %v2739 = vunpack.c.l.b16 %v2611
      %v2740 = vunpack.c.l.b16 %v2612
      %v2741 = vunpack.c.l.b16 %v2613
      %v2742 = vunpack.c.l.b16 %v2614
      %v2743 = vunpack.c.l.b16 %v2615
      %v2744 = vunpack.c.l.b16 %v2616
      %v2745 = vunpack.c.l.b16 %v2617
      %v2746 = vunpack.c.l.b16 %v2618
      %v2747 = vunpack.c.l.b16 %v2619
      %v2748 = vpack.c.b16 %v2733, %v2732
      %v2749 = vpack.c.b16 %v2735, %v2734
      %v2750 = vpack.c.b16 %v2737, %v2736
      %v2751 = vpack.c.b16 %v2739, %v2738
      %v2752 = vpack.c.b16 %v2741, %v2740
      %v2753 = vpack.c.b16 %v2743, %v2742
      %v2754 = vpack.c.b16 %v2745, %v2744
      %v2755 = vpack.c.b16 %v2747, %v2746
      %2764 = vmatprep.subr.bf16.mxu0 0
      %2765 = vmatpush1.bf16.msra.mxu0 %v2748
      %2766 = vmatprep.subr.bf16.mxu0 0
      %2767 = vmatpush1.bf16.msra.mxu0 %v2749
      %2768 = vmatprep.subr.bf16.mxu0 0
      %2769 = vmatpush1.bf16.msra.mxu0 %v2750
      %2770 = vmatprep.subr.bf16.mxu0 0
      %2771 = vmatpush1.bf16.msra.mxu0 %v2751
      %2772 = vmatprep.subr.bf16.mxu0 0
      %2773 = vmatpush1.bf16.msra.mxu0 %v2752
      %2774 = vmatprep.subr.bf16.mxu0 0
      %2775 = vmatpush1.bf16.msra.mxu0 %v2753
      %2776 = vmatprep.subr.bf16.mxu0 0
      %2777 = vmatpush1.bf16.msra.mxu0 %v2754
      %2778 = vmatprep.subr.bf16.mxu0 0
      %2779 = vmatpush1.bf16.msra.mxu0 %v2755
      %2780 = vmatprep.subr.bf16.mxu0 0
      %2781 = vmatpush1.bf16.msra.mxu0 0
      %2782 = vmatprep.subr.bf16.mxu0 0
      %2783 = vmatpush1.bf16.msra.mxu0 0
      %2784 = vmatprep.subr.bf16.mxu0 0
      %2785 = vmatpush1.bf16.msra.mxu0 0
      %2786 = vmatprep.subr.bf16.mxu0 0
      %2787 = vmatpush1.bf16.msra.mxu0 0
      %2788 = vmatprep.subr.bf16.mxu0 0
      %2789 = vmatpush1.bf16.msra.mxu0 0
      %2790 = vmatprep.subr.bf16.mxu0 0
      %2791 = vmatpush1.bf16.msra.mxu0 0
      %2792 = vmatprep.subr.bf16.mxu0 0
      %2793 = vmatpush1.bf16.msra.mxu0 0
      %2794 = vmatprep.subr.bf16.mxu0 0
      %2795 = vmatpush1.bf16.msra.mxu0 0
      %2796 = vmatprep.mubr.bf16.mxu0 0
      %2797 = vmatmul.mubr.bf16.gmra.mrb[0].mxu0 %v2684
      %v2798 = vpop.f32.mrb[0].mxu0
      %v2799 = vadd.f32 0.0, %v2798
      %v2800 = vpop.f32.mrb[0].mxu0
      %v2801 = vpop.f32.mrb[0].mxu0
      %v2802 = vadd.f32 0.0, %v2801
      %v2803 = vpop.f32.mrb[0].mxu0
      %2804 = vmatprep.mubr.bf16.mxu0 0
      %2805 = vmatmul.mubr.bf16.gmra.mrb[0].mxu0 %v2685
      %v2806 = vpop.f32.mrb[0].mxu0
      %v2807 = vadd.f32 0.0, %v2806
      %v2808 = vpop.f32.mrb[0].mxu0
      %v2809 = vpop.f32.mrb[0].mxu0
      %v2810 = vadd.f32 0.0, %v2809
      %v2811 = vpop.f32.mrb[0].mxu0
      %2812 = vmatprep.mubr.bf16.mxu0 0
      %2813 = vmatmul.mubr.bf16.gmra.mrb[0].mxu0 %v2686
      %v2814 = vpop.f32.mrb[0].mxu0
      %v2815 = vadd.f32 0.0, %v2814
      %v2816 = vpop.f32.mrb[0].mxu0
      %v2817 = vpop.f32.mrb[0].mxu0
      %v2818 = vadd.f32 0.0, %v2817
      %v2819 = vpop.f32.mrb[0].mxu0
      %2820 = vmatprep.mubr.bf16.mxu0 0
      %2821 = vmatmul.mubr.bf16.gmra.mrb[0].mxu0 %v2687
      %v2822 = vpop.f32.mrb[0].mxu0
      %v2823 = vadd.f32 0.0, %v2822
      %v2824 = vpop.f32.mrb[0].mxu0
      %v2825 = vpop.f32.mrb[0].mxu0
      %v2826 = vadd.f32 0.0, %v2825
      %v2827 = vpop.f32.mrb[0].mxu0
      %2828 = vmatprep.mubr.bf16.mxu0 0
      %2829 = vmatmul.mubr.bf16.gmra.mrb[0].mxu0 %v2688
      %v2830 = vpop.f32.mrb[0].mxu0
      %v2831 = vadd.f32 0.0, %v2830
      %v2832 = vpop.f32.mrb[0].mxu0
      %v2833 = vpop.f32.mrb[0].mxu0
      %v2834 = vadd.f32 0.0, %v2833
      %v2835 = vpop.f32.mrb[0].mxu0
      %2836 = vmatprep.mubr.bf16.mxu0 0
      %2837 = vmatmul.mubr.bf16.gmra.mrb[0].mxu0 %v2689
      %v2838 = vpop.f32.mrb[0].mxu0
      %v2839 = vadd.f32 0.0, %v2838
      %v2840 = vpop.f32.mrb[0].mxu0
      %v2841 = vpop.f32.mrb[0].mxu0
      %v2842 = vadd.f32 0.0, %v2841
      %v2843 = vpop.f32.mrb[0].mxu0
      %2844 = vmatprep.mubr.bf16.mxu0 0
      %2845 = vmatmul.mubr.bf16.gmra.mrb[0].mxu0 %v2690
      %v2846 = vpop.f32.mrb[0].mxu0
      %v2847 = vadd.f32 0.0, %v2846
      %v2848 = vpop.f32.mrb[0].mxu0
      %v2849 = vpop.f32.mrb[0].mxu0
      %v2850 = vadd.f32 0.0, %v2849
      %v2851 = vpop.f32.mrb[0].mxu0
      %2852 = vmatprep.mubr.bf16.mxu0 0
      %2853 = vmatmul.mubr.bf16.gmra.mrb[0].mxu0 %v2691
      %v2854 = vpop.f32.mrb[0].mxu0
      %v2855 = vadd.f32 0.0, %v2854
      %v2856 = vpop.f32.mrb[0].mxu0
      %v2857 = vpop.f32.mrb[0].mxu0
      %v2858 = vadd.f32 0.0, %v2857
      %v2859 = vpop.f32.mrb[0].mxu0
      %2860 = vmatprep.mubr.bf16.mxu0 0
      %2861 = vmatmul.mubr.bf16.gmra.mrb[0].mxu0 %v2692
      %v2862 = vpop.f32.mrb[0].mxu0
      %v2863 = vadd.f32 0.0, %v2862
      %v2864 = vpop.f32.mrb[0].mxu0
      %v2865 = vpop.f32.mrb[0].mxu0
      %v2866 = vadd.f32 0.0, %v2865
      %v2867 = vpop.f32.mrb[0].mxu0
      %2868 = vmatprep.mubr.bf16.mxu0 0
      %2869 = vmatmul.mubr.bf16.gmra.mrb[0].mxu0 %v2693
      %v2870 = vpop.f32.mrb[0].mxu0
      %v2871 = vadd.f32 0.0, %v2870
      %v2872 = vpop.f32.mrb[0].mxu0
      %v2873 = vpop.f32.mrb[0].mxu0
      %v2874 = vadd.f32 0.0, %v2873
      %v2875 = vpop.f32.mrb[0].mxu0
      %2876 = vmatprep.mubr.bf16.mxu0 0
      %2877 = vmatmul.mubr.bf16.gmra.mrb[0].mxu0 %v2694
      %v2878 = vpop.f32.mrb[0].mxu0
      %v2879 = vadd.f32 0.0, %v2878
      %v2880 = vpop.f32.mrb[0].mxu0
      %v2881 = vpop.f32.mrb[0].mxu0
      %v2882 = vadd.f32 0.0, %v2881
      %v2883 = vpop.f32.mrb[0].mxu0
      %2884 = vmatprep.mubr.bf16.mxu0 0
      %2885 = vmatmul.mubr.bf16.gmra.mrb[0].mxu0 %v2695
      %v2886 = vpop.f32.mrb[0].mxu0
      %v2887 = vadd.f32 0.0, %v2886
      %v2888 = vpop.f32.mrb[0].mxu0
      %v2889 = vpop.f32.mrb[0].mxu0
      %v2890 = vadd.f32 0.0, %v2889
      %v2891 = vpop.f32.mrb[0].mxu0
      %2892 = vmatprep.mubr.bf16.mxu0 0
      %2893 = vmatmul.mubr.bf16.gmra.mrb[0].mxu0 %v2696
      %v2894 = vpop.f32.mrb[0].mxu0
      %v2895 = vadd.f32 0.0, %v2894
      %v2896 = vpop.f32.mrb[0].mxu0
      %v2897 = vpop.f32.mrb[0].mxu0
      %v2898 = vadd.f32 0.0, %v2897
      %v2899 = vpop.f32.mrb[0].mxu0
      %2900 = vmatprep.mubr.bf16.mxu0 0
      %2901 = vmatmul.mubr.bf16.gmra.mrb[0].mxu0 %v2697
      %v2902 = vpop.f32.mrb[0].mxu0
      %v2903 = vadd.f32 0.0, %v2902
      %v2904 = vpop.f32.mrb[0].mxu0
      %v2905 = vpop.f32.mrb[0].mxu0
      %v2906 = vadd.f32 0.0, %v2905
      %v2907 = vpop.f32.mrb[0].mxu0
      %2908 = vmatprep.mubr.bf16.mxu0 0
      %2909 = vmatmul.mubr.bf16.gmra.mrb[0].mxu0 %v2698
      %v2910 = vpop.f32.mrb[0].mxu0
      %v2911 = vadd.f32 0.0, %v2910
      %v2912 = vpop.f32.mrb[0].mxu0
      %v2913 = vpop.f32.mrb[0].mxu0
      %v2914 = vadd.f32 0.0, %v2913
      %v2915 = vpop.f32.mrb[0].mxu0
      %2916 = vmatprep.mubr.bf16.mxu0 0
      %2917 = vmatmul.mubr.bf16.gmra.mrb[0].mxu0 %v2699
      %v2918 = vpop.f32.mrb[0].mxu0
      %v2919 = vadd.f32 0.0, %v2918
      %v2920 = vpop.f32.mrb[0].mxu0
      %v2921 = vpop.f32.mrb[0].mxu0
      %v2922 = vadd.f32 0.0, %v2921
      %v2923 = vpop.f32.mrb[0].mxu0
      %2924 = vdwg.mxu0
      %v2925 = vadd.f32 %v2539, %v2799
      %v2926 = vadd.f32 %v2540, %v2802
      %v2927 = vadd.f32 %v2541, %v2807
      %v2928 = vadd.f32 %v2542, %v2810
      %v2929 = vadd.f32 %v2543, %v2815
      %v2930 = vadd.f32 %v2544, %v2818
      %v2931 = vadd.f32 %v2545, %v2823
      %v2932 = vadd.f32 %v2546, %v2826
      %v2933 = vadd.f32 %v2547, %v2831
      %v2934 = vadd.f32 %v2548, %v2834
      %v2935 = vadd.f32 %v2549, %v2839
      %v2936 = vadd.f32 %v2550, %v2842
      %v2937 = vadd.f32 %v2551, %v2847
      %v2938 = vadd.f32 %v2552, %v2850
      %v2939 = vadd.f32 %v2553, %v2855
      %v2940 = vadd.f32 %v2554, %v2858
      %v2941 = vadd.f32 %v2555, %v2863
      %v2942 = vadd.f32 %v2556, %v2866
      %v2943 = vadd.f32 %v2557, %v2871
      %v2944 = vadd.f32 %v2558, %v2874
      %v2945 = vadd.f32 %v2559, %v2879
      %v2946 = vadd.f32 %v2560, %v2882
      %v2947 = vadd.f32 %v2561, %v2887
      %v2948 = vadd.f32 %v2562, %v2890
      %v2949 = vadd.f32 %v2563, %v2895
      %v2950 = vadd.f32 %v2564, %v2898
      %v2951 = vadd.f32 %v2565, %v2903
      %v2952 = vadd.f32 %v2566, %v2906
      %v2953 = vadd.f32 %v2567, %v2911
      %v2954 = vadd.f32 %v2568, %v2914
      %v2955 = vadd.f32 %v2569, %v2919
      %v2956 = vadd.f32 %v2570, %v2922
      %v2957 = vld [vmem:[%s922] sm:$0xf]
      %v2958 = vld [vmem:[%s922 + $0x4] sm:$0xf]
      %v2959 = vld [vmem:[%s922 + $0x8] sm:$0x1]
      %v2960 = vld [vmem:[%s922 + $0xc] sm:$0xf]
      %v2961 = vld [vmem:[%s922 + $0x10] sm:$0xf]
      %v2962 = vld [vmem:[%s922 + $0x14] sm:$0x1]
      %v2963 = vld [vmem:[%s922 + $0x18] sm:$0xf]
      %v2964 = vld [vmem:[%s922 + $0x1c] sm:$0xf]
      %v2965 = vld [vmem:[%s922 + $0x20] sm:$0x1]
      %v2966 = vld [vmem:[%s922 + $0x24] sm:$0xf]
      %v2967 = vld [vmem:[%s922 + $0x28] sm:$0xf]
      %v2968 = vld [vmem:[%s922 + $0x2c] sm:$0x1]
      %v2969 = vld [vmem:[%s922 + $0x30] sm:$0xf]
      %v2970 = vld [vmem:[%s922 + $0x34] sm:$0xf]
      %v2971 = vld [vmem:[%s922 + $0x38] sm:$0x1]
      %v2972 = vld [vmem:[%s922 + $0x3c] sm:$0xf]
      %v2973 = vld [vmem:[%s922 + $0x40] sm:$0xf]
      %v2974 = vld [vmem:[%s922 + $0x44] sm:$0x1]
      %v2975 = vld [vmem:[%s922 + $0x48] sm:$0xf]
      %v2976 = vld [vmem:[%s922 + $0x4c] sm:$0xf]
      %v2977 = vld [vmem:[%s922 + $0x50] sm:$0x1]
      %v2978 = vld [vmem:[%s922 + $0x54] sm:$0xf]
      %v2979 = vld [vmem:[%s922 + $0x58] sm:$0xf]
      %v2980 = vld [vmem:[%s922 + $0x5c] sm:$0x1]
      %v2981 = vld [vmem:[%s922 + $0x60] sm:$0xf]
      %v2982 = vld [vmem:[%s922 + $0x64] sm:$0xf]
      %v2983 = vld [vmem:[%s922 + $0x68] sm:$0x1]
      %v2984 = vld [vmem:[%s922 + $0x6c] sm:$0xf]
      %v2985 = vld [vmem:[%s922 + $0x70] sm:$0xf]
      %v2986 = vld [vmem:[%s922 + $0x74] sm:$0x1]
      %v2987 = vld [vmem:[%s922 + $0x78] sm:$0xf]
      %v2988 = vld [vmem:[%s922 + $0x7c] sm:$0xf]
      %v2989 = vld [vmem:[%s922 + $0x80] sm:$0x1]
      %v2990 = vld [vmem:[%s922 + $0x84] sm:$0xf]
      %v2991 = vld [vmem:[%s922 + $0x88] sm:$0xf]
      %v2992 = vld [vmem:[%s922 + $0x8c] sm:$0x1]
      %v2993 = vld [vmem:[%s922 + $0x90] sm:$0xf]
      %v2994 = vld [vmem:[%s922 + $0x94] sm:$0xf]
      %v2995 = vld [vmem:[%s922 + $0x98] sm:$0x1]
      %v2996 = vld [vmem:[%s922 + $0x9c] sm:$0xf]
      %v2997 = vld [vmem:[%s922 + $0xa0] sm:$0xf]
      %v2998 = vld [vmem:[%s922 + $0xa4] sm:$0x1]
      %v2999 = vld [vmem:[%s922 + $0xa8] sm:$0xf]
      %v3000 = vld [vmem:[%s922 + $0xac] sm:$0xf]
      %v3001 = vld [vmem:[%s922 + $0xb0] sm:$0x1]
      %v3002 = vld [vmem:[%s922 + $0xb4] sm:$0xf]
      %v3003 = vld [vmem:[%s922 + $0xb8] sm:$0xf]
      %v3004 = vld [vmem:[%s922 + $0xbc] sm:$0x1]
      %v3006 = vshrl.u32 %v2957, 16
      %v3008 = vrot.slane %v3006, 4
      %v3009 = vshll.u32 %v2957, 16
      %v3011 = vrot.slane %v3009, 5
      %v3012 = vor.u32 %v3008, %v3011
      %v3013 = vrot.slane %v3012, 4
      %v3015 = vshll.u32 %v2958, 16
      %v3017 = vrot.slane %v3015, 5
      %v3018 = vsel %vm1106, %v3013, %v3017
      %v3019 = vshrl.u32 %v2958, 16
      %v3021 = vrot.slane %v3019, 4
      %v3022 = vor.u32 %v3021, %v3017
      %v3023 = vrot.slane %v3022, 4
      %v3025 = vshll.u32 %v2959, 16
      %v3027 = vrot.slane %v3025, 5
      %v3028 = vsel %vm1106, %v3023, %v3027
      %v3030 = vshrl.u32 %v2960, 16
      %v3032 = vrot.slane %v3030, 4
      %v3033 = vshll.u32 %v2960, 16
      %v3035 = vrot.slane %v3033, 5
      %v3036 = vor.u32 %v3032, %v3035
      %v3037 = vrot.slane %v3036, 4
      %v3039 = vshll.u32 %v2961, 16
      %v3041 = vrot.slane %v3039, 5
      %v3042 = vsel %vm1106, %v3037, %v3041
      %v3043 = vshrl.u32 %v2961, 16
      %v3045 = vrot.slane %v3043, 4
      %v3046 = vor.u32 %v3045, %v3041
      %v3047 = vrot.slane %v3046, 4
      %v3049 = vshll.u32 %v2962, 16
      %v3051 = vrot.slane %v3049, 5
      %v3052 = vsel %vm1106, %v3047, %v3051
      %v3054 = vshrl.u32 %v2963, 16
      %v3056 = vrot.slane %v3054, 4
      %v3057 = vshll.u32 %v2963, 16
      %v3059 = vrot.slane %v3057, 5
      %v3060 = vor.u32 %v3056, %v3059
      %v3061 = vrot.slane %v3060, 4
      %v3063 = vshll.u32 %v2964, 16
      %v3065 = vrot.slane %v3063, 5
      %v3066 = vsel %vm1106, %v3061, %v3065
      %v3067 = vshrl.u32 %v2964, 16
      %v3069 = vrot.slane %v3067, 4
      %v3070 = vor.u32 %v3069, %v3065
      %v3071 = vrot.slane %v3070, 4
      %v3073 = vshll.u32 %v2965, 16
      %v3075 = vrot.slane %v3073, 5
      %v3076 = vsel %vm1106, %v3071, %v3075
      %v3078 = vshrl.u32 %v2966, 16
      %v3080 = vrot.slane %v3078, 4
      %v3081 = vshll.u32 %v2966, 16
      %v3083 = vrot.slane %v3081, 5
      %v3084 = vor.u32 %v3080, %v3083
      %v3085 = vrot.slane %v3084, 4
      %v3087 = vshll.u32 %v2967, 16
      %v3089 = vrot.slane %v3087, 5
      %v3090 = vsel %vm1106, %v3085, %v3089
      %v3091 = vshrl.u32 %v2967, 16
      %v3093 = vrot.slane %v3091, 4
      %v3094 = vor.u32 %v3093, %v3089
      %v3095 = vrot.slane %v3094, 4
      %v3097 = vshll.u32 %v2968, 16
      %v3099 = vrot.slane %v3097, 5
      %v3100 = vsel %vm1106, %v3095, %v3099
      %v3102 = vshrl.u32 %v2969, 16
      %v3104 = vrot.slane %v3102, 4
      %v3105 = vshll.u32 %v2969, 16
      %v3107 = vrot.slane %v3105, 5
      %v3108 = vor.u32 %v3104, %v3107
      %v3109 = vrot.slane %v3108, 4
      %v3111 = vshll.u32 %v2970, 16
      %v3113 = vrot.slane %v3111, 5
      %v3114 = vsel %vm1106, %v3109, %v3113
      %v3115 = vshrl.u32 %v2970, 16
      %v3117 = vrot.slane %v3115, 4
      %v3118 = vor.u32 %v3117, %v3113
      %v3119 = vrot.slane %v3118, 4
      %v3121 = vshll.u32 %v2971, 16
      %v3123 = vrot.slane %v3121, 5
      %v3124 = vsel %vm1106, %v3119, %v3123
      %v3126 = vshrl.u32 %v2972, 16
      %v3128 = vrot.slane %v3126, 4
      %v3129 = vshll.u32 %v2972, 16
      %v3131 = vrot.slane %v3129, 5
      %v3132 = vor.u32 %v3128, %v3131
      %v3133 = vrot.slane %v3132, 4
      %v3135 = vshll.u32 %v2973, 16
      %v3137 = vrot.slane %v3135, 5
      %v3138 = vsel %vm1106, %v3133, %v3137
      %v3139 = vshrl.u32 %v2973, 16
      %v3141 = vrot.slane %v3139, 4
      %v3142 = vor.u32 %v3141, %v3137
      %v3143 = vrot.slane %v3142, 4
      %v3145 = vshll.u32 %v2974, 16
      %v3147 = vrot.slane %v3145, 5
      %v3148 = vsel %vm1106, %v3143, %v3147
      %v3150 = vshrl.u32 %v2975, 16
      %v3152 = vrot.slane %v3150, 4
      %v3153 = vshll.u32 %v2975, 16
      %v3155 = vrot.slane %v3153, 5
      %v3156 = vor.u32 %v3152, %v3155
      %v3157 = vrot.slane %v3156, 4
      %v3159 = vshll.u32 %v2976, 16
      %v3161 = vrot.slane %v3159, 5
      %v3162 = vsel %vm1106, %v3157, %v3161
      %v3163 = vshrl.u32 %v2976, 16
      %v3165 = vrot.slane %v3163, 4
      %v3166 = vor.u32 %v3165, %v3161
      %v3167 = vrot.slane %v3166, 4
      %v3169 = vshll.u32 %v2977, 16
      %v3171 = vrot.slane %v3169, 5
      %v3172 = vsel %vm1106, %v3167, %v3171
      %v3174 = vshrl.u32 %v2978, 16
      %v3176 = vrot.slane %v3174, 4
      %v3177 = vshll.u32 %v2978, 16
      %v3179 = vrot.slane %v3177, 5
      %v3180 = vor.u32 %v3176, %v3179
      %v3181 = vrot.slane %v3180, 4
      %v3183 = vshll.u32 %v2979, 16
      %v3185 = vrot.slane %v3183, 5
      %v3186 = vsel %vm1106, %v3181, %v3185
      %v3187 = vshrl.u32 %v2979, 16
      %v3189 = vrot.slane %v3187, 4
      %v3190 = vor.u32 %v3189, %v3185
      %v3191 = vrot.slane %v3190, 4
      %v3193 = vshll.u32 %v2980, 16
      %v3195 = vrot.slane %v3193, 5
      %v3196 = vsel %vm1106, %v3191, %v3195
      %v3198 = vshrl.u32 %v2981, 16
      %v3200 = vrot.slane %v3198, 4
      %v3201 = vshll.u32 %v2981, 16
      %v3203 = vrot.slane %v3201, 5
      %v3204 = vor.u32 %v3200, %v3203
      %v3205 = vrot.slane %v3204, 4
      %v3207 = vshll.u32 %v2982, 16
      %v3209 = vrot.slane %v3207, 5
      %v3210 = vsel %vm1106, %v3205, %v3209
      %v3211 = vshrl.u32 %v2982, 16
      %v3213 = vrot.slane %v3211, 4
      %v3214 = vor.u32 %v3213, %v3209
      %v3215 = vrot.slane %v3214, 4
      %v3217 = vshll.u32 %v2983, 16
      %v3219 = vrot.slane %v3217, 5
      %v3220 = vsel %vm1106, %v3215, %v3219
      %v3222 = vshrl.u32 %v2984, 16
      %v3224 = vrot.slane %v3222, 4
      %v3225 = vshll.u32 %v2984, 16
      %v3227 = vrot.slane %v3225, 5
      %v3228 = vor.u32 %v3224, %v3227
      %v3229 = vrot.slane %v3228, 4
      %v3231 = vshll.u32 %v2985, 16
      %v3233 = vrot.slane %v3231, 5
      %v3234 = vsel %vm1106, %v3229, %v3233
      %v3235 = vshrl.u32 %v2985, 16
      %v3237 = vrot.slane %v3235, 4
      %v3238 = vor.u32 %v3237, %v3233
      %v3239 = vrot.slane %v3238, 4
      %v3241 = vshll.u32 %v2986, 16
      %v3243 = vrot.slane %v3241, 5
      %v3244 = vsel %vm1106, %v3239, %v3243
      %v3246 = vshrl.u32 %v2987, 16
      %v3248 = vrot.slane %v3246, 4
      %v3249 = vshll.u32 %v2987, 16
      %v3251 = vrot.slane %v3249, 5
      %v3252 = vor.u32 %v3248, %v3251
      %v3253 = vrot.slane %v3252, 4
      %v3255 = vshll.u32 %v2988, 16
      %v3257 = vrot.slane %v3255, 5
      %v3258 = vsel %vm1106, %v3253, %v3257
      %v3259 = vshrl.u32 %v2988, 16
      %v3261 = vrot.slane %v3259, 4
      %v3262 = vor.u32 %v3261, %v3257
      %v3263 = vrot.slane %v3262, 4
      %v3265 = vshll.u32 %v2989, 16
      %v3267 = vrot.slane %v3265, 5
      %v3268 = vsel %vm1106, %v3263, %v3267
      %v3270 = vshrl.u32 %v2990, 16
      %v3272 = vrot.slane %v3270, 4
      %v3273 = vshll.u32 %v2990, 16
      %v3275 = vrot.slane %v3273, 5
      %v3276 = vor.u32 %v3272, %v3275
      %v3277 = vrot.slane %v3276, 4
      %v3279 = vshll.u32 %v2991, 16
      %v3281 = vrot.slane %v3279, 5
      %v3282 = vsel %vm1106, %v3277, %v3281
      %v3283 = vshrl.u32 %v2991, 16
      %v3285 = vrot.slane %v3283, 4
      %v3286 = vor.u32 %v3285, %v3281
      %v3287 = vrot.slane %v3286, 4
      %v3289 = vshll.u32 %v2992, 16
      %v3291 = vrot.slane %v3289, 5
      %v3292 = vsel %vm1106, %v3287, %v3291
      %v3294 = vshrl.u32 %v2993, 16
      %v3296 = vrot.slane %v3294, 4
      %v3297 = vshll.u32 %v2993, 16
      %v3299 = vrot.slane %v3297, 5
      %v3300 = vor.u32 %v3296, %v3299
      %v3301 = vrot.slane %v3300, 4
      %v3303 = vshll.u32 %v2994, 16
      %v3305 = vrot.slane %v3303, 5
      %v3306 = vsel %vm1106, %v3301, %v3305
      %v3307 = vshrl.u32 %v2994, 16
      %v3309 = vrot.slane %v3307, 4
      %v3310 = vor.u32 %v3309, %v3305
      %v3311 = vrot.slane %v3310, 4
      %v3313 = vshll.u32 %v2995, 16
      %v3315 = vrot.slane %v3313, 5
      %v3316 = vsel %vm1106, %v3311, %v3315
      %v3318 = vshrl.u32 %v2996, 16
      %v3320 = vrot.slane %v3318, 4
      %v3321 = vshll.u32 %v2996, 16
      %v3323 = vrot.slane %v3321, 5
      %v3324 = vor.u32 %v3320, %v3323
      %v3325 = vrot.slane %v3324, 4
      %v3327 = vshll.u32 %v2997, 16
      %v3329 = vrot.slane %v3327, 5
      %v3330 = vsel %vm1106, %v3325, %v3329
      %v3331 = vshrl.u32 %v2997, 16
      %v3333 = vrot.slane %v3331, 4
      %v3334 = vor.u32 %v3333, %v3329
      %v3335 = vrot.slane %v3334, 4
      %v3337 = vshll.u32 %v2998, 16
      %v3339 = vrot.slane %v3337, 5
      %v3340 = vsel %vm1106, %v3335, %v3339
      %v3342 = vshrl.u32 %v2999, 16
      %v3344 = vrot.slane %v3342, 4
      %v3345 = vshll.u32 %v2999, 16
      %v3347 = vrot.slane %v3345, 5
      %v3348 = vor.u32 %v3344, %v3347
      %v3349 = vrot.slane %v3348, 4
      %v3351 = vshll.u32 %v3000, 16
      %v3353 = vrot.slane %v3351, 5
      %v3354 = vsel %vm1106, %v3349, %v3353
      %v3355 = vshrl.u32 %v3000, 16
      %v3357 = vrot.slane %v3355, 4
      %v3358 = vor.u32 %v3357, %v3353
      %v3359 = vrot.slane %v3358, 4
      %v3361 = vshll.u32 %v3001, 16
      %v3363 = vrot.slane %v3361, 5
      %v3364 = vsel %vm1106, %v3359, %v3363
      %v3366 = vshrl.u32 %v3002, 16
      %v3368 = vrot.slane %v3366, 4
      %v3369 = vshll.u32 %v3002, 16
      %v3371 = vrot.slane %v3369, 5
      %v3372 = vor.u32 %v3368, %v3371
      %v3373 = vrot.slane %v3372, 4
      %v3375 = vshll.u32 %v3003, 16
      %v3377 = vrot.slane %v3375, 5
      %v3378 = vsel %vm1106, %v3373, %v3377
      %v3379 = vshrl.u32 %v3003, 16
      %v3381 = vrot.slane %v3379, 4
      %v3382 = vor.u32 %v3381, %v3377
      %v3383 = vrot.slane %v3382, 4
      %v3385 = vshll.u32 %v3004, 16
      %v3387 = vrot.slane %v3385, 5
      %v3388 = vsel %vm1106, %v3383, %v3387
      %s3389 = scalar_lea.vmem %s3, 256
      %v3390 = vld [vmem:[%s3389] sm:$0xf]
      %v3391 = vld [vmem:[%s3389 + $0x4] sm:$0xf]
      %v3392 = vld [vmem:[%s3389 + $0x8] sm:$0xf]
      %v3393 = vld [vmem:[%s3389 + $0xc] sm:$0xf]
      %v3394 = vld [vmem:[%s3389 + $0x10] sm:$0xf]
      %v3395 = vld [vmem:[%s3389 + $0x14] sm:$0xf]
      %v3396 = vld [vmem:[%s3389 + $0x18] sm:$0xf]
      %v3397 = vld [vmem:[%s3389 + $0x1c] sm:$0xf]
      %v3398 = vld [vmem:[%s3389 + $0x20] sm:$0xf]
      %v3399 = vld [vmem:[%s3389 + $0x24] sm:$0xf]
      %v3400 = vld [vmem:[%s3389 + $0x28] sm:$0xf]
      %v3401 = vld [vmem:[%s3389 + $0x2c] sm:$0xf]
      %v3402 = vld [vmem:[%s3389 + $0x30] sm:$0xf]
      %v3403 = vld [vmem:[%s3389 + $0x34] sm:$0xf]
      %v3404 = vld [vmem:[%s3389 + $0x38] sm:$0xf]
      %v3405 = vld [vmem:[%s3389 + $0x3c] sm:$0xf]
      %v3406 = vunpack.c.l.b16 %v3018
      %v3407 = vunpack.c.l.b16 %v3028
      %v3408 = vunpack.c.l.b16 %v3042
      %v3409 = vunpack.c.l.b16 %v3052
      %v3410 = vunpack.c.l.b16 %v3066
      %v3411 = vunpack.c.l.b16 %v3076
      %v3412 = vunpack.c.l.b16 %v3090
      %v3413 = vunpack.c.l.b16 %v3100
      %v3414 = vunpack.c.l.b16 %v3114
      %v3415 = vunpack.c.l.b16 %v3124
      %v3416 = vunpack.c.l.b16 %v3138
      %v3417 = vunpack.c.l.b16 %v3148
      %v3418 = vunpack.c.l.b16 %v3162
      %v3419 = vunpack.c.l.b16 %v3172
      %v3420 = vunpack.c.l.b16 %v3186
      %v3421 = vunpack.c.l.b16 %v3196
      %v3422 = vunpack.c.l.b16 %v3210
      %v3423 = vunpack.c.l.b16 %v3220
      %v3424 = vunpack.c.l.b16 %v3234
      %v3425 = vunpack.c.l.b16 %v3244
      %v3426 = vunpack.c.l.b16 %v3258
      %v3427 = vunpack.c.l.b16 %v3268
      %v3428 = vunpack.c.l.b16 %v3282
      %v3429 = vunpack.c.l.b16 %v3292
      %v3430 = vunpack.c.l.b16 %v3306
      %v3431 = vunpack.c.l.b16 %v3316
      %v3432 = vunpack.c.l.b16 %v3330
      %v3433 = vunpack.c.l.b16 %v3340
      %v3434 = vunpack.c.l.b16 %v3354
      %v3435 = vunpack.c.l.b16 %v3364
      %v3436 = vunpack.c.l.b16 %v3378
      %v3437 = vunpack.c.l.b16 %v3388
      %v3438 = vpack.c.b16 %v3407, %v3406
      %v3439 = vpack.c.b16 %v3409, %v3408
      %v3440 = vpack.c.b16 %v3411, %v3410
      %v3441 = vpack.c.b16 %v3413, %v3412
      %v3442 = vpack.c.b16 %v3415, %v3414
      %v3443 = vpack.c.b16 %v3417, %v3416
      %v3444 = vpack.c.b16 %v3419, %v3418
      %v3445 = vpack.c.b16 %v3421, %v3420
      %v3446 = vpack.c.b16 %v3423, %v3422
      %v3447 = vpack.c.b16 %v3425, %v3424
      %v3448 = vpack.c.b16 %v3427, %v3426
      %v3449 = vpack.c.b16 %v3429, %v3428
      %v3450 = vpack.c.b16 %v3431, %v3430
      %v3451 = vpack.c.b16 %v3433, %v3432
      %v3452 = vpack.c.b16 %v3435, %v3434
      %v3453 = vpack.c.b16 %v3437, %v3436
      %v3486 = vunpack.c.l.b16 %v3390
      %v3487 = vunpack.c.l.b16 %v3391
      %v3488 = vunpack.c.l.b16 %v3392
      %v3489 = vunpack.c.l.b16 %v3393
      %v3490 = vunpack.c.l.b16 %v3394
      %v3491 = vunpack.c.l.b16 %v3395
      %v3492 = vunpack.c.l.b16 %v3396
      %v3493 = vunpack.c.l.b16 %v3397
      %v3494 = vunpack.c.l.b16 %v3398
      %v3495 = vunpack.c.l.b16 %v3399
      %v3496 = vunpack.c.l.b16 %v3400
      %v3497 = vunpack.c.l.b16 %v3401
      %v3498 = vunpack.c.l.b16 %v3402
      %v3499 = vunpack.c.l.b16 %v3403
      %v3500 = vunpack.c.l.b16 %v3404
      %v3501 = vunpack.c.l.b16 %v3405
      %v3502 = vpack.c.b16 %v3487, %v3486
      %v3503 = vpack.c.b16 %v3489, %v3488
      %v3504 = vpack.c.b16 %v3491, %v3490
      %v3505 = vpack.c.b16 %v3493, %v3492
      %v3506 = vpack.c.b16 %v3495, %v3494
      %v3507 = vpack.c.b16 %v3497, %v3496
      %v3508 = vpack.c.b16 %v3499, %v3498
      %v3509 = vpack.c.b16 %v3501, %v3500
      %3518 = vmatprep.subr.bf16.mxu0 0
      %3519 = vmatpush1.bf16.msra.mxu0 %v3502
      %3520 = vmatprep.subr.bf16.mxu0 0
      %3521 = vmatpush1.bf16.msra.mxu0 %v3503
      %3522 = vmatprep.subr.bf16.mxu0 0
      %3523 = vmatpush1.bf16.msra.mxu0 %v3504
      %3524 = vmatprep.subr.bf16.mxu0 0
      %3525 = vmatpush1.bf16.msra.mxu0 %v3505
      %3526 = vmatprep.subr.bf16.mxu0 0
      %3527 = vmatpush1.bf16.msra.mxu0 %v3506
      %3528 = vmatprep.subr.bf16.mxu0 0
      %3529 = vmatpush1.bf16.msra.mxu0 %v3507
      %3530 = vmatprep.subr.bf16.mxu0 0
      %3531 = vmatpush1.bf16.msra.mxu0 %v3508
      %3532 = vmatprep.subr.bf16.mxu0 0
      %3533 = vmatpush1.bf16.msra.mxu0 %v3509
      %3534 = vmatprep.subr.bf16.mxu0 0
      %3535 = vmatpush1.bf16.msra.mxu0 0
      %3536 = vmatprep.subr.bf16.mxu0 0
      %3537 = vmatpush1.bf16.msra.mxu0 0
      %3538 = vmatprep.subr.bf16.mxu0 0
      %3539 = vmatpush1.bf16.msra.mxu0 0
      %3540 = vmatprep.subr.bf16.mxu0 0
      %3541 = vmatpush1.bf16.msra.mxu0 0
      %3542 = vmatprep.subr.bf16.mxu0 0
      %3543 = vmatpush1.bf16.msra.mxu0 0
      %3544 = vmatprep.subr.bf16.mxu0 0
      %3545 = vmatpush1.bf16.msra.mxu0 0
      %3546 = vmatprep.subr.bf16.mxu0 0
      %3547 = vmatpush1.bf16.msra.mxu0 0
      %3548 = vmatprep.subr.bf16.mxu0 0
      %3549 = vmatpush1.bf16.msra.mxu0 0
      %3550 = vmatprep.mubr.bf16.mxu0 0
      %3551 = vmatmul.mubr.bf16.gmra.mrb[0].mxu0 %v3438
      %v3552 = vpop.f32.mrb[0].mxu0
      %v3553 = vadd.f32 0.0, %v3552
      %v3554 = vpop.f32.mrb[0].mxu0
      %v3555 = vpop.f32.mrb[0].mxu0
      %v3556 = vadd.f32 0.0, %v3555
      %v3557 = vpop.f32.mrb[0].mxu0
      %3558 = vmatprep.mubr.bf16.mxu0 0
      %3559 = vmatmul.mubr.bf16.gmra.mrb[0].mxu0 %v3439
      %v3560 = vpop.f32.mrb[0].mxu0
      %v3561 = vadd.f32 0.0, %v3560
      %v3562 = vpop.f32.mrb[0].mxu0
      %v3563 = vpop.f32.mrb[0].mxu0
      %v3564 = vadd.f32 0.0, %v3563
      %v3565 = vpop.f32.mrb[0].mxu0
      %3566 = vmatprep.mubr.bf16.mxu0 0
      %3567 = vmatmul.mubr.bf16.gmra.mrb[0].mxu0 %v3440
      %v3568 = vpop.f32.mrb[0].mxu0
      %v3569 = vadd.f32 0.0, %v3568
      %v3570 = vpop.f32.mrb[0].mxu0
      %v3571 = vpop.f32.mrb[0].mxu0
      %v3572 = vadd.f32 0.0, %v3571
      %v3573 = vpop.f32.mrb[0].mxu0
      %3574 = vmatprep.mubr.bf16.mxu0 0
      %3575 = vmatmul.mubr.bf16.gmra.mrb[0].mxu0 %v3441
      %v3576 = vpop.f32.mrb[0].mxu0
      %v3577 = vadd.f32 0.0, %v3576
      %v3578 = vpop.f32.mrb[0].mxu0
      %v3579 = vpop.f32.mrb[0].mxu0
      %v3580 = vadd.f32 0.0, %v3579
      %v3581 = vpop.f32.mrb[0].mxu0
      %3582 = vmatprep.mubr.bf16.mxu0 0
      %3583 = vmatmul.mubr.bf16.gmra.mrb[0].mxu0 %v3442
      %v3584 = vpop.f32.mrb[0].mxu0
      %v3585 = vadd.f32 0.0, %v3584
      %v3586 = vpop.f32.mrb[0].mxu0
      %v3587 = vpop.f32.mrb[0].mxu0
      %v3588 = vadd.f32 0.0, %v3587
      %v3589 = vpop.f32.mrb[0].mxu0
      %3590 = vmatprep.mubr.bf16.mxu0 0
      %3591 = vmatmul.mubr.bf16.gmra.mrb[0].mxu0 %v3443
      %v3592 = vpop.f32.mrb[0].mxu0
      %v3593 = vadd.f32 0.0, %v3592
      %v3594 = vpop.f32.mrb[0].mxu0
      %v3595 = vpop.f32.mrb[0].mxu0
      %v3596 = vadd.f32 0.0, %v3595
      %v3597 = vpop.f32.mrb[0].mxu0
      %3598 = vmatprep.mubr.bf16.mxu0 0
      %3599 = vmatmul.mubr.bf16.gmra.mrb[0].mxu0 %v3444
      %v3600 = vpop.f32.mrb[0].mxu0
      %v3601 = vadd.f32 0.0, %v3600
      %v3602 = vpop.f32.mrb[0].mxu0
      %v3603 = vpop.f32.mrb[0].mxu0
      %v3604 = vadd.f32 0.0, %v3603
      %v3605 = vpop.f32.mrb[0].mxu0
      %3606 = vmatprep.mubr.bf16.mxu0 0
      %3607 = vmatmul.mubr.bf16.gmra.mrb[0].mxu0 %v3445
      %v3608 = vpop.f32.mrb[0].mxu0
      %v3609 = vadd.f32 0.0, %v3608
      %v3610 = vpop.f32.mrb[0].mxu0
      %v3611 = vpop.f32.mrb[0].mxu0
      %v3612 = vadd.f32 0.0, %v3611
      %v3613 = vpop.f32.mrb[0].mxu0
      %3614 = vmatprep.mubr.bf16.mxu0 0
      %3615 = vmatmul.mubr.bf16.gmra.mrb[0].mxu0 %v3446
      %v3616 = vpop.f32.mrb[0].mxu0
      %v3617 = vadd.f32 0.0, %v3616
      %v3618 = vpop.f32.mrb[0].mxu0
      %v3619 = vpop.f32.mrb[0].mxu0
      %v3620 = vadd.f32 0.0, %v3619
      %v3621 = vpop.f32.mrb[0].mxu0
      %3622 = vmatprep.mubr.bf16.mxu0 0
      %3623 = vmatmul.mubr.bf16.gmra.mrb[0].mxu0 %v3447
      %v3624 = vpop.f32.mrb[0].mxu0
      %v3625 = vadd.f32 0.0, %v3624
      %v3626 = vpop.f32.mrb[0].mxu0
      %v3627 = vpop.f32.mrb[0].mxu0
      %v3628 = vadd.f32 0.0, %v3627
      %v3629 = vpop.f32.mrb[0].mxu0
      %3630 = vmatprep.mubr.bf16.mxu0 0
      %3631 = vmatmul.mubr.bf16.gmra.mrb[0].mxu0 %v3448
      %v3632 = vpop.f32.mrb[0].mxu0
      %v3633 = vadd.f32 0.0, %v3632
      %v3634 = vpop.f32.mrb[0].mxu0
      %v3635 = vpop.f32.mrb[0].mxu0
      %v3636 = vadd.f32 0.0, %v3635
      %v3637 = vpop.f32.mrb[0].mxu0
      %3638 = vmatprep.mubr.bf16.mxu0 0
      %3639 = vmatmul.mubr.bf16.gmra.mrb[0].mxu0 %v3449
      %v3640 = vpop.f32.mrb[0].mxu0
      %v3641 = vadd.f32 0.0, %v3640
      %v3642 = vpop.f32.mrb[0].mxu0
      %v3643 = vpop.f32.mrb[0].mxu0
      %v3644 = vadd.f32 0.0, %v3643
      %v3645 = vpop.f32.mrb[0].mxu0
      %3646 = vmatprep.mubr.bf16.mxu0 0
      %3647 = vmatmul.mubr.bf16.gmra.mrb[0].mxu0 %v3450
      %v3648 = vpop.f32.mrb[0].mxu0
      %v3649 = vadd.f32 0.0, %v3648
      %v3650 = vpop.f32.mrb[0].mxu0
      %v3651 = vpop.f32.mrb[0].mxu0
      %v3652 = vadd.f32 0.0, %v3651
      %v3653 = vpop.f32.mrb[0].mxu0
      %3654 = vmatprep.mubr.bf16.mxu0 0
      %3655 = vmatmul.mubr.bf16.gmra.mrb[0].mxu0 %v3451
      %v3656 = vpop.f32.mrb[0].mxu0
      %v3657 = vadd.f32 0.0, %v3656
      %v3658 = vpop.f32.mrb[0].mxu0
      %v3659 = vpop.f32.mrb[0].mxu0
      %v3660 = vadd.f32 0.0, %v3659
      %v3661 = vpop.f32.mrb[0].mxu0
      %3662 = vmatprep.mubr.bf16.mxu0 0
      %3663 = vmatmul.mubr.bf16.gmra.mrb[0].mxu0 %v3452
      %v3664 = vpop.f32.mrb[0].mxu0
      %v3665 = vadd.f32 0.0, %v3664
      %v3666 = vpop.f32.mrb[0].mxu0
      %v3667 = vpop.f32.mrb[0].mxu0
      %v3668 = vadd.f32 0.0, %v3667
      %v3669 = vpop.f32.mrb[0].mxu0
      %3670 = vmatprep.mubr.bf16.mxu0 0
      %3671 = vmatmul.mubr.bf16.gmra.mrb[0].mxu0 %v3453
      %v3672 = vpop.f32.mrb[0].mxu0
      %v3673 = vadd.f32 0.0, %v3672
      %v3674 = vpop.f32.mrb[0].mxu0
      %v3675 = vpop.f32.mrb[0].mxu0
      %v3676 = vadd.f32 0.0, %v3675
      %v3677 = vpop.f32.mrb[0].mxu0
      %3678 = vdwg.mxu0
      %v3679 = vadd.f32 %v2925, %v3553
      %v3680 = vadd.f32 %v2926, %v3556
      %v3681 = vadd.f32 %v2927, %v3561
      %v3682 = vadd.f32 %v2928, %v3564
      %v3683 = vadd.f32 %v2929, %v3569
      %v3684 = vadd.f32 %v2930, %v3572
      %v3685 = vadd.f32 %v2931, %v3577
      %v3686 = vadd.f32 %v2932, %v3580
      %v3687 = vadd.f32 %v2933, %v3585
      %v3688 = vadd.f32 %v2934, %v3588
      %v3689 = vadd.f32 %v2935, %v3593
      %v3690 = vadd.f32 %v2936, %v3596
      %v3691 = vadd.f32 %v2937, %v3601
      %v3692 = vadd.f32 %v2938, %v3604
      %v3693 = vadd.f32 %v2939, %v3609
      %v3694 = vadd.f32 %v2940, %v3612
      %v3695 = vadd.f32 %v2941, %v3617
      %v3696 = vadd.f32 %v2942, %v3620
      %v3697 = vadd.f32 %v2943, %v3625
      %v3698 = vadd.f32 %v2944, %v3628
      %v3699 = vadd.f32 %v2945, %v3633
      %v3700 = vadd.f32 %v2946, %v3636
      %v3701 = vadd.f32 %v2947, %v3641
      %v3702 = vadd.f32 %v2948, %v3644
      %v3703 = vadd.f32 %v2949, %v3649
      %v3704 = vadd.f32 %v2950, %v3652
      %v3705 = vadd.f32 %v2951, %v3657
      %v3706 = vadd.f32 %v2952, %v3660
      %v3707 = vadd.f32 %v2953, %v3665
      %v3708 = vadd.f32 %v2954, %v3668
      %v3709 = vadd.f32 %v2955, %v3673
      %v3710 = vadd.f32 %v2956, %v3676
      %v3711 = vld [vmem:[%s922] sm:$0xe]
      %v3712 = vld [vmem:[%s922 + $0xc] sm:$0xe]
      %v3713 = vld [vmem:[%s922 + $0x18] sm:$0xe]
      %v3714 = vld [vmem:[%s922 + $0x24] sm:$0xe]
      %v3715 = vld [vmem:[%s922 + $0x30] sm:$0xe]
      %v3716 = vld [vmem:[%s922 + $0x3c] sm:$0xe]
      %v3717 = vld [vmem:[%s922 + $0x48] sm:$0xe]
      %v3718 = vld [vmem:[%s922 + $0x54] sm:$0xe]
      %v3719 = vld [vmem:[%s922 + $0x60] sm:$0xe]
      %v3720 = vld [vmem:[%s922 + $0x6c] sm:$0xe]
      %v3721 = vld [vmem:[%s922 + $0x78] sm:$0xe]
      %v3722 = vld [vmem:[%s922 + $0x84] sm:$0xe]
      %v3723 = vld [vmem:[%s922 + $0x90] sm:$0xe]
      %v3724 = vld [vmem:[%s922 + $0x9c] sm:$0xe]
      %v3725 = vld [vmem:[%s922 + $0xa8] sm:$0xe]
      %v3726 = vld [vmem:[%s922 + $0xb4] sm:$0xe]
      %v3775 = vrot.slane %v3711, 5
      %v3776 = vrot.slane %v3775, 4
      %v3777 = vrot.slane %v2958, 5
      %v3778 = vsel %vm2136, %v3776, %v3777
      %v3779 = vrot.slane %v3777, 4
      %v3780 = vrot.slane %v2959, 5
      %v3781 = vsel %vm2136, %v3779, %v3780
      %v3782 = vrot.slane %v3712, 5
      %v3783 = vrot.slane %v3782, 4
      %v3784 = vrot.slane %v2961, 5
      %v3785 = vsel %vm2136, %v3783, %v3784
      %v3786 = vrot.slane %v3784, 4
      %v3787 = vrot.slane %v2962, 5
      %v3788 = vsel %vm2136, %v3786, %v3787
      %v3789 = vrot.slane %v3713, 5
      %v3790 = vrot.slane %v3789, 4
      %v3791 = vrot.slane %v2964, 5
      %v3792 = vsel %vm2136, %v3790, %v3791
      %v3793 = vrot.slane %v3791, 4
      %v3794 = vrot.slane %v2965, 5
      %v3795 = vsel %vm2136, %v3793, %v3794
      %v3796 = vrot.slane %v3714, 5
      %v3797 = vrot.slane %v3796, 4
      %v3798 = vrot.slane %v2967, 5
      %v3799 = vsel %vm2136, %v3797, %v3798
      %v3800 = vrot.slane %v3798, 4
      %v3801 = vrot.slane %v2968, 5
      %v3802 = vsel %vm2136, %v3800, %v3801
      %v3803 = vrot.slane %v3715, 5
      %v3804 = vrot.slane %v3803, 4
      %v3805 = vrot.slane %v2970, 5
      %v3806 = vsel %vm2136, %v3804, %v3805
      %v3807 = vrot.slane %v3805, 4
      %v3808 = vrot.slane %v2971, 5
      %v3809 = vsel %vm2136, %v3807, %v3808
      %v3810 = vrot.slane %v3716, 5
      %v3811 = vrot.slane %v3810, 4
      %v3812 = vrot.slane %v2973, 5
      %v3813 = vsel %vm2136, %v3811, %v3812
      %v3814 = vrot.slane %v3812, 4
      %v3815 = vrot.slane %v2974, 5
      %v3816 = vsel %vm2136, %v3814, %v3815
      %v3817 = vrot.slane %v3717, 5
      %v3818 = vrot.slane %v3817, 4
      %v3819 = vrot.slane %v2976, 5
      %v3820 = vsel %vm2136, %v3818, %v3819
      %v3821 = vrot.slane %v3819, 4
      %v3822 = vrot.slane %v2977, 5
      %v3823 = vsel %vm2136, %v3821, %v3822
      %v3824 = vrot.slane %v3718, 5
      %v3825 = vrot.slane %v3824, 4
      %v3826 = vrot.slane %v2979, 5
      %v3827 = vsel %vm2136, %v3825, %v3826
      %v3828 = vrot.slane %v3826, 4
      %v3829 = vrot.slane %v2980, 5
      %v3830 = vsel %vm2136, %v3828, %v3829
      %v3831 = vrot.slane %v3719, 5
      %v3832 = vrot.slane %v3831, 4
      %v3833 = vrot.slane %v2982, 5
      %v3834 = vsel %vm2136, %v3832, %v3833
      %v3835 = vrot.slane %v3833, 4
      %v3836 = vrot.slane %v2983, 5
      %v3837 = vsel %vm2136, %v3835, %v3836
      %v3838 = vrot.slane %v3720, 5
      %v3839 = vrot.slane %v3838, 4
      %v3840 = vrot.slane %v2985, 5
      %v3841 = vsel %vm2136, %v3839, %v3840
      %v3842 = vrot.slane %v3840, 4
      %v3843 = vrot.slane %v2986, 5
      %v3844 = vsel %vm2136, %v3842, %v3843
      %v3845 = vrot.slane %v3721, 5
      %v3846 = vrot.slane %v3845, 4
      %v3847 = vrot.slane %v2988, 5
      %v3848 = vsel %vm2136, %v3846, %v3847
      %v3849 = vrot.slane %v3847, 4
      %v3850 = vrot.slane %v2989, 5
      %v3851 = vsel %vm2136, %v3849, %v3850
      %v3852 = vrot.slane %v3722, 5
      %v3853 = vrot.slane %v3852, 4
      %v3854 = vrot.slane %v2991, 5
      %v3855 = vsel %vm2136, %v3853, %v3854
      %v3856 = vrot.slane %v3854, 4
      %v3857 = vrot.slane %v2992, 5
      %v3858 = vsel %vm2136, %v3856, %v3857
      %v3859 = vrot.slane %v3723, 5
      %v3860 = vrot.slane %v3859, 4
      %v3861 = vrot.slane %v2994, 5
      %v3862 = vsel %vm2136, %v3860, %v3861
      %v3863 = vrot.slane %v3861, 4
      %v3864 = vrot.slane %v2995, 5
      %v3865 = vsel %vm2136, %v3863, %v3864
      %v3866 = vrot.slane %v3724, 5
      %v3867 = vrot.slane %v3866, 4
      %v3868 = vrot.slane %v2997, 5
      %v3869 = vsel %vm2136, %v3867, %v3868
      %v3870 = vrot.slane %v3868, 4
      %v3871 = vrot.slane %v2998, 5
      %v3872 = vsel %vm2136, %v3870, %v3871
      %v3873 = vrot.slane %v3725, 5
      %v3874 = vrot.slane %v3873, 4
      %v3875 = vrot.slane %v3000, 5
      %v3876 = vsel %vm2136, %v3874, %v3875
      %v3877 = vrot.slane %v3875, 4
      %v3878 = vrot.slane %v3001, 5
      %v3879 = vsel %vm2136, %v3877, %v3878
      %v3880 = vrot.slane %v3726, 5
      %v3881 = vrot.slane %v3880, 4
      %v3882 = vrot.slane %v3003, 5
      %v3883 = vsel %vm2136, %v3881, %v3882
      %v3884 = vrot.slane %v3882, 4
      %v3885 = vrot.slane %v3004, 5
      %v3886 = vsel %vm2136, %v3884, %v3885
      %s3887 = scalar_lea.vmem %s3, 320
      %v3888 = vld [vmem:[%s3887] sm:$0xf]
      %v3889 = vld [vmem:[%s3887 + $0x4] sm:$0xf]
      %v3890 = vld [vmem:[%s3887 + $0x8] sm:$0xf]
      %v3891 = vld [vmem:[%s3887 + $0xc] sm:$0xf]
      %v3892 = vld [vmem:[%s3887 + $0x10] sm:$0xf]
      %v3893 = vld [vmem:[%s3887 + $0x14] sm:$0xf]
      %v3894 = vld [vmem:[%s3887 + $0x18] sm:$0xf]
      %v3895 = vld [vmem:[%s3887 + $0x1c] sm:$0xf]
      %v3896 = vld [vmem:[%s3887 + $0x20] sm:$0xf]
      %v3897 = vld [vmem:[%s3887 + $0x24] sm:$0xf]
      %v3898 = vld [vmem:[%s3887 + $0x28] sm:$0xf]
      %v3899 = vld [vmem:[%s3887 + $0x2c] sm:$0xf]
      %v3900 = vld [vmem:[%s3887 + $0x30] sm:$0xf]
      %v3901 = vld [vmem:[%s3887 + $0x34] sm:$0xf]
      %v3902 = vld [vmem:[%s3887 + $0x38] sm:$0xf]
      %v3903 = vld [vmem:[%s3887 + $0x3c] sm:$0xf]
      %v3904 = vunpack.c.l.b16 %v3778
      %v3905 = vunpack.c.l.b16 %v3781
      %v3906 = vunpack.c.l.b16 %v3785
      %v3907 = vunpack.c.l.b16 %v3788
      %v3908 = vunpack.c.l.b16 %v3792
      %v3909 = vunpack.c.l.b16 %v3795
      %v3910 = vunpack.c.l.b16 %v3799
      %v3911 = vunpack.c.l.b16 %v3802
      %v3912 = vunpack.c.l.b16 %v3806
      %v3913 = vunpack.c.l.b16 %v3809
      %v3914 = vunpack.c.l.b16 %v3813
      %v3915 = vunpack.c.l.b16 %v3816
      %v3916 = vunpack.c.l.b16 %v3820
      %v3917 = vunpack.c.l.b16 %v3823
      %v3918 = vunpack.c.l.b16 %v3827
      %v3919 = vunpack.c.l.b16 %v3830
      %v3920 = vunpack.c.l.b16 %v3834
      %v3921 = vunpack.c.l.b16 %v3837
      %v3922 = vunpack.c.l.b16 %v3841
      %v3923 = vunpack.c.l.b16 %v3844
      %v3924 = vunpack.c.l.b16 %v3848
      %v3925 = vunpack.c.l.b16 %v3851
      %v3926 = vunpack.c.l.b16 %v3855
      %v3927 = vunpack.c.l.b16 %v3858
      %v3928 = vunpack.c.l.b16 %v3862
      %v3929 = vunpack.c.l.b16 %v3865
      %v3930 = vunpack.c.l.b16 %v3869
      %v3931 = vunpack.c.l.b16 %v3872
      %v3932 = vunpack.c.l.b16 %v3876
      %v3933 = vunpack.c.l.b16 %v3879
      %v3934 = vunpack.c.l.b16 %v3883
      %v3935 = vunpack.c.l.b16 %v3886
      %v3936 = vpack.c.b16 %v3905, %v3904
      %v3937 = vpack.c.b16 %v3907, %v3906
      %v3938 = vpack.c.b16 %v3909, %v3908
      %v3939 = vpack.c.b16 %v3911, %v3910
      %v3940 = vpack.c.b16 %v3913, %v3912
      %v3941 = vpack.c.b16 %v3915, %v3914
      %v3942 = vpack.c.b16 %v3917, %v3916
      %v3943 = vpack.c.b16 %v3919, %v3918
      %v3944 = vpack.c.b16 %v3921, %v3920
      %v3945 = vpack.c.b16 %v3923, %v3922
      %v3946 = vpack.c.b16 %v3925, %v3924
      %v3947 = vpack.c.b16 %v3927, %v3926
      %v3948 = vpack.c.b16 %v3929, %v3928
      %v3949 = vpack.c.b16 %v3931, %v3930
      %v3950 = vpack.c.b16 %v3933, %v3932
      %v3951 = vpack.c.b16 %v3935, %v3934
      %v3984 = vunpack.c.l.b16 %v3888
      %v3985 = vunpack.c.l.b16 %v3889
      %v3986 = vunpack.c.l.b16 %v3890
      %v3987 = vunpack.c.l.b16 %v3891
      %v3988 = vunpack.c.l.b16 %v3892
      %v3989 = vunpack.c.l.b16 %v3893
      %v3990 = vunpack.c.l.b16 %v3894
      %v3991 = vunpack.c.l.b16 %v3895
      %v3992 = vunpack.c.l.b16 %v3896
      %v3993 = vunpack.c.l.b16 %v3897
      %v3994 = vunpack.c.l.b16 %v3898
      %v3995 = vunpack.c.l.b16 %v3899
      %v3996 = vunpack.c.l.b16 %v3900
      %v3997 = vunpack.c.l.b16 %v3901
      %v3998 = vunpack.c.l.b16 %v3902
      %v3999 = vunpack.c.l.b16 %v3903
      %v4000 = vpack.c.b16 %v3985, %v3984
      %v4001 = vpack.c.b16 %v3987, %v3986
      %v4002 = vpack.c.b16 %v3989, %v3988
      %v4003 = vpack.c.b16 %v3991, %v3990
      %v4004 = vpack.c.b16 %v3993, %v3992
      %v4005 = vpack.c.b16 %v3995, %v3994
      %v4006 = vpack.c.b16 %v3997, %v3996
      %v4007 = vpack.c.b16 %v3999, %v3998
      %4016 = vmatprep.subr.bf16.mxu0 0
      %4017 = vmatpush1.bf16.msra.mxu0 %v4000
      %4018 = vmatprep.subr.bf16.mxu0 0
      %4019 = vmatpush1.bf16.msra.mxu0 %v4001
      %4020 = vmatprep.subr.bf16.mxu0 0
      %4021 = vmatpush1.bf16.msra.mxu0 %v4002
      %4022 = vmatprep.subr.bf16.mxu0 0
      %4023 = vmatpush1.bf16.msra.mxu0 %v4003
      %4024 = vmatprep.subr.bf16.mxu0 0
      %4025 = vmatpush1.bf16.msra.mxu0 %v4004
      %4026 = vmatprep.subr.bf16.mxu0 0
      %4027 = vmatpush1.bf16.msra.mxu0 %v4005
      %4028 = vmatprep.subr.bf16.mxu0 0
      %4029 = vmatpush1.bf16.msra.mxu0 %v4006
      %4030 = vmatprep.subr.bf16.mxu0 0
      %4031 = vmatpush1.bf16.msra.mxu0 %v4007
      %4032 = vmatprep.subr.bf16.mxu0 0
      %4033 = vmatpush1.bf16.msra.mxu0 0
      %4034 = vmatprep.subr.bf16.mxu0 0
      %4035 = vmatpush1.bf16.msra.mxu0 0
      %4036 = vmatprep.subr.bf16.mxu0 0
      %4037 = vmatpush1.bf16.msra.mxu0 0
      %4038 = vmatprep.subr.bf16.mxu0 0
      %4039 = vmatpush1.bf16.msra.mxu0 0
      %4040 = vmatprep.subr.bf16.mxu0 0
      %4041 = vmatpush1.bf16.msra.mxu0 0
      %4042 = vmatprep.subr.bf16.mxu0 0
      %4043 = vmatpush1.bf16.msra.mxu0 0
      %4044 = vmatprep.subr.bf16.mxu0 0
      %4045 = vmatpush1.bf16.msra.mxu0 0
      %4046 = vmatprep.subr.bf16.mxu0 0
      %4047 = vmatpush1.bf16.msra.mxu0 0
      %4048 = vmatprep.mubr.bf16.mxu0 0
      %4049 = vmatmul.mubr.bf16.gmra.mrb[0].mxu0 %v3936
      %v4050 = vpop.f32.mrb[0].mxu0
      %v4051 = vadd.f32 0.0, %v4050
      %v4052 = vpop.f32.mrb[0].mxu0
      %v4053 = vpop.f32.mrb[0].mxu0
      %v4054 = vadd.f32 0.0, %v4053
      %v4055 = vpop.f32.mrb[0].mxu0
      %4056 = vmatprep.mubr.bf16.mxu0 0
      %4057 = vmatmul.mubr.bf16.gmra.mrb[0].mxu0 %v3937
      %v4058 = vpop.f32.mrb[0].mxu0
      %v4059 = vadd.f32 0.0, %v4058
      %v4060 = vpop.f32.mrb[0].mxu0
      %v4061 = vpop.f32.mrb[0].mxu0
      %v4062 = vadd.f32 0.0, %v4061
      %v4063 = vpop.f32.mrb[0].mxu0
      %4064 = vmatprep.mubr.bf16.mxu0 0
      %4065 = vmatmul.mubr.bf16.gmra.mrb[0].mxu0 %v3938
      %v4066 = vpop.f32.mrb[0].mxu0
      %v4067 = vadd.f32 0.0, %v4066
      %v4068 = vpop.f32.mrb[0].mxu0
      %v4069 = vpop.f32.mrb[0].mxu0
      %v4070 = vadd.f32 0.0, %v4069
      %v4071 = vpop.f32.mrb[0].mxu0
      %4072 = vmatprep.mubr.bf16.mxu0 0
      %4073 = vmatmul.mubr.bf16.gmra.mrb[0].mxu0 %v3939
      %v4074 = vpop.f32.mrb[0].mxu0
      %v4075 = vadd.f32 0.0, %v4074
      %v4076 = vpop.f32.mrb[0].mxu0
      %v4077 = vpop.f32.mrb[0].mxu0
      %v4078 = vadd.f32 0.0, %v4077
      %v4079 = vpop.f32.mrb[0].mxu0
      %4080 = vmatprep.mubr.bf16.mxu0 0
      %4081 = vmatmul.mubr.bf16.gmra.mrb[0].mxu0 %v3940
      %v4082 = vpop.f32.mrb[0].mxu0
      %v4083 = vadd.f32 0.0, %v4082
      %v4084 = vpop.f32.mrb[0].mxu0
      %v4085 = vpop.f32.mrb[0].mxu0
      %v4086 = vadd.f32 0.0, %v4085
      %v4087 = vpop.f32.mrb[0].mxu0
      %4088 = vmatprep.mubr.bf16.mxu0 0
      %4089 = vmatmul.mubr.bf16.gmra.mrb[0].mxu0 %v3941
      %v4090 = vpop.f32.mrb[0].mxu0
      %v4091 = vadd.f32 0.0, %v4090
      %v4092 = vpop.f32.mrb[0].mxu0
      %v4093 = vpop.f32.mrb[0].mxu0
      %v4094 = vadd.f32 0.0, %v4093
      %v4095 = vpop.f32.mrb[0].mxu0
      %4096 = vmatprep.mubr.bf16.mxu0 0
      %4097 = vmatmul.mubr.bf16.gmra.mrb[0].mxu0 %v3942
      %v4098 = vpop.f32.mrb[0].mxu0
      %v4099 = vadd.f32 0.0, %v4098
      %v4100 = vpop.f32.mrb[0].mxu0
      %v4101 = vpop.f32.mrb[0].mxu0
      %v4102 = vadd.f32 0.0, %v4101
      %v4103 = vpop.f32.mrb[0].mxu0
      %4104 = vmatprep.mubr.bf16.mxu0 0
      %4105 = vmatmul.mubr.bf16.gmra.mrb[0].mxu0 %v3943
      %v4106 = vpop.f32.mrb[0].mxu0
      %v4107 = vadd.f32 0.0, %v4106
      %v4108 = vpop.f32.mrb[0].mxu0
      %v4109 = vpop.f32.mrb[0].mxu0
      %v4110 = vadd.f32 0.0, %v4109
      %v4111 = vpop.f32.mrb[0].mxu0
      %4112 = vmatprep.mubr.bf16.mxu0 0
      %4113 = vmatmul.mubr.bf16.gmra.mrb[0].mxu0 %v3944
      %v4114 = vpop.f32.mrb[0].mxu0
      %v4115 = vadd.f32 0.0, %v4114
      %v4116 = vpop.f32.mrb[0].mxu0
      %v4117 = vpop.f32.mrb[0].mxu0
      %v4118 = vadd.f32 0.0, %v4117
      %v4119 = vpop.f32.mrb[0].mxu0
      %4120 = vmatprep.mubr.bf16.mxu0 0
      %4121 = vmatmul.mubr.bf16.gmra.mrb[0].mxu0 %v3945
      %v4122 = vpop.f32.mrb[0].mxu0
      %v4123 = vadd.f32 0.0, %v4122
      %v4124 = vpop.f32.mrb[0].mxu0
      %v4125 = vpop.f32.mrb[0].mxu0
      %v4126 = vadd.f32 0.0, %v4125
      %v4127 = vpop.f32.mrb[0].mxu0
      %4128 = vmatprep.mubr.bf16.mxu0 0
      %4129 = vmatmul.mubr.bf16.gmra.mrb[0].mxu0 %v3946
      %v4130 = vpop.f32.mrb[0].mxu0
      %v4131 = vadd.f32 0.0, %v4130
      %v4132 = vpop.f32.mrb[0].mxu0
      %v4133 = vpop.f32.mrb[0].mxu0
      %v4134 = vadd.f32 0.0, %v4133
      %v4135 = vpop.f32.mrb[0].mxu0
      %4136 = vmatprep.mubr.bf16.mxu0 0
      %4137 = vmatmul.mubr.bf16.gmra.mrb[0].mxu0 %v3947
      %v4138 = vpop.f32.mrb[0].mxu0
      %v4139 = vadd.f32 0.0, %v4138
      %v4140 = vpop.f32.mrb[0].mxu0
      %v4141 = vpop.f32.mrb[0].mxu0
      %v4142 = vadd.f32 0.0, %v4141
      %v4143 = vpop.f32.mrb[0].mxu0
      %4144 = vmatprep.mubr.bf16.mxu0 0
      %4145 = vmatmul.mubr.bf16.gmra.mrb[0].mxu0 %v3948
      %v4146 = vpop.f32.mrb[0].mxu0
      %v4147 = vadd.f32 0.0, %v4146
      %v4148 = vpop.f32.mrb[0].mxu0
      %v4149 = vpop.f32.mrb[0].mxu0
      %v4150 = vadd.f32 0.0, %v4149
      %v4151 = vpop.f32.mrb[0].mxu0
      %4152 = vmatprep.mubr.bf16.mxu0 0
      %4153 = vmatmul.mubr.bf16.gmra.mrb[0].mxu0 %v3949
      %v4154 = vpop.f32.mrb[0].mxu0
      %v4155 = vadd.f32 0.0, %v4154
      %v4156 = vpop.f32.mrb[0].mxu0
      %v4157 = vpop.f32.mrb[0].mxu0
      %v4158 = vadd.f32 0.0, %v4157
      %v4159 = vpop.f32.mrb[0].mxu0
      %4160 = vmatprep.mubr.bf16.mxu0 0
      %4161 = vmatmul.mubr.bf16.gmra.mrb[0].mxu0 %v3950
      %v4162 = vpop.f32.mrb[0].mxu0
      %v4163 = vadd.f32 0.0, %v4162
      %v4164 = vpop.f32.mrb[0].mxu0
      %v4165 = vpop.f32.mrb[0].mxu0
      %v4166 = vadd.f32 0.0, %v4165
      %v4167 = vpop.f32.mrb[0].mxu0
      %4168 = vmatprep.mubr.bf16.mxu0 0
      %4169 = vmatmul.mubr.bf16.gmra.mrb[0].mxu0 %v3951
      %v4170 = vpop.f32.mrb[0].mxu0
      %v4171 = vadd.f32 0.0, %v4170
      %v4172 = vpop.f32.mrb[0].mxu0
      %v4173 = vpop.f32.mrb[0].mxu0
      %v4174 = vadd.f32 0.0, %v4173
      %v4175 = vpop.f32.mrb[0].mxu0
      %4176 = vdwg.mxu0
      %v4177 = vadd.f32 %v3679, %v4051
      %v4178 = vadd.f32 %v3680, %v4054
      %v4179 = vadd.f32 %v3681, %v4059
      %v4180 = vadd.f32 %v3682, %v4062
      %v4181 = vadd.f32 %v3683, %v4067
      %v4182 = vadd.f32 %v3684, %v4070
      %v4183 = vadd.f32 %v3685, %v4075
      %v4184 = vadd.f32 %v3686, %v4078
      %v4185 = vadd.f32 %v3687, %v4083
      %v4186 = vadd.f32 %v3688, %v4086
      %v4187 = vadd.f32 %v3689, %v4091
      %v4188 = vadd.f32 %v3690, %v4094
      %v4189 = vadd.f32 %v3691, %v4099
      %v4190 = vadd.f32 %v3692, %v4102
      %v4191 = vadd.f32 %v3693, %v4107
      %v4192 = vadd.f32 %v3694, %v4110
      %v4193 = vadd.f32 %v3695, %v4115
      %v4194 = vadd.f32 %v3696, %v4118
      %v4195 = vadd.f32 %v3697, %v4123
      %v4196 = vadd.f32 %v3698, %v4126
      %v4197 = vadd.f32 %v3699, %v4131
      %v4198 = vadd.f32 %v3700, %v4134
      %v4199 = vadd.f32 %v3701, %v4139
      %v4200 = vadd.f32 %v3702, %v4142
      %v4201 = vadd.f32 %v3703, %v4147
      %v4202 = vadd.f32 %v3704, %v4150
      %v4203 = vadd.f32 %v3705, %v4155
      %v4204 = vadd.f32 %v3706, %v4158
      %v4205 = vadd.f32 %v3707, %v4163
      %v4206 = vadd.f32 %v3708, %v4166
      %v4207 = vadd.f32 %v3709, %v4171
      %v4208 = vadd.f32 %v3710, %v4174
      %s4209 = scalar_lea.vmem [#allocation2], 24
      %v4210 = vld [vmem:[%s4209] sm:$0xf]
      %v4211 = vld [vmem:[%s4209 + $0x4] sm:$0xf]
      %v4212 = vld [vmem:[%s4209 + $0xc] sm:$0xf]
      %v4213 = vld [vmem:[%s4209 + $0x10] sm:$0xf]
      %v4214 = vld [vmem:[%s4209 + $0x18] sm:$0xf]
      %v4215 = vld [vmem:[%s4209 + $0x1c] sm:$0xf]
      %v4216 = vld [vmem:[%s4209 + $0x24] sm:$0xf]
      %v4217 = vld [vmem:[%s4209 + $0x28] sm:$0xf]
      %v4218 = vld [vmem:[%s4209 + $0x30] sm:$0xf]
      %v4219 = vld [vmem:[%s4209 + $0x34] sm:$0xf]
      %v4220 = vld [vmem:[%s4209 + $0x3c] sm:$0xf]
      %v4221 = vld [vmem:[%s4209 + $0x40] sm:$0xf]
      %v4222 = vld [vmem:[%s4209 + $0x48] sm:$0xf]
      %v4223 = vld [vmem:[%s4209 + $0x4c] sm:$0xf]
      %v4224 = vld [vmem:[%s4209 + $0x54] sm:$0xf]
      %v4225 = vld [vmem:[%s4209 + $0x58] sm:$0xf]
      %v4226 = vld [vmem:[%s4209 + $0x60] sm:$0xf]
      %v4227 = vld [vmem:[%s4209 + $0x64] sm:$0xf]
      %v4228 = vld [vmem:[%s4209 + $0x6c] sm:$0xf]
      %v4229 = vld [vmem:[%s4209 + $0x70] sm:$0xf]
      %v4230 = vld [vmem:[%s4209 + $0x78] sm:$0xf]
      %v4231 = vld [vmem:[%s4209 + $0x7c] sm:$0xf]
      %v4232 = vld [vmem:[%s4209 + $0x84] sm:$0xf]
      %v4233 = vld [vmem:[%s4209 + $0x88] sm:$0xf]
      %v4234 = vld [vmem:[%s4209 + $0x90] sm:$0xf]
      %v4235 = vld [vmem:[%s4209 + $0x94] sm:$0xf]
      %v4236 = vld [vmem:[%s4209 + $0x9c] sm:$0xf]
      %v4237 = vld [vmem:[%s4209 + $0xa0] sm:$0xf]
      %v4238 = vld [vmem:[%s4209 + $0xa8] sm:$0xf]
      %v4239 = vld [vmem:[%s4209 + $0xac] sm:$0xf]
      %v4240 = vld [vmem:[%s4209 + $0xb4] sm:$0xf]
      %v4241 = vld [vmem:[%s4209 + $0xb8] sm:$0xf]
      %s4242 = scalar_lea.vmem %s3, 384
      %v4243 = vld [vmem:[%s4242] sm:$0xf]
      %v4244 = vld [vmem:[%s4242 + $0x4] sm:$0xf]
      %v4245 = vld [vmem:[%s4242 + $0x8] sm:$0xf]
      %v4246 = vld [vmem:[%s4242 + $0xc] sm:$0xf]
      %v4247 = vld [vmem:[%s4242 + $0x10] sm:$0xf]
      %v4248 = vld [vmem:[%s4242 + $0x14] sm:$0xf]
      %v4249 = vld [vmem:[%s4242 + $0x18] sm:$0xf]
      %v4250 = vld [vmem:[%s4242 + $0x1c] sm:$0xf]
      %v4251 = vld [vmem:[%s4242 + $0x20] sm:$0xf]
      %v4252 = vld [vmem:[%s4242 + $0x24] sm:$0xf]
      %v4253 = vld [vmem:[%s4242 + $0x28] sm:$0xf]
      %v4254 = vld [vmem:[%s4242 + $0x2c] sm:$0xf]
      %v4255 = vld [vmem:[%s4242 + $0x30] sm:$0xf]
      %v4256 = vld [vmem:[%s4242 + $0x34] sm:$0xf]
      %v4257 = vld [vmem:[%s4242 + $0x38] sm:$0xf]
      %v4258 = vld [vmem:[%s4242 + $0x3c] sm:$0xf]
      %v4291 = vunpack.c.l.b16 %v4210
      %v4292 = vunpack.c.l.b16 %v4211
      %v4293 = vunpack.c.l.b16 %v4212
      %v4294 = vunpack.c.l.b16 %v4213
      %v4295 = vunpack.c.l.b16 %v4214
      %v4296 = vunpack.c.l.b16 %v4215
      %v4297 = vunpack.c.l.b16 %v4216
      %v4298 = vunpack.c.l.b16 %v4217
      %v4299 = vunpack.c.l.b16 %v4218
      %v4300 = vunpack.c.l.b16 %v4219
      %v4301 = vunpack.c.l.b16 %v4220
      %v4302 = vunpack.c.l.b16 %v4221
      %v4303 = vunpack.c.l.b16 %v4222
      %v4304 = vunpack.c.l.b16 %v4223
      %v4305 = vunpack.c.l.b16 %v4224
      %v4306 = vunpack.c.l.b16 %v4225
      %v4307 = vunpack.c.l.b16 %v4226
      %v4308 = vunpack.c.l.b16 %v4227
      %v4309 = vunpack.c.l.b16 %v4228
      %v4310 = vunpack.c.l.b16 %v4229
      %v4311 = vunpack.c.l.b16 %v4230
      %v4312 = vunpack.c.l.b16 %v4231
      %v4313 = vunpack.c.l.b16 %v4232
      %v4314 = vunpack.c.l.b16 %v4233
      %v4315 = vunpack.c.l.b16 %v4234
      %v4316 = vunpack.c.l.b16 %v4235
      %v4317 = vunpack.c.l.b16 %v4236
      %v4318 = vunpack.c.l.b16 %v4237
      %v4319 = vunpack.c.l.b16 %v4238
      %v4320 = vunpack.c.l.b16 %v4239
      %v4321 = vunpack.c.l.b16 %v4240
      %v4322 = vunpack.c.l.b16 %v4241
      %v4323 = vpack.c.b16 %v4292, %v4291
      %v4324 = vpack.c.b16 %v4294, %v4293
      %v4325 = vpack.c.b16 %v4296, %v4295
      %v4326 = vpack.c.b16 %v4298, %v4297
      %v4327 = vpack.c.b16 %v4300, %v4299
      %v4328 = vpack.c.b16 %v4302, %v4301
      %v4329 = vpack.c.b16 %v4304, %v4303
      %v4330 = vpack.c.b16 %v4306, %v4305
      %v4331 = vpack.c.b16 %v4308, %v4307
      %v4332 = vpack.c.b16 %v4310, %v4309
      %v4333 = vpack.c.b16 %v4312, %v4311
      %v4334 = vpack.c.b16 %v4314, %v4313
      %v4335 = vpack.c.b16 %v4316, %v4315
      %v4336 = vpack.c.b16 %v4318, %v4317
      %v4337 = vpack.c.b16 %v4320, %v4319
      %v4338 = vpack.c.b16 %v4322, %v4321
      %v4371 = vunpack.c.l.b16 %v4243
      %v4372 = vunpack.c.l.b16 %v4244
      %v4373 = vunpack.c.l.b16 %v4245
      %v4374 = vunpack.c.l.b16 %v4246
      %v4375 = vunpack.c.l.b16 %v4247
      %v4376 = vunpack.c.l.b16 %v4248
      %v4377 = vunpack.c.l.b16 %v4249
      %v4378 = vunpack.c.l.b16 %v4250
      %v4379 = vunpack.c.l.b16 %v4251
      %v4380 = vunpack.c.l.b16 %v4252
      %v4381 = vunpack.c.l.b16 %v4253
      %v4382 = vunpack.c.l.b16 %v4254
      %v4383 = vunpack.c.l.b16 %v4255
      %v4384 = vunpack.c.l.b16 %v4256
      %v4385 = vunpack.c.l.b16 %v4257
      %v4386 = vunpack.c.l.b16 %v4258
      %v4387 = vpack.c.b16 %v4372, %v4371
      %v4388 = vpack.c.b16 %v4374, %v4373
      %v4389 = vpack.c.b16 %v4376, %v4375
      %v4390 = vpack.c.b16 %v4378, %v4377
      %v4391 = vpack.c.b16 %v4380, %v4379
      %v4392 = vpack.c.b16 %v4382, %v4381
      %v4393 = vpack.c.b16 %v4384, %v4383
      %v4394 = vpack.c.b16 %v4386, %v4385
      %4403 = vmatprep.subr.bf16.mxu0 0
      %4404 = vmatpush1.bf16.msra.mxu0 %v4387
      %4405 = vmatprep.subr.bf16.mxu0 0
      %4406 = vmatpush1.bf16.msra.mxu0 %v4388
      %4407 = vmatprep.subr.bf16.mxu0 0
      %4408 = vmatpush1.bf16.msra.mxu0 %v4389
      %4409 = vmatprep.subr.bf16.mxu0 0
      %4410 = vmatpush1.bf16.msra.mxu0 %v4390
      %4411 = vmatprep.subr.bf16.mxu0 0
      %4412 = vmatpush1.bf16.msra.mxu0 %v4391
      %4413 = vmatprep.subr.bf16.mxu0 0
      %4414 = vmatpush1.bf16.msra.mxu0 %v4392
      %4415 = vmatprep.subr.bf16.mxu0 0
      %4416 = vmatpush1.bf16.msra.mxu0 %v4393
      %4417 = vmatprep.subr.bf16.mxu0 0
      %4418 = vmatpush1.bf16.msra.mxu0 %v4394
      %4419 = vmatprep.subr.bf16.mxu0 0
      %4420 = vmatpush1.bf16.msra.mxu0 0
      %4421 = vmatprep.subr.bf16.mxu0 0
      %4422 = vmatpush1.bf16.msra.mxu0 0
      %4423 = vmatprep.subr.bf16.mxu0 0
      %4424 = vmatpush1.bf16.msra.mxu0 0
      %4425 = vmatprep.subr.bf16.mxu0 0
      %4426 = vmatpush1.bf16.msra.mxu0 0
      %4427 = vmatprep.subr.bf16.mxu0 0
      %4428 = vmatpush1.bf16.msra.mxu0 0
      %4429 = vmatprep.subr.bf16.mxu0 0
      %4430 = vmatpush1.bf16.msra.mxu0 0
      %4431 = vmatprep.subr.bf16.mxu0 0
      %4432 = vmatpush1.bf16.msra.mxu0 0
      %4433 = vmatprep.subr.bf16.mxu0 0
      %4434 = vmatpush1.bf16.msra.mxu0 0
      %4435 = vmatprep.mubr.bf16.mxu0 0
      %4436 = vmatmul.mubr.bf16.gmra.mrb[0].mxu0 %v4323
      %v4437 = vpop.f32.mrb[0].mxu0
      %v4438 = vadd.f32 0.0, %v4437
      %v4439 = vpop.f32.mrb[0].mxu0
      %v4440 = vpop.f32.mrb[0].mxu0
      %v4441 = vadd.f32 0.0, %v4440
      %v4442 = vpop.f32.mrb[0].mxu0
      %4443 = vmatprep.mubr.bf16.mxu0 0
      %4444 = vmatmul.mubr.bf16.gmra.mrb[0].mxu0 %v4324
      %v4445 = vpop.f32.mrb[0].mxu0
      %v4446 = vadd.f32 0.0, %v4445
      %v4447 = vpop.f32.mrb[0].mxu0
      %v4448 = vpop.f32.mrb[0].mxu0
      %v4449 = vadd.f32 0.0, %v4448
      %v4450 = vpop.f32.mrb[0].mxu0
      %4451 = vmatprep.mubr.bf16.mxu0 0
      %4452 = vmatmul.mubr.bf16.gmra.mrb[0].mxu0 %v4325
      %v4453 = vpop.f32.mrb[0].mxu0
      %v4454 = vadd.f32 0.0, %v4453
      %v4455 = vpop.f32.mrb[0].mxu0
      %v4456 = vpop.f32.mrb[0].mxu0
      %v4457 = vadd.f32 0.0, %v4456
      %v4458 = vpop.f32.mrb[0].mxu0
      %4459 = vmatprep.mubr.bf16.mxu0 0
      %4460 = vmatmul.mubr.bf16.gmra.mrb[0].mxu0 %v4326
      %v4461 = vpop.f32.mrb[0].mxu0
      %v4462 = vadd.f32 0.0, %v4461
      %v4463 = vpop.f32.mrb[0].mxu0
      %v4464 = vpop.f32.mrb[0].mxu0
      %v4465 = vadd.f32 0.0, %v4464
      %v4466 = vpop.f32.mrb[0].mxu0
      %4467 = vmatprep.mubr.bf16.mxu0 0
      %4468 = vmatmul.mubr.bf16.gmra.mrb[0].mxu0 %v4327
      %v4469 = vpop.f32.mrb[0].mxu0
      %v4470 = vadd.f32 0.0, %v4469
      %v4471 = vpop.f32.mrb[0].mxu0
      %v4472 = vpop.f32.mrb[0].mxu0
      %v4473 = vadd.f32 0.0, %v4472
      %v4474 = vpop.f32.mrb[0].mxu0
      %4475 = vmatprep.mubr.bf16.mxu0 0
      %4476 = vmatmul.mubr.bf16.gmra.mrb[0].mxu0 %v4328
      %v4477 = vpop.f32.mrb[0].mxu0
      %v4478 = vadd.f32 0.0, %v4477
      %v4479 = vpop.f32.mrb[0].mxu0
      %v4480 = vpop.f32.mrb[0].mxu0
      %v4481 = vadd.f32 0.0, %v4480
      %v4482 = vpop.f32.mrb[0].mxu0
      %4483 = vmatprep.mubr.bf16.mxu0 0
      %4484 = vmatmul.mubr.bf16.gmra.mrb[0].mxu0 %v4329
      %v4485 = vpop.f32.mrb[0].mxu0
      %v4486 = vadd.f32 0.0, %v4485
      %v4487 = vpop.f32.mrb[0].mxu0
      %v4488 = vpop.f32.mrb[0].mxu0
      %v4489 = vadd.f32 0.0, %v4488
      %v4490 = vpop.f32.mrb[0].mxu0
      %4491 = vmatprep.mubr.bf16.mxu0 0
      %4492 = vmatmul.mubr.bf16.gmra.mrb[0].mxu0 %v4330
      %v4493 = vpop.f32.mrb[0].mxu0
      %v4494 = vadd.f32 0.0, %v4493
      %v4495 = vpop.f32.mrb[0].mxu0
      %v4496 = vpop.f32.mrb[0].mxu0
      %v4497 = vadd.f32 0.0, %v4496
      %v4498 = vpop.f32.mrb[0].mxu0
      %4499 = vmatprep.mubr.bf16.mxu0 0
      %4500 = vmatmul.mubr.bf16.gmra.mrb[0].mxu0 %v4331
      %v4501 = vpop.f32.mrb[0].mxu0
      %v4502 = vadd.f32 0.0, %v4501
      %v4503 = vpop.f32.mrb[0].mxu0
      %v4504 = vpop.f32.mrb[0].mxu0
      %v4505 = vadd.f32 0.0, %v4504
      %v4506 = vpop.f32.mrb[0].mxu0
      %4507 = vmatprep.mubr.bf16.mxu0 0
      %4508 = vmatmul.mubr.bf16.gmra.mrb[0].mxu0 %v4332
      %v4509 = vpop.f32.mrb[0].mxu0
      %v4510 = vadd.f32 0.0, %v4509
      %v4511 = vpop.f32.mrb[0].mxu0
      %v4512 = vpop.f32.mrb[0].mxu0
      %v4513 = vadd.f32 0.0, %v4512
      %v4514 = vpop.f32.mrb[0].mxu0
      %4515 = vmatprep.mubr.bf16.mxu0 0
      %4516 = vmatmul.mubr.bf16.gmra.mrb[0].mxu0 %v4333
      %v4517 = vpop.f32.mrb[0].mxu0
      %v4518 = vadd.f32 0.0, %v4517
      %v4519 = vpop.f32.mrb[0].mxu0
      %v4520 = vpop.f32.mrb[0].mxu0
      %v4521 = vadd.f32 0.0, %v4520
      %v4522 = vpop.f32.mrb[0].mxu0
      %4523 = vmatprep.mubr.bf16.mxu0 0
      %4524 = vmatmul.mubr.bf16.gmra.mrb[0].mxu0 %v4334
      %v4525 = vpop.f32.mrb[0].mxu0
      %v4526 = vadd.f32 0.0, %v4525
      %v4527 = vpop.f32.mrb[0].mxu0
      %v4528 = vpop.f32.mrb[0].mxu0
      %v4529 = vadd.f32 0.0, %v4528
      %v4530 = vpop.f32.mrb[0].mxu0
      %4531 = vmatprep.mubr.bf16.mxu0 0
      %4532 = vmatmul.mubr.bf16.gmra.mrb[0].mxu0 %v4335
      %v4533 = vpop.f32.mrb[0].mxu0
      %v4534 = vadd.f32 0.0, %v4533
      %v4535 = vpop.f32.mrb[0].mxu0
      %v4536 = vpop.f32.mrb[0].mxu0
      %v4537 = vadd.f32 0.0, %v4536
      %v4538 = vpop.f32.mrb[0].mxu0
      %4539 = vmatprep.mubr.bf16.mxu0 0
      %4540 = vmatmul.mubr.bf16.gmra.mrb[0].mxu0 %v4336
      %v4541 = vpop.f32.mrb[0].mxu0
      %v4542 = vadd.f32 0.0, %v4541
      %v4543 = vpop.f32.mrb[0].mxu0
      %v4544 = vpop.f32.mrb[0].mxu0
      %v4545 = vadd.f32 0.0, %v4544
      %v4546 = vpop.f32.mrb[0].mxu0
      %4547 = vmatprep.mubr.bf16.mxu0 0
      %4548 = vmatmul.mubr.bf16.gmra.mrb[0].mxu0 %v4337
      %v4549 = vpop.f32.mrb[0].mxu0
      %v4550 = vadd.f32 0.0, %v4549
      %v4551 = vpop.f32.mrb[0].mxu0
      %v4552 = vpop.f32.mrb[0].mxu0
      %v4553 = vadd.f32 0.0, %v4552
      %v4554 = vpop.f32.mrb[0].mxu0
      %4555 = vmatprep.mubr.bf16.mxu0 0
      %4556 = vmatmul.mubr.bf16.gmra.mrb[0].mxu0 %v4338
      %v4557 = vpop.f32.mrb[0].mxu0
      %v4558 = vadd.f32 0.0, %v4557
      %v4559 = vpop.f32.mrb[0].mxu0
      %v4560 = vpop.f32.mrb[0].mxu0
      %v4561 = vadd.f32 0.0, %v4560
      %v4562 = vpop.f32.mrb[0].mxu0
      %4563 = vdwg.mxu0
      %v4564 = vadd.f32 %v4177, %v4438
      %v4565 = vadd.f32 %v4178, %v4441
      %v4566 = vadd.f32 %v4179, %v4446
      %v4567 = vadd.f32 %v4180, %v4449
      %v4568 = vadd.f32 %v4181, %v4454
      %v4569 = vadd.f32 %v4182, %v4457
      %v4570 = vadd.f32 %v4183, %v4462
      %v4571 = vadd.f32 %v4184, %v4465
      %v4572 = vadd.f32 %v4185, %v4470
      %v4573 = vadd.f32 %v4186, %v4473
      %v4574 = vadd.f32 %v4187, %v4478
      %v4575 = vadd.f32 %v4188, %v4481
      %v4576 = vadd.f32 %v4189, %v4486
      %v4577 = vadd.f32 %v4190, %v4489
      %v4578 = vadd.f32 %v4191, %v4494
      %v4579 = vadd.f32 %v4192, %v4497
      %v4580 = vadd.f32 %v4193, %v4502
      %v4581 = vadd.f32 %v4194, %v4505
      %v4582 = vadd.f32 %v4195, %v4510
      %v4583 = vadd.f32 %v4196, %v4513
      %v4584 = vadd.f32 %v4197, %v4518
      %v4585 = vadd.f32 %v4198, %v4521
      %v4586 = vadd.f32 %v4199, %v4526
      %v4587 = vadd.f32 %v4200, %v4529
      %v4588 = vadd.f32 %v4201, %v4534
      %v4589 = vadd.f32 %v4202, %v4537
      %v4590 = vadd.f32 %v4203, %v4542
      %v4591 = vadd.f32 %v4204, %v4545
      %v4592 = vadd.f32 %v4205, %v4550
      %v4593 = vadd.f32 %v4206, %v4553
      %v4594 = vadd.f32 %v4207, %v4558
      %v4595 = vadd.f32 %v4208, %v4561
      %v4596 = vld [vmem:[%s4209] sm:$0xf]
      %v4597 = vld [vmem:[%s4209 + $0x4] sm:$0xf]
      %v4598 = vld [vmem:[%s4209 + $0x8] sm:$0x1]
      %v4599 = vld [vmem:[%s4209 + $0xc] sm:$0xf]
      %v4600 = vld [vmem:[%s4209 + $0x10] sm:$0xf]
      %v4601 = vld [vmem:[%s4209 + $0x14] sm:$0x1]
      %v4602 = vld [vmem:[%s4209 + $0x18] sm:$0xf]
      %v4603 = vld [vmem:[%s4209 + $0x1c] sm:$0xf]
      %v4604 = vld [vmem:[%s4209 + $0x20] sm:$0x1]
      %v4605 = vld [vmem:[%s4209 + $0x24] sm:$0xf]
      %v4606 = vld [vmem:[%s4209 + $0x28] sm:$0xf]
      %v4607 = vld [vmem:[%s4209 + $0x2c] sm:$0x1]
      %v4608 = vld [vmem:[%s4209 + $0x30] sm:$0xf]
      %v4609 = vld [vmem:[%s4209 + $0x34] sm:$0xf]
      %v4610 = vld [vmem:[%s4209 + $0x38] sm:$0x1]
      %v4611 = vld [vmem:[%s4209 + $0x3c] sm:$0xf]
      %v4612 = vld [vmem:[%s4209 + $0x40] sm:$0xf]
      %v4613 = vld [vmem:[%s4209 + $0x44] sm:$0x1]
      %v4614 = vld [vmem:[%s4209 + $0x48] sm:$0xf]
      %v4615 = vld [vmem:[%s4209 + $0x4c] sm:$0xf]
      %v4616 = vld [vmem:[%s4209 + $0x50] sm:$0x1]
      %v4617 = vld [vmem:[%s4209 + $0x54] sm:$0xf]
      %v4618 = vld [vmem:[%s4209 + $0x58] sm:$0xf]
      %v4619 = vld [vmem:[%s4209 + $0x5c] sm:$0x1]
      %v4620 = vld [vmem:[%s4209 + $0x60] sm:$0xf]
      %v4621 = vld [vmem:[%s4209 + $0x64] sm:$0xf]
      %v4622 = vld [vmem:[%s4209 + $0x68] sm:$0x1]
      %v4623 = vld [vmem:[%s4209 + $0x6c] sm:$0xf]
      %v4624 = vld [vmem:[%s4209 + $0x70] sm:$0xf]
      %v4625 = vld [vmem:[%s4209 + $0x74] sm:$0x1]
      %v4626 = vld [vmem:[%s4209 + $0x78] sm:$0xf]
      %v4627 = vld [vmem:[%s4209 + $0x7c] sm:$0xf]
      %v4628 = vld [vmem:[%s4209 + $0x80] sm:$0x1]
      %v4629 = vld [vmem:[%s4209 + $0x84] sm:$0xf]
      %v4630 = vld [vmem:[%s4209 + $0x88] sm:$0xf]
      %v4631 = vld [vmem:[%s4209 + $0x8c] sm:$0x1]
      %v4632 = vld [vmem:[%s4209 + $0x90] sm:$0xf]
      %v4633 = vld [vmem:[%s4209 + $0x94] sm:$0xf]
      %v4634 = vld [vmem:[%s4209 + $0x98] sm:$0x1]
      %v4635 = vld [vmem:[%s4209 + $0x9c] sm:$0xf]
      %v4636 = vld [vmem:[%s4209 + $0xa0] sm:$0xf]
      %v4637 = vld [vmem:[%s4209 + $0xa4] sm:$0x1]
      %v4638 = vld [vmem:[%s4209 + $0xa8] sm:$0xf]
      %v4639 = vld [vmem:[%s4209 + $0xac] sm:$0xf]
      %v4640 = vld [vmem:[%s4209 + $0xb0] sm:$0x1]
      %v4641 = vld [vmem:[%s4209 + $0xb4] sm:$0xf]
      %v4642 = vld [vmem:[%s4209 + $0xb8] sm:$0xf]
      %v4643 = vld [vmem:[%s4209 + $0xbc] sm:$0x1]
      %v4645 = vshrl.u32 %v4596, 16
      %v4647 = vrot.slane %v4645, 4
      %v4648 = vshll.u32 %v4596, 16
      %v4650 = vrot.slane %v4648, 5
      %v4651 = vor.u32 %v4647, %v4650
      %v4652 = vrot.slane %v4651, 4
      %v4654 = vshll.u32 %v4597, 16
      %v4656 = vrot.slane %v4654, 5
      %v4657 = vsel %vm1106, %v4652, %v4656
      %v4658 = vshrl.u32 %v4597, 16
      %v4660 = vrot.slane %v4658, 4
      %v4661 = vor.u32 %v4660, %v4656
      %v4662 = vrot.slane %v4661, 4
      %v4664 = vshll.u32 %v4598, 16
      %v4666 = vrot.slane %v4664, 5
      %v4667 = vsel %vm1106, %v4662, %v4666
      %v4669 = vshrl.u32 %v4599, 16
      %v4671 = vrot.slane %v4669, 4
      %v4672 = vshll.u32 %v4599, 16
      %v4674 = vrot.slane %v4672, 5
      %v4675 = vor.u32 %v4671, %v4674
      %v4676 = vrot.slane %v4675, 4
      %v4678 = vshll.u32 %v4600, 16
      %v4680 = vrot.slane %v4678, 5
      %v4681 = vsel %vm1106, %v4676, %v4680
      %v4682 = vshrl.u32 %v4600, 16
      %v4684 = vrot.slane %v4682, 4
      %v4685 = vor.u32 %v4684, %v4680
      %v4686 = vrot.slane %v4685, 4
      %v4688 = vshll.u32 %v4601, 16
      %v4690 = vrot.slane %v4688, 5
      %v4691 = vsel %vm1106, %v4686, %v4690
      %v4693 = vshrl.u32 %v4602, 16
      %v4695 = vrot.slane %v4693, 4
      %v4696 = vshll.u32 %v4602, 16
      %v4698 = vrot.slane %v4696, 5
      %v4699 = vor.u32 %v4695, %v4698
      %v4700 = vrot.slane %v4699, 4
      %v4702 = vshll.u32 %v4603, 16
      %v4704 = vrot.slane %v4702, 5
      %v4705 = vsel %vm1106, %v4700, %v4704
      %v4706 = vshrl.u32 %v4603, 16
      %v4708 = vrot.slane %v4706, 4
      %v4709 = vor.u32 %v4708, %v4704
      %v4710 = vrot.slane %v4709, 4
      %v4712 = vshll.u32 %v4604, 16
      %v4714 = vrot.slane %v4712, 5
      %v4715 = vsel %vm1106, %v4710, %v4714
      %v4717 = vshrl.u32 %v4605, 16
      %v4719 = vrot.slane %v4717, 4
      %v4720 = vshll.u32 %v4605, 16
      %v4722 = vrot.slane %v4720, 5
      %v4723 = vor.u32 %v4719, %v4722
      %v4724 = vrot.slane %v4723, 4
      %v4726 = vshll.u32 %v4606, 16
      %v4728 = vrot.slane %v4726, 5
      %v4729 = vsel %vm1106, %v4724, %v4728
      %v4730 = vshrl.u32 %v4606, 16
      %v4732 = vrot.slane %v4730, 4
      %v4733 = vor.u32 %v4732, %v4728
      %v4734 = vrot.slane %v4733, 4
      %v4736 = vshll.u32 %v4607, 16
      %v4738 = vrot.slane %v4736, 5
      %v4739 = vsel %vm1106, %v4734, %v4738
      %v4741 = vshrl.u32 %v4608, 16
      %v4743 = vrot.slane %v4741, 4
      %v4744 = vshll.u32 %v4608, 16
      %v4746 = vrot.slane %v4744, 5
      %v4747 = vor.u32 %v4743, %v4746
      %v4748 = vrot.slane %v4747, 4
      %v4750 = vshll.u32 %v4609, 16
      %v4752 = vrot.slane %v4750, 5
      %v4753 = vsel %vm1106, %v4748, %v4752
      %v4754 = vshrl.u32 %v4609, 16
      %v4756 = vrot.slane %v4754, 4
      %v4757 = vor.u32 %v4756, %v4752
      %v4758 = vrot.slane %v4757, 4
      %v4760 = vshll.u32 %v4610, 16
      %v4762 = vrot.slane %v4760, 5
      %v4763 = vsel %vm1106, %v4758, %v4762
      %v4765 = vshrl.u32 %v4611, 16
      %v4767 = vrot.slane %v4765, 4
      %v4768 = vshll.u32 %v4611, 16
      %v4770 = vrot.slane %v4768, 5
      %v4771 = vor.u32 %v4767, %v4770
      %v4772 = vrot.slane %v4771, 4
      %v4774 = vshll.u32 %v4612, 16
      %v4776 = vrot.slane %v4774, 5
      %v4777 = vsel %vm1106, %v4772, %v4776
      %v4778 = vshrl.u32 %v4612, 16
      %v4780 = vrot.slane %v4778, 4
      %v4781 = vor.u32 %v4780, %v4776
      %v4782 = vrot.slane %v4781, 4
      %v4784 = vshll.u32 %v4613, 16
      %v4786 = vrot.slane %v4784, 5
      %v4787 = vsel %vm1106, %v4782, %v4786
      %v4789 = vshrl.u32 %v4614, 16
      %v4791 = vrot.slane %v4789, 4
      %v4792 = vshll.u32 %v4614, 16
      %v4794 = vrot.slane %v4792, 5
      %v4795 = vor.u32 %v4791, %v4794
      %v4796 = vrot.slane %v4795, 4
      %v4798 = vshll.u32 %v4615, 16
      %v4800 = vrot.slane %v4798, 5
      %v4801 = vsel %vm1106, %v4796, %v4800
      %v4802 = vshrl.u32 %v4615, 16
      %v4804 = vrot.slane %v4802, 4
      %v4805 = vor.u32 %v4804, %v4800
      %v4806 = vrot.slane %v4805, 4
      %v4808 = vshll.u32 %v4616, 16
      %v4810 = vrot.slane %v4808, 5
      %v4811 = vsel %vm1106, %v4806, %v4810
      %v4813 = vshrl.u32 %v4617, 16
      %v4815 = vrot.slane %v4813, 4
      %v4816 = vshll.u32 %v4617, 16
      %v4818 = vrot.slane %v4816, 5
      %v4819 = vor.u32 %v4815, %v4818
      %v4820 = vrot.slane %v4819, 4
      %v4822 = vshll.u32 %v4618, 16
      %v4824 = vrot.slane %v4822, 5
      %v4825 = vsel %vm1106, %v4820, %v4824
      %v4826 = vshrl.u32 %v4618, 16
      %v4828 = vrot.slane %v4826, 4
      %v4829 = vor.u32 %v4828, %v4824
      %v4830 = vrot.slane %v4829, 4
      %v4832 = vshll.u32 %v4619, 16
      %v4834 = vrot.slane %v4832, 5
      %v4835 = vsel %vm1106, %v4830, %v4834
      %v4837 = vshrl.u32 %v4620, 16
      %v4839 = vrot.slane %v4837, 4
      %v4840 = vshll.u32 %v4620, 16
      %v4842 = vrot.slane %v4840, 5
      %v4843 = vor.u32 %v4839, %v4842
      %v4844 = vrot.slane %v4843, 4
      %v4846 = vshll.u32 %v4621, 16
      %v4848 = vrot.slane %v4846, 5
      %v4849 = vsel %vm1106, %v4844, %v4848
      %v4850 = vshrl.u32 %v4621, 16
      %v4852 = vrot.slane %v4850, 4
      %v4853 = vor.u32 %v4852, %v4848
      %v4854 = vrot.slane %v4853, 4
      %v4856 = vshll.u32 %v4622, 16
      %v4858 = vrot.slane %v4856, 5
      %v4859 = vsel %vm1106, %v4854, %v4858
      %v4861 = vshrl.u32 %v4623, 16
      %v4863 = vrot.slane %v4861, 4
      %v4864 = vshll.u32 %v4623, 16
      %v4866 = vrot.slane %v4864, 5
      %v4867 = vor.u32 %v4863, %v4866
      %v4868 = vrot.slane %v4867, 4
      %v4870 = vshll.u32 %v4624, 16
      %v4872 = vrot.slane %v4870, 5
      %v4873 = vsel %vm1106, %v4868, %v4872
      %v4874 = vshrl.u32 %v4624, 16
      %v4876 = vrot.slane %v4874, 4
      %v4877 = vor.u32 %v4876, %v4872
      %v4878 = vrot.slane %v4877, 4
      %v4880 = vshll.u32 %v4625, 16
      %v4882 = vrot.slane %v4880, 5
      %v4883 = vsel %vm1106, %v4878, %v4882
      %v4885 = vshrl.u32 %v4626, 16
      %v4887 = vrot.slane %v4885, 4
      %v4888 = vshll.u32 %v4626, 16
      %v4890 = vrot.slane %v4888, 5
      %v4891 = vor.u32 %v4887, %v4890
      %v4892 = vrot.slane %v4891, 4
      %v4894 = vshll.u32 %v4627, 16
      %v4896 = vrot.slane %v4894, 5
      %v4897 = vsel %vm1106, %v4892, %v4896
      %v4898 = vshrl.u32 %v4627, 16
      %v4900 = vrot.slane %v4898, 4
      %v4901 = vor.u32 %v4900, %v4896
      %v4902 = vrot.slane %v4901, 4
      %v4904 = vshll.u32 %v4628, 16
      %v4906 = vrot.slane %v4904, 5
      %v4907 = vsel %vm1106, %v4902, %v4906
      %v4909 = vshrl.u32 %v4629, 16
      %v4911 = vrot.slane %v4909, 4
      %v4912 = vshll.u32 %v4629, 16
      %v4914 = vrot.slane %v4912, 5
      %v4915 = vor.u32 %v4911, %v4914
      %v4916 = vrot.slane %v4915, 4
      %v4918 = vshll.u32 %v4630, 16
      %v4920 = vrot.slane %v4918, 5
      %v4921 = vsel %vm1106, %v4916, %v4920
      %v4922 = vshrl.u32 %v4630, 16
      %v4924 = vrot.slane %v4922, 4
      %v4925 = vor.u32 %v4924, %v4920
      %v4926 = vrot.slane %v4925, 4
      %v4928 = vshll.u32 %v4631, 16
      %v4930 = vrot.slane %v4928, 5
      %v4931 = vsel %vm1106, %v4926, %v4930
      %v4933 = vshrl.u32 %v4632, 16
      %v4935 = vrot.slane %v4933, 4
      %v4936 = vshll.u32 %v4632, 16
      %v4938 = vrot.slane %v4936, 5
      %v4939 = vor.u32 %v4935, %v4938
      %v4940 = vrot.slane %v4939, 4
      %v4942 = vshll.u32 %v4633, 16
      %v4944 = vrot.slane %v4942, 5
      %v4945 = vsel %vm1106, %v4940, %v4944
      %v4946 = vshrl.u32 %v4633, 16
      %v4948 = vrot.slane %v4946, 4
      %v4949 = vor.u32 %v4948, %v4944
      %v4950 = vrot.slane %v4949, 4
      %v4952 = vshll.u32 %v4634, 16
      %v4954 = vrot.slane %v4952, 5
      %v4955 = vsel %vm1106, %v4950, %v4954
      %v4957 = vshrl.u32 %v4635, 16
      %v4959 = vrot.slane %v4957, 4
      %v4960 = vshll.u32 %v4635, 16
      %v4962 = vrot.slane %v4960, 5
      %v4963 = vor.u32 %v4959, %v4962
      %v4964 = vrot.slane %v4963, 4
      %v4966 = vshll.u32 %v4636, 16
      %v4968 = vrot.slane %v4966, 5
      %v4969 = vsel %vm1106, %v4964, %v4968
      %v4970 = vshrl.u32 %v4636, 16
      %v4972 = vrot.slane %v4970, 4
      %v4973 = vor.u32 %v4972, %v4968
      %v4974 = vrot.slane %v4973, 4
      %v4976 = vshll.u32 %v4637, 16
      %v4978 = vrot.slane %v4976, 5
      %v4979 = vsel %vm1106, %v4974, %v4978
      %v4981 = vshrl.u32 %v4638, 16
      %v4983 = vrot.slane %v4981, 4
      %v4984 = vshll.u32 %v4638, 16
      %v4986 = vrot.slane %v4984, 5
      %v4987 = vor.u32 %v4983, %v4986
      %v4988 = vrot.slane %v4987, 4
      %v4990 = vshll.u32 %v4639, 16
      %v4992 = vrot.slane %v4990, 5
      %v4993 = vsel %vm1106, %v4988, %v4992
      %v4994 = vshrl.u32 %v4639, 16
      %v4996 = vrot.slane %v4994, 4
      %v4997 = vor.u32 %v4996, %v4992
      %v4998 = vrot.slane %v4997, 4
      %v5000 = vshll.u32 %v4640, 16
      %v5002 = vrot.slane %v5000, 5
      %v5003 = vsel %vm1106, %v4998, %v5002
      %v5005 = vshrl.u32 %v4641, 16
      %v5007 = vrot.slane %v5005, 4
      %v5008 = vshll.u32 %v4641, 16
      %v5010 = vrot.slane %v5008, 5
      %v5011 = vor.u32 %v5007, %v5010
      %v5012 = vrot.slane %v5011, 4
      %v5014 = vshll.u32 %v4642, 16
      %v5016 = vrot.slane %v5014, 5
      %v5017 = vsel %vm1106, %v5012, %v5016
      %v5018 = vshrl.u32 %v4642, 16
      %v5020 = vrot.slane %v5018, 4
      %v5021 = vor.u32 %v5020, %v5016
      %v5022 = vrot.slane %v5021, 4
      %v5024 = vshll.u32 %v4643, 16
      %v5026 = vrot.slane %v5024, 5
      %v5027 = vsel %vm1106, %v5022, %v5026
      %s5028 = scalar_lea.vmem %s3, 448
      %v5029 = vld [vmem:[%s5028] sm:$0xf]
      %v5030 = vld [vmem:[%s5028 + $0x4] sm:$0xf]
      %v5031 = vld [vmem:[%s5028 + $0x8] sm:$0xf]
      %v5032 = vld [vmem:[%s5028 + $0xc] sm:$0xf]
      %v5033 = vld [vmem:[%s5028 + $0x10] sm:$0xf]
      %v5034 = vld [vmem:[%s5028 + $0x14] sm:$0xf]
      %v5035 = vld [vmem:[%s5028 + $0x18] sm:$0xf]
      %v5036 = vld [vmem:[%s5028 + $0x1c] sm:$0xf]
      %v5037 = vld [vmem:[%s5028 + $0x20] sm:$0xf]
      %v5038 = vld [vmem:[%s5028 + $0x24] sm:$0xf]
      %v5039 = vld [vmem:[%s5028 + $0x28] sm:$0xf]
      %v5040 = vld [vmem:[%s5028 + $0x2c] sm:$0xf]
      %v5041 = vld [vmem:[%s5028 + $0x30] sm:$0xf]
      %v5042 = vld [vmem:[%s5028 + $0x34] sm:$0xf]
      %v5043 = vld [vmem:[%s5028 + $0x38] sm:$0xf]
      %v5044 = vld [vmem:[%s5028 + $0x3c] sm:$0xf]
      %v5045 = vunpack.c.l.b16 %v4657
      %v5046 = vunpack.c.l.b16 %v4667
      %v5047 = vunpack.c.l.b16 %v4681
      %v5048 = vunpack.c.l.b16 %v4691
      %v5049 = vunpack.c.l.b16 %v4705
      %v5050 = vunpack.c.l.b16 %v4715
      %v5051 = vunpack.c.l.b16 %v4729
      %v5052 = vunpack.c.l.b16 %v4739
      %v5053 = vunpack.c.l.b16 %v4753
      %v5054 = vunpack.c.l.b16 %v4763
      %v5055 = vunpack.c.l.b16 %v4777
      %v5056 = vunpack.c.l.b16 %v4787
      %v5057 = vunpack.c.l.b16 %v4801
      %v5058 = vunpack.c.l.b16 %v4811
      %v5059 = vunpack.c.l.b16 %v4825
      %v5060 = vunpack.c.l.b16 %v4835
      %v5061 = vunpack.c.l.b16 %v4849
      %v5062 = vunpack.c.l.b16 %v4859
      %v5063 = vunpack.c.l.b16 %v4873
      %v5064 = vunpack.c.l.b16 %v4883
      %v5065 = vunpack.c.l.b16 %v4897
      %v5066 = vunpack.c.l.b16 %v4907
      %v5067 = vunpack.c.l.b16 %v4921
      %v5068 = vunpack.c.l.b16 %v4931
      %v5069 = vunpack.c.l.b16 %v4945
      %v5070 = vunpack.c.l.b16 %v4955
      %v5071 = vunpack.c.l.b16 %v4969
      %v5072 = vunpack.c.l.b16 %v4979
      %v5073 = vunpack.c.l.b16 %v4993
      %v5074 = vunpack.c.l.b16 %v5003
      %v5075 = vunpack.c.l.b16 %v5017
      %v5076 = vunpack.c.l.b16 %v5027
      %v5077 = vpack.c.b16 %v5046, %v5045
      %v5078 = vpack.c.b16 %v5048, %v5047
      %v5079 = vpack.c.b16 %v5050, %v5049
      %v5080 = vpack.c.b16 %v5052, %v5051
      %v5081 = vpack.c.b16 %v5054, %v5053
      %v5082 = vpack.c.b16 %v5056, %v5055
      %v5083 = vpack.c.b16 %v5058, %v5057
      %v5084 = vpack.c.b16 %v5060, %v5059
      %v5085 = vpack.c.b16 %v5062, %v5061
      %v5086 = vpack.c.b16 %v5064, %v5063
      %v5087 = vpack.c.b16 %v5066, %v5065
      %v5088 = vpack.c.b16 %v5068, %v5067
      %v5089 = vpack.c.b16 %v5070, %v5069
      %v5090 = vpack.c.b16 %v5072, %v5071
      %v5091 = vpack.c.b16 %v5074, %v5073
      %v5092 = vpack.c.b16 %v5076, %v5075
      %v5125 = vunpack.c.l.b16 %v5029
      %v5126 = vunpack.c.l.b16 %v5030
      %v5127 = vunpack.c.l.b16 %v5031
      %v5128 = vunpack.c.l.b16 %v5032
      %v5129 = vunpack.c.l.b16 %v5033
      %v5130 = vunpack.c.l.b16 %v5034
      %v5131 = vunpack.c.l.b16 %v5035
      %v5132 = vunpack.c.l.b16 %v5036
      %v5133 = vunpack.c.l.b16 %v5037
      %v5134 = vunpack.c.l.b16 %v5038
      %v5135 = vunpack.c.l.b16 %v5039
      %v5136 = vunpack.c.l.b16 %v5040
      %v5137 = vunpack.c.l.b16 %v5041
      %v5138 = vunpack.c.l.b16 %v5042
      %v5139 = vunpack.c.l.b16 %v5043
      %v5140 = vunpack.c.l.b16 %v5044
      %v5141 = vpack.c.b16 %v5126, %v5125
      %v5142 = vpack.c.b16 %v5128, %v5127
      %v5143 = vpack.c.b16 %v5130, %v5129
      %v5144 = vpack.c.b16 %v5132, %v5131
      %v5145 = vpack.c.b16 %v5134, %v5133
      %v5146 = vpack.c.b16 %v5136, %v5135
      %v5147 = vpack.c.b16 %v5138, %v5137
      %v5148 = vpack.c.b16 %v5140, %v5139
      %5157 = vmatprep.subr.bf16.mxu0 0
      %5158 = vmatpush1.bf16.msra.mxu0 %v5141
      %5159 = vmatprep.subr.bf16.mxu0 0
      %5160 = vmatpush1.bf16.msra.mxu0 %v5142
      %5161 = vmatprep.subr.bf16.mxu0 0
      %5162 = vmatpush1.bf16.msra.mxu0 %v5143
      %5163 = vmatprep.subr.bf16.mxu0 0
      %5164 = vmatpush1.bf16.msra.mxu0 %v5144
      %5165 = vmatprep.subr.bf16.mxu0 0
      %5166 = vmatpush1.bf16.msra.mxu0 %v5145
      %5167 = vmatprep.subr.bf16.mxu0 0
      %5168 = vmatpush1.bf16.msra.mxu0 %v5146
      %5169 = vmatprep.subr.bf16.mxu0 0
      %5170 = vmatpush1.bf16.msra.mxu0 %v5147
      %5171 = vmatprep.subr.bf16.mxu0 0
      %5172 = vmatpush1.bf16.msra.mxu0 %v5148
      %5173 = vmatprep.subr.bf16.mxu0 0
      %5174 = vmatpush1.bf16.msra.mxu0 0
      %5175 = vmatprep.subr.bf16.mxu0 0
      %5176 = vmatpush1.bf16.msra.mxu0 0
      %5177 = vmatprep.subr.bf16.mxu0 0
      %5178 = vmatpush1.bf16.msra.mxu0 0
      %5179 = vmatprep.subr.bf16.mxu0 0
      %5180 = vmatpush1.bf16.msra.mxu0 0
      %5181 = vmatprep.subr.bf16.mxu0 0
      %5182 = vmatpush1.bf16.msra.mxu0 0
      %5183 = vmatprep.subr.bf16.mxu0 0
      %5184 = vmatpush1.bf16.msra.mxu0 0
      %5185 = vmatprep.subr.bf16.mxu0 0
      %5186 = vmatpush1.bf16.msra.mxu0 0
      %5187 = vmatprep.subr.bf16.mxu0 0
      %5188 = vmatpush1.bf16.msra.mxu0 0
      %5189 = vmatprep.mubr.bf16.mxu0 0
      %5190 = vmatmul.mubr.bf16.gmra.mrb[0].mxu0 %v5077
      %v5191 = vpop.f32.mrb[0].mxu0
      %v5192 = vadd.f32 0.0, %v5191
      %v5193 = vpop.f32.mrb[0].mxu0
      %v5194 = vpop.f32.mrb[0].mxu0
      %v5195 = vadd.f32 0.0, %v5194
      %v5196 = vpop.f32.mrb[0].mxu0
      %5197 = vmatprep.mubr.bf16.mxu0 0
      %5198 = vmatmul.mubr.bf16.gmra.mrb[0].mxu0 %v5078
      %v5199 = vpop.f32.mrb[0].mxu0
      %v5200 = vadd.f32 0.0, %v5199
      %v5201 = vpop.f32.mrb[0].mxu0
      %v5202 = vpop.f32.mrb[0].mxu0
      %v5203 = vadd.f32 0.0, %v5202
      %v5204 = vpop.f32.mrb[0].mxu0
      %5205 = vmatprep.mubr.bf16.mxu0 0
      %5206 = vmatmul.mubr.bf16.gmra.mrb[0].mxu0 %v5079
      %v5207 = vpop.f32.mrb[0].mxu0
      %v5208 = vadd.f32 0.0, %v5207
      %v5209 = vpop.f32.mrb[0].mxu0
      %v5210 = vpop.f32.mrb[0].mxu0
      %v5211 = vadd.f32 0.0, %v5210
      %v5212 = vpop.f32.mrb[0].mxu0
      %5213 = vmatprep.mubr.bf16.mxu0 0
      %5214 = vmatmul.mubr.bf16.gmra.mrb[0].mxu0 %v5080
      %v5215 = vpop.f32.mrb[0].mxu0
      %v5216 = vadd.f32 0.0, %v5215
      %v5217 = vpop.f32.mrb[0].mxu0
      %v5218 = vpop.f32.mrb[0].mxu0
      %v5219 = vadd.f32 0.0, %v5218
      %v5220 = vpop.f32.mrb[0].mxu0
      %5221 = vmatprep.mubr.bf16.mxu0 0
      %5222 = vmatmul.mubr.bf16.gmra.mrb[0].mxu0 %v5081
      %v5223 = vpop.f32.mrb[0].mxu0
      %v5224 = vadd.f32 0.0, %v5223
      %v5225 = vpop.f32.mrb[0].mxu0
      %v5226 = vpop.f32.mrb[0].mxu0
      %v5227 = vadd.f32 0.0, %v5226
      %v5228 = vpop.f32.mrb[0].mxu0
      %5229 = vmatprep.mubr.bf16.mxu0 0
      %5230 = vmatmul.mubr.bf16.gmra.mrb[0].mxu0 %v5082
      %v5231 = vpop.f32.mrb[0].mxu0
      %v5232 = vadd.f32 0.0, %v5231
      %v5233 = vpop.f32.mrb[0].mxu0
      %v5234 = vpop.f32.mrb[0].mxu0
      %v5235 = vadd.f32 0.0, %v5234
      %v5236 = vpop.f32.mrb[0].mxu0
      %5237 = vmatprep.mubr.bf16.mxu0 0
      %5238 = vmatmul.mubr.bf16.gmra.mrb[0].mxu0 %v5083
      %v5239 = vpop.f32.mrb[0].mxu0
      %v5240 = vadd.f32 0.0, %v5239
      %v5241 = vpop.f32.mrb[0].mxu0
      %v5242 = vpop.f32.mrb[0].mxu0
      %v5243 = vadd.f32 0.0, %v5242
      %v5244 = vpop.f32.mrb[0].mxu0
      %5245 = vmatprep.mubr.bf16.mxu0 0
      %5246 = vmatmul.mubr.bf16.gmra.mrb[0].mxu0 %v5084
      %v5247 = vpop.f32.mrb[0].mxu0
      %v5248 = vadd.f32 0.0, %v5247
      %v5249 = vpop.f32.mrb[0].mxu0
      %v5250 = vpop.f32.mrb[0].mxu0
      %v5251 = vadd.f32 0.0, %v5250
      %v5252 = vpop.f32.mrb[0].mxu0
      %5253 = vmatprep.mubr.bf16.mxu0 0
      %5254 = vmatmul.mubr.bf16.gmra.mrb[0].mxu0 %v5085
      %v5255 = vpop.f32.mrb[0].mxu0
      %v5256 = vadd.f32 0.0, %v5255
      %v5257 = vpop.f32.mrb[0].mxu0
      %v5258 = vpop.f32.mrb[0].mxu0
      %v5259 = vadd.f32 0.0, %v5258
      %v5260 = vpop.f32.mrb[0].mxu0
      %5261 = vmatprep.mubr.bf16.mxu0 0
      %5262 = vmatmul.mubr.bf16.gmra.mrb[0].mxu0 %v5086
      %v5263 = vpop.f32.mrb[0].mxu0
      %v5264 = vadd.f32 0.0, %v5263
      %v5265 = vpop.f32.mrb[0].mxu0
      %v5266 = vpop.f32.mrb[0].mxu0
      %v5267 = vadd.f32 0.0, %v5266
      %v5268 = vpop.f32.mrb[0].mxu0
      %5269 = vmatprep.mubr.bf16.mxu0 0
      %5270 = vmatmul.mubr.bf16.gmra.mrb[0].mxu0 %v5087
      %v5271 = vpop.f32.mrb[0].mxu0
      %v5272 = vadd.f32 0.0, %v5271
      %v5273 = vpop.f32.mrb[0].mxu0
      %v5274 = vpop.f32.mrb[0].mxu0
      %v5275 = vadd.f32 0.0, %v5274
      %v5276 = vpop.f32.mrb[0].mxu0
      %5277 = vmatprep.mubr.bf16.mxu0 0
      %5278 = vmatmul.mubr.bf16.gmra.mrb[0].mxu0 %v5088
      %v5279 = vpop.f32.mrb[0].mxu0
      %v5280 = vadd.f32 0.0, %v5279
      %v5281 = vpop.f32.mrb[0].mxu0
      %v5282 = vpop.f32.mrb[0].mxu0
      %v5283 = vadd.f32 0.0, %v5282
      %v5284 = vpop.f32.mrb[0].mxu0
      %5285 = vmatprep.mubr.bf16.mxu0 0
      %5286 = vmatmul.mubr.bf16.gmra.mrb[0].mxu0 %v5089
      %v5287 = vpop.f32.mrb[0].mxu0
      %v5288 = vadd.f32 0.0, %v5287
      %v5289 = vpop.f32.mrb[0].mxu0
      %v5290 = vpop.f32.mrb[0].mxu0
      %v5291 = vadd.f32 0.0, %v5290
      %v5292 = vpop.f32.mrb[0].mxu0
      %5293 = vmatprep.mubr.bf16.mxu0 0
      %5294 = vmatmul.mubr.bf16.gmra.mrb[0].mxu0 %v5090
      %v5295 = vpop.f32.mrb[0].mxu0
      %v5296 = vadd.f32 0.0, %v5295
      %v5297 = vpop.f32.mrb[0].mxu0
      %v5298 = vpop.f32.mrb[0].mxu0
      %v5299 = vadd.f32 0.0, %v5298
      %v5300 = vpop.f32.mrb[0].mxu0
      %5301 = vmatprep.mubr.bf16.mxu0 0
      %5302 = vmatmul.mubr.bf16.gmra.mrb[0].mxu0 %v5091
      %v5303 = vpop.f32.mrb[0].mxu0
      %v5304 = vadd.f32 0.0, %v5303
      %v5305 = vpop.f32.mrb[0].mxu0
      %v5306 = vpop.f32.mrb[0].mxu0
      %v5307 = vadd.f32 0.0, %v5306
      %v5308 = vpop.f32.mrb[0].mxu0
      %5309 = vmatprep.mubr.bf16.mxu0 0
      %5310 = vmatmul.mubr.bf16.gmra.mrb[0].mxu0 %v5092
      %v5311 = vpop.f32.mrb[0].mxu0
      %v5312 = vadd.f32 0.0, %v5311
      %v5313 = vpop.f32.mrb[0].mxu0
      %v5314 = vpop.f32.mrb[0].mxu0
      %v5315 = vadd.f32 0.0, %v5314
      %v5316 = vpop.f32.mrb[0].mxu0
      %5317 = vdwg.mxu0
      %v5318 = vadd.f32 %v4564, %v5192
      %v5319 = vadd.f32 %v4565, %v5195
      %v5320 = vadd.f32 %v4566, %v5200
      %v5321 = vadd.f32 %v4567, %v5203
      %v5322 = vadd.f32 %v4568, %v5208
      %v5323 = vadd.f32 %v4569, %v5211
      %v5324 = vadd.f32 %v4570, %v5216
      %v5325 = vadd.f32 %v4571, %v5219
      %v5326 = vadd.f32 %v4572, %v5224
      %v5327 = vadd.f32 %v4573, %v5227
      %v5328 = vadd.f32 %v4574, %v5232
      %v5329 = vadd.f32 %v4575, %v5235
      %v5330 = vadd.f32 %v4576, %v5240
      %v5331 = vadd.f32 %v4577, %v5243
      %v5332 = vadd.f32 %v4578, %v5248
      %v5333 = vadd.f32 %v4579, %v5251
      %v5334 = vadd.f32 %v4580, %v5256
      %v5335 = vadd.f32 %v4581, %v5259
      %v5336 = vadd.f32 %v4582, %v5264
      %v5337 = vadd.f32 %v4583, %v5267
      %v5338 = vadd.f32 %v4584, %v5272
      %v5339 = vadd.f32 %v4585, %v5275
      %v5340 = vadd.f32 %v4586, %v5280
      %v5341 = vadd.f32 %v4587, %v5283
      %v5342 = vadd.f32 %v4588, %v5288
      %v5343 = vadd.f32 %v4589, %v5291
      %v5344 = vadd.f32 %v4590, %v5296
      %v5345 = vadd.f32 %v4591, %v5299
      %v5346 = vadd.f32 %v4592, %v5304
      %v5347 = vadd.f32 %v4593, %v5307
      %v5348 = vadd.f32 %v4594, %v5312
      %v5349 = vadd.f32 %v4595, %v5315
      %v5350 = vld [vmem:[%s4209] sm:$0xe]
      %v5351 = vld [vmem:[%s4209 + $0xc] sm:$0xe]
      %v5352 = vld [vmem:[%s4209 + $0x18] sm:$0xe]
      %v5353 = vld [vmem:[%s4209 + $0x24] sm:$0xe]
      %v5354 = vld [vmem:[%s4209 + $0x30] sm:$0xe]
      %v5355 = vld [vmem:[%s4209 + $0x3c] sm:$0xe]
      %v5356 = vld [vmem:[%s4209 + $0x48] sm:$0xe]
      %v5357 = vld [vmem:[%s4209 + $0x54] sm:$0xe]
      %v5358 = vld [vmem:[%s4209 + $0x60] sm:$0xe]
      %v5359 = vld [vmem:[%s4209 + $0x6c] sm:$0xe]
      %v5360 = vld [vmem:[%s4209 + $0x78] sm:$0xe]
      %v5361 = vld [vmem:[%s4209 + $0x84] sm:$0xe]
      %v5362 = vld [vmem:[%s4209 + $0x90] sm:$0xe]
      %v5363 = vld [vmem:[%s4209 + $0x9c] sm:$0xe]
      %v5364 = vld [vmem:[%s4209 + $0xa8] sm:$0xe]
      %v5365 = vld [vmem:[%s4209 + $0xb4] sm:$0xe]
      %v5414 = vrot.slane %v5350, 5
      %v5415 = vrot.slane %v5414, 4
      %v5416 = vrot.slane %v4597, 5
      %v5417 = vsel %vm2136, %v5415, %v5416
      %v5418 = vrot.slane %v5416, 4
      %v5419 = vrot.slane %v4598, 5
      %v5420 = vsel %vm2136, %v5418, %v5419
      %v5421 = vrot.slane %v5351, 5
      %v5422 = vrot.slane %v5421, 4
      %v5423 = vrot.slane %v4600, 5
      %v5424 = vsel %vm2136, %v5422, %v5423
      %v5425 = vrot.slane %v5423, 4
      %v5426 = vrot.slane %v4601, 5
      %v5427 = vsel %vm2136, %v5425, %v5426
      %v5428 = vrot.slane %v5352, 5
      %v5429 = vrot.slane %v5428, 4
      %v5430 = vrot.slane %v4603, 5
      %v5431 = vsel %vm2136, %v5429, %v5430
      %v5432 = vrot.slane %v5430, 4
      %v5433 = vrot.slane %v4604, 5
      %v5434 = vsel %vm2136, %v5432, %v5433
      %v5435 = vrot.slane %v5353, 5
      %v5436 = vrot.slane %v5435, 4
      %v5437 = vrot.slane %v4606, 5
      %v5438 = vsel %vm2136, %v5436, %v5437
      %v5439 = vrot.slane %v5437, 4
      %v5440 = vrot.slane %v4607, 5
      %v5441 = vsel %vm2136, %v5439, %v5440
      %v5442 = vrot.slane %v5354, 5
      %v5443 = vrot.slane %v5442, 4
      %v5444 = vrot.slane %v4609, 5
      %v5445 = vsel %vm2136, %v5443, %v5444
      %v5446 = vrot.slane %v5444, 4
      %v5447 = vrot.slane %v4610, 5
      %v5448 = vsel %vm2136, %v5446, %v5447
      %v5449 = vrot.slane %v5355, 5
      %v5450 = vrot.slane %v5449, 4
      %v5451 = vrot.slane %v4612, 5
      %v5452 = vsel %vm2136, %v5450, %v5451
      %v5453 = vrot.slane %v5451, 4
      %v5454 = vrot.slane %v4613, 5
      %v5455 = vsel %vm2136, %v5453, %v5454
      %v5456 = vrot.slane %v5356, 5
      %v5457 = vrot.slane %v5456, 4
      %v5458 = vrot.slane %v4615, 5
      %v5459 = vsel %vm2136, %v5457, %v5458
      %v5460 = vrot.slane %v5458, 4
      %v5461 = vrot.slane %v4616, 5
      %v5462 = vsel %vm2136, %v5460, %v5461
      %v5463 = vrot.slane %v5357, 5
      %v5464 = vrot.slane %v5463, 4
      %v5465 = vrot.slane %v4618, 5
      %v5466 = vsel %vm2136, %v5464, %v5465
      %v5467 = vrot.slane %v5465, 4
      %v5468 = vrot.slane %v4619, 5
      %v5469 = vsel %vm2136, %v5467, %v5468
      %v5470 = vrot.slane %v5358, 5
      %v5471 = vrot.slane %v5470, 4
      %v5472 = vrot.slane %v4621, 5
      %v5473 = vsel %vm2136, %v5471, %v5472
      %v5474 = vrot.slane %v5472, 4
      %v5475 = vrot.slane %v4622, 5
      %v5476 = vsel %vm2136, %v5474, %v5475
      %v5477 = vrot.slane %v5359, 5
      %v5478 = vrot.slane %v5477, 4
      %v5479 = vrot.slane %v4624, 5
      %v5480 = vsel %vm2136, %v5478, %v5479
      %v5481 = vrot.slane %v5479, 4
      %v5482 = vrot.slane %v4625, 5
      %v5483 = vsel %vm2136, %v5481, %v5482
      %v5484 = vrot.slane %v5360, 5
      %v5485 = vrot.slane %v5484, 4
      %v5486 = vrot.slane %v4627, 5
      %v5487 = vsel %vm2136, %v5485, %v5486
      %v5488 = vrot.slane %v5486, 4
      %v5489 = vrot.slane %v4628, 5
      %v5490 = vsel %vm2136, %v5488, %v5489
      %v5491 = vrot.slane %v5361, 5
      %v5492 = vrot.slane %v5491, 4
      %v5493 = vrot.slane %v4630, 5
      %v5494 = vsel %vm2136, %v5492, %v5493
      %v5495 = vrot.slane %v5493, 4
      %v5496 = vrot.slane %v4631, 5
      %v5497 = vsel %vm2136, %v5495, %v5496
      %v5498 = vrot.slane %v5362, 5
      %v5499 = vrot.slane %v5498, 4
      %v5500 = vrot.slane %v4633, 5
      %v5501 = vsel %vm2136, %v5499, %v5500
      %v5502 = vrot.slane %v5500, 4
      %v5503 = vrot.slane %v4634, 5
      %v5504 = vsel %vm2136, %v5502, %v5503
      %v5505 = vrot.slane %v5363, 5
      %v5506 = vrot.slane %v5505, 4
      %v5507 = vrot.slane %v4636, 5
      %v5508 = vsel %vm2136, %v5506, %v5507
      %v5509 = vrot.slane %v5507, 4
      %v5510 = vrot.slane %v4637, 5
      %v5511 = vsel %vm2136, %v5509, %v5510
      %v5512 = vrot.slane %v5364, 5
      %v5513 = vrot.slane %v5512, 4
      %v5514 = vrot.slane %v4639, 5
      %v5515 = vsel %vm2136, %v5513, %v5514
      %v5516 = vrot.slane %v5514, 4
      %v5517 = vrot.slane %v4640, 5
      %v5518 = vsel %vm2136, %v5516, %v5517
      %v5519 = vrot.slane %v5365, 5
      %v5520 = vrot.slane %v5519, 4
      %v5521 = vrot.slane %v4642, 5
      %v5522 = vsel %vm2136, %v5520, %v5521
      %v5523 = vrot.slane %v5521, 4
      %v5524 = vrot.slane %v4643, 5
      %v5525 = vsel %vm2136, %v5523, %v5524
      %s5526 = scalar_lea.vmem %s3, 512
      %v5527 = vld [vmem:[%s5526] sm:$0xf]
      %v5528 = vld [vmem:[%s5526 + $0x4] sm:$0xf]
      %v5529 = vld [vmem:[%s5526 + $0x8] sm:$0xf]
      %v5530 = vld [vmem:[%s5526 + $0xc] sm:$0xf]
      %v5531 = vld [vmem:[%s5526 + $0x10] sm:$0xf]
      %v5532 = vld [vmem:[%s5526 + $0x14] sm:$0xf]
      %v5533 = vld [vmem:[%s5526 + $0x18] sm:$0xf]
      %v5534 = vld [vmem:[%s5526 + $0x1c] sm:$0xf]
      %v5535 = vld [vmem:[%s5526 + $0x20] sm:$0xf]
      %v5536 = vld [vmem:[%s5526 + $0x24] sm:$0xf]
      %v5537 = vld [vmem:[%s5526 + $0x28] sm:$0xf]
      %v5538 = vld [vmem:[%s5526 + $0x2c] sm:$0xf]
      %v5539 = vld [vmem:[%s5526 + $0x30] sm:$0xf]
      %v5540 = vld [vmem:[%s5526 + $0x34] sm:$0xf]
      %v5541 = vld [vmem:[%s5526 + $0x38] sm:$0xf]
      %v5542 = vld [vmem:[%s5526 + $0x3c] sm:$0xf]
      %v5543 = vunpack.c.l.b16 %v5417
      %v5544 = vunpack.c.l.b16 %v5420
      %v5545 = vunpack.c.l.b16 %v5424
      %v5546 = vunpack.c.l.b16 %v5427
      %v5547 = vunpack.c.l.b16 %v5431
      %v5548 = vunpack.c.l.b16 %v5434
      %v5549 = vunpack.c.l.b16 %v5438
      %v5550 = vunpack.c.l.b16 %v5441
      %v5551 = vunpack.c.l.b16 %v5445
      %v5552 = vunpack.c.l.b16 %v5448
      %v5553 = vunpack.c.l.b16 %v5452
      %v5554 = vunpack.c.l.b16 %v5455
      %v5555 = vunpack.c.l.b16 %v5459
      %v5556 = vunpack.c.l.b16 %v5462
      %v5557 = vunpack.c.l.b16 %v5466
      %v5558 = vunpack.c.l.b16 %v5469
      %v5559 = vunpack.c.l.b16 %v5473
      %v5560 = vunpack.c.l.b16 %v5476
      %v5561 = vunpack.c.l.b16 %v5480
      %v5562 = vunpack.c.l.b16 %v5483
      %v5563 = vunpack.c.l.b16 %v5487
      %v5564 = vunpack.c.l.b16 %v5490
      %v5565 = vunpack.c.l.b16 %v5494
      %v5566 = vunpack.c.l.b16 %v5497
      %v5567 = vunpack.c.l.b16 %v5501
      %v5568 = vunpack.c.l.b16 %v5504
      %v5569 = vunpack.c.l.b16 %v5508
      %v5570 = vunpack.c.l.b16 %v5511
      %v5571 = vunpack.c.l.b16 %v5515
      %v5572 = vunpack.c.l.b16 %v5518
      %v5573 = vunpack.c.l.b16 %v5522
      %v5574 = vunpack.c.l.b16 %v5525
      %v5575 = vpack.c.b16 %v5544, %v5543
      %v5576 = vpack.c.b16 %v5546, %v5545
      %v5577 = vpack.c.b16 %v5548, %v5547
      %v5578 = vpack.c.b16 %v5550, %v5549
      %v5579 = vpack.c.b16 %v5552, %v5551
      %v5580 = vpack.c.b16 %v5554, %v5553
      %v5581 = vpack.c.b16 %v5556, %v5555
      %v5582 = vpack.c.b16 %v5558, %v5557
      %v5583 = vpack.c.b16 %v5560, %v5559
      %v5584 = vpack.c.b16 %v5562, %v5561
      %v5585 = vpack.c.b16 %v5564, %v5563
      %v5586 = vpack.c.b16 %v5566, %v5565
      %v5587 = vpack.c.b16 %v5568, %v5567
      %v5588 = vpack.c.b16 %v5570, %v5569
      %v5589 = vpack.c.b16 %v5572, %v5571
      %v5590 = vpack.c.b16 %v5574, %v5573
      %v5623 = vunpack.c.l.b16 %v5527
      %v5624 = vunpack.c.l.b16 %v5528
      %v5625 = vunpack.c.l.b16 %v5529
      %v5626 = vunpack.c.l.b16 %v5530
      %v5627 = vunpack.c.l.b16 %v5531
      %v5628 = vunpack.c.l.b16 %v5532
      %v5629 = vunpack.c.l.b16 %v5533
      %v5630 = vunpack.c.l.b16 %v5534
      %v5631 = vunpack.c.l.b16 %v5535
      %v5632 = vunpack.c.l.b16 %v5536
      %v5633 = vunpack.c.l.b16 %v5537
      %v5634 = vunpack.c.l.b16 %v5538
      %v5635 = vunpack.c.l.b16 %v5539
      %v5636 = vunpack.c.l.b16 %v5540
      %v5637 = vunpack.c.l.b16 %v5541
      %v5638 = vunpack.c.l.b16 %v5542
      %v5639 = vpack.c.b16 %v5624, %v5623
      %v5640 = vpack.c.b16 %v5626, %v5625
      %v5641 = vpack.c.b16 %v5628, %v5627
      %v5642 = vpack.c.b16 %v5630, %v5629
      %v5643 = vpack.c.b16 %v5632, %v5631
      %v5644 = vpack.c.b16 %v5634, %v5633
      %v5645 = vpack.c.b16 %v5636, %v5635
      %v5646 = vpack.c.b16 %v5638, %v5637
      %5655 = vmatprep.subr.bf16.mxu0 0
      %5656 = vmatpush1.bf16.msra.mxu0 %v5639
      %5657 = vmatprep.subr.bf16.mxu0 0
      %5658 = vmatpush1.bf16.msra.mxu0 %v5640
      %5659 = vmatprep.subr.bf16.mxu0 0
      %5660 = vmatpush1.bf16.msra.mxu0 %v5641
      %5661 = vmatprep.subr.bf16.mxu0 0
      %5662 = vmatpush1.bf16.msra.mxu0 %v5642
      %5663 = vmatprep.subr.bf16.mxu0 0
      %5664 = vmatpush1.bf16.msra.mxu0 %v5643
      %5665 = vmatprep.subr.bf16.mxu0 0
      %5666 = vmatpush1.bf16.msra.mxu0 %v5644
      %5667 = vmatprep.subr.bf16.mxu0 0
      %5668 = vmatpush1.bf16.msra.mxu0 %v5645
      %5669 = vmatprep.subr.bf16.mxu0 0
      %5670 = vmatpush1.bf16.msra.mxu0 %v5646
      %5671 = vmatprep.subr.bf16.mxu0 0
      %5672 = vmatpush1.bf16.msra.mxu0 0
      %5673 = vmatprep.subr.bf16.mxu0 0
      %5674 = vmatpush1.bf16.msra.mxu0 0
      %5675 = vmatprep.subr.bf16.mxu0 0
      %5676 = vmatpush1.bf16.msra.mxu0 0
      %5677 = vmatprep.subr.bf16.mxu0 0
      %5678 = vmatpush1.bf16.msra.mxu0 0
      %5679 = vmatprep.subr.bf16.mxu0 0
      %5680 = vmatpush1.bf16.msra.mxu0 0
      %5681 = vmatprep.subr.bf16.mxu0 0
      %5682 = vmatpush1.bf16.msra.mxu0 0
      %5683 = vmatprep.subr.bf16.mxu0 0
      %5684 = vmatpush1.bf16.msra.mxu0 0
      %5685 = vmatprep.subr.bf16.mxu0 0
      %5686 = vmatpush1.bf16.msra.mxu0 0
      %5687 = vmatprep.mubr.bf16.mxu0 0
      %5688 = vmatmul.mubr.bf16.gmra.mrb[0].mxu0 %v5575
      %v5689 = vpop.f32.mrb[0].mxu0
      %v5690 = vadd.f32 0.0, %v5689
      %v5691 = vpop.f32.mrb[0].mxu0
      %v5692 = vpop.f32.mrb[0].mxu0
      %v5693 = vadd.f32 0.0, %v5692
      %v5694 = vpop.f32.mrb[0].mxu0
      %5695 = vmatprep.mubr.bf16.mxu0 0
      %5696 = vmatmul.mubr.bf16.gmra.mrb[0].mxu0 %v5576
      %v5697 = vpop.f32.mrb[0].mxu0
      %v5698 = vadd.f32 0.0, %v5697
      %v5699 = vpop.f32.mrb[0].mxu0
      %v5700 = vpop.f32.mrb[0].mxu0
      %v5701 = vadd.f32 0.0, %v5700
      %v5702 = vpop.f32.mrb[0].mxu0
      %5703 = vmatprep.mubr.bf16.mxu0 0
      %5704 = vmatmul.mubr.bf16.gmra.mrb[0].mxu0 %v5577
      %v5705 = vpop.f32.mrb[0].mxu0
      %v5706 = vadd.f32 0.0, %v5705
      %v5707 = vpop.f32.mrb[0].mxu0
      %v5708 = vpop.f32.mrb[0].mxu0
      %v5709 = vadd.f32 0.0, %v5708
      %v5710 = vpop.f32.mrb[0].mxu0
      %5711 = vmatprep.mubr.bf16.mxu0 0
      %5712 = vmatmul.mubr.bf16.gmra.mrb[0].mxu0 %v5578
      %v5713 = vpop.f32.mrb[0].mxu0
      %v5714 = vadd.f32 0.0, %v5713
      %v5715 = vpop.f32.mrb[0].mxu0
      %v5716 = vpop.f32.mrb[0].mxu0
      %v5717 = vadd.f32 0.0, %v5716
      %v5718 = vpop.f32.mrb[0].mxu0
      %5719 = vmatprep.mubr.bf16.mxu0 0
      %5720 = vmatmul.mubr.bf16.gmra.mrb[0].mxu0 %v5579
      %v5721 = vpop.f32.mrb[0].mxu0
      %v5722 = vadd.f32 0.0, %v5721
      %v5723 = vpop.f32.mrb[0].mxu0
      %v5724 = vpop.f32.mrb[0].mxu0
      %v5725 = vadd.f32 0.0, %v5724
      %v5726 = vpop.f32.mrb[0].mxu0
      %5727 = vmatprep.mubr.bf16.mxu0 0
      %5728 = vmatmul.mubr.bf16.gmra.mrb[0].mxu0 %v5580
      %v5729 = vpop.f32.mrb[0].mxu0
      %v5730 = vadd.f32 0.0, %v5729
      %v5731 = vpop.f32.mrb[0].mxu0
      %v5732 = vpop.f32.mrb[0].mxu0
      %v5733 = vadd.f32 0.0, %v5732
      %v5734 = vpop.f32.mrb[0].mxu0
      %5735 = vmatprep.mubr.bf16.mxu0 0
      %5736 = vmatmul.mubr.bf16.gmra.mrb[0].mxu0 %v5581
      %v5737 = vpop.f32.mrb[0].mxu0
      %v5738 = vadd.f32 0.0, %v5737
      %v5739 = vpop.f32.mrb[0].mxu0
      %v5740 = vpop.f32.mrb[0].mxu0
      %v5741 = vadd.f32 0.0, %v5740
      %v5742 = vpop.f32.mrb[0].mxu0
      %5743 = vmatprep.mubr.bf16.mxu0 0
      %5744 = vmatmul.mubr.bf16.gmra.mrb[0].mxu0 %v5582
      %v5745 = vpop.f32.mrb[0].mxu0
      %v5746 = vadd.f32 0.0, %v5745
      %v5747 = vpop.f32.mrb[0].mxu0
      %v5748 = vpop.f32.mrb[0].mxu0
      %v5749 = vadd.f32 0.0, %v5748
      %v5750 = vpop.f32.mrb[0].mxu0
      %5751 = vmatprep.mubr.bf16.mxu0 0
      %5752 = vmatmul.mubr.bf16.gmra.mrb[0].mxu0 %v5583
      %v5753 = vpop.f32.mrb[0].mxu0
      %v5754 = vadd.f32 0.0, %v5753
      %v5755 = vpop.f32.mrb[0].mxu0
      %v5756 = vpop.f32.mrb[0].mxu0
      %v5757 = vadd.f32 0.0, %v5756
      %v5758 = vpop.f32.mrb[0].mxu0
      %5759 = vmatprep.mubr.bf16.mxu0 0
      %5760 = vmatmul.mubr.bf16.gmra.mrb[0].mxu0 %v5584
      %v5761 = vpop.f32.mrb[0].mxu0
      %v5762 = vadd.f32 0.0, %v5761
      %v5763 = vpop.f32.mrb[0].mxu0
      %v5764 = vpop.f32.mrb[0].mxu0
      %v5765 = vadd.f32 0.0, %v5764
      %v5766 = vpop.f32.mrb[0].mxu0
      %5767 = vmatprep.mubr.bf16.mxu0 0
      %5768 = vmatmul.mubr.bf16.gmra.mrb[0].mxu0 %v5585
      %v5769 = vpop.f32.mrb[0].mxu0
      %v5770 = vadd.f32 0.0, %v5769
      %v5771 = vpop.f32.mrb[0].mxu0
      %v5772 = vpop.f32.mrb[0].mxu0
      %v5773 = vadd.f32 0.0, %v5772
      %v5774 = vpop.f32.mrb[0].mxu0
      %5775 = vmatprep.mubr.bf16.mxu0 0
      %5776 = vmatmul.mubr.bf16.gmra.mrb[0].mxu0 %v5586
      %v5777 = vpop.f32.mrb[0].mxu0
      %v5778 = vadd.f32 0.0, %v5777
      %v5779 = vpop.f32.mrb[0].mxu0
      %v5780 = vpop.f32.mrb[0].mxu0
      %v5781 = vadd.f32 0.0, %v5780
      %v5782 = vpop.f32.mrb[0].mxu0
      %5783 = vmatprep.mubr.bf16.mxu0 0
      %5784 = vmatmul.mubr.bf16.gmra.mrb[0].mxu0 %v5587
      %v5785 = vpop.f32.mrb[0].mxu0
      %v5786 = vadd.f32 0.0, %v5785
      %v5787 = vpop.f32.mrb[0].mxu0
      %v5788 = vpop.f32.mrb[0].mxu0
      %v5789 = vadd.f32 0.0, %v5788
      %v5790 = vpop.f32.mrb[0].mxu0
      %5791 = vmatprep.mubr.bf16.mxu0 0
      %5792 = vmatmul.mubr.bf16.gmra.mrb[0].mxu0 %v5588
      %v5793 = vpop.f32.mrb[0].mxu0
      %v5794 = vadd.f32 0.0, %v5793
      %v5795 = vpop.f32.mrb[0].mxu0
      %v5796 = vpop.f32.mrb[0].mxu0
      %v5797 = vadd.f32 0.0, %v5796
      %v5798 = vpop.f32.mrb[0].mxu0
      %5799 = vmatprep.mubr.bf16.mxu0 0
      %5800 = vmatmul.mubr.bf16.gmra.mrb[0].mxu0 %v5589
      %v5801 = vpop.f32.mrb[0].mxu0
      %v5802 = vadd.f32 0.0, %v5801
      %v5803 = vpop.f32.mrb[0].mxu0
      %v5804 = vpop.f32.mrb[0].mxu0
      %v5805 = vadd.f32 0.0, %v5804
      %v5806 = vpop.f32.mrb[0].mxu0
      %5807 = vmatprep.mubr.bf16.mxu0 0
      %5808 = vmatmul.mubr.bf16.gmra.mrb[0].mxu0 %v5590
      %v5809 = vpop.f32.mrb[0].mxu0
      %v5810 = vadd.f32 0.0, %v5809
      %v5811 = vpop.f32.mrb[0].mxu0
      %v5812 = vpop.f32.mrb[0].mxu0
      %v5813 = vadd.f32 0.0, %v5812
      %v5814 = vpop.f32.mrb[0].mxu0
      %5815 = vdwg.mxu0
      %v5816 = vadd.f32 %v5318, %v5690
      %v5817 = vadd.f32 %v5319, %v5693
      %v5818 = vadd.f32 %v5320, %v5698
      %v5819 = vadd.f32 %v5321, %v5701
      %v5820 = vadd.f32 %v5322, %v5706
      %v5821 = vadd.f32 %v5323, %v5709
      %v5822 = vadd.f32 %v5324, %v5714
      %v5823 = vadd.f32 %v5325, %v5717
      %v5824 = vadd.f32 %v5326, %v5722
      %v5825 = vadd.f32 %v5327, %v5725
      %v5826 = vadd.f32 %v5328, %v5730
      %v5827 = vadd.f32 %v5329, %v5733
      %v5828 = vadd.f32 %v5330, %v5738
      %v5829 = vadd.f32 %v5331, %v5741
      %v5830 = vadd.f32 %v5332, %v5746
      %v5831 = vadd.f32 %v5333, %v5749
      %v5832 = vadd.f32 %v5334, %v5754
      %v5833 = vadd.f32 %v5335, %v5757
      %v5834 = vadd.f32 %v5336, %v5762
      %v5835 = vadd.f32 %v5337, %v5765
      %v5836 = vadd.f32 %v5338, %v5770
      %v5837 = vadd.f32 %v5339, %v5773
      %v5838 = vadd.f32 %v5340, %v5778
      %v5839 = vadd.f32 %v5341, %v5781
      %v5840 = vadd.f32 %v5342, %v5786
      %v5841 = vadd.f32 %v5343, %v5789
      %v5842 = vadd.f32 %v5344, %v5794
      %v5843 = vadd.f32 %v5345, %v5797
      %v5844 = vadd.f32 %v5346, %v5802
      %v5845 = vadd.f32 %v5347, %v5805
      %v5846 = vadd.f32 %v5348, %v5810
      %v5847 = vadd.f32 %v5349, %v5813
      %v5848 = vpack.c.bf16 %v5817, %v5816
      %v5849 = vpack.c.bf16 %v5819, %v5818
      %v5850 = vpack.c.bf16 %v5821, %v5820
      %v5851 = vpack.c.bf16 %v5823, %v5822
      %v5852 = vpack.c.bf16 %v5825, %v5824
      %v5853 = vpack.c.bf16 %v5827, %v5826
      %v5854 = vpack.c.bf16 %v5829, %v5828
      %v5855 = vpack.c.bf16 %v5831, %v5830
      %v5856 = vpack.c.bf16 %v5833, %v5832
      %v5857 = vpack.c.bf16 %v5835, %v5834
      %v5858 = vpack.c.bf16 %v5837, %v5836
      %v5859 = vpack.c.bf16 %v5839, %v5838
      %v5860 = vpack.c.bf16 %v5841, %v5840
      %v5861 = vpack.c.bf16 %v5843, %v5842
      %v5862 = vpack.c.bf16 %v5845, %v5844
      %v5863 = vpack.c.bf16 %v5847, %v5846
      %v5880 = vunpack.c.l.b16 %v5848
      %v5881 = vunpack.c.h.b16 %v5848
      %v5882 = vunpack.c.l.b16 %v5849
      %v5883 = vunpack.c.h.b16 %v5849
      %v5884 = vunpack.c.l.b16 %v5850
      %v5885 = vunpack.c.h.b16 %v5850
      %v5886 = vunpack.c.l.b16 %v5851
      %v5887 = vunpack.c.h.b16 %v5851
      %v5888 = vunpack.c.l.b16 %v5852
      %v5889 = vunpack.c.h.b16 %v5852
      %v5890 = vunpack.c.l.b16 %v5853
      %v5891 = vunpack.c.h.b16 %v5853
      %v5892 = vunpack.c.l.b16 %v5854
      %v5893 = vunpack.c.h.b16 %v5854
      %v5894 = vunpack.c.l.b16 %v5855
      %v5895 = vunpack.c.h.b16 %v5855
      %v5896 = vunpack.c.l.b16 %v5856
      %v5897 = vunpack.c.h.b16 %v5856
      %v5898 = vunpack.c.l.b16 %v5857
      %v5899 = vunpack.c.h.b16 %v5857
      %v5900 = vunpack.c.l.b16 %v5858
      %v5901 = vunpack.c.h.b16 %v5858
      %v5902 = vunpack.c.l.b16 %v5859
      %v5903 = vunpack.c.h.b16 %v5859
      %v5904 = vunpack.c.l.b16 %v5860
      %v5905 = vunpack.c.h.b16 %v5860
      %v5906 = vunpack.c.l.b16 %v5861
      %v5907 = vunpack.c.h.b16 %v5861
      %v5908 = vunpack.c.l.b16 %v5862
      %v5909 = vunpack.c.h.b16 %v5862
      %v5910 = vunpack.c.l.b16 %v5863
      %v5911 = vunpack.c.h.b16 %v5863
      %v5912 = vpack.c.b16 %v5880, %v5880
      %v5913 = vpack.c.b16 %v5881, %v5881
      %v5914 = vpack.c.b16 %v5882, %v5882
      %v5915 = vpack.c.b16 %v5883, %v5883
      %v5916 = vpack.c.b16 %v5884, %v5884
      %v5917 = vpack.c.b16 %v5885, %v5885
      %v5918 = vpack.c.b16 %v5886, %v5886
      %v5919 = vpack.c.b16 %v5887, %v5887
      %v5920 = vpack.c.b16 %v5888, %v5888
      %v5921 = vpack.c.b16 %v5889, %v5889
      %v5922 = vpack.c.b16 %v5890, %v5890
      %v5923 = vpack.c.b16 %v5891, %v5891
      %v5924 = vpack.c.b16 %v5892, %v5892
      %v5925 = vpack.c.b16 %v5893, %v5893
      %v5926 = vpack.c.b16 %v5894, %v5894
      %v5927 = vpack.c.b16 %v5895, %v5895
      %v5928 = vpack.c.b16 %v5896, %v5896
      %v5929 = vpack.c.b16 %v5897, %v5897
      %v5930 = vpack.c.b16 %v5898, %v5898
      %v5931 = vpack.c.b16 %v5899, %v5899
      %v5932 = vpack.c.b16 %v5900, %v5900
      %v5933 = vpack.c.b16 %v5901, %v5901
      %v5934 = vpack.c.b16 %v5902, %v5902
      %v5935 = vpack.c.b16 %v5903, %v5903
      %v5936 = vpack.c.b16 %v5904, %v5904
      %v5937 = vpack.c.b16 %v5905, %v5905
      %v5938 = vpack.c.b16 %v5906, %v5906
      %v5939 = vpack.c.b16 %v5907, %v5907
      %v5940 = vpack.c.b16 %v5908, %v5908
      %v5941 = vpack.c.b16 %v5909, %v5909
      %v5942 = vpack.c.b16 %v5910, %v5910
      %v5943 = vpack.c.b16 %v5911, %v5911
      %5976 = vst [vmem:[%s264] sm:$0xf] %v5912
      %5977 = vst [vmem:[%s264 + $0x4] sm:$0xf] %v5913
      %5978 = vst [vmem:[%s264 + $0x8] sm:$0xf] %v5914
      %5979 = vst [vmem:[%s264 + $0xc] sm:$0xf] %v5915
      %5980 = vst [vmem:[%s264 + $0x10] sm:$0xf] %v5916
      %5981 = vst [vmem:[%s264 + $0x14] sm:$0xf] %v5917
      %5982 = vst [vmem:[%s264 + $0x18] sm:$0xf] %v5918
      %5983 = vst [vmem:[%s264 + $0x1c] sm:$0xf] %v5919
      %5984 = vst [vmem:[%s264 + $0x20] sm:$0xf] %v5920
      %5985 = vst [vmem:[%s264 + $0x24] sm:$0xf] %v5921
      %5986 = vst [vmem:[%s264 + $0x28] sm:$0xf] %v5922
      %5987 = vst [vmem:[%s264 + $0x2c] sm:$0xf] %v5923
      %5988 = vst [vmem:[%s264 + $0x30] sm:$0xf] %v5924
      %5989 = vst [vmem:[%s264 + $0x34] sm:$0xf] %v5925
      %5990 = vst [vmem:[%s264 + $0x38] sm:$0xf] %v5926
      %5991 = vst [vmem:[%s264 + $0x3c] sm:$0xf] %v5927
      %5992 = vst [vmem:[%s264 + $0x40] sm:$0xf] %v5928
      %5993 = vst [vmem:[%s264 + $0x44] sm:$0xf] %v5929
      %5994 = vst [vmem:[%s264 + $0x48] sm:$0xf] %v5930
      %5995 = vst [vmem:[%s264 + $0x4c] sm:$0xf] %v5931
      %5996 = vst [vmem:[%s264 + $0x50] sm:$0xf] %v5932
      %5997 = vst [vmem:[%s264 + $0x54] sm:$0xf] %v5933
      %5998 = vst [vmem:[%s264 + $0x58] sm:$0xf] %v5934
      %5999 = vst [vmem:[%s264 + $0x5c] sm:$0xf] %v5935
      %6000 = vst [vmem:[%s264 + $0x60] sm:$0xf] %v5936
      %6001 = vst [vmem:[%s264 + $0x64] sm:$0xf] %v5937
      %6002 = vst [vmem:[%s264 + $0x68] sm:$0xf] %v5938
      %6003 = vst [vmem:[%s264 + $0x6c] sm:$0xf] %v5939
      %6004 = vst [vmem:[%s264 + $0x70] sm:$0xf] %v5940
      %6005 = vst [vmem:[%s264 + $0x74] sm:$0xf] %v5941
      %6006 = vst [vmem:[%s264 + $0x78] sm:$0xf] %v5942
      %6007 = vst [vmem:[%s264 + $0x7c] sm:$0xf] %v5943
      %v6008 = vadd.f32 %v5816, %v5817
      %v6009 = vadd.f32 %v6008, %v5818
      %v6010 = vadd.f32 %v6009, %v5819
      %v6011 = vadd.f32 %v6010, %v5820
      %v6012 = vadd.f32 %v6011, %v5821
      %v6013 = vadd.f32 %v6012, %v5822
      %v6014 = vadd.f32 %v6013, %v5823
      %v6015 = vadd.f32 %v6014, %v5824
      %v6016 = vadd.f32 %v6015, %v5825
      %v6017 = vadd.f32 %v6016, %v5826
      %v6018 = vadd.f32 %v6017, %v5827
      %v6019 = vadd.f32 %v6018, %v5828
      %v6020 = vadd.f32 %v6019, %v5829
      %v6021 = vadd.f32 %v6020, %v5830
      %v6022 = vadd.f32 %v6021, %v5831
      %v6023 = vadd.f32 %v6022, %v5832
      %v6024 = vadd.f32 %v6023, %v5833
      %v6025 = vadd.f32 %v6024, %v5834
      %v6026 = vadd.f32 %v6025, %v5835
      %v6027 = vadd.f32 %v6026, %v5836
      %v6028 = vadd.f32 %v6027, %v5837
      %v6029 = vadd.f32 %v6028, %v5838
      %v6030 = vadd.f32 %v6029, %v5839
      %v6031 = vadd.f32 %v6030, %v5840
      %v6032 = vadd.f32 %v6031, %v5841
      %v6033 = vadd.f32 %v6032, %v5842
      %v6034 = vadd.f32 %v6033, %v5843
      %v6035 = vadd.f32 %v6034, %v5844
      %v6036 = vadd.f32 %v6035, %v5845
      %v6037 = vadd.f32 %v6036, %v5846
      %v6038 = vadd.f32 %v6037, %v5847
      %v6039 = vrot.slane %v6038, 4
      %v6040 = vadd.f32 %v6038, %v6039
      %v6041 = vrot.slane %v6040, 2
      %v6042 = vadd.f32 %v6040, %v6041
      %v6043 = vrot.slane %v6042, 1
      %v6044 = vadd.f32 %v6042, %v6043
      %v6045 = vmul.f32 %v5816, %v5816
      %v6046 = vmul.f32 %v5817, %v5817
      %v6047 = vmul.f32 %v5818, %v5818
      %v6048 = vmul.f32 %v5819, %v5819
      %v6049 = vmul.f32 %v5820, %v5820
      %v6050 = vmul.f32 %v5821, %v5821
      %v6051 = vmul.f32 %v5822, %v5822
      %v6052 = vmul.f32 %v5823, %v5823
      %v6053 = vmul.f32 %v5824, %v5824
      %v6054 = vmul.f32 %v5825, %v5825
      %v6055 = vmul.f32 %v5826, %v5826
      %v6056 = vmul.f32 %v5827, %v5827
      %v6057 = vmul.f32 %v5828, %v5828
      %v6058 = vmul.f32 %v5829, %v5829
      %v6059 = vmul.f32 %v5830, %v5830
      %v6060 = vmul.f32 %v5831, %v5831
      %v6061 = vmul.f32 %v5832, %v5832
      %v6062 = vmul.f32 %v5833, %v5833
      %v6063 = vmul.f32 %v5834, %v5834
      %v6064 = vmul.f32 %v5835, %v5835
      %v6065 = vmul.f32 %v5836, %v5836
      %v6066 = vmul.f32 %v5837, %v5837
      %v6067 = vmul.f32 %v5838, %v5838
      %v6068 = vmul.f32 %v5839, %v5839
      %v6069 = vmul.f32 %v5840, %v5840
      %v6070 = vmul.f32 %v5841, %v5841
      %v6071 = vmul.f32 %v5842, %v5842
      %v6072 = vmul.f32 %v5843, %v5843
      %v6073 = vmul.f32 %v5844, %v5844
      %v6074 = vmul.f32 %v5845, %v5845
      %v6075 = vmul.f32 %v5846, %v5846
      %v6076 = vmul.f32 %v5847, %v5847
      %v6077 = vadd.f32 %v6045, %v6046
      %v6078 = vadd.f32 %v6077, %v6047
      %v6079 = vadd.f32 %v6078, %v6048
      %v6080 = vadd.f32 %v6079, %v6049
      %v6081 = vadd.f32 %v6080, %v6050
      %v6082 = vadd.f32 %v6081, %v6051
      %v6083 = vadd.f32 %v6082, %v6052
      %v6084 = vadd.f32 %v6083, %v6053
      %v6085 = vadd.f32 %v6084, %v6054
      %v6086 = vadd.f32 %v6085, %v6055
      %v6087 = vadd.f32 %v6086, %v6056
      %v6088 = vadd.f32 %v6087, %v6057
      %v6089 = vadd.f32 %v6088, %v6058
      %v6090 = vadd.f32 %v6089, %v6059
      %v6091 = vadd.f32 %v6090, %v6060
      %v6092 = vadd.f32 %v6091, %v6061
      %v6093 = vadd.f32 %v6092, %v6062
      %v6094 = vadd.f32 %v6093, %v6063
      %v6095 = vadd.f32 %v6094, %v6064
      %v6096 = vadd.f32 %v6095, %v6065
      %v6097 = vadd.f32 %v6096, %v6066
      %v6098 = vadd.f32 %v6097, %v6067
      %v6099 = vadd.f32 %v6098, %v6068
      %v6100 = vadd.f32 %v6099, %v6069
      %v6101 = vadd.f32 %v6100, %v6070
      %v6102 = vadd.f32 %v6101, %v6071
      %v6103 = vadd.f32 %v6102, %v6072
      %v6104 = vadd.f32 %v6103, %v6073
      %v6105 = vadd.f32 %v6104, %v6074
      %v6106 = vadd.f32 %v6105, %v6075
      %v6107 = vadd.f32 %v6106, %v6076
      %v6108 = vrot.slane %v6107, 4
      %v6109 = vadd.f32 %v6107, %v6108
      %v6110 = vrot.slane %v6109, 2
      %v6111 = vadd.f32 %v6109, %v6110
      %v6112 = vrot.slane %v6111, 1
      %v6113 = vadd.f32 %v6111, %v6112
      %6114 = vst [vmem:[%s269] sm:$0xff] %v6044
      %6115 = vst [vmem:[%s273] sm:$0xff] %v6113
      %s6116 = smul.u32 32, %s18
      %p6117 = scmp.lt.s32.totalorder %s6116, 63
      %s6118 = scalar_select %p6117, %s6116, 63
      %s6119 = smul.addr %s6118, 4
      %s6120 = scalar_lea.vmem %s4, %s6119
      %p6121 = scmp.lt.s32.totalorder %s18, 1
      %s6122 = scalar_select %p6121, %s18, 1
      %s6123 = smul.addr %s6122, 8
      %s6124 = scalar_lea.vmem %s5, %s6123
      %p6125 = scmp.lt.s32.totalorder %s18, 1
      %s6126 = scalar_select %p6125, %s18, 1
      %s6127 = smul.addr %s6126, 8
      %s6128 = scalar_lea.vmem %s6, %s6127
      // Predicated region
      $region37: #{residual_block_forward.4} parent=35 // pred_check
        %p6129 = pneg %p125
      $region38: #{residual_block_forward.4} parent=35 // pred_check_branch
        %6131 = sbr.rel (%p6129) target = $region40
      $region39: #{residual_block_forward.4} parent=35 // pred_region
        %s6132 = smul.u32 32, %s18
      $region40: #{residual_block_forward.4} parent=35 // pred_fallthru
        _
      // Predicated region
      $region41: #{residual_block_forward.4} parent=35 // pred_check
        %p6133 = pneg %p151
      $region42: #{residual_block_forward.4} parent=35 // pred_check_branch
        %6135 = sbr.rel (%p6133) target = $region44
      $region43: #{residual_block_forward.4} parent=35 // pred_region
        _
      $region44: #{residual_block_forward.4} parent=35 // pred_fallthru
        _
      // Predicated region
      $region45: #{residual_block_forward.4} parent=35 // pred_check
        %p6136 = pneg %p177
      $region46: #{residual_block_forward.4} parent=35 // pred_check_branch
        %6138 = sbr.rel (%p6136) target = $region48
      $region47: #{residual_block_forward.4} parent=35 // pred_region
        _
      $region48: #{residual_block_forward.4} parent=35 // pred_fallthru
        _
    $region36: #{residual_block_forward.4} parent=5 // pred_fallthru
      _
    %p6139 = scmp.le.s32.totalorder 2, %s13
    // Predicated region
    $region49: #{residual_block_forward.4} parent=5 // pred_check
      %p6140 = pneg %p6139
    $region50: #{residual_block_forward.4} parent=5 // pred_check_branch
      %6142 = sbr.rel (%p6140) target = $region52
    $region51: #{residual_block_forward.4} parent=5 // pred_region
      %s6143 = ssub.s32 %s13, 2
      // Predicated region
      $region53: #{residual_block_forward.4} parent=51 // pred_check
        %p6144 = pneg %p131
      $region54: #{residual_block_forward.4} parent=51 // pred_check_branch
        %6146 = sbr.rel (%p6144) target = $region56
      $region55: #{residual_block_forward.4} parent=51 // pred_region
        %s6147 = smul.u32 32, %s19
        %p6148 = scmp.lt.s32.totalorder %s6147, 63
        %s6149 = scalar_select %p6148, %s6147, 63
        %s6150 = smul.addr %s6149, 4
        %s6151 = scalar_lea.vmem %s4, %s6150
      $region56: #{residual_block_forward.4} parent=51 // pred_fallthru
        _
      // Predicated region
      $region57: #{residual_block_forward.4} parent=51 // pred_check
        %p6152 = pneg %p157
      $region58: #{residual_block_forward.4} parent=51 // pred_check_branch
        %6154 = sbr.rel (%p6152) target = $region60
      $region59: #{residual_block_forward.4} parent=51 // pred_region
        %p6155 = scmp.lt.s32.totalorder %s19, 1
        %s6156 = scalar_select %p6155, %s19, 1
        %s6157 = smul.addr %s6156, 8
        %s6158 = scalar_lea.vmem %s5, %s6157
      $region60: #{residual_block_forward.4} parent=51 // pred_fallthru
        _
      // Predicated region
      $region61: #{residual_block_forward.4} parent=51 // pred_check
        %p6159 = pneg %p183
      $region62: #{residual_block_forward.4} parent=51 // pred_check_branch
        %6161 = sbr.rel (%p6159) target = $region64
      $region63: #{residual_block_forward.4} parent=51 // pred_region
        %p6162 = scmp.lt.s32.totalorder %s19, 1
        %s6163 = scalar_select %p6162, %s19, 1
        %s6164 = smul.addr %s6163, 8
        %s6165 = scalar_lea.vmem %s6, %s6164
      $region64: #{residual_block_forward.4} parent=51 // pred_fallthru
        _
    $region52: #{residual_block_forward.4} parent=5 // pred_fallthru
      _
  $region6: #{residual_block_forward.4} parent=0 // loop_footer
    %s17 = sadd.s32 1, %s13
  $region7: #{residual_block_forward.4} parent=0 // loop_footer_branch
    %12 = sbr.rel target = $region3
  $region8: #{residual_block_forward.4} parent=0 // loop_exit
    _

</llo_original>
